<compile_context>
chip_gen: v5e
topology: v5e:2x2
jax: 0.10.0
libtpu: 0.0.40
codegen_flags: <defaults>
</compile_context>

<pallas_src>
import jax
import jax.numpy as jnp
from jax.experimental import pallas as pl
from jax.experimental.pallas import tpu as pltpu

# Layer widths of Model7: 28 -> 32 -> 64 -> 128 -> 256 -> 512 -> 1024 -> 64 -> 1
DIMS = [28, 32, 64, 128, 256, 512, 1024, 64, 1]

_MIN_TILE = 256  # never shrink per-grid-step tiles below this many rows


def _cdiv(a, b):
    return -(-a // b)


def _round_up(n, m):
    return ((n + m - 1) // m) * m


def _choose_tile(B, tile_b, min_steps):
    """Batch-tile size: multiple of 8, <= tile_b, and (when the batch is big
    enough that each step still gets >= _MIN_TILE rows) small enough that the
    grid has at least `min_steps` steps -- keeps both v7x TensorCores busy."""
    B8 = _round_up(B, 8)
    tb = min(tile_b, B8)
    if min_steps > 1 and B8 >= min_steps * _MIN_TILE:
        n = max(min_steps, _cdiv(B8, tile_b))
        tb = min(tb, _round_up(_cdiv(B8, n), 8))
    return tb


def _mlp_kernel(x_ref,
                w1, b1, w2, b2, w3, b3, w4, b4,
                w5, b5, w6, b6, w7, b7, w8, b8,
                o_ref):
    h = x_ref[...].astype(jnp.float32)

    def lin(h, w_ref, b_ref):
        w = w_ref[...]
        # All weights are bf16 (native MXU input dtype); activations are cast
        # to the weight dtype right before the dot, accumulation stays f32.
        return jnp.dot(h.astype(w.dtype), w,
                       preferred_element_type=jnp.float32) + b_ref[...]

    # fc1 .. fc7 with ReLU
    h = jnp.maximum(lin(h, w1, b1), 0.0)
    h = jnp.maximum(lin(h, w2, b2), 0.0)
    h = jnp.maximum(lin(h, w3, b3), 0.0)
    h = jnp.maximum(lin(h, w4, b4), 0.0)
    h = jnp.maximum(lin(h, w5, b5), 0.0)
    h = jnp.maximum(lin(h, w6, b6), 0.0)
    h = jnp.maximum(lin(h, w7, b7), 0.0)

    # fc8 (64 -> 1): a [tb,64] x [64,1] matmul would use a single MXU column,
    # so do it as a VPU multiply + XLU lane reduction.  w8 arrives as [1,64].
    z = jnp.sum(h * w8[...].astype(jnp.float32), axis=-1,
                keepdims=True) + b8[...]

    # Numerically stable sigmoid: exp argument <= 0 so it never overflows;
    # exp runs on the EUP, denominator uses the approximate EUP reciprocal.
    e = jnp.exp(-jnp.abs(z))
    r = pl.reciprocal(1.0 + e, approx=True)
    o_ref[...] = jnp.where(z >= 0.0, r, e * r).astype(o_ref.dtype)

    # NOTE: o_ref is a [tb, 1] column (lane width 1 -> ~tb/8 masked stores per
    # step).  Emitting a lane-dense [1, tb] row instead would require a
    # sublane->lane relayout of the logits that costs about as much as the
    # masked stores it removes for this tiny (tb x 1) output, so the column
    # layout is kept.


def model7_forward(x, params, *, tile_b=512, min_steps=2):
    """x: [B, 28] float32; params: list of (W [in,out], b [1,out]).

    tile_b:    max rows per grid step (512-1024 amortizes the ~0.35 us
               per-step pipeline overhead; VMEM stays well under 32 MiB).
    min_steps: minimum grid length when the batch is large enough; 2 keeps
               both v7x TensorCores fed (set to 1 on single-TC v5e/v6e when
               the batch only just exceeds one tile).
    """
    B, F_in = x.shape
    assert F_in == DIMS[0]

    tb = _choose_tile(B, tile_b, min_steps)
    num_tiles = _cdiv(B, tb)
    B_pad = num_tiles * tb  # output rows are padded so output writes never go OOB

    in_specs = [pl.BlockSpec((tb, DIMS[0]), lambda i: (i, 0))]
    flat_params = []
    for li, (w, b) in enumerate(params):
        if li == len(params) - 1:
            # fc8 weight is a [64,1] column; present it lane-dense as [1,64].
            w = w.reshape(1, DIMS[-2])
        # Constant index_map: each weight/bias block is DMA'd once and stays
        # VMEM-resident across all grid steps.
        in_specs.append(pl.BlockSpec(w.shape, lambda i: (0, 0)))
        in_specs.append(pl.BlockSpec(b.shape, lambda i: (0, 0)))
        flat_params.extend([w, b])

    out_spec = pl.BlockSpec((tb, DIMS[-1]), lambda i: (i, 0))

    out = pl.pallas_call(
        _mlp_kernel,
        out_shape=jax.ShapeDtypeStruct((B_pad, DIMS[-1]), jnp.float32),
        grid_spec=pltpu.PrefetchScalarGridSpec(
            num_scalar_prefetch=0,
            grid=(num_tiles,),
            in_specs=in_specs,
            out_specs=out_spec,
        ),
        compiler_params=pltpu.CompilerParams(
            dimension_semantics=("parallel",),  # shard tiles across v7x's 2 TCs
            vmem_limit_bytes=32 << 20,
        ),
    )(x, *flat_params)

    return out[:B] if B_pad != B else out


def init_params(key):
    """PyTorch-style (Kaiming-uniform-ish) init; all weights stored in bf16."""
    params = []
    for i in range(len(DIMS) - 1):
        fan_in, fan_out = DIMS[i], DIMS[i + 1]
        key, kw, kb = jax.random.split(key, 3)
        bound = 1.0 / (fan_in ** 0.5)
        w = jax.random.uniform(kw, (fan_in, fan_out), jnp.float32, -bound, bound)
        b = jax.random.uniform(kb, (1, fan_out), jnp.float32, -bound, bound)
        params.append((w.astype(jnp.bfloat16), b))
    return params


def reference_forward(x, params):
    """Pure-JAX reference with the same weight dtypes / accumulation rules."""
    h = x.astype(jnp.float32)
    for i, (w, b) in enumerate(params):
        h = jnp.dot(h.astype(w.dtype), w,
                    preferred_element_type=jnp.float32) + b
        if i < len(params) - 1:
            h = jnp.maximum(h, 0.0)
        else:
            h = jax.nn.sigmoid(h)
    return h


def _check(out, ref, name, tol=2e-3):
    err = float(jnp.max(jnp.abs(out - ref)))
    assert err < tol, f"max err ({name}): {err}"


if __name__ == "__main__":
    key = jax.random.PRNGKey(0)
    params = init_params(key)

    # Case 1: batched inference — B=512 now splits into 2 tiles of 256 rows
    # so both v7x TensorCores get a step.
    key, kx = jax.random.split(key)
    B_big = 512
    x_big = jax.random.normal(kx, (B_big, DIMS[0]), jnp.float32)
    out_big = jax.block_until_ready(model7_forward(x_big, params))
    assert out_big.shape == (B_big, 1), out_big.shape
    _check(out_big, reference_forward(x_big, params), f"B={B_big}")

    # Case 2: small batch — tile clamps to 8 rows, grid of 1.
    key, kx = jax.random.split(key)
    B_small = 8
    x_small = jax.random.normal(kx, (B_small, DIMS[0]), jnp.float32)
    out_small = jax.block_until_ready(model7_forward(x_small, params))
    assert out_small.shape == (B_small, 1), out_small.shape
    _check(out_small, reference_forward(x_small, params), f"B={B_small}")

    # Case 3: ragged batch (not a multiple of the tile) — exercises the
    # pad-free path: 2 tiles of 304 rows, last input block partially OOB,
    # padded output rows sliced off in the wrapper.
    key, kx = jax.random.split(key)
    B_rag = 600
    x_rag = jax.random.normal(kx, (B_rag, DIMS[0]), jnp.float32)
    out_rag = jax.block_until_ready(model7_forward(x_rag, params))
    assert out_rag.shape == (B_rag, 1), out_rag.shape
    _check(out_rag, reference_forward(x_rag, params), f"B={B_rag}")

    print("KERNEL_OK")
</pallas_src>

<mosaic_0001>
module attributes {stable_mosaic.version = 11 : i64} {
  func.func @_mlp_kernel(%arg0: i32, %arg1: memref<256x28xf32, #tpu.memory_space<vmem>>, %arg2: memref<28x32xbf16, #tpu.memory_space<vmem>>, %arg3: memref<1x32xf32, #tpu.memory_space<vmem>>, %arg4: memref<32x64xbf16, #tpu.memory_space<vmem>>, %arg5: memref<1x64xf32, #tpu.memory_space<vmem>>, %arg6: memref<64x128xbf16, #tpu.memory_space<vmem>>, %arg7: memref<1x128xf32, #tpu.memory_space<vmem>>, %arg8: memref<128x256xbf16, #tpu.memory_space<vmem>>, %arg9: memref<1x256xf32, #tpu.memory_space<vmem>>, %arg10: memref<256x512xbf16, #tpu.memory_space<vmem>>, %arg11: memref<1x512xf32, #tpu.memory_space<vmem>>, %arg12: memref<512x1024xbf16, #tpu.memory_space<vmem>>, %arg13: memref<1x1024xf32, #tpu.memory_space<vmem>>, %arg14: memref<1024x64xbf16, #tpu.memory_space<vmem>>, %arg15: memref<1x64xf32, #tpu.memory_space<vmem>>, %arg16: memref<1x64xbf16, #tpu.memory_space<vmem>>, %arg17: memref<1x1xf32, #tpu.memory_space<vmem>>, %arg18: memref<256x1xf32, #tpu.memory_space<vmem>>) attributes {dimension_semantics = [#tpu.dimension_semantics<parallel>], iteration_bounds = array<i64: 2>, scalar_prefetch = 0 : i64, scratch_operands = 0 : i64, tpu.core_type = #tpu.core_type<tc>, window_params = [{transform_indices = @transform_0, window_bounds = array<i64: 256, 28>}, {pipeline_mode = #tpu.pipeline_mode<synchronous>, transform_indices = @transform_1, window_bounds = array<i64: 28, 32>}, {pipeline_mode = #tpu.pipeline_mode<synchronous>, transform_indices = @transform_2, window_bounds = array<i64: 1, 32>}, {pipeline_mode = #tpu.pipeline_mode<synchronous>, transform_indices = @transform_3, window_bounds = array<i64: 32, 64>}, {pipeline_mode = #tpu.pipeline_mode<synchronous>, transform_indices = @transform_4, window_bounds = array<i64: 1, 64>}, {pipeline_mode = #tpu.pipeline_mode<synchronous>, transform_indices = @transform_5, window_bounds = array<i64: 64, 128>}, {pipeline_mode = #tpu.pipeline_mode<synchronous>, transform_indices = @transform_6, window_bounds = array<i64: 1, 128>}, {pipeline_mode = #tpu.pipeline_mode<synchronous>, transform_indices = @transform_7, window_bounds = array<i64: 128, 256>}, {pipeline_mode = #tpu.pipeline_mode<synchronous>, transform_indices = @transform_8, window_bounds = array<i64: 1, 256>}, {pipeline_mode = #tpu.pipeline_mode<synchronous>, transform_indices = @transform_9, window_bounds = array<i64: 256, 512>}, {pipeline_mode = #tpu.pipeline_mode<synchronous>, transform_indices = @transform_10, window_bounds = array<i64: 1, 512>}, {pipeline_mode = #tpu.pipeline_mode<synchronous>, transform_indices = @transform_11, window_bounds = array<i64: 512, 1024>}, {pipeline_mode = #tpu.pipeline_mode<synchronous>, transform_indices = @transform_12, window_bounds = array<i64: 1, 1024>}, {pipeline_mode = #tpu.pipeline_mode<synchronous>, transform_indices = @transform_13, window_bounds = array<i64: 1024, 64>}, {pipeline_mode = #tpu.pipeline_mode<synchronous>, transform_indices = @transform_14, window_bounds = array<i64: 1, 64>}, {pipeline_mode = #tpu.pipeline_mode<synchronous>, transform_indices = @transform_15, window_bounds = array<i64: 1, 64>}, {pipeline_mode = #tpu.pipeline_mode<synchronous>, transform_indices = @transform_16, window_bounds = array<i64: 1, 1>}, {transform_indices = @transform_17, window_bounds = array<i64: 256, 1>}]} {
    %c0 = arith.constant 0 : index
    %c0_0 = arith.constant 0 : index
    %0 = vector.load %arg1[%c0, %c0_0] : memref<256x28xf32, #tpu.memory_space<vmem>>, vector<256x28xf32>
    %c0_1 = arith.constant 0 : index
    %c0_2 = arith.constant 0 : index
    %1 = vector.load %arg2[%c0_1, %c0_2] : memref<28x32xbf16, #tpu.memory_space<vmem>>, vector<28x32xbf16>
    %2 = arith.truncf %0 : vector<256x28xf32> to vector<256x28xbf16>
    %cst = arith.constant dense<0.000000e+00> : vector<256x32xf32>
    %3 = tpu.matmul %2, %1, %cst {dimension_numbers = #tpu.dot_dimension_numbers<[1], [0], [0], [1], [0, 0, 1, 1], [], []>} : vector<256x28xbf16>, vector<28x32xbf16>, vector<256x32xf32> -> vector<256x32xf32>
    %c0_3 = arith.constant 0 : index
    %c0_4 = arith.constant 0 : index
    %4 = vector.load %arg3[%c0_3, %c0_4] : memref<1x32xf32, #tpu.memory_space<vmem>>, vector<1x32xf32>
    %5 = vector.broadcast %4 : vector<1x32xf32> to vector<256x32xf32>
    %6 = arith.addf %3, %5 : vector<256x32xf32>
    %cst_5 = arith.constant 0.000000e+00 : f32
    %7 = vector.broadcast %cst_5 : f32 to vector<256x32xf32>
    %8 = arith.maximumf %6, %7 : vector<256x32xf32>
    %c0_6 = arith.constant 0 : index
    %c0_7 = arith.constant 0 : index
    %9 = vector.load %arg4[%c0_6, %c0_7] : memref<32x64xbf16, #tpu.memory_space<vmem>>, vector<32x64xbf16>
    %10 = arith.truncf %8 : vector<256x32xf32> to vector<256x32xbf16>
    %cst_8 = arith.constant dense<0.000000e+00> : vector<256x64xf32>
    %11 = tpu.matmul %10, %9, %cst_8 {dimension_numbers = #tpu.dot_dimension_numbers<[1], [0], [0], [1], [0, 0, 1, 1], [], []>} : vector<256x32xbf16>, vector<32x64xbf16>, vector<256x64xf32> -> vector<256x64xf32>
    %c0_9 = arith.constant 0 : index
    %c0_10 = arith.constant 0 : index
    %12 = vector.load %arg5[%c0_9, %c0_10] : memref<1x64xf32, #tpu.memory_space<vmem>>, vector<1x64xf32>
    %13 = vector.broadcast %12 : vector<1x64xf32> to vector<256x64xf32>
    %14 = arith.addf %11, %13 : vector<256x64xf32>
    %cst_11 = arith.constant 0.000000e+00 : f32
    %15 = vector.broadcast %cst_11 : f32 to vector<256x64xf32>
    %16 = arith.maximumf %14, %15 : vector<256x64xf32>
    %c0_12 = arith.constant 0 : index
    %c0_13 = arith.constant 0 : index
    %17 = vector.load %arg6[%c0_12, %c0_13] : memref<64x128xbf16, #tpu.memory_space<vmem>>, vector<64x128xbf16>
    %18 = arith.truncf %16 : vector<256x64xf32> to vector<256x64xbf16>
    %cst_14 = arith.constant dense<0.000000e+00> : vector<256x128xf32>
    %19 = tpu.matmul %18, %17, %cst_14 {dimension_numbers = #tpu.dot_dimension_numbers<[1], [0], [0], [1], [0, 0, 1, 1], [], []>} : vector<256x64xbf16>, vector<64x128xbf16>, vector<256x128xf32> -> vector<256x128xf32>
    %c0_15 = arith.constant 0 : index
    %c0_16 = arith.constant 0 : index
    %20 = vector.load %arg7[%c0_15, %c0_16] : memref<1x128xf32, #tpu.memory_space<vmem>>, vector<1x128xf32>
    %21 = vector.broadcast %20 : vector<1x128xf32> to vector<256x128xf32>
    %22 = arith.addf %19, %21 : vector<256x128xf32>
    %cst_17 = arith.constant 0.000000e+00 : f32
    %23 = vector.broadcast %cst_17 : f32 to vector<256x128xf32>
    %24 = arith.maximumf %22, %23 : vector<256x128xf32>
    %c0_18 = arith.constant 0 : index
    %c0_19 = arith.constant 0 : index
    %25 = vector.load %arg8[%c0_18, %c0_19] : memref<128x256xbf16, #tpu.memory_space<vmem>>, vector<128x256xbf16>
    %26 = arith.truncf %24 : vector<256x128xf32> to vector<256x128xbf16>
    %cst_20 = arith.constant dense<0.000000e+00> : vector<256x256xf32>
    %27 = tpu.matmul %26, %25, %cst_20 {dimension_numbers = #tpu.dot_dimension_numbers<[1], [0], [0], [1], [0, 0, 1, 1], [], []>} : vector<256x128xbf16>, vector<128x256xbf16>, vector<256x256xf32> -> vector<256x256xf32>
    %c0_21 = arith.constant 0 : index
    %c0_22 = arith.constant 0 : index
    %28 = vector.load %arg9[%c0_21, %c0_22] : memref<1x256xf32, #tpu.memory_space<vmem>>, vector<1x256xf32>
    %29 = vector.broadcast %28 : vector<1x256xf32> to vector<256x256xf32>
    %30 = arith.addf %27, %29 : vector<256x256xf32>
    %cst_23 = arith.constant 0.000000e+00 : f32
    %31 = vector.broadcast %cst_23 : f32 to vector<256x256xf32>
    %32 = arith.maximumf %30, %31 : vector<256x256xf32>
    %c0_24 = arith.constant 0 : index
    %c0_25 = arith.constant 0 : index
    %33 = vector.load %arg10[%c0_24, %c0_25] : memref<256x512xbf16, #tpu.memory_space<vmem>>, vector<256x512xbf16>
    %34 = arith.truncf %32 : vector<256x256xf32> to vector<256x256xbf16>
    %cst_26 = arith.constant dense<0.000000e+00> : vector<256x512xf32>
    %35 = tpu.matmul %34, %33, %cst_26 {dimension_numbers = #tpu.dot_dimension_numbers<[1], [0], [0], [1], [0, 0, 1, 1], [], []>} : vector<256x256xbf16>, vector<256x512xbf16>, vector<256x512xf32> -> vector<256x512xf32>
    %c0_27 = arith.constant 0 : index
    %c0_28 = arith.constant 0 : index
    %36 = vector.load %arg11[%c0_27, %c0_28] : memref<1x512xf32, #tpu.memory_space<vmem>>, vector<1x512xf32>
    %37 = vector.broadcast %36 : vector<1x512xf32> to vector<256x512xf32>
    %38 = arith.addf %35, %37 : vector<256x512xf32>
    %cst_29 = arith.constant 0.000000e+00 : f32
    %39 = vector.broadcast %cst_29 : f32 to vector<256x512xf32>
    %40 = arith.maximumf %38, %39 : vector<256x512xf32>
    %c0_30 = arith.constant 0 : index
    %c0_31 = arith.constant 0 : index
    %41 = vector.load %arg12[%c0_30, %c0_31] : memref<512x1024xbf16, #tpu.memory_space<vmem>>, vector<512x1024xbf16>
    %42 = arith.truncf %40 : vector<256x512xf32> to vector<256x512xbf16>
    %cst_32 = arith.constant dense<0.000000e+00> : vector<256x1024xf32>
    %43 = tpu.matmul %42, %41, %cst_32 {dimension_numbers = #tpu.dot_dimension_numbers<[1], [0], [0], [1], [0, 0, 1, 1], [], []>} : vector<256x512xbf16>, vector<512x1024xbf16>, vector<256x1024xf32> -> vector<256x1024xf32>
    %c0_33 = arith.constant 0 : index
    %c0_34 = arith.constant 0 : index
    %44 = vector.load %arg13[%c0_33, %c0_34] : memref<1x1024xf32, #tpu.memory_space<vmem>>, vector<1x1024xf32>
    %45 = vector.broadcast %44 : vector<1x1024xf32> to vector<256x1024xf32>
    %46 = arith.addf %43, %45 : vector<256x1024xf32>
    %cst_35 = arith.constant 0.000000e+00 : f32
    %47 = vector.broadcast %cst_35 : f32 to vector<256x1024xf32>
    %48 = arith.maximumf %46, %47 : vector<256x1024xf32>
    %c0_36 = arith.constant 0 : index
    %c0_37 = arith.constant 0 : index
    %49 = vector.load %arg14[%c0_36, %c0_37] : memref<1024x64xbf16, #tpu.memory_space<vmem>>, vector<1024x64xbf16>
    %50 = arith.truncf %48 : vector<256x1024xf32> to vector<256x1024xbf16>
    %cst_38 = arith.constant dense<0.000000e+00> : vector<256x64xf32>
    %51 = tpu.matmul %50, %49, %cst_38 {dimension_numbers = #tpu.dot_dimension_numbers<[1], [0], [0], [1], [0, 0, 1, 1], [], []>} : vector<256x1024xbf16>, vector<1024x64xbf16>, vector<256x64xf32> -> vector<256x64xf32>
    %c0_39 = arith.constant 0 : index
    %c0_40 = arith.constant 0 : index
    %52 = vector.load %arg15[%c0_39, %c0_40] : memref<1x64xf32, #tpu.memory_space<vmem>>, vector<1x64xf32>
    %53 = vector.broadcast %52 : vector<1x64xf32> to vector<256x64xf32>
    %54 = arith.addf %51, %53 : vector<256x64xf32>
    %cst_41 = arith.constant 0.000000e+00 : f32
    %55 = vector.broadcast %cst_41 : f32 to vector<256x64xf32>
    %56 = arith.maximumf %54, %55 : vector<256x64xf32>
    %c0_42 = arith.constant 0 : index
    %c0_43 = arith.constant 0 : index
    %57 = vector.load %arg16[%c0_42, %c0_43] : memref<1x64xbf16, #tpu.memory_space<vmem>>, vector<1x64xbf16>
    %58 = arith.extf %57 : vector<1x64xbf16> to vector<1x64xf32>
    %59 = vector.broadcast %58 : vector<1x64xf32> to vector<256x64xf32>
    %60 = arith.mulf %56, %59 : vector<256x64xf32>
    %cst_44 = arith.constant dense<0.000000e+00> : vector<256xf32>
    %61 = vector.multi_reduction <add>, %60, %cst_44 [1] : vector<256x64xf32> to vector<256xf32>
    %62 = vector.shape_cast %61 : vector<256xf32> to vector<256x1xf32>
    %c0_45 = arith.constant 0 : index
    %c0_46 = arith.constant 0 : index
    %63 = vector.load %arg17[%c0_45, %c0_46] : memref<1x1xf32, #tpu.memory_space<vmem>>, vector<1x1xf32>
    %64 = vector.broadcast %63 : vector<1x1xf32> to vector<256x1xf32>
    %65 = arith.addf %62, %64 : vector<256x1xf32>
    %66 = math.absf %65 : vector<256x1xf32>
    %cst_47 = arith.constant 0.000000e+00 : f32
    %67 = vector.broadcast %cst_47 : f32 to vector<256x1xf32>
    %68 = arith.subf %67, %66 : vector<256x1xf32>
    %69 = math.exp %68 : vector<256x1xf32>
    %cst_48 = arith.constant 1.000000e+00 : f32
    %70 = vector.broadcast %cst_48 : f32 to vector<256x1xf32>
    %71 = arith.addf %70, %69 : vector<256x1xf32>
    %72 = tpu.reciprocal %71 {approx = true} : vector<256x1xf32> -> vector<256x1xf32>
    %cst_49 = arith.constant 0.000000e+00 : f32
    %73 = vector.broadcast %cst_49 : f32 to vector<256x1xf32>
    %74 = arith.cmpf oge, %65, %73 : vector<256x1xf32>
    %75 = arith.mulf %69, %72 : vector<256x1xf32>
    %76 = arith.select %74, %72, %75 : vector<256x1xi1>, vector<256x1xf32>
    %c0_50 = arith.constant 0 : index
    %c0_51 = arith.constant 0 : index
    %77 = vector.load %arg18[%c0_50, %c0_51] : memref<256x1xf32, #tpu.memory_space<vmem>>, vector<256x1xf32>
    tpu.vector_store %arg18[%c0_50, %c0_51], %76 {strides = array<i32>} : memref<256x1xf32, #tpu.memory_space<vmem>>, vector<256x1xf32>,
    return
  }
  func.func @transform_0(%arg0: i32) -> (i32, i32) {
    %c0_i32 = arith.constant 0 : i32
    %c0_i32_0 = arith.constant 0 : i32
    return %arg0, %c0_i32 : i32, i32
  }
  func.func @transform_1(%arg0: i32) -> (i32, i32) {
    %c0_i32 = arith.constant 0 : i32
    %c0_i32_0 = arith.constant 0 : i32
    %c0_i32_1 = arith.constant 0 : i32
    return %c0_i32, %c0_i32_0 : i32, i32
  }
  func.func @transform_2(%arg0: i32) -> (i32, i32) {
    %c0_i32 = arith.constant 0 : i32
    %c0_i32_0 = arith.constant 0 : i32
    %c0_i32_1 = arith.constant 0 : i32
    return %c0_i32, %c0_i32_0 : i32, i32
  }
  func.func @transform_3(%arg0: i32) -> (i32, i32) {
    %c0_i32 = arith.constant 0 : i32
    %c0_i32_0 = arith.constant 0 : i32
    %c0_i32_1 = arith.constant 0 : i32
    return %c0_i32, %c0_i32_0 : i32, i32
  }
  func.func @transform_4(%arg0: i32) -> (i32, i32) {
    %c0_i32 = arith.constant 0 : i32
    %c0_i32_0 = arith.constant 0 : i32
    %c0_i32_1 = arith.constant 0 : i32
    return %c0_i32, %c0_i32_0 : i32, i32
  }
  func.func @transform_5(%arg0: i32) -> (i32, i32) {
    %c0_i32 = arith.constant 0 : i32
    %c0_i32_0 = arith.constant 0 : i32
    %c0_i32_1 = arith.constant 0 : i32
    return %c0_i32, %c0_i32_0 : i32, i32
  }
  func.func @transform_6(%arg0: i32) -> (i32, i32) {
    %c0_i32 = arith.constant 0 : i32
    %c0_i32_0 = arith.constant 0 : i32
    %c0_i32_1 = arith.constant 0 : i32
    return %c0_i32, %c0_i32_0 : i32, i32
  }
  func.func @transform_7(%arg0: i32) -> (i32, i32) {
    %c0_i32 = arith.constant 0 : i32
    %c0_i32_0 = arith.constant 0 : i32
    %c0_i32_1 = arith.constant 0 : i32
    return %c0_i32, %c0_i32_0 : i32, i32
  }
  func.func @transform_8(%arg0: i32) -> (i32, i32) {
    %c0_i32 = arith.constant 0 : i32
    %c0_i32_0 = arith.constant 0 : i32
    %c0_i32_1 = arith.constant 0 : i32
    return %c0_i32, %c0_i32_0 : i32, i32
  }
  func.func @transform_9(%arg0: i32) -> (i32, i32) {
    %c0_i32 = arith.constant 0 : i32
    %c0_i32_0 = arith.constant 0 : i32
    %c0_i32_1 = arith.constant 0 : i32
    return %c0_i32, %c0_i32_0 : i32, i32
  }
  func.func @transform_10(%arg0: i32) -> (i32, i32) {
    %c0_i32 = arith.constant 0 : i32
    %c0_i32_0 = arith.constant 0 : i32
    %c0_i32_1 = arith.constant 0 : i32
    return %c0_i32, %c0_i32_0 : i32, i32
  }
  func.func @transform_11(%arg0: i32) -> (i32, i32) {
    %c0_i32 = arith.constant 0 : i32
    %c0_i32_0 = arith.constant 0 : i32
    %c0_i32_1 = arith.constant 0 : i32
    return %c0_i32, %c0_i32_0 : i32, i32
  }
  func.func @transform_12(%arg0: i32) -> (i32, i32) {
    %c0_i32 = arith.constant 0 : i32
    %c0_i32_0 = arith.constant 0 : i32
    %c0_i32_1 = arith.constant 0 : i32
    return %c0_i32, %c0_i32_0 : i32, i32
  }
  func.func @transform_13(%arg0: i32) -> (i32, i32) {
    %c0_i32 = arith.constant 0 : i32
    %c0_i32_0 = arith.constant 0 : i32
    %c0_i32_1 = arith.constant 0 : i32
    return %c0_i32, %c0_i32_0 : i32, i32
  }
  func.func @transform_14(%arg0: i32) -> (i32, i32) {
    %c0_i32 = arith.constant 0 : i32
    %c0_i32_0 = arith.constant 0 : i32
    %c0_i32_1 = arith.constant 0 : i32
    return %c0_i32, %c0_i32_0 : i32, i32
  }
  func.func @transform_15(%arg0: i32) -> (i32, i32) {
    %c0_i32 = arith.constant 0 : i32
    %c0_i32_0 = arith.constant 0 : i32
    %c0_i32_1 = arith.constant 0 : i32
    return %c0_i32, %c0_i32_0 : i32, i32
  }
  func.func @transform_16(%arg0: i32) -> (i32, i32) {
    %c0_i32 = arith.constant 0 : i32
    %c0_i32_0 = arith.constant 0 : i32
    %c0_i32_1 = arith.constant 0 : i32
    return %c0_i32, %c0_i32_0 : i32, i32
  }
  func.func @transform_17(%arg0: i32) -> (i32, i32) {
    %c0_i32 = arith.constant 0 : i32
    %c0_i32_0 = arith.constant 0 : i32
    return %arg0, %c0_i32 : i32, i32
  }
}

</mosaic_0001>

<llo_original>
// kernel: tpu_custom_call.1
$region0: #{tpu_custom_call.1}
  #allocation0 [shape = 'u32[]', space=smem, size = 0x4, offset = 0x4, fixed_abs, tag = 'smem constant byte address 0x4 - core index']
  #allocation1 [shape = 'u32[72,128]{1,0:T(1,128)}', space=vmem, size = 0x9000, scoped, tag = 'internal scratch']
  #allocation2 [shape = 'f32[1,1]{1,0:T(1,128)S(1)}', space=vmem, size = 0x200, scoped, tag = 'scoped memory for tpu_custom_call.1']
  %s0 = inlined_call_operand.vmem [shape: f32[512,28], index: 0, kind: input, shape index: {}]
  %s1 = inlined_call_operand.vmem [shape: bf16[28,32], index: 1, kind: input, shape index: {}]
  %s2 = inlined_call_operand.vmem [shape: f32[1,32], index: 2, kind: input, shape index: {}]
  %s3 = inlined_call_operand.vmem [shape: bf16[32,64], index: 3, kind: input, shape index: {}]
  %s4 = inlined_call_operand.vmem [shape: f32[1,64], index: 4, kind: input, shape index: {}]
  %s5 = inlined_call_operand.vmem [shape: bf16[64,128], index: 5, kind: input, shape index: {}]
  %s6 = inlined_call_operand.vmem [shape: f32[1,128], index: 6, kind: input, shape index: {}]
  %s7 = inlined_call_operand.vmem [shape: bf16[128,256], index: 7, kind: input, shape index: {}]
  %s8 = inlined_call_operand.vmem [shape: f32[1,256], index: 8, kind: input, shape index: {}]
  %s9 = inlined_call_operand.vmem [shape: bf16[256,512], index: 9, kind: input, shape index: {}]
  %s10 = inlined_call_operand.vmem [shape: f32[1,512], index: 10, kind: input, shape index: {}]
  %s11 = inlined_call_operand.hbm [shape: bf16[512,1024], index: 11, kind: input, shape index: {}]
  %s12 = inlined_call_operand.vmem [shape: f32[1,1024], index: 12, kind: input, shape index: {}]
  %s13 = inlined_call_operand.vmem [shape: bf16[1024,64], index: 13, kind: input, shape index: {}]
  %s14 = inlined_call_operand.vmem [shape: f32[1,64], index: 14, kind: input, shape index: {}]
  %s15 = inlined_call_operand.vmem [shape: bf16[1,64], index: 15, kind: input, shape index: {}]
  %s16 = inlined_call_operand.<no memory space> [shape: f32[1,1], index: 16, kind: input, shape index: {}]
  %s17 = inlined_call_operand.vmem [shape: f32[512,1], index: 17, kind: output, shape index: {}]
  %s18 = sld [smem:[#allocation0]]
  $region105: #{tpu_custom_call.1} parent=0
    _
  %s20 = ssub.s32 1, %s18
  %s21 = scalar_select 0, %s20, %s18
  %v22 = vstv %s16
  %23 = vst [vmem:[#allocation2] sm:$0x1] %v22
  $region1: #{tpu_custom_call.1} parent=0
    #allocation3 [shape = 'u8[1048576]{0}', space=vmem, size = 0x100000, scoped, tag = 'input window, operand 11, single buffered']
    #allocation4 [shape = 's32[2]{0}', space=sflag, size = 0x8, scoped, tag = 'scoped memory for tpu_custom_call.1']
    %24 = vsyncpa [#allocation4], 0
    loop: start=0, step=1, limit=4
    $region2: #{tpu_custom_call.1} parent=1 // loop_pre_header
      _
    $region3: #{tpu_custom_call.1} parent=1 // loop_header
      %s26 = sphi 0, %s30
      %p27 = scmp.ge.s32.totalorder %s26, 4
      %s36 = sphi 0, %s38
      %s39 = sphi 0, %s36
      %s40 = sphi 0, %s39
      %s56 = sphi 0, %s40
      %s60 = sphi 0, %s60
      %s62 = sphi 0, %s60
      %s63 = sphi 0, %s62
      %s77 = sphi 0, %s63
      %s81 = sphi 0, %s81
      %s83 = sphi 0, %s81
      %s84 = sphi 0, %s83
      %s98 = sphi 0, %s84
      %s102 = sphi 0, %s102
      %s104 = sphi 0, %s102
      %s105 = sphi 0, %s104
      %s119 = sphi 0, %s105
      %s123 = sphi 0, %s123
      %s125 = sphi 0, %s123
      %s126 = sphi 0, %s125
      %s140 = sphi 0, %s126
      %s144 = sphi 0, %s144
      %s146 = sphi 0, %s144
      %s147 = sphi 0, %s146
      %s161 = sphi 0, %s147
      %s165 = sphi 0, %s165
      %s167 = sphi 0, %s165
      %s168 = sphi 0, %s167
      %s182 = sphi 0, %s168
      %s186 = sphi 0, %s186
      %s188 = sphi 0, %s186
      %s189 = sphi 0, %s188
      %s203 = sphi 0, %s189
      %s207 = sphi 0, %s207
      %s209 = sphi 0, %s207
      %s210 = sphi 0, %s209
      %s224 = sphi 0, %s210
      %s228 = sphi 0, %s228
      %s230 = sphi 0, %s228
      %s231 = sphi 0, %s230
      %s245 = sphi 0, %s231
      %s249 = sphi 0, %s249
      %s251 = sphi 0, %s249
      %s252 = sphi 0, %s251
      %s266 = sphi 0, %s252
      %s270 = sphi 0, %s270
      %s272 = sphi 0, %s270
      %s273 = sphi 0, %s272
      %s287 = sphi 0, %s273
      %s291 = sphi 0, %s291
      %s293 = sphi 0, %s291
      %s294 = sphi 0, %s293
      %s308 = sphi 0, %s294
      %s312 = sphi 0, %s312
      %s314 = sphi 0, %s312
      %s315 = sphi 0, %s314
      %s329 = sphi 0, %s315
      %s333 = sphi 0, %s333
      %s335 = sphi 0, %s333
      %s336 = sphi 0, %s335
      %s350 = sphi 0, %s336
      %s354 = sphi 0, %s354
      %s356 = sphi 0, %s354
      %s357 = sphi 0, %s356
      %s371 = sphi 0, %s357
      %s375 = sphi 0, %s375
      %s377 = sphi 0, %s375
      %s378 = sphi 0, %s377
      %s392 = sphi 0, %s378
      %s398 = sphi 0, %s400
      %s401 = sphi 0, %s398
      %s402 = sphi 0, %s401
      %s418 = sphi 0, %s402
    $region4: #{tpu_custom_call.1} parent=1 // loop_header_branch
      %29 = sbr.rel (%p27) target = $region8
    $region5: #{tpu_custom_call.1} parent=1 // loop_body
      %s31 = ssub.s32 %s26, 1
      %s32 = ssub.s32 %s26, 2
      %s33 = sadd.s32 %s26, 1
      %s34 = ssub.s32 %s26, %s33
      %p35 = scmp.eq.s32.totalorder %s34, 0
      %s37 = sadd.s32 %s36, 1
      %s38 = scalar_select %p35, %s36, %s37
      %p41 = pneg %p35
      %p42 = scmp.eq.s32.totalorder %s26, 1
      %p43 = por %p41, %p42
      %p44 = scmp.ne.s32.totalorder %s36, %s39
      %p45 = scmp.eq.s32.totalorder %s26, 0
      %p46 = por %p44, %p45
      %p47 = scmp.ne.s32.totalorder %s36, %s39
      %p48 = scmp.eq.s32.totalorder %s31, 1
      %p49 = por %p47, %p48
      %p50 = scmp.ne.s32.totalorder %s39, %s40
      %p51 = scmp.eq.s32.totalorder %s31, 0
      %p52 = por %p50, %p51
      %p53 = scmp.ne.s32.totalorder %s39, %s40
      %p54 = scmp.eq.s32.totalorder %s32, 1
      %p55 = por %p53, %p54
      %p57 = scmp.ne.s32.totalorder %s40, %s56
      %p58 = scmp.eq.s32.totalorder %s32, 0
      %p59 = por %p57, %p58
      %s61 = sadd.s32 %s60, 1
      %p64 = scmp.eq.s32.totalorder %s26, 1
      %p65 = scmp.ne.s32.totalorder %s60, %s62
      %p66 = scmp.eq.s32.totalorder %s26, 0
      %p67 = por %p65, %p66
      %p68 = scmp.ne.s32.totalorder %s60, %s62
      %p69 = scmp.eq.s32.totalorder %s31, 1
      %p70 = por %p68, %p69
      %p71 = scmp.ne.s32.totalorder %s62, %s63
      %p72 = scmp.eq.s32.totalorder %s31, 0
      %p73 = por %p71, %p72
      %p74 = scmp.ne.s32.totalorder %s62, %s63
      %p75 = scmp.eq.s32.totalorder %s32, 1
      %p76 = por %p74, %p75
      %p78 = scmp.ne.s32.totalorder %s63, %s77
      %p79 = scmp.eq.s32.totalorder %s32, 0
      %p80 = por %p78, %p79
      %s82 = sadd.s32 %s81, 1
      %p85 = scmp.eq.s32.totalorder %s26, 1
      %p86 = scmp.ne.s32.totalorder %s81, %s83
      %p87 = scmp.eq.s32.totalorder %s26, 0
      %p88 = por %p86, %p87
      %p89 = scmp.ne.s32.totalorder %s81, %s83
      %p90 = scmp.eq.s32.totalorder %s31, 1
      %p91 = por %p89, %p90
      %p92 = scmp.ne.s32.totalorder %s83, %s84
      %p93 = scmp.eq.s32.totalorder %s31, 0
      %p94 = por %p92, %p93
      %p95 = scmp.ne.s32.totalorder %s83, %s84
      %p96 = scmp.eq.s32.totalorder %s32, 1
      %p97 = por %p95, %p96
      %p99 = scmp.ne.s32.totalorder %s84, %s98
      %p100 = scmp.eq.s32.totalorder %s32, 0
      %p101 = por %p99, %p100
      %s103 = sadd.s32 %s102, 1
      %p106 = scmp.eq.s32.totalorder %s26, 1
      %p107 = scmp.ne.s32.totalorder %s102, %s104
      %p108 = scmp.eq.s32.totalorder %s26, 0
      %p109 = por %p107, %p108
      %p110 = scmp.ne.s32.totalorder %s102, %s104
      %p111 = scmp.eq.s32.totalorder %s31, 1
      %p112 = por %p110, %p111
      %p113 = scmp.ne.s32.totalorder %s104, %s105
      %p114 = scmp.eq.s32.totalorder %s31, 0
      %p115 = por %p113, %p114
      %p116 = scmp.ne.s32.totalorder %s104, %s105
      %p117 = scmp.eq.s32.totalorder %s32, 1
      %p118 = por %p116, %p117
      %p120 = scmp.ne.s32.totalorder %s105, %s119
      %p121 = scmp.eq.s32.totalorder %s32, 0
      %p122 = por %p120, %p121
      %s124 = sadd.s32 %s123, 1
      %p127 = scmp.eq.s32.totalorder %s26, 1
      %p128 = scmp.ne.s32.totalorder %s123, %s125
      %p129 = scmp.eq.s32.totalorder %s26, 0
      %p130 = por %p128, %p129
      %p131 = scmp.ne.s32.totalorder %s123, %s125
      %p132 = scmp.eq.s32.totalorder %s31, 1
      %p133 = por %p131, %p132
      %p134 = scmp.ne.s32.totalorder %s125, %s126
      %p135 = scmp.eq.s32.totalorder %s31, 0
      %p136 = por %p134, %p135
      %p137 = scmp.ne.s32.totalorder %s125, %s126
      %p138 = scmp.eq.s32.totalorder %s32, 1
      %p139 = por %p137, %p138
      %p141 = scmp.ne.s32.totalorder %s126, %s140
      %p142 = scmp.eq.s32.totalorder %s32, 0
      %p143 = por %p141, %p142
      %s145 = sadd.s32 %s144, 1
      %p148 = scmp.eq.s32.totalorder %s26, 1
      %p149 = scmp.ne.s32.totalorder %s144, %s146
      %p150 = scmp.eq.s32.totalorder %s26, 0
      %p151 = por %p149, %p150
      %p152 = scmp.ne.s32.totalorder %s144, %s146
      %p153 = scmp.eq.s32.totalorder %s31, 1
      %p154 = por %p152, %p153
      %p155 = scmp.ne.s32.totalorder %s146, %s147
      %p156 = scmp.eq.s32.totalorder %s31, 0
      %p157 = por %p155, %p156
      %p158 = scmp.ne.s32.totalorder %s146, %s147
      %p159 = scmp.eq.s32.totalorder %s32, 1
      %p160 = por %p158, %p159
      %p162 = scmp.ne.s32.totalorder %s147, %s161
      %p163 = scmp.eq.s32.totalorder %s32, 0
      %p164 = por %p162, %p163
      %s166 = sadd.s32 %s165, 1
      %p169 = scmp.eq.s32.totalorder %s26, 1
      %p170 = scmp.ne.s32.totalorder %s165, %s167
      %p171 = scmp.eq.s32.totalorder %s26, 0
      %p172 = por %p170, %p171
      %p173 = scmp.ne.s32.totalorder %s165, %s167
      %p174 = scmp.eq.s32.totalorder %s31, 1
      %p175 = por %p173, %p174
      %p176 = scmp.ne.s32.totalorder %s167, %s168
      %p177 = scmp.eq.s32.totalorder %s31, 0
      %p178 = por %p176, %p177
      %p179 = scmp.ne.s32.totalorder %s167, %s168
      %p180 = scmp.eq.s32.totalorder %s32, 1
      %p181 = por %p179, %p180
      %p183 = scmp.ne.s32.totalorder %s168, %s182
      %p184 = scmp.eq.s32.totalorder %s32, 0
      %p185 = por %p183, %p184
      %s187 = sadd.s32 %s186, 1
      %p190 = scmp.eq.s32.totalorder %s26, 1
      %p191 = scmp.ne.s32.totalorder %s186, %s188
      %p192 = scmp.eq.s32.totalorder %s26, 0
      %p193 = por %p191, %p192
      %p194 = scmp.ne.s32.totalorder %s186, %s188
      %p195 = scmp.eq.s32.totalorder %s31, 1
      %p196 = por %p194, %p195
      %p197 = scmp.ne.s32.totalorder %s188, %s189
      %p198 = scmp.eq.s32.totalorder %s31, 0
      %p199 = por %p197, %p198
      %p200 = scmp.ne.s32.totalorder %s188, %s189
      %p201 = scmp.eq.s32.totalorder %s32, 1
      %p202 = por %p200, %p201
      %p204 = scmp.ne.s32.totalorder %s189, %s203
      %p205 = scmp.eq.s32.totalorder %s32, 0
      %p206 = por %p204, %p205
      %s208 = sadd.s32 %s207, 1
      %p211 = scmp.eq.s32.totalorder %s26, 1
      %p212 = scmp.ne.s32.totalorder %s207, %s209
      %p213 = scmp.eq.s32.totalorder %s26, 0
      %p214 = por %p212, %p213
      %p215 = scmp.ne.s32.totalorder %s207, %s209
      %p216 = scmp.eq.s32.totalorder %s31, 1
      %p217 = por %p215, %p216
      %p218 = scmp.ne.s32.totalorder %s209, %s210
      %p219 = scmp.eq.s32.totalorder %s31, 0
      %p220 = por %p218, %p219
      %p221 = scmp.ne.s32.totalorder %s209, %s210
      %p222 = scmp.eq.s32.totalorder %s32, 1
      %p223 = por %p221, %p222
      %p225 = scmp.ne.s32.totalorder %s210, %s224
      %p226 = scmp.eq.s32.totalorder %s32, 0
      %p227 = por %p225, %p226
      %s229 = sadd.s32 %s228, 1
      %p232 = scmp.eq.s32.totalorder %s26, 1
      %p233 = scmp.ne.s32.totalorder %s228, %s230
      %p234 = scmp.eq.s32.totalorder %s26, 0
      %p235 = por %p233, %p234
      %p236 = scmp.ne.s32.totalorder %s228, %s230
      %p237 = scmp.eq.s32.totalorder %s31, 1
      %p238 = por %p236, %p237
      %p239 = scmp.ne.s32.totalorder %s230, %s231
      %p240 = scmp.eq.s32.totalorder %s31, 0
      %p241 = por %p239, %p240
      %p242 = scmp.ne.s32.totalorder %s230, %s231
      %p243 = scmp.eq.s32.totalorder %s32, 1
      %p244 = por %p242, %p243
      %p246 = scmp.ne.s32.totalorder %s231, %s245
      %p247 = scmp.eq.s32.totalorder %s32, 0
      %p248 = por %p246, %p247
      %s250 = sadd.s32 %s249, 1
      %p253 = scmp.eq.s32.totalorder %s26, 1
      %p254 = scmp.ne.s32.totalorder %s249, %s251
      %p255 = scmp.eq.s32.totalorder %s26, 0
      %p256 = por %p254, %p255
      %p257 = scmp.ne.s32.totalorder %s249, %s251
      %p258 = scmp.eq.s32.totalorder %s31, 1
      %p259 = por %p257, %p258
      %p260 = scmp.ne.s32.totalorder %s251, %s252
      %p261 = scmp.eq.s32.totalorder %s31, 0
      %p262 = por %p260, %p261
      %p263 = scmp.ne.s32.totalorder %s251, %s252
      %p264 = scmp.eq.s32.totalorder %s32, 1
      %p265 = por %p263, %p264
      %p267 = scmp.ne.s32.totalorder %s252, %s266
      %p268 = scmp.eq.s32.totalorder %s32, 0
      %p269 = por %p267, %p268
      %s271 = sadd.s32 %s270, 1
      %p274 = scmp.eq.s32.totalorder %s26, 1
      %p275 = scmp.ne.s32.totalorder %s270, %s272
      %p276 = scmp.eq.s32.totalorder %s26, 0
      %p277 = por %p275, %p276
      %p278 = scmp.ne.s32.totalorder %s270, %s272
      %p279 = scmp.eq.s32.totalorder %s31, 1
      %p280 = por %p278, %p279
      %p281 = scmp.ne.s32.totalorder %s272, %s273
      %p282 = scmp.eq.s32.totalorder %s31, 0
      %p283 = por %p281, %p282
      %p284 = scmp.ne.s32.totalorder %s272, %s273
      %p285 = scmp.eq.s32.totalorder %s32, 1
      %p286 = por %p284, %p285
      %p288 = scmp.ne.s32.totalorder %s273, %s287
      %p289 = scmp.eq.s32.totalorder %s32, 0
      %p290 = por %p288, %p289
      %s292 = sadd.s32 %s291, 1
      %p295 = scmp.eq.s32.totalorder %s26, 1
      %p296 = scmp.ne.s32.totalorder %s291, %s293
      %p297 = scmp.eq.s32.totalorder %s26, 0
      %p298 = por %p296, %p297
      %p299 = scmp.ne.s32.totalorder %s291, %s293
      %p300 = scmp.eq.s32.totalorder %s31, 1
      %p301 = por %p299, %p300
      %p302 = scmp.ne.s32.totalorder %s293, %s294
      %p303 = scmp.eq.s32.totalorder %s31, 0
      %p304 = por %p302, %p303
      %p305 = scmp.ne.s32.totalorder %s293, %s294
      %p306 = scmp.eq.s32.totalorder %s32, 1
      %p307 = por %p305, %p306
      %p309 = scmp.ne.s32.totalorder %s294, %s308
      %p310 = scmp.eq.s32.totalorder %s32, 0
      %p311 = por %p309, %p310
      %s313 = sadd.s32 %s312, 1
      %p316 = scmp.eq.s32.totalorder %s26, 1
      %p317 = scmp.ne.s32.totalorder %s312, %s314
      %p318 = scmp.eq.s32.totalorder %s26, 0
      %p319 = por %p317, %p318
      %p320 = scmp.ne.s32.totalorder %s312, %s314
      %p321 = scmp.eq.s32.totalorder %s31, 1
      %p322 = por %p320, %p321
      %p323 = scmp.ne.s32.totalorder %s314, %s315
      %p324 = scmp.eq.s32.totalorder %s31, 0
      %p325 = por %p323, %p324
      %p326 = scmp.ne.s32.totalorder %s314, %s315
      %p327 = scmp.eq.s32.totalorder %s32, 1
      %p328 = por %p326, %p327
      %p330 = scmp.ne.s32.totalorder %s315, %s329
      %p331 = scmp.eq.s32.totalorder %s32, 0
      %p332 = por %p330, %p331
      %s334 = sadd.s32 %s333, 1
      %p337 = scmp.eq.s32.totalorder %s26, 1
      %p338 = scmp.ne.s32.totalorder %s333, %s335
      %p339 = scmp.eq.s32.totalorder %s26, 0
      %p340 = por %p338, %p339
      %p341 = scmp.ne.s32.totalorder %s333, %s335
      %p342 = scmp.eq.s32.totalorder %s31, 1
      %p343 = por %p341, %p342
      %p344 = scmp.ne.s32.totalorder %s335, %s336
      %p345 = scmp.eq.s32.totalorder %s31, 0
      %p346 = por %p344, %p345
      %p347 = scmp.ne.s32.totalorder %s335, %s336
      %p348 = scmp.eq.s32.totalorder %s32, 1
      %p349 = por %p347, %p348
      %p351 = scmp.ne.s32.totalorder %s336, %s350
      %p352 = scmp.eq.s32.totalorder %s32, 0
      %p353 = por %p351, %p352
      %s355 = sadd.s32 %s354, 1
      %p358 = scmp.eq.s32.totalorder %s26, 1
      %p359 = scmp.ne.s32.totalorder %s354, %s356
      %p360 = scmp.eq.s32.totalorder %s26, 0
      %p361 = por %p359, %p360
      %p362 = scmp.ne.s32.totalorder %s354, %s356
      %p363 = scmp.eq.s32.totalorder %s31, 1
      %p364 = por %p362, %p363
      %p365 = scmp.ne.s32.totalorder %s356, %s357
      %p366 = scmp.eq.s32.totalorder %s31, 0
      %p367 = por %p365, %p366
      %p368 = scmp.ne.s32.totalorder %s356, %s357
      %p369 = scmp.eq.s32.totalorder %s32, 1
      %p370 = por %p368, %p369
      %p372 = scmp.ne.s32.totalorder %s357, %s371
      %p373 = scmp.eq.s32.totalorder %s32, 0
      %p374 = por %p372, %p373
      %s376 = sadd.s32 %s375, 1
      %p379 = scmp.eq.s32.totalorder %s26, 1
      %p380 = scmp.ne.s32.totalorder %s375, %s377
      %p381 = scmp.eq.s32.totalorder %s26, 0
      %p382 = por %p380, %p381
      %p383 = scmp.ne.s32.totalorder %s375, %s377
      %p384 = scmp.eq.s32.totalorder %s31, 1
      %p385 = por %p383, %p384
      %p386 = scmp.ne.s32.totalorder %s377, %s378
      %p387 = scmp.eq.s32.totalorder %s31, 0
      %p388 = por %p386, %p387
      %p389 = scmp.ne.s32.totalorder %s377, %s378
      %p390 = scmp.eq.s32.totalorder %s32, 1
      %p391 = por %p389, %p390
      %p393 = scmp.ne.s32.totalorder %s378, %s392
      %p394 = scmp.eq.s32.totalorder %s32, 0
      %p395 = por %p393, %p394
      %s396 = ssub.s32 %s26, %s33
      %p397 = scmp.eq.s32.totalorder %s396, 0
      %s399 = sadd.s32 %s398, 1
      %s400 = scalar_select %p397, %s398, %s399
      %p403 = pneg %p397
      %p404 = scmp.eq.s32.totalorder %s26, 1
      %p405 = por %p403, %p404
      %p406 = scmp.ne.s32.totalorder %s398, %s401
      %p407 = scmp.eq.s32.totalorder %s26, 0
      %p408 = por %p406, %p407
      %p409 = scmp.ne.s32.totalorder %s398, %s401
      %p410 = scmp.eq.s32.totalorder %s31, 1
      %p411 = por %p409, %p410
      %p412 = scmp.ne.s32.totalorder %s401, %s402
      %p413 = scmp.eq.s32.totalorder %s31, 0
      %p414 = por %p412, %p413
      %p415 = scmp.ne.s32.totalorder %s401, %s402
      %p416 = scmp.eq.s32.totalorder %s32, 1
      %p417 = por %p415, %p416
      %p419 = scmp.ne.s32.totalorder %s402, %s418
      %p420 = scmp.eq.s32.totalorder %s32, 0
      %p421 = por %p419, %p420
      %p422 = scmp.le.s32.totalorder 1, %s26
      %p423 = scmp.lt.s32.totalorder %s26, 3
      %p424 = pnand %p422, %p423
      %p425 = pneg %p424
      // Predicated region
      $region9: #{tpu_custom_call.1} parent=5 // pred_check
        _
      $region10: #{tpu_custom_call.1} parent=5 // pred_check_branch
        %427 = sbr.rel (%p424) target = $region12
      $region11: #{tpu_custom_call.1} parent=5 // pred_region
        %s428 = ssub.s32 %s26, 1
        // Predicated region
        $region13: #{tpu_custom_call.1} parent=11 // pred_check
          %p429 = pneg %p73
        $region14: #{tpu_custom_call.1} parent=11 // pred_check_branch
          %431 = sbr.rel (%p429) target = $region16
        $region15: #{tpu_custom_call.1} parent=11 // pred_region
          _
        $region16: #{tpu_custom_call.1} parent=11 // pred_fallthru
          _
        // Predicated region
        $region17: #{tpu_custom_call.1} parent=11 // pred_check
          %p432 = pneg %p94
        $region18: #{tpu_custom_call.1} parent=11 // pred_check_branch
          %434 = sbr.rel (%p432) target = $region20
        $region19: #{tpu_custom_call.1} parent=11 // pred_region
          _
        $region20: #{tpu_custom_call.1} parent=11 // pred_fallthru
          _
        // Predicated region
        $region21: #{tpu_custom_call.1} parent=11 // pred_check
          %p435 = pneg %p115
        $region22: #{tpu_custom_call.1} parent=11 // pred_check_branch
          %437 = sbr.rel (%p435) target = $region24
        $region23: #{tpu_custom_call.1} parent=11 // pred_region
          _
        $region24: #{tpu_custom_call.1} parent=11 // pred_fallthru
          _
        // Predicated region
        $region25: #{tpu_custom_call.1} parent=11 // pred_check
          %p438 = pneg %p136
        $region26: #{tpu_custom_call.1} parent=11 // pred_check_branch
          %440 = sbr.rel (%p438) target = $region28
        $region27: #{tpu_custom_call.1} parent=11 // pred_region
          _
        $region28: #{tpu_custom_call.1} parent=11 // pred_fallthru
          _
        // Predicated region
        $region29: #{tpu_custom_call.1} parent=11 // pred_check
          %p441 = pneg %p157
        $region30: #{tpu_custom_call.1} parent=11 // pred_check_branch
          %443 = sbr.rel (%p441) target = $region32
        $region31: #{tpu_custom_call.1} parent=11 // pred_region
          _
        $region32: #{tpu_custom_call.1} parent=11 // pred_fallthru
          _
        // Predicated region
        $region33: #{tpu_custom_call.1} parent=11 // pred_check
          %p444 = pneg %p178
        $region34: #{tpu_custom_call.1} parent=11 // pred_check_branch
          %446 = sbr.rel (%p444) target = $region36
        $region35: #{tpu_custom_call.1} parent=11 // pred_region
          _
        $region36: #{tpu_custom_call.1} parent=11 // pred_fallthru
          _
        // Predicated region
        $region37: #{tpu_custom_call.1} parent=11 // pred_check
          %p447 = pneg %p199
        $region38: #{tpu_custom_call.1} parent=11 // pred_check_branch
          %449 = sbr.rel (%p447) target = $region40
        $region39: #{tpu_custom_call.1} parent=11 // pred_region
          _
        $region40: #{tpu_custom_call.1} parent=11 // pred_fallthru
          _
        // Predicated region
        $region41: #{tpu_custom_call.1} parent=11 // pred_check
          %p450 = pneg %p220
        $region42: #{tpu_custom_call.1} parent=11 // pred_check_branch
          %452 = sbr.rel (%p450) target = $region44
        $region43: #{tpu_custom_call.1} parent=11 // pred_region
          _
        $region44: #{tpu_custom_call.1} parent=11 // pred_fallthru
          _
        // Predicated region
        $region45: #{tpu_custom_call.1} parent=11 // pred_check
          %p453 = pneg %p241
        $region46: #{tpu_custom_call.1} parent=11 // pred_check_branch
          %455 = sbr.rel (%p453) target = $region48
        $region47: #{tpu_custom_call.1} parent=11 // pred_region
          _
        $region48: #{tpu_custom_call.1} parent=11 // pred_fallthru
          _
        // Predicated region
        $region49: #{tpu_custom_call.1} parent=11 // pred_check
          %p456 = pneg %p262
        $region50: #{tpu_custom_call.1} parent=11 // pred_check_branch
          %458 = sbr.rel (%p456) target = $region52
        $region51: #{tpu_custom_call.1} parent=11 // pred_region
          _
        $region52: #{tpu_custom_call.1} parent=11 // pred_fallthru
          _
        // Predicated region
        $region53: #{tpu_custom_call.1} parent=11 // pred_check
          %p459 = pneg %p283
        $region54: #{tpu_custom_call.1} parent=11 // pred_check_branch
          %461 = sbr.rel (%p459) target = $region56
        $region55: #{tpu_custom_call.1} parent=11 // pred_region
          %463 = vsyncadd [#allocation4], 0
          %s464 = sshll.u32 %s11, 4
          %s465 = int_to_ptr.hbm [resolvable:$true] %s464
          %s466 = sshll.u32 [#allocation3], 4
          %s467 = int_to_ptr.vmem [resolvable:$true] %s466
          %472 = dma.hbm_to_vmem [thread:$0]  %s465, 32768, %s467, [#allocation4], 512, 512, 32
        $region56: #{tpu_custom_call.1} parent=11 // pred_fallthru
          _
        // Predicated region
        $region57: #{tpu_custom_call.1} parent=11 // pred_check
          %p473 = pneg %p304
        $region58: #{tpu_custom_call.1} parent=11 // pred_check_branch
          %475 = sbr.rel (%p473) target = $region60
        $region59: #{tpu_custom_call.1} parent=11 // pred_region
          _
        $region60: #{tpu_custom_call.1} parent=11 // pred_fallthru
          _
        // Predicated region
        $region61: #{tpu_custom_call.1} parent=11 // pred_check
          %p476 = pneg %p325
        $region62: #{tpu_custom_call.1} parent=11 // pred_check_branch
          %478 = sbr.rel (%p476) target = $region64
        $region63: #{tpu_custom_call.1} parent=11 // pred_region
          _
        $region64: #{tpu_custom_call.1} parent=11 // pred_fallthru
          _
        // Predicated region
        $region65: #{tpu_custom_call.1} parent=11 // pred_check
          %p479 = pneg %p346
        $region66: #{tpu_custom_call.1} parent=11 // pred_check_branch
          %481 = sbr.rel (%p479) target = $region68
        $region67: #{tpu_custom_call.1} parent=11 // pred_region
          _
        $region68: #{tpu_custom_call.1} parent=11 // pred_fallthru
          _
        // Predicated region
        $region69: #{tpu_custom_call.1} parent=11 // pred_check
          %p482 = pneg %p367
        $region70: #{tpu_custom_call.1} parent=11 // pred_check_branch
          %484 = sbr.rel (%p482) target = $region72
        $region71: #{tpu_custom_call.1} parent=11 // pred_region
          _
        $region72: #{tpu_custom_call.1} parent=11 // pred_fallthru
          _
        // Predicated region
        $region73: #{tpu_custom_call.1} parent=11 // pred_check
          %p485 = pneg %p388
        $region74: #{tpu_custom_call.1} parent=11 // pred_check_branch
          %487 = sbr.rel (%p485) target = $region76
        $region75: #{tpu_custom_call.1} parent=11 // pred_region
          _
        $region76: #{tpu_custom_call.1} parent=11 // pred_fallthru
          _
      $region12: #{tpu_custom_call.1} parent=5 // pred_fallthru
        _
      %p488 = scmp.lt.s32.totalorder %s26, 2
      // Predicated region
      $region77: #{tpu_custom_call.1} parent=5 // pred_check
        %p489 = pneg %p488
      $region78: #{tpu_custom_call.1} parent=5 // pred_check_branch
        %491 = sbr.rel (%p489) target = $region80
      $region79: #{tpu_custom_call.1} parent=5 // pred_region
        // Predicated region
        $region81: #{tpu_custom_call.1} parent=79 // pred_check
          %p492 = pneg %p46
        $region82: #{tpu_custom_call.1} parent=79 // pred_check_branch
          %494 = sbr.rel (%p492) target = $region84
        $region83: #{tpu_custom_call.1} parent=79 // pred_region
          %s495 = smul.u32 32, %s26
          %p496 = scmp.lt.s32.totalorder %s495, 63
          %s497 = scalar_select %p496, %s495, 63
          %s498 = smul.addr %s497, 8
          %s499 = scalar_lea.vmem %s0, %s498
          %s500 = smul.u32 32, %s26
        $region84: #{tpu_custom_call.1} parent=79 // pred_fallthru
          _
      $region80: #{tpu_custom_call.1} parent=5 // pred_fallthru
        _
      %p501 = scmp.le.s32.totalorder 1, %s26
      %p502 = scmp.lt.s32.totalorder %s26, 3
      %p503 = pnand %p501, %p502
      %p504 = pneg %p503
      // Predicated region
      $region85: #{tpu_custom_call.1} parent=5 // pred_check
        _
      $region86: #{tpu_custom_call.1} parent=5 // pred_check_branch
        %506 = sbr.rel (%p503) target = $region88
      $region87: #{tpu_custom_call.1} parent=5 // pred_region
        %s507 = ssub.s32 %s26, 1
        // Predicated region
        $region89: #{tpu_custom_call.1} parent=87 // pred_check
          %p508 = pneg %p283
        $region90: #{tpu_custom_call.1} parent=87 // pred_check_branch
          %510 = sbr.rel (%p508) target = $region92
        $region91: #{tpu_custom_call.1} parent=87 // pred_region
          %512 = dma.done [#allocation4], 32768
        $region92: #{tpu_custom_call.1} parent=87 // pred_fallthru
          _
        %s513 = smul.u32 32, %s31
        %p514 = scmp.lt.s32.totalorder %s513, 63
        %s515 = scalar_select %p514, %s513, 63
        %s516 = smul.addr %s515, 8
        %s517 = scalar_lea.vmem %s0, %s516
        %p518 = pneg %p52
        %p519 = pneg %p49
        %p520 = pneg %p73
        %p521 = pneg %p70
        %p522 = pneg %p94
        %p523 = pneg %p91
        %p524 = pneg %p115
        %p525 = pneg %p112
        %p526 = pneg %p136
        %p527 = pneg %p133
        %p528 = pneg %p157
        %p529 = pneg %p154
        %p530 = pneg %p178
        %p531 = pneg %p175
        %p532 = pneg %p199
        %p533 = pneg %p196
        %p534 = pneg %p220
        %p535 = pneg %p217
        %p536 = pneg %p241
        %p537 = pneg %p238
        %p538 = pneg %p262
        %p539 = pneg %p259
        %p540 = pneg %p283
        %p541 = pneg %p280
        %p542 = pneg %p304
        %p543 = pneg %p301
        %p544 = pneg %p325
        %p545 = pneg %p322
        %p546 = pneg %p346
        %p547 = pneg %p343
        %p548 = pneg %p367
        %p549 = pneg %p364
        %p550 = pneg %p388
        %p551 = pneg %p385
        %p552 = pneg %p414
        %p553 = pneg %p411
        %s554 = smul.u32 32, %s31
        %p555 = scmp.lt.s32.totalorder %s554, 63
        %s556 = scalar_select %p555, %s554, 63
        %s557 = smul.addr %s556, 8
        %s558 = scalar_lea.vmem %s17, %s557
        %s559 = smul.u32 32, %s31
        %p560 = scmp.lt.s32.totalorder %s559, 63
        %s561 = scalar_select %p560, %s559, 63
        %s562 = smul.addr %s561, 8
        %s563 = scalar_lea.vmem %s0, %s562
        %s564 = smul.u32 32, %s31
        %s565 = smul.u32 32, %s31
        %p566 = scmp.lt.s32.totalorder %s565, 63
        %s567 = scalar_select %p566, %s565, 63
        %s568 = smul.addr %s567, 8
        %s569 = scalar_lea.vmem %s17, %s568
        %s570 = smul.u32 32, %s31
        %v572 = vld [vmem:[%s563] sm:$0xff]
        %v573 = vld [vmem:[%s563 + $0x8] sm:$0xff]
        %v574 = vld [vmem:[%s563 + $0x10] sm:$0xff]
        %v575 = vld [vmem:[%s563 + $0x18] sm:$0xff]
        %v576 = vld [vmem:[%s563 + $0x20] sm:$0xff]
        %v577 = vld [vmem:[%s563 + $0x28] sm:$0xff]
        %v578 = vld [vmem:[%s563 + $0x30] sm:$0xff]
        %v579 = vld [vmem:[%s563 + $0x38] sm:$0xff]
        %v580 = vld [vmem:[%s563 + $0x40] sm:$0xff]
        %v581 = vld [vmem:[%s563 + $0x48] sm:$0xff]
        %v582 = vld [vmem:[%s563 + $0x50] sm:$0xff]
        %v583 = vld [vmem:[%s563 + $0x58] sm:$0xff]
        %v584 = vld [vmem:[%s563 + $0x60] sm:$0xff]
        %v585 = vld [vmem:[%s563 + $0x68] sm:$0xff]
        %v586 = vld [vmem:[%s563 + $0x70] sm:$0xff]
        %v587 = vld [vmem:[%s563 + $0x78] sm:$0xff]
        %v588 = vld [vmem:[%s563 + $0x80] sm:$0xff]
        %v589 = vld [vmem:[%s563 + $0x88] sm:$0xff]
        %v590 = vld [vmem:[%s563 + $0x90] sm:$0xff]
        %v591 = vld [vmem:[%s563 + $0x98] sm:$0xff]
        %v592 = vld [vmem:[%s563 + $0xa0] sm:$0xff]
        %v593 = vld [vmem:[%s563 + $0xa8] sm:$0xff]
        %v594 = vld [vmem:[%s563 + $0xb0] sm:$0xff]
        %v595 = vld [vmem:[%s563 + $0xb8] sm:$0xff]
        %v596 = vld [vmem:[%s563 + $0xc0] sm:$0xff]
        %v597 = vld [vmem:[%s563 + $0xc8] sm:$0xff]
        %v598 = vld [vmem:[%s563 + $0xd0] sm:$0xff]
        %v599 = vld [vmem:[%s563 + $0xd8] sm:$0xff]
        %v600 = vld [vmem:[%s563 + $0xe0] sm:$0xff]
        %v601 = vld [vmem:[%s563 + $0xe8] sm:$0xff]
        %v602 = vld [vmem:[%s563 + $0xf0] sm:$0xff]
        %v603 = vld [vmem:[%s563 + $0xf8] sm:$0xff]
        %v604 = vld [vmem:[%s1] sm:$0xf]
        %v605 = vld [vmem:[%s1 + $0x4] sm:$0xf]
        %v606 = vld [vmem:[%s1 + $0x8] sm:$0xf]
        %v607 = vld [vmem:[%s1 + $0xc] sm:$0x3]
        %v608 = vpack.c.bf16 %v573, %v572
        %v609 = vpack.c.bf16 %v575, %v574
        %v610 = vpack.c.bf16 %v577, %v576
        %v611 = vpack.c.bf16 %v579, %v578
        %v612 = vpack.c.bf16 %v581, %v580
        %v613 = vpack.c.bf16 %v583, %v582
        %v614 = vpack.c.bf16 %v585, %v584
        %v615 = vpack.c.bf16 %v587, %v586
        %v616 = vpack.c.bf16 %v589, %v588
        %v617 = vpack.c.bf16 %v591, %v590
        %v618 = vpack.c.bf16 %v593, %v592
        %v619 = vpack.c.bf16 %v595, %v594
        %v620 = vpack.c.bf16 %v597, %v596
        %v621 = vpack.c.bf16 %v599, %v598
        %v622 = vpack.c.bf16 %v601, %v600
        %v623 = vpack.c.bf16 %v603, %v602
        %v624 = vld [vmem:[%s2] sm:$0x1]
        %v626 = vperm.slane %v624, 0
        %v632 = vunpack.c.l.b16 %v604
        %v633 = vunpack.c.l.b16 %v605
        %v634 = vunpack.c.l.b16 %v606
        %v635 = vunpack.c.l.b16 %v607
        %v636 = vpack.c.b16 %v633, %v632
        %v637 = vpack.c.b16 %v635, %v634
        %vm639 = vcmask 228352
        %v641 = vsel %vm639, %v608, 0
        %v644 = vsel %vm639, %v609, 0
        %v647 = vsel %vm639, %v610, 0
        %v650 = vsel %vm639, %v611, 0
        %v653 = vsel %vm639, %v612, 0
        %v656 = vsel %vm639, %v613, 0
        %v659 = vsel %vm639, %v614, 0
        %v662 = vsel %vm639, %v615, 0
        %v665 = vsel %vm639, %v616, 0
        %v668 = vsel %vm639, %v617, 0
        %v671 = vsel %vm639, %v618, 0
        %v674 = vsel %vm639, %v619, 0
        %v677 = vsel %vm639, %v620, 0
        %v680 = vsel %vm639, %v621, 0
        %v683 = vsel %vm639, %v622, 0
        %v686 = vsel %vm639, %v623, 0
        %vm688 = vcmask 1045504
        %v690 = vsel %vm688, %v637, 0
        %692 = vmatpush.bf16.msra.mxu0 0
        %693 = vmatpush.bf16.msra.mxu0 0
        %694 = vmatpush.bf16.msra.mxu0 0
        %695 = vmatpush.bf16.msra.mxu0 0
        %696 = vmatpush.bf16.msra.mxu0 0
        %697 = vmatpush.bf16.msra.mxu0 0
        %698 = vmatpush.bf16.msra.mxu0 %v690
        %699 = vmatpush.bf16.msra.mxu0 %v636
        %700 = vmatmul.bf16.gmra.mxu0 %v641
        %v701 = vpop.f32.mrf.mxu0
        %v702 = vadd.f32 %v626, %v701
        %v703 = vpop.f32.mrf.mxu0
        %v704 = vadd.f32 %v626, %v703
        %705 = vmatmul.bf16.gmra.mxu0 %v644
        %v706 = vpop.f32.mrf.mxu0
        %v707 = vadd.f32 %v626, %v706
        %v708 = vpop.f32.mrf.mxu0
        %v709 = vadd.f32 %v626, %v708
        %710 = vmatmul.bf16.gmra.mxu0 %v647
        %v711 = vpop.f32.mrf.mxu0
        %v712 = vadd.f32 %v626, %v711
        %v713 = vpop.f32.mrf.mxu0
        %v714 = vadd.f32 %v626, %v713
        %715 = vmatmul.bf16.gmra.mxu0 %v650
        %v716 = vpop.f32.mrf.mxu0
        %v717 = vadd.f32 %v626, %v716
        %v718 = vpop.f32.mrf.mxu0
        %v719 = vadd.f32 %v626, %v718
        %720 = vmatmul.bf16.gmra.mxu0 %v653
        %v721 = vpop.f32.mrf.mxu0
        %v722 = vadd.f32 %v626, %v721
        %v723 = vpop.f32.mrf.mxu0
        %v724 = vadd.f32 %v626, %v723
        %725 = vmatmul.bf16.gmra.mxu0 %v656
        %v726 = vpop.f32.mrf.mxu0
        %v727 = vadd.f32 %v626, %v726
        %v728 = vpop.f32.mrf.mxu0
        %v729 = vadd.f32 %v626, %v728
        %730 = vmatmul.bf16.gmra.mxu0 %v659
        %v731 = vpop.f32.mrf.mxu0
        %v732 = vadd.f32 %v626, %v731
        %v733 = vpop.f32.mrf.mxu0
        %v734 = vadd.f32 %v626, %v733
        %735 = vmatmul.bf16.gmra.mxu0 %v662
        %v736 = vpop.f32.mrf.mxu0
        %v737 = vadd.f32 %v626, %v736
        %v738 = vpop.f32.mrf.mxu0
        %v739 = vadd.f32 %v626, %v738
        %740 = vmatmul.bf16.gmra.mxu0 %v665
        %v741 = vpop.f32.mrf.mxu0
        %v742 = vadd.f32 %v626, %v741
        %v743 = vpop.f32.mrf.mxu0
        %v744 = vadd.f32 %v626, %v743
        %745 = vmatmul.bf16.gmra.mxu0 %v668
        %v746 = vpop.f32.mrf.mxu0
        %v747 = vadd.f32 %v626, %v746
        %v748 = vpop.f32.mrf.mxu0
        %v749 = vadd.f32 %v626, %v748
        %750 = vmatmul.bf16.gmra.mxu0 %v671
        %v751 = vpop.f32.mrf.mxu0
        %v752 = vadd.f32 %v626, %v751
        %v753 = vpop.f32.mrf.mxu0
        %v754 = vadd.f32 %v626, %v753
        %755 = vmatmul.bf16.gmra.mxu0 %v674
        %v756 = vpop.f32.mrf.mxu0
        %v757 = vadd.f32 %v626, %v756
        %v758 = vpop.f32.mrf.mxu0
        %v759 = vadd.f32 %v626, %v758
        %760 = vmatmul.bf16.gmra.mxu0 %v677
        %v761 = vpop.f32.mrf.mxu0
        %v762 = vadd.f32 %v626, %v761
        %v763 = vpop.f32.mrf.mxu0
        %v764 = vadd.f32 %v626, %v763
        %765 = vmatmul.bf16.gmra.mxu0 %v680
        %v766 = vpop.f32.mrf.mxu0
        %v767 = vadd.f32 %v626, %v766
        %v768 = vpop.f32.mrf.mxu0
        %v769 = vadd.f32 %v626, %v768
        %770 = vmatmul.bf16.gmra.mxu0 %v683
        %v771 = vpop.f32.mrf.mxu0
        %v772 = vadd.f32 %v626, %v771
        %v773 = vpop.f32.mrf.mxu0
        %v774 = vadd.f32 %v626, %v773
        %775 = vmatmul.bf16.gmra.mxu0 %v686
        %v776 = vpop.f32.mrf.mxu0
        %v777 = vadd.f32 %v626, %v776
        %v778 = vpop.f32.mrf.mxu0
        %v779 = vadd.f32 %v626, %v778
        %780 = vdwg.mxu0
        %v781 = vmax.f32 %v702, 0.0
        %v782 = vmax.f32 %v704, 0.0
        %v783 = vmax.f32 %v707, 0.0
        %v784 = vmax.f32 %v709, 0.0
        %v785 = vmax.f32 %v712, 0.0
        %v786 = vmax.f32 %v714, 0.0
        %v787 = vmax.f32 %v717, 0.0
        %v788 = vmax.f32 %v719, 0.0
        %v789 = vmax.f32 %v722, 0.0
        %v790 = vmax.f32 %v724, 0.0
        %v791 = vmax.f32 %v727, 0.0
        %v792 = vmax.f32 %v729, 0.0
        %v793 = vmax.f32 %v732, 0.0
        %v794 = vmax.f32 %v734, 0.0
        %v795 = vmax.f32 %v737, 0.0
        %v796 = vmax.f32 %v739, 0.0
        %v797 = vmax.f32 %v742, 0.0
        %v798 = vmax.f32 %v744, 0.0
        %v799 = vmax.f32 %v747, 0.0
        %v800 = vmax.f32 %v749, 0.0
        %v801 = vmax.f32 %v752, 0.0
        %v802 = vmax.f32 %v754, 0.0
        %v803 = vmax.f32 %v757, 0.0
        %v804 = vmax.f32 %v759, 0.0
        %v805 = vmax.f32 %v762, 0.0
        %v806 = vmax.f32 %v764, 0.0
        %v807 = vmax.f32 %v767, 0.0
        %v808 = vmax.f32 %v769, 0.0
        %v809 = vmax.f32 %v772, 0.0
        %v810 = vmax.f32 %v774, 0.0
        %v811 = vmax.f32 %v777, 0.0
        %v812 = vmax.f32 %v779, 0.0
        %v813 = vld [vmem:[%s3] sm:$0xf]
        %v814 = vld [vmem:[%s3 + $0x4] sm:$0xf]
        %v815 = vld [vmem:[%s3 + $0x8] sm:$0xf]
        %v816 = vld [vmem:[%s3 + $0xc] sm:$0xf]
        %v817 = vpack.c.bf16 %v782, %v781
        %v818 = vpack.c.bf16 %v784, %v783
        %v819 = vpack.c.bf16 %v786, %v785
        %v820 = vpack.c.bf16 %v788, %v787
        %v821 = vpack.c.bf16 %v790, %v789
        %v822 = vpack.c.bf16 %v792, %v791
        %v823 = vpack.c.bf16 %v794, %v793
        %v824 = vpack.c.bf16 %v796, %v795
        %v825 = vpack.c.bf16 %v798, %v797
        %v826 = vpack.c.bf16 %v800, %v799
        %v827 = vpack.c.bf16 %v802, %v801
        %v828 = vpack.c.bf16 %v804, %v803
        %v829 = vpack.c.bf16 %v806, %v805
        %v830 = vpack.c.bf16 %v808, %v807
        %v831 = vpack.c.bf16 %v810, %v809
        %v832 = vpack.c.bf16 %v812, %v811
        %v833 = vld [vmem:[%s4] sm:$0x1]
        %v835 = vperm.slane %v833, 0
        %v841 = vunpack.c.l.b16 %v813
        %v842 = vunpack.c.l.b16 %v814
        %v843 = vunpack.c.l.b16 %v815
        %v844 = vunpack.c.l.b16 %v816
        %v845 = vpack.c.b16 %v842, %v841
        %v846 = vpack.c.b16 %v844, %v843
        %vm849 = vcmask 261120
        %v851 = vsel %vm849, %v817, 0
        %v854 = vsel %vm849, %v818, 0
        %v857 = vsel %vm849, %v819, 0
        %v860 = vsel %vm849, %v820, 0
        %v863 = vsel %vm849, %v821, 0
        %v866 = vsel %vm849, %v822, 0
        %v869 = vsel %vm849, %v823, 0
        %v872 = vsel %vm849, %v824, 0
        %v875 = vsel %vm849, %v825, 0
        %v878 = vsel %vm849, %v826, 0
        %v881 = vsel %vm849, %v827, 0
        %v884 = vsel %vm849, %v828, 0
        %v887 = vsel %vm849, %v829, 0
        %v890 = vsel %vm849, %v830, 0
        %v893 = vsel %vm849, %v831, 0
        %v896 = vsel %vm849, %v832, 0
        %898 = vmatpush.bf16.msra.mxu0 0
        %899 = vmatpush.bf16.msra.mxu0 0
        %900 = vmatpush.bf16.msra.mxu0 0
        %901 = vmatpush.bf16.msra.mxu0 0
        %902 = vmatpush.bf16.msra.mxu0 0
        %903 = vmatpush.bf16.msra.mxu0 0
        %904 = vmatpush.bf16.msra.mxu0 %v846
        %905 = vmatpush.bf16.msra.mxu0 %v845
        %906 = vmatmul.bf16.gmra.mxu0 %v851
        %v907 = vpop.f32.mrf.mxu0
        %v908 = vadd.f32 %v835, %v907
        %v909 = vpop.f32.mrf.mxu0
        %v910 = vadd.f32 %v835, %v909
        %911 = vmatmul.bf16.gmra.mxu0 %v854
        %v912 = vpop.f32.mrf.mxu0
        %v913 = vadd.f32 %v835, %v912
        %v914 = vpop.f32.mrf.mxu0
        %v915 = vadd.f32 %v835, %v914
        %916 = vmatmul.bf16.gmra.mxu0 %v857
        %v917 = vpop.f32.mrf.mxu0
        %v918 = vadd.f32 %v835, %v917
        %v919 = vpop.f32.mrf.mxu0
        %v920 = vadd.f32 %v835, %v919
        %921 = vmatmul.bf16.gmra.mxu0 %v860
        %v922 = vpop.f32.mrf.mxu0
        %v923 = vadd.f32 %v835, %v922
        %v924 = vpop.f32.mrf.mxu0
        %v925 = vadd.f32 %v835, %v924
        %926 = vmatmul.bf16.gmra.mxu0 %v863
        %v927 = vpop.f32.mrf.mxu0
        %v928 = vadd.f32 %v835, %v927
        %v929 = vpop.f32.mrf.mxu0
        %v930 = vadd.f32 %v835, %v929
        %931 = vmatmul.bf16.gmra.mxu0 %v866
        %v932 = vpop.f32.mrf.mxu0
        %v933 = vadd.f32 %v835, %v932
        %v934 = vpop.f32.mrf.mxu0
        %v935 = vadd.f32 %v835, %v934
        %936 = vmatmul.bf16.gmra.mxu0 %v869
        %v937 = vpop.f32.mrf.mxu0
        %v938 = vadd.f32 %v835, %v937
        %v939 = vpop.f32.mrf.mxu0
        %v940 = vadd.f32 %v835, %v939
        %941 = vmatmul.bf16.gmra.mxu0 %v872
        %v942 = vpop.f32.mrf.mxu0
        %v943 = vadd.f32 %v835, %v942
        %v944 = vpop.f32.mrf.mxu0
        %v945 = vadd.f32 %v835, %v944
        %946 = vmatmul.bf16.gmra.mxu0 %v875
        %v947 = vpop.f32.mrf.mxu0
        %v948 = vadd.f32 %v835, %v947
        %v949 = vpop.f32.mrf.mxu0
        %v950 = vadd.f32 %v835, %v949
        %951 = vmatmul.bf16.gmra.mxu0 %v878
        %v952 = vpop.f32.mrf.mxu0
        %v953 = vadd.f32 %v835, %v952
        %v954 = vpop.f32.mrf.mxu0
        %v955 = vadd.f32 %v835, %v954
        %956 = vmatmul.bf16.gmra.mxu0 %v881
        %v957 = vpop.f32.mrf.mxu0
        %v958 = vadd.f32 %v835, %v957
        %v959 = vpop.f32.mrf.mxu0
        %v960 = vadd.f32 %v835, %v959
        %961 = vmatmul.bf16.gmra.mxu0 %v884
        %v962 = vpop.f32.mrf.mxu0
        %v963 = vadd.f32 %v835, %v962
        %v964 = vpop.f32.mrf.mxu0
        %v965 = vadd.f32 %v835, %v964
        %966 = vmatmul.bf16.gmra.mxu0 %v887
        %v967 = vpop.f32.mrf.mxu0
        %v968 = vadd.f32 %v835, %v967
        %v969 = vpop.f32.mrf.mxu0
        %v970 = vadd.f32 %v835, %v969
        %971 = vmatmul.bf16.gmra.mxu0 %v890
        %v972 = vpop.f32.mrf.mxu0
        %v973 = vadd.f32 %v835, %v972
        %v974 = vpop.f32.mrf.mxu0
        %v975 = vadd.f32 %v835, %v974
        %976 = vmatmul.bf16.gmra.mxu0 %v893
        %v977 = vpop.f32.mrf.mxu0
        %v978 = vadd.f32 %v835, %v977
        %v979 = vpop.f32.mrf.mxu0
        %v980 = vadd.f32 %v835, %v979
        %981 = vmatmul.bf16.gmra.mxu0 %v896
        %v982 = vpop.f32.mrf.mxu0
        %v983 = vadd.f32 %v835, %v982
        %v984 = vpop.f32.mrf.mxu0
        %v985 = vadd.f32 %v835, %v984
        %986 = vdwg.mxu0
        %v987 = vmax.f32 %v908, 0.0
        %v988 = vmax.f32 %v910, 0.0
        %v989 = vmax.f32 %v913, 0.0
        %v990 = vmax.f32 %v915, 0.0
        %v991 = vmax.f32 %v918, 0.0
        %v992 = vmax.f32 %v920, 0.0
        %v993 = vmax.f32 %v923, 0.0
        %v994 = vmax.f32 %v925, 0.0
        %v995 = vmax.f32 %v928, 0.0
        %v996 = vmax.f32 %v930, 0.0
        %v997 = vmax.f32 %v933, 0.0
        %v998 = vmax.f32 %v935, 0.0
        %v999 = vmax.f32 %v938, 0.0
        %v1000 = vmax.f32 %v940, 0.0
        %v1001 = vmax.f32 %v943, 0.0
        %v1002 = vmax.f32 %v945, 0.0
        %v1003 = vmax.f32 %v948, 0.0
        %v1004 = vmax.f32 %v950, 0.0
        %v1005 = vmax.f32 %v953, 0.0
        %v1006 = vmax.f32 %v955, 0.0
        %v1007 = vmax.f32 %v958, 0.0
        %v1008 = vmax.f32 %v960, 0.0
        %v1009 = vmax.f32 %v963, 0.0
        %v1010 = vmax.f32 %v965, 0.0
        %v1011 = vmax.f32 %v968, 0.0
        %v1012 = vmax.f32 %v970, 0.0
        %v1013 = vmax.f32 %v973, 0.0
        %v1014 = vmax.f32 %v975, 0.0
        %v1015 = vmax.f32 %v978, 0.0
        %v1016 = vmax.f32 %v980, 0.0
        %v1017 = vmax.f32 %v983, 0.0
        %v1018 = vmax.f32 %v985, 0.0
        %v1019 = vld [vmem:[%s5] sm:$0xf]
        %v1020 = vld [vmem:[%s5 + $0x4] sm:$0xf]
        %v1021 = vld [vmem:[%s5 + $0x8] sm:$0xf]
        %v1022 = vld [vmem:[%s5 + $0xc] sm:$0xf]
        %v1023 = vld [vmem:[%s5 + $0x10] sm:$0xf]
        %v1024 = vld [vmem:[%s5 + $0x14] sm:$0xf]
        %v1025 = vld [vmem:[%s5 + $0x18] sm:$0xf]
        %v1026 = vld [vmem:[%s5 + $0x1c] sm:$0xf]
        %v1027 = vpack.c.bf16 %v988, %v987
        %v1028 = vpack.c.bf16 %v990, %v989
        %v1029 = vpack.c.bf16 %v992, %v991
        %v1030 = vpack.c.bf16 %v994, %v993
        %v1031 = vpack.c.bf16 %v996, %v995
        %v1032 = vpack.c.bf16 %v998, %v997
        %v1033 = vpack.c.bf16 %v1000, %v999
        %v1034 = vpack.c.bf16 %v1002, %v1001
        %v1035 = vpack.c.bf16 %v1004, %v1003
        %v1036 = vpack.c.bf16 %v1006, %v1005
        %v1037 = vpack.c.bf16 %v1008, %v1007
        %v1038 = vpack.c.bf16 %v1010, %v1009
        %v1039 = vpack.c.bf16 %v1012, %v1011
        %v1040 = vpack.c.bf16 %v1014, %v1013
        %v1041 = vpack.c.bf16 %v1016, %v1015
        %v1042 = vpack.c.bf16 %v1018, %v1017
        %v1043 = vld [vmem:[%s6] sm:$0x1]
        %v1045 = vperm.slane %v1043, 0
        %v1055 = vunpack.c.l.b16 %v1019
        %v1056 = vunpack.c.l.b16 %v1020
        %v1057 = vunpack.c.l.b16 %v1021
        %v1058 = vunpack.c.l.b16 %v1022
        %v1059 = vunpack.c.l.b16 %v1023
        %v1060 = vunpack.c.l.b16 %v1024
        %v1061 = vunpack.c.l.b16 %v1025
        %v1062 = vunpack.c.l.b16 %v1026
        %v1063 = vpack.c.b16 %v1056, %v1055
        %v1064 = vpack.c.b16 %v1058, %v1057
        %v1065 = vpack.c.b16 %v1060, %v1059
        %v1066 = vpack.c.b16 %v1062, %v1061
        %vm1071 = vcmask 523264
        %v1073 = vsel %vm1071, %v1027, 0
        %v1076 = vsel %vm1071, %v1028, 0
        %v1079 = vsel %vm1071, %v1029, 0
        %v1082 = vsel %vm1071, %v1030, 0
        %v1085 = vsel %vm1071, %v1031, 0
        %v1088 = vsel %vm1071, %v1032, 0
        %v1091 = vsel %vm1071, %v1033, 0
        %v1094 = vsel %vm1071, %v1034, 0
        %v1097 = vsel %vm1071, %v1035, 0
        %v1100 = vsel %vm1071, %v1036, 0
        %v1103 = vsel %vm1071, %v1037, 0
        %v1106 = vsel %vm1071, %v1038, 0
        %v1109 = vsel %vm1071, %v1039, 0
        %v1112 = vsel %vm1071, %v1040, 0
        %v1115 = vsel %vm1071, %v1041, 0
        %v1118 = vsel %vm1071, %v1042, 0
        %1120 = vmatpush.bf16.msra.mxu0 0
        %1121 = vmatpush.bf16.msra.mxu0 0
        %1122 = vmatpush.bf16.msra.mxu0 0
        %1123 = vmatpush.bf16.msra.mxu0 0
        %1124 = vmatpush.bf16.msra.mxu0 %v1066
        %1125 = vmatpush.bf16.msra.mxu0 %v1065
        %1126 = vmatpush.bf16.msra.mxu0 %v1064
        %1127 = vmatpush.bf16.msra.mxu0 %v1063
        %1128 = vmatmul.bf16.gmra.mxu0 %v1073
        %v1129 = vpop.f32.mrf.mxu0
        %v1130 = vadd.f32 %v1045, %v1129
        %v1131 = vpop.f32.mrf.mxu0
        %v1132 = vadd.f32 %v1045, %v1131
        %1133 = vmatmul.bf16.gmra.mxu0 %v1076
        %v1134 = vpop.f32.mrf.mxu0
        %v1135 = vadd.f32 %v1045, %v1134
        %v1136 = vpop.f32.mrf.mxu0
        %v1137 = vadd.f32 %v1045, %v1136
        %1138 = vmatmul.bf16.gmra.mxu0 %v1079
        %v1139 = vpop.f32.mrf.mxu0
        %v1140 = vadd.f32 %v1045, %v1139
        %v1141 = vpop.f32.mrf.mxu0
        %v1142 = vadd.f32 %v1045, %v1141
        %1143 = vmatmul.bf16.gmra.mxu0 %v1082
        %v1144 = vpop.f32.mrf.mxu0
        %v1145 = vadd.f32 %v1045, %v1144
        %v1146 = vpop.f32.mrf.mxu0
        %v1147 = vadd.f32 %v1045, %v1146
        %1148 = vmatmul.bf16.gmra.mxu0 %v1085
        %v1149 = vpop.f32.mrf.mxu0
        %v1150 = vadd.f32 %v1045, %v1149
        %v1151 = vpop.f32.mrf.mxu0
        %v1152 = vadd.f32 %v1045, %v1151
        %1153 = vmatmul.bf16.gmra.mxu0 %v1088
        %v1154 = vpop.f32.mrf.mxu0
        %v1155 = vadd.f32 %v1045, %v1154
        %v1156 = vpop.f32.mrf.mxu0
        %v1157 = vadd.f32 %v1045, %v1156
        %1158 = vmatmul.bf16.gmra.mxu0 %v1091
        %v1159 = vpop.f32.mrf.mxu0
        %v1160 = vadd.f32 %v1045, %v1159
        %v1161 = vpop.f32.mrf.mxu0
        %v1162 = vadd.f32 %v1045, %v1161
        %1163 = vmatmul.bf16.gmra.mxu0 %v1094
        %v1164 = vpop.f32.mrf.mxu0
        %v1165 = vadd.f32 %v1045, %v1164
        %v1166 = vpop.f32.mrf.mxu0
        %v1167 = vadd.f32 %v1045, %v1166
        %1168 = vmatmul.bf16.gmra.mxu0 %v1097
        %v1169 = vpop.f32.mrf.mxu0
        %v1170 = vadd.f32 %v1045, %v1169
        %v1171 = vpop.f32.mrf.mxu0
        %v1172 = vadd.f32 %v1045, %v1171
        %1173 = vmatmul.bf16.gmra.mxu0 %v1100
        %v1174 = vpop.f32.mrf.mxu0
        %v1175 = vadd.f32 %v1045, %v1174
        %v1176 = vpop.f32.mrf.mxu0
        %v1177 = vadd.f32 %v1045, %v1176
        %1178 = vmatmul.bf16.gmra.mxu0 %v1103
        %v1179 = vpop.f32.mrf.mxu0
        %v1180 = vadd.f32 %v1045, %v1179
        %v1181 = vpop.f32.mrf.mxu0
        %v1182 = vadd.f32 %v1045, %v1181
        %1183 = vmatmul.bf16.gmra.mxu0 %v1106
        %v1184 = vpop.f32.mrf.mxu0
        %v1185 = vadd.f32 %v1045, %v1184
        %v1186 = vpop.f32.mrf.mxu0
        %v1187 = vadd.f32 %v1045, %v1186
        %1188 = vmatmul.bf16.gmra.mxu0 %v1109
        %v1189 = vpop.f32.mrf.mxu0
        %v1190 = vadd.f32 %v1045, %v1189
        %v1191 = vpop.f32.mrf.mxu0
        %v1192 = vadd.f32 %v1045, %v1191
        %1193 = vmatmul.bf16.gmra.mxu0 %v1112
        %v1194 = vpop.f32.mrf.mxu0
        %v1195 = vadd.f32 %v1045, %v1194
        %v1196 = vpop.f32.mrf.mxu0
        %v1197 = vadd.f32 %v1045, %v1196
        %1198 = vmatmul.bf16.gmra.mxu0 %v1115
        %v1199 = vpop.f32.mrf.mxu0
        %v1200 = vadd.f32 %v1045, %v1199
        %v1201 = vpop.f32.mrf.mxu0
        %v1202 = vadd.f32 %v1045, %v1201
        %1203 = vmatmul.bf16.gmra.mxu0 %v1118
        %v1204 = vpop.f32.mrf.mxu0
        %v1205 = vadd.f32 %v1045, %v1204
        %v1206 = vpop.f32.mrf.mxu0
        %v1207 = vadd.f32 %v1045, %v1206
        %1208 = vdwg.mxu0
        %v1209 = vmax.f32 %v1130, 0.0
        %v1210 = vmax.f32 %v1132, 0.0
        %v1211 = vmax.f32 %v1135, 0.0
        %v1212 = vmax.f32 %v1137, 0.0
        %v1213 = vmax.f32 %v1140, 0.0
        %v1214 = vmax.f32 %v1142, 0.0
        %v1215 = vmax.f32 %v1145, 0.0
        %v1216 = vmax.f32 %v1147, 0.0
        %v1217 = vmax.f32 %v1150, 0.0
        %v1218 = vmax.f32 %v1152, 0.0
        %v1219 = vmax.f32 %v1155, 0.0
        %v1220 = vmax.f32 %v1157, 0.0
        %v1221 = vmax.f32 %v1160, 0.0
        %v1222 = vmax.f32 %v1162, 0.0
        %v1223 = vmax.f32 %v1165, 0.0
        %v1224 = vmax.f32 %v1167, 0.0
        %v1225 = vmax.f32 %v1170, 0.0
        %v1226 = vmax.f32 %v1172, 0.0
        %v1227 = vmax.f32 %v1175, 0.0
        %v1228 = vmax.f32 %v1177, 0.0
        %v1229 = vmax.f32 %v1180, 0.0
        %v1230 = vmax.f32 %v1182, 0.0
        %v1231 = vmax.f32 %v1185, 0.0
        %v1232 = vmax.f32 %v1187, 0.0
        %v1233 = vmax.f32 %v1190, 0.0
        %v1234 = vmax.f32 %v1192, 0.0
        %v1235 = vmax.f32 %v1195, 0.0
        %v1236 = vmax.f32 %v1197, 0.0
        %v1237 = vmax.f32 %v1200, 0.0
        %v1238 = vmax.f32 %v1202, 0.0
        %v1239 = vmax.f32 %v1205, 0.0
        %v1240 = vmax.f32 %v1207, 0.0
        %v1241 = vld [vmem:[%s7] sm:$0xff]
        %v1242 = vld [vmem:[%s7 + $0x8] sm:$0xff]
        %v1243 = vld [vmem:[%s7 + $0x10] sm:$0xff]
        %v1244 = vld [vmem:[%s7 + $0x18] sm:$0xff]
        %v1245 = vld [vmem:[%s7 + $0x20] sm:$0xff]
        %v1246 = vld [vmem:[%s7 + $0x28] sm:$0xff]
        %v1247 = vld [vmem:[%s7 + $0x30] sm:$0xff]
        %v1248 = vld [vmem:[%s7 + $0x38] sm:$0xff]
        %v1249 = vld [vmem:[%s7 + $0x40] sm:$0xff]
        %v1250 = vld [vmem:[%s7 + $0x48] sm:$0xff]
        %v1251 = vld [vmem:[%s7 + $0x50] sm:$0xff]
        %v1252 = vld [vmem:[%s7 + $0x58] sm:$0xff]
        %v1253 = vld [vmem:[%s7 + $0x60] sm:$0xff]
        %v1254 = vld [vmem:[%s7 + $0x68] sm:$0xff]
        %v1255 = vld [vmem:[%s7 + $0x70] sm:$0xff]
        %v1256 = vld [vmem:[%s7 + $0x78] sm:$0xff]
        %v1257 = vpack.c.bf16 %v1210, %v1209
        %v1258 = vpack.c.bf16 %v1212, %v1211
        %v1259 = vpack.c.bf16 %v1214, %v1213
        %v1260 = vpack.c.bf16 %v1216, %v1215
        %v1261 = vpack.c.bf16 %v1218, %v1217
        %v1262 = vpack.c.bf16 %v1220, %v1219
        %v1263 = vpack.c.bf16 %v1222, %v1221
        %v1264 = vpack.c.bf16 %v1224, %v1223
        %v1265 = vpack.c.bf16 %v1226, %v1225
        %v1266 = vpack.c.bf16 %v1228, %v1227
        %v1267 = vpack.c.bf16 %v1230, %v1229
        %v1268 = vpack.c.bf16 %v1232, %v1231
        %v1269 = vpack.c.bf16 %v1234, %v1233
        %v1270 = vpack.c.bf16 %v1236, %v1235
        %v1271 = vpack.c.bf16 %v1238, %v1237
        %v1272 = vpack.c.bf16 %v1240, %v1239
        %v1273 = vld [vmem:[%s8] sm:$0x3]
        %v1275 = vperm.slane %v1273, 0
        %v1276 = vperm.slane %v1273, 1
        %v1295 = vunpack.c.l.b16 %v1241
        %v1296 = vunpack.c.h.b16 %v1241
        %v1297 = vunpack.c.l.b16 %v1242
        %v1298 = vunpack.c.h.b16 %v1242
        %v1299 = vunpack.c.l.b16 %v1243
        %v1300 = vunpack.c.h.b16 %v1243
        %v1301 = vunpack.c.l.b16 %v1244
        %v1302 = vunpack.c.h.b16 %v1244
        %v1303 = vunpack.c.l.b16 %v1245
        %v1304 = vunpack.c.h.b16 %v1245
        %v1305 = vunpack.c.l.b16 %v1246
        %v1306 = vunpack.c.h.b16 %v1246
        %v1307 = vunpack.c.l.b16 %v1247
        %v1308 = vunpack.c.h.b16 %v1247
        %v1309 = vunpack.c.l.b16 %v1248
        %v1310 = vunpack.c.h.b16 %v1248
        %v1311 = vunpack.c.l.b16 %v1249
        %v1312 = vunpack.c.h.b16 %v1249
        %v1313 = vunpack.c.l.b16 %v1250
        %v1314 = vunpack.c.h.b16 %v1250
        %v1315 = vunpack.c.l.b16 %v1251
        %v1316 = vunpack.c.h.b16 %v1251
        %v1317 = vunpack.c.l.b16 %v1252
        %v1318 = vunpack.c.h.b16 %v1252
        %v1319 = vunpack.c.l.b16 %v1253
        %v1320 = vunpack.c.h.b16 %v1253
        %v1321 = vunpack.c.l.b16 %v1254
        %v1322 = vunpack.c.h.b16 %v1254
        %v1323 = vunpack.c.l.b16 %v1255
        %v1324 = vunpack.c.h.b16 %v1255
        %v1325 = vunpack.c.l.b16 %v1256
        %v1326 = vunpack.c.h.b16 %v1256
        %v1327 = vpack.c.b16 %v1297, %v1295
        %v1328 = vpack.c.b16 %v1298, %v1296
        %v1329 = vpack.c.b16 %v1301, %v1299
        %v1330 = vpack.c.b16 %v1302, %v1300
        %v1331 = vpack.c.b16 %v1305, %v1303
        %v1332 = vpack.c.b16 %v1306, %v1304
        %v1333 = vpack.c.b16 %v1309, %v1307
        %v1334 = vpack.c.b16 %v1310, %v1308
        %v1335 = vpack.c.b16 %v1313, %v1311
        %v1336 = vpack.c.b16 %v1314, %v1312
        %v1337 = vpack.c.b16 %v1317, %v1315
        %v1338 = vpack.c.b16 %v1318, %v1316
        %v1339 = vpack.c.b16 %v1321, %v1319
        %v1340 = vpack.c.b16 %v1322, %v1320
        %v1341 = vpack.c.b16 %v1325, %v1323
        %v1342 = vpack.c.b16 %v1326, %v1324
        %1359 = vmatpush.bf16.msra.mxu0 %v1341
        %1360 = vmatpush.bf16.msra.mxu0 %v1339
        %1361 = vmatpush.bf16.msra.mxu0 %v1337
        %1362 = vmatpush.bf16.msra.mxu0 %v1335
        %1363 = vmatpush.bf16.msra.mxu0 %v1333
        %1364 = vmatpush.bf16.msra.mxu0 %v1331
        %1365 = vmatpush.bf16.msra.mxu0 %v1329
        %1366 = vmatpush.bf16.msra.mxu0 %v1327
        %1367 = vmatmul.bf16.gmra.mxu0 %v1257
        %v1368 = vpop.f32.mrf.mxu0
        %v1369 = vadd.f32 %v1275, %v1368
        %v1370 = vpop.f32.mrf.mxu0
        %v1371 = vadd.f32 %v1275, %v1370
        %1372 = vmatmul.bf16.gmra.mxu0 %v1258
        %v1373 = vpop.f32.mrf.mxu0
        %v1374 = vadd.f32 %v1275, %v1373
        %v1375 = vpop.f32.mrf.mxu0
        %v1376 = vadd.f32 %v1275, %v1375
        %1377 = vmatmul.bf16.gmra.mxu0 %v1259
        %v1378 = vpop.f32.mrf.mxu0
        %v1379 = vadd.f32 %v1275, %v1378
        %v1380 = vpop.f32.mrf.mxu0
        %v1381 = vadd.f32 %v1275, %v1380
        %1382 = vmatmul.bf16.gmra.mxu0 %v1260
        %v1383 = vpop.f32.mrf.mxu0
        %v1384 = vadd.f32 %v1275, %v1383
        %v1385 = vpop.f32.mrf.mxu0
        %v1386 = vadd.f32 %v1275, %v1385
        %1387 = vmatmul.bf16.gmra.mxu0 %v1261
        %v1388 = vpop.f32.mrf.mxu0
        %v1389 = vadd.f32 %v1275, %v1388
        %v1390 = vpop.f32.mrf.mxu0
        %v1391 = vadd.f32 %v1275, %v1390
        %1392 = vmatmul.bf16.gmra.mxu0 %v1262
        %v1393 = vpop.f32.mrf.mxu0
        %v1394 = vadd.f32 %v1275, %v1393
        %v1395 = vpop.f32.mrf.mxu0
        %v1396 = vadd.f32 %v1275, %v1395
        %1397 = vmatmul.bf16.gmra.mxu0 %v1263
        %v1398 = vpop.f32.mrf.mxu0
        %v1399 = vadd.f32 %v1275, %v1398
        %v1400 = vpop.f32.mrf.mxu0
        %v1401 = vadd.f32 %v1275, %v1400
        %1402 = vmatmul.bf16.gmra.mxu0 %v1264
        %v1403 = vpop.f32.mrf.mxu0
        %v1404 = vadd.f32 %v1275, %v1403
        %v1405 = vpop.f32.mrf.mxu0
        %v1406 = vadd.f32 %v1275, %v1405
        %1407 = vmatmul.bf16.gmra.mxu0 %v1265
        %v1408 = vpop.f32.mrf.mxu0
        %v1409 = vadd.f32 %v1275, %v1408
        %v1410 = vpop.f32.mrf.mxu0
        %v1411 = vadd.f32 %v1275, %v1410
        %1412 = vmatmul.bf16.gmra.mxu0 %v1266
        %v1413 = vpop.f32.mrf.mxu0
        %v1414 = vadd.f32 %v1275, %v1413
        %v1415 = vpop.f32.mrf.mxu0
        %v1416 = vadd.f32 %v1275, %v1415
        %1417 = vmatmul.bf16.gmra.mxu0 %v1267
        %v1418 = vpop.f32.mrf.mxu0
        %v1419 = vadd.f32 %v1275, %v1418
        %v1420 = vpop.f32.mrf.mxu0
        %v1421 = vadd.f32 %v1275, %v1420
        %1422 = vmatmul.bf16.gmra.mxu0 %v1268
        %v1423 = vpop.f32.mrf.mxu0
        %v1424 = vadd.f32 %v1275, %v1423
        %v1425 = vpop.f32.mrf.mxu0
        %v1426 = vadd.f32 %v1275, %v1425
        %1427 = vmatmul.bf16.gmra.mxu0 %v1269
        %v1428 = vpop.f32.mrf.mxu0
        %v1429 = vadd.f32 %v1275, %v1428
        %v1430 = vpop.f32.mrf.mxu0
        %v1431 = vadd.f32 %v1275, %v1430
        %1432 = vmatmul.bf16.gmra.mxu0 %v1270
        %v1433 = vpop.f32.mrf.mxu0
        %v1434 = vadd.f32 %v1275, %v1433
        %v1435 = vpop.f32.mrf.mxu0
        %v1436 = vadd.f32 %v1275, %v1435
        %1437 = vmatmul.bf16.gmra.mxu0 %v1271
        %v1438 = vpop.f32.mrf.mxu0
        %v1439 = vadd.f32 %v1275, %v1438
        %v1440 = vpop.f32.mrf.mxu0
        %v1441 = vadd.f32 %v1275, %v1440
        %1442 = vmatmul.bf16.gmra.mxu0 %v1272
        %v1443 = vpop.f32.mrf.mxu0
        %v1444 = vadd.f32 %v1275, %v1443
        %v1445 = vpop.f32.mrf.mxu0
        %v1446 = vadd.f32 %v1275, %v1445
        %1447 = vdwg.mxu0
        %1448 = vmatpush.bf16.msra.mxu0 %v1342
        %1449 = vmatpush.bf16.msra.mxu0 %v1340
        %1450 = vmatpush.bf16.msra.mxu0 %v1338
        %1451 = vmatpush.bf16.msra.mxu0 %v1336
        %1452 = vmatpush.bf16.msra.mxu0 %v1334
        %1453 = vmatpush.bf16.msra.mxu0 %v1332
        %1454 = vmatpush.bf16.msra.mxu0 %v1330
        %1455 = vmatpush.bf16.msra.mxu0 %v1328
        %1456 = vmatmul.bf16.gmra.mxu0 %v1257
        %v1457 = vpop.f32.mrf.mxu0
        %v1458 = vadd.f32 %v1276, %v1457
        %v1459 = vpop.f32.mrf.mxu0
        %v1460 = vadd.f32 %v1276, %v1459
        %1461 = vmatmul.bf16.gmra.mxu0 %v1258
        %v1462 = vpop.f32.mrf.mxu0
        %v1463 = vadd.f32 %v1276, %v1462
        %v1464 = vpop.f32.mrf.mxu0
        %v1465 = vadd.f32 %v1276, %v1464
        %1466 = vmatmul.bf16.gmra.mxu0 %v1259
        %v1467 = vpop.f32.mrf.mxu0
        %v1468 = vadd.f32 %v1276, %v1467
        %v1469 = vpop.f32.mrf.mxu0
        %v1470 = vadd.f32 %v1276, %v1469
        %1471 = vmatmul.bf16.gmra.mxu0 %v1260
        %v1472 = vpop.f32.mrf.mxu0
        %v1473 = vadd.f32 %v1276, %v1472
        %v1474 = vpop.f32.mrf.mxu0
        %v1475 = vadd.f32 %v1276, %v1474
        %1476 = vmatmul.bf16.gmra.mxu0 %v1261
        %v1477 = vpop.f32.mrf.mxu0
        %v1478 = vadd.f32 %v1276, %v1477
        %v1479 = vpop.f32.mrf.mxu0
        %v1480 = vadd.f32 %v1276, %v1479
        %1481 = vmatmul.bf16.gmra.mxu0 %v1262
        %v1482 = vpop.f32.mrf.mxu0
        %v1483 = vadd.f32 %v1276, %v1482
        %v1484 = vpop.f32.mrf.mxu0
        %v1485 = vadd.f32 %v1276, %v1484
        %1486 = vmatmul.bf16.gmra.mxu0 %v1263
        %v1487 = vpop.f32.mrf.mxu0
        %v1488 = vadd.f32 %v1276, %v1487
        %v1489 = vpop.f32.mrf.mxu0
        %v1490 = vadd.f32 %v1276, %v1489
        %1491 = vmatmul.bf16.gmra.mxu0 %v1264
        %v1492 = vpop.f32.mrf.mxu0
        %v1493 = vadd.f32 %v1276, %v1492
        %v1494 = vpop.f32.mrf.mxu0
        %v1495 = vadd.f32 %v1276, %v1494
        %1496 = vmatmul.bf16.gmra.mxu0 %v1265
        %v1497 = vpop.f32.mrf.mxu0
        %v1498 = vadd.f32 %v1276, %v1497
        %v1499 = vpop.f32.mrf.mxu0
        %v1500 = vadd.f32 %v1276, %v1499
        %1501 = vmatmul.bf16.gmra.mxu0 %v1266
        %v1502 = vpop.f32.mrf.mxu0
        %v1503 = vadd.f32 %v1276, %v1502
        %v1504 = vpop.f32.mrf.mxu0
        %v1505 = vadd.f32 %v1276, %v1504
        %1506 = vmatmul.bf16.gmra.mxu0 %v1267
        %v1507 = vpop.f32.mrf.mxu0
        %v1508 = vadd.f32 %v1276, %v1507
        %v1509 = vpop.f32.mrf.mxu0
        %v1510 = vadd.f32 %v1276, %v1509
        %1511 = vmatmul.bf16.gmra.mxu0 %v1268
        %v1512 = vpop.f32.mrf.mxu0
        %v1513 = vadd.f32 %v1276, %v1512
        %v1514 = vpop.f32.mrf.mxu0
        %v1515 = vadd.f32 %v1276, %v1514
        %1516 = vmatmul.bf16.gmra.mxu0 %v1269
        %v1517 = vpop.f32.mrf.mxu0
        %v1518 = vadd.f32 %v1276, %v1517
        %v1519 = vpop.f32.mrf.mxu0
        %v1520 = vadd.f32 %v1276, %v1519
        %1521 = vmatmul.bf16.gmra.mxu0 %v1270
        %v1522 = vpop.f32.mrf.mxu0
        %v1523 = vadd.f32 %v1276, %v1522
        %v1524 = vpop.f32.mrf.mxu0
        %v1525 = vadd.f32 %v1276, %v1524
        %1526 = vmatmul.bf16.gmra.mxu0 %v1271
        %v1527 = vpop.f32.mrf.mxu0
        %v1528 = vadd.f32 %v1276, %v1527
        %v1529 = vpop.f32.mrf.mxu0
        %v1530 = vadd.f32 %v1276, %v1529
        %1531 = vmatmul.bf16.gmra.mxu0 %v1272
        %v1532 = vpop.f32.mrf.mxu0
        %v1533 = vadd.f32 %v1276, %v1532
        %v1534 = vpop.f32.mrf.mxu0
        %v1535 = vadd.f32 %v1276, %v1534
        %1536 = vdwg.mxu0
        %v1537 = vmax.f32 %v1369, 0.0
        %v1538 = vmax.f32 %v1458, 0.0
        %v1539 = vmax.f32 %v1371, 0.0
        %v1540 = vmax.f32 %v1460, 0.0
        %v1541 = vmax.f32 %v1374, 0.0
        %v1542 = vmax.f32 %v1463, 0.0
        %v1543 = vmax.f32 %v1376, 0.0
        %v1544 = vmax.f32 %v1465, 0.0
        %v1545 = vmax.f32 %v1379, 0.0
        %v1546 = vmax.f32 %v1468, 0.0
        %v1547 = vmax.f32 %v1381, 0.0
        %v1548 = vmax.f32 %v1470, 0.0
        %v1549 = vmax.f32 %v1384, 0.0
        %v1550 = vmax.f32 %v1473, 0.0
        %v1551 = vmax.f32 %v1386, 0.0
        %v1552 = vmax.f32 %v1475, 0.0
        %v1553 = vmax.f32 %v1389, 0.0
        %v1554 = vmax.f32 %v1478, 0.0
        %v1555 = vmax.f32 %v1391, 0.0
        %v1556 = vmax.f32 %v1480, 0.0
        %v1557 = vmax.f32 %v1394, 0.0
        %v1558 = vmax.f32 %v1483, 0.0
        %v1559 = vmax.f32 %v1396, 0.0
        %v1560 = vmax.f32 %v1485, 0.0
        %v1561 = vmax.f32 %v1399, 0.0
        %v1562 = vmax.f32 %v1488, 0.0
        %v1563 = vmax.f32 %v1401, 0.0
        %v1564 = vmax.f32 %v1490, 0.0
        %v1565 = vmax.f32 %v1404, 0.0
        %v1566 = vmax.f32 %v1493, 0.0
        %v1567 = vmax.f32 %v1406, 0.0
        %v1568 = vmax.f32 %v1495, 0.0
        %v1569 = vmax.f32 %v1409, 0.0
        %v1570 = vmax.f32 %v1498, 0.0
        %v1571 = vmax.f32 %v1411, 0.0
        %v1572 = vmax.f32 %v1500, 0.0
        %v1573 = vmax.f32 %v1414, 0.0
        %v1574 = vmax.f32 %v1503, 0.0
        %v1575 = vmax.f32 %v1416, 0.0
        %v1576 = vmax.f32 %v1505, 0.0
        %v1577 = vmax.f32 %v1419, 0.0
        %v1578 = vmax.f32 %v1508, 0.0
        %v1579 = vmax.f32 %v1421, 0.0
        %v1580 = vmax.f32 %v1510, 0.0
        %v1581 = vmax.f32 %v1424, 0.0
        %v1582 = vmax.f32 %v1513, 0.0
        %v1583 = vmax.f32 %v1426, 0.0
        %v1584 = vmax.f32 %v1515, 0.0
        %v1585 = vmax.f32 %v1429, 0.0
        %v1586 = vmax.f32 %v1518, 0.0
        %v1587 = vmax.f32 %v1431, 0.0
        %v1588 = vmax.f32 %v1520, 0.0
        %v1589 = vmax.f32 %v1434, 0.0
        %v1590 = vmax.f32 %v1523, 0.0
        %v1591 = vmax.f32 %v1436, 0.0
        %v1592 = vmax.f32 %v1525, 0.0
        %v1593 = vmax.f32 %v1439, 0.0
        %v1594 = vmax.f32 %v1528, 0.0
        %v1595 = vmax.f32 %v1441, 0.0
        %v1596 = vmax.f32 %v1530, 0.0
        %v1597 = vmax.f32 %v1444, 0.0
        %v1598 = vmax.f32 %v1533, 0.0
        %v1599 = vmax.f32 %v1446, 0.0
        %v1600 = vmax.f32 %v1535, 0.0
        %v1601 = vld [vmem:[%s9] sm:$0xff]
        %v1602 = vld [vmem:[%s9 + $0x8] sm:$0xff]
        %v1603 = vld [vmem:[%s9 + $0x10] sm:$0xff]
        %v1604 = vld [vmem:[%s9 + $0x18] sm:$0xff]
        %v1605 = vld [vmem:[%s9 + $0x20] sm:$0xff]
        %v1606 = vld [vmem:[%s9 + $0x28] sm:$0xff]
        %v1607 = vld [vmem:[%s9 + $0x30] sm:$0xff]
        %v1608 = vld [vmem:[%s9 + $0x38] sm:$0xff]
        %v1609 = vld [vmem:[%s9 + $0x40] sm:$0xff]
        %v1610 = vld [vmem:[%s9 + $0x48] sm:$0xff]
        %v1611 = vld [vmem:[%s9 + $0x50] sm:$0xff]
        %v1612 = vld [vmem:[%s9 + $0x58] sm:$0xff]
        %v1613 = vld [vmem:[%s9 + $0x60] sm:$0xff]
        %v1614 = vld [vmem:[%s9 + $0x68] sm:$0xff]
        %v1615 = vld [vmem:[%s9 + $0x70] sm:$0xff]
        %v1616 = vld [vmem:[%s9 + $0x78] sm:$0xff]
        %v1617 = vld [vmem:[%s9 + $0x80] sm:$0xff]
        %v1618 = vld [vmem:[%s9 + $0x88] sm:$0xff]
        %v1619 = vld [vmem:[%s9 + $0x90] sm:$0xff]
        %v1620 = vld [vmem:[%s9 + $0x98] sm:$0xff]
        %v1621 = vld [vmem:[%s9 + $0xa0] sm:$0xff]
        %v1622 = vld [vmem:[%s9 + $0xa8] sm:$0xff]
        %v1623 = vld [vmem:[%s9 + $0xb0] sm:$0xff]
        %v1624 = vld [vmem:[%s9 + $0xb8] sm:$0xff]
        %v1625 = vld [vmem:[%s9 + $0xc0] sm:$0xff]
        %v1626 = vld [vmem:[%s9 + $0xc8] sm:$0xff]
        %v1627 = vld [vmem:[%s9 + $0xd0] sm:$0xff]
        %v1628 = vld [vmem:[%s9 + $0xd8] sm:$0xff]
        %v1629 = vld [vmem:[%s9 + $0xe0] sm:$0xff]
        %v1630 = vld [vmem:[%s9 + $0xe8] sm:$0xff]
        %v1631 = vld [vmem:[%s9 + $0xf0] sm:$0xff]
        %v1632 = vld [vmem:[%s9 + $0xf8] sm:$0xff]
        %v1633 = vld [vmem:[%s9 + $0x100] sm:$0xff]
        %v1634 = vld [vmem:[%s9 + $0x108] sm:$0xff]
        %v1635 = vld [vmem:[%s9 + $0x110] sm:$0xff]
        %v1636 = vld [vmem:[%s9 + $0x118] sm:$0xff]
        %v1637 = vld [vmem:[%s9 + $0x120] sm:$0xff]
        %v1638 = vld [vmem:[%s9 + $0x128] sm:$0xff]
        %v1639 = vld [vmem:[%s9 + $0x130] sm:$0xff]
        %v1640 = vld [vmem:[%s9 + $0x138] sm:$0xff]
        %v1641 = vld [vmem:[%s9 + $0x140] sm:$0xff]
        %v1642 = vld [vmem:[%s9 + $0x148] sm:$0xff]
        %v1643 = vld [vmem:[%s9 + $0x150] sm:$0xff]
        %v1644 = vld [vmem:[%s9 + $0x158] sm:$0xff]
        %v1645 = vld [vmem:[%s9 + $0x160] sm:$0xff]
        %v1646 = vld [vmem:[%s9 + $0x168] sm:$0xff]
        %v1647 = vld [vmem:[%s9 + $0x170] sm:$0xff]
        %v1648 = vld [vmem:[%s9 + $0x178] sm:$0xff]
        %v1649 = vld [vmem:[%s9 + $0x180] sm:$0xff]
        %v1650 = vld [vmem:[%s9 + $0x188] sm:$0xff]
        %v1651 = vld [vmem:[%s9 + $0x190] sm:$0xff]
        %v1652 = vld [vmem:[%s9 + $0x198] sm:$0xff]
        %v1653 = vld [vmem:[%s9 + $0x1a0] sm:$0xff]
        %v1654 = vld [vmem:[%s9 + $0x1a8] sm:$0xff]
        %v1655 = vld [vmem:[%s9 + $0x1b0] sm:$0xff]
        %v1656 = vld [vmem:[%s9 + $0x1b8] sm:$0xff]
        %v1657 = vld [vmem:[%s9 + $0x1c0] sm:$0xff]
        %v1658 = vld [vmem:[%s9 + $0x1c8] sm:$0xff]
        %v1659 = vld [vmem:[%s9 + $0x1d0] sm:$0xff]
        %v1660 = vld [vmem:[%s9 + $0x1d8] sm:$0xff]
        %v1661 = vld [vmem:[%s9 + $0x1e0] sm:$0xff]
        %v1662 = vld [vmem:[%s9 + $0x1e8] sm:$0xff]
        %v1663 = vld [vmem:[%s9 + $0x1f0] sm:$0xff]
        %v1664 = vld [vmem:[%s9 + $0x1f8] sm:$0xff]
        %v1665 = vpack.c.bf16 %v1539, %v1537
        %v1666 = vpack.c.bf16 %v1540, %v1538
        %v1667 = vpack.c.bf16 %v1543, %v1541
        %v1668 = vpack.c.bf16 %v1544, %v1542
        %v1669 = vpack.c.bf16 %v1547, %v1545
        %v1670 = vpack.c.bf16 %v1548, %v1546
        %v1671 = vpack.c.bf16 %v1551, %v1549
        %v1672 = vpack.c.bf16 %v1552, %v1550
        %v1673 = vpack.c.bf16 %v1555, %v1553
        %v1674 = vpack.c.bf16 %v1556, %v1554
        %v1675 = vpack.c.bf16 %v1559, %v1557
        %v1676 = vpack.c.bf16 %v1560, %v1558
        %v1677 = vpack.c.bf16 %v1563, %v1561
        %v1678 = vpack.c.bf16 %v1564, %v1562
        %v1679 = vpack.c.bf16 %v1567, %v1565
        %v1680 = vpack.c.bf16 %v1568, %v1566
        %v1681 = vpack.c.bf16 %v1571, %v1569
        %v1682 = vpack.c.bf16 %v1572, %v1570
        %v1683 = vpack.c.bf16 %v1575, %v1573
        %v1684 = vpack.c.bf16 %v1576, %v1574
        %v1685 = vpack.c.bf16 %v1579, %v1577
        %v1686 = vpack.c.bf16 %v1580, %v1578
        %v1687 = vpack.c.bf16 %v1583, %v1581
        %v1688 = vpack.c.bf16 %v1584, %v1582
        %v1689 = vpack.c.bf16 %v1587, %v1585
        %v1690 = vpack.c.bf16 %v1588, %v1586
        %v1691 = vpack.c.bf16 %v1591, %v1589
        %v1692 = vpack.c.bf16 %v1592, %v1590
        %v1693 = vpack.c.bf16 %v1595, %v1593
        %v1694 = vpack.c.bf16 %v1596, %v1594
        %v1695 = vpack.c.bf16 %v1599, %v1597
        %v1696 = vpack.c.bf16 %v1600, %v1598
        %v1697 = vld [vmem:[%s10] sm:$0xf]
        %v1699 = vperm.slane %v1697, 0
        %v1700 = vperm.slane %v1697, 1
        %v1701 = vperm.slane %v1697, 2
        %v1702 = vperm.slane %v1697, 3
        %v1771 = vunpack.c.l.b16 %v1601
        %v1772 = vunpack.c.h.b16 %v1601
        %v1773 = vunpack.c.l.b16 %v1602
        %v1774 = vunpack.c.h.b16 %v1602
        %v1775 = vunpack.c.l.b16 %v1603
        %v1776 = vunpack.c.h.b16 %v1603
        %v1777 = vunpack.c.l.b16 %v1604
        %v1778 = vunpack.c.h.b16 %v1604
        %v1779 = vunpack.c.l.b16 %v1605
        %v1780 = vunpack.c.h.b16 %v1605
        %v1781 = vunpack.c.l.b16 %v1606
        %v1782 = vunpack.c.h.b16 %v1606
        %v1783 = vunpack.c.l.b16 %v1607
        %v1784 = vunpack.c.h.b16 %v1607
        %v1785 = vunpack.c.l.b16 %v1608
        %v1786 = vunpack.c.h.b16 %v1608
        %v1787 = vunpack.c.l.b16 %v1609
        %v1788 = vunpack.c.h.b16 %v1609
        %v1789 = vunpack.c.l.b16 %v1610
        %v1790 = vunpack.c.h.b16 %v1610
        %v1791 = vunpack.c.l.b16 %v1611
        %v1792 = vunpack.c.h.b16 %v1611
        %v1793 = vunpack.c.l.b16 %v1612
        %v1794 = vunpack.c.h.b16 %v1612
        %v1795 = vunpack.c.l.b16 %v1613
        %v1796 = vunpack.c.h.b16 %v1613
        %v1797 = vunpack.c.l.b16 %v1614
        %v1798 = vunpack.c.h.b16 %v1614
        %v1799 = vunpack.c.l.b16 %v1615
        %v1800 = vunpack.c.h.b16 %v1615
        %v1801 = vunpack.c.l.b16 %v1616
        %v1802 = vunpack.c.h.b16 %v1616
        %v1803 = vunpack.c.l.b16 %v1617
        %v1804 = vunpack.c.h.b16 %v1617
        %v1805 = vunpack.c.l.b16 %v1618
        %v1806 = vunpack.c.h.b16 %v1618
        %v1807 = vunpack.c.l.b16 %v1619
        %v1808 = vunpack.c.h.b16 %v1619
        %v1809 = vunpack.c.l.b16 %v1620
        %v1810 = vunpack.c.h.b16 %v1620
        %v1811 = vunpack.c.l.b16 %v1621
        %v1812 = vunpack.c.h.b16 %v1621
        %v1813 = vunpack.c.l.b16 %v1622
        %v1814 = vunpack.c.h.b16 %v1622
        %v1815 = vunpack.c.l.b16 %v1623
        %v1816 = vunpack.c.h.b16 %v1623
        %v1817 = vunpack.c.l.b16 %v1624
        %v1818 = vunpack.c.h.b16 %v1624
        %v1819 = vunpack.c.l.b16 %v1625
        %v1820 = vunpack.c.h.b16 %v1625
        %v1821 = vunpack.c.l.b16 %v1626
        %v1822 = vunpack.c.h.b16 %v1626
        %v1823 = vunpack.c.l.b16 %v1627
        %v1824 = vunpack.c.h.b16 %v1627
        %v1825 = vunpack.c.l.b16 %v1628
        %v1826 = vunpack.c.h.b16 %v1628
        %v1827 = vunpack.c.l.b16 %v1629
        %v1828 = vunpack.c.h.b16 %v1629
        %v1829 = vunpack.c.l.b16 %v1630
        %v1830 = vunpack.c.h.b16 %v1630
        %v1831 = vunpack.c.l.b16 %v1631
        %v1832 = vunpack.c.h.b16 %v1631
        %v1833 = vunpack.c.l.b16 %v1632
        %v1834 = vunpack.c.h.b16 %v1632
        %v1835 = vunpack.c.l.b16 %v1633
        %v1836 = vunpack.c.h.b16 %v1633
        %v1837 = vunpack.c.l.b16 %v1634
        %v1838 = vunpack.c.h.b16 %v1634
        %v1839 = vunpack.c.l.b16 %v1635
        %v1840 = vunpack.c.h.b16 %v1635
        %v1841 = vunpack.c.l.b16 %v1636
        %v1842 = vunpack.c.h.b16 %v1636
        %v1843 = vunpack.c.l.b16 %v1637
        %v1844 = vunpack.c.h.b16 %v1637
        %v1845 = vunpack.c.l.b16 %v1638
        %v1846 = vunpack.c.h.b16 %v1638
        %v1847 = vunpack.c.l.b16 %v1639
        %v1848 = vunpack.c.h.b16 %v1639
        %v1849 = vunpack.c.l.b16 %v1640
        %v1850 = vunpack.c.h.b16 %v1640
        %v1851 = vunpack.c.l.b16 %v1641
        %v1852 = vunpack.c.h.b16 %v1641
        %v1853 = vunpack.c.l.b16 %v1642
        %v1854 = vunpack.c.h.b16 %v1642
        %v1855 = vunpack.c.l.b16 %v1643
        %v1856 = vunpack.c.h.b16 %v1643
        %v1857 = vunpack.c.l.b16 %v1644
        %v1858 = vunpack.c.h.b16 %v1644
        %v1859 = vunpack.c.l.b16 %v1645
        %v1860 = vunpack.c.h.b16 %v1645
        %v1861 = vunpack.c.l.b16 %v1646
        %v1862 = vunpack.c.h.b16 %v1646
        %v1863 = vunpack.c.l.b16 %v1647
        %v1864 = vunpack.c.h.b16 %v1647
        %v1865 = vunpack.c.l.b16 %v1648
        %v1866 = vunpack.c.h.b16 %v1648
        %v1867 = vunpack.c.l.b16 %v1649
        %v1868 = vunpack.c.h.b16 %v1649
        %v1869 = vunpack.c.l.b16 %v1650
        %v1870 = vunpack.c.h.b16 %v1650
        %v1871 = vunpack.c.l.b16 %v1651
        %v1872 = vunpack.c.h.b16 %v1651
        %v1873 = vunpack.c.l.b16 %v1652
        %v1874 = vunpack.c.h.b16 %v1652
        %v1875 = vunpack.c.l.b16 %v1653
        %v1876 = vunpack.c.h.b16 %v1653
        %v1877 = vunpack.c.l.b16 %v1654
        %v1878 = vunpack.c.h.b16 %v1654
        %v1879 = vunpack.c.l.b16 %v1655
        %v1880 = vunpack.c.h.b16 %v1655
        %v1881 = vunpack.c.l.b16 %v1656
        %v1882 = vunpack.c.h.b16 %v1656
        %v1883 = vunpack.c.l.b16 %v1657
        %v1884 = vunpack.c.h.b16 %v1657
        %v1885 = vunpack.c.l.b16 %v1658
        %v1886 = vunpack.c.h.b16 %v1658
        %v1887 = vunpack.c.l.b16 %v1659
        %v1888 = vunpack.c.h.b16 %v1659
        %v1889 = vunpack.c.l.b16 %v1660
        %v1890 = vunpack.c.h.b16 %v1660
        %v1891 = vunpack.c.l.b16 %v1661
        %v1892 = vunpack.c.h.b16 %v1661
        %v1893 = vunpack.c.l.b16 %v1662
        %v1894 = vunpack.c.h.b16 %v1662
        %v1895 = vunpack.c.l.b16 %v1663
        %v1896 = vunpack.c.h.b16 %v1663
        %v1897 = vunpack.c.l.b16 %v1664
        %v1898 = vunpack.c.h.b16 %v1664
        %v1899 = vpack.c.b16 %v1775, %v1771
        %v1900 = vpack.c.b16 %v1776, %v1772
        %v1901 = vpack.c.b16 %v1777, %v1773
        %v1902 = vpack.c.b16 %v1778, %v1774
        %v1903 = vpack.c.b16 %v1783, %v1779
        %v1904 = vpack.c.b16 %v1784, %v1780
        %v1905 = vpack.c.b16 %v1785, %v1781
        %v1906 = vpack.c.b16 %v1786, %v1782
        %v1907 = vpack.c.b16 %v1791, %v1787
        %v1908 = vpack.c.b16 %v1792, %v1788
        %v1909 = vpack.c.b16 %v1793, %v1789
        %v1910 = vpack.c.b16 %v1794, %v1790
        %v1911 = vpack.c.b16 %v1799, %v1795
        %v1912 = vpack.c.b16 %v1800, %v1796
        %v1913 = vpack.c.b16 %v1801, %v1797
        %v1914 = vpack.c.b16 %v1802, %v1798
        %v1915 = vpack.c.b16 %v1807, %v1803
        %v1916 = vpack.c.b16 %v1808, %v1804
        %v1917 = vpack.c.b16 %v1809, %v1805
        %v1918 = vpack.c.b16 %v1810, %v1806
        %v1919 = vpack.c.b16 %v1815, %v1811
        %v1920 = vpack.c.b16 %v1816, %v1812
        %v1921 = vpack.c.b16 %v1817, %v1813
        %v1922 = vpack.c.b16 %v1818, %v1814
        %v1923 = vpack.c.b16 %v1823, %v1819
        %v1924 = vpack.c.b16 %v1824, %v1820
        %v1925 = vpack.c.b16 %v1825, %v1821
        %v1926 = vpack.c.b16 %v1826, %v1822
        %v1927 = vpack.c.b16 %v1831, %v1827
        %v1928 = vpack.c.b16 %v1832, %v1828
        %v1929 = vpack.c.b16 %v1833, %v1829
        %v1930 = vpack.c.b16 %v1834, %v1830
        %v1931 = vpack.c.b16 %v1839, %v1835
        %v1932 = vpack.c.b16 %v1840, %v1836
        %v1933 = vpack.c.b16 %v1841, %v1837
        %v1934 = vpack.c.b16 %v1842, %v1838
        %v1935 = vpack.c.b16 %v1847, %v1843
        %v1936 = vpack.c.b16 %v1848, %v1844
        %v1937 = vpack.c.b16 %v1849, %v1845
        %v1938 = vpack.c.b16 %v1850, %v1846
        %v1939 = vpack.c.b16 %v1855, %v1851
        %v1940 = vpack.c.b16 %v1856, %v1852
        %v1941 = vpack.c.b16 %v1857, %v1853
        %v1942 = vpack.c.b16 %v1858, %v1854
        %v1943 = vpack.c.b16 %v1863, %v1859
        %v1944 = vpack.c.b16 %v1864, %v1860
        %v1945 = vpack.c.b16 %v1865, %v1861
        %v1946 = vpack.c.b16 %v1866, %v1862
        %v1947 = vpack.c.b16 %v1871, %v1867
        %v1948 = vpack.c.b16 %v1872, %v1868
        %v1949 = vpack.c.b16 %v1873, %v1869
        %v1950 = vpack.c.b16 %v1874, %v1870
        %v1951 = vpack.c.b16 %v1879, %v1875
        %v1952 = vpack.c.b16 %v1880, %v1876
        %v1953 = vpack.c.b16 %v1881, %v1877
        %v1954 = vpack.c.b16 %v1882, %v1878
        %v1955 = vpack.c.b16 %v1887, %v1883
        %v1956 = vpack.c.b16 %v1888, %v1884
        %v1957 = vpack.c.b16 %v1889, %v1885
        %v1958 = vpack.c.b16 %v1890, %v1886
        %v1959 = vpack.c.b16 %v1895, %v1891
        %v1960 = vpack.c.b16 %v1896, %v1892
        %v1961 = vpack.c.b16 %v1897, %v1893
        %v1962 = vpack.c.b16 %v1898, %v1894
        %2027 = vmatpush.bf16.msra.mxu0 %v1927
        %2028 = vmatpush.bf16.msra.mxu0 %v1923
        %2029 = vmatpush.bf16.msra.mxu0 %v1919
        %2030 = vmatpush.bf16.msra.mxu0 %v1915
        %2031 = vmatpush.bf16.msra.mxu0 %v1911
        %2032 = vmatpush.bf16.msra.mxu0 %v1907
        %2033 = vmatpush.bf16.msra.mxu0 %v1903
        %2034 = vmatpush.bf16.msra.mxu0 %v1899
        %2035 = vmatmul.bf16.gmra.mxu0 %v1665
        %v2036 = vpop.f32.mrf.mxu0
        %v2037 = vadd.f32 %v1699, %v2036
        %v2038 = vpop.f32.mrf.mxu0
        %v2039 = vadd.f32 %v1699, %v2038
        %2040 = vmatmul.bf16.gmra.mxu0 %v1667
        %v2041 = vpop.f32.mrf.mxu0
        %v2042 = vadd.f32 %v1699, %v2041
        %v2043 = vpop.f32.mrf.mxu0
        %v2044 = vadd.f32 %v1699, %v2043
        %2045 = vmatmul.bf16.gmra.mxu0 %v1669
        %v2046 = vpop.f32.mrf.mxu0
        %v2047 = vadd.f32 %v1699, %v2046
        %v2048 = vpop.f32.mrf.mxu0
        %v2049 = vadd.f32 %v1699, %v2048
        %2050 = vmatmul.bf16.gmra.mxu0 %v1671
        %v2051 = vpop.f32.mrf.mxu0
        %v2052 = vadd.f32 %v1699, %v2051
        %v2053 = vpop.f32.mrf.mxu0
        %v2054 = vadd.f32 %v1699, %v2053
        %2055 = vmatmul.bf16.gmra.mxu0 %v1673
        %v2056 = vpop.f32.mrf.mxu0
        %v2057 = vadd.f32 %v1699, %v2056
        %v2058 = vpop.f32.mrf.mxu0
        %v2059 = vadd.f32 %v1699, %v2058
        %2060 = vmatmul.bf16.gmra.mxu0 %v1675
        %v2061 = vpop.f32.mrf.mxu0
        %v2062 = vadd.f32 %v1699, %v2061
        %v2063 = vpop.f32.mrf.mxu0
        %v2064 = vadd.f32 %v1699, %v2063
        %2065 = vmatmul.bf16.gmra.mxu0 %v1677
        %v2066 = vpop.f32.mrf.mxu0
        %v2067 = vadd.f32 %v1699, %v2066
        %v2068 = vpop.f32.mrf.mxu0
        %v2069 = vadd.f32 %v1699, %v2068
        %2070 = vmatmul.bf16.gmra.mxu0 %v1679
        %v2071 = vpop.f32.mrf.mxu0
        %v2072 = vadd.f32 %v1699, %v2071
        %v2073 = vpop.f32.mrf.mxu0
        %v2074 = vadd.f32 %v1699, %v2073
        %2075 = vmatmul.bf16.gmra.mxu0 %v1681
        %v2076 = vpop.f32.mrf.mxu0
        %v2077 = vadd.f32 %v1699, %v2076
        %v2078 = vpop.f32.mrf.mxu0
        %v2079 = vadd.f32 %v1699, %v2078
        %2080 = vmatmul.bf16.gmra.mxu0 %v1683
        %v2081 = vpop.f32.mrf.mxu0
        %v2082 = vadd.f32 %v1699, %v2081
        %v2083 = vpop.f32.mrf.mxu0
        %v2084 = vadd.f32 %v1699, %v2083
        %2085 = vmatmul.bf16.gmra.mxu0 %v1685
        %v2086 = vpop.f32.mrf.mxu0
        %v2087 = vadd.f32 %v1699, %v2086
        %v2088 = vpop.f32.mrf.mxu0
        %v2089 = vadd.f32 %v1699, %v2088
        %2090 = vmatmul.bf16.gmra.mxu0 %v1687
        %v2091 = vpop.f32.mrf.mxu0
        %v2092 = vadd.f32 %v1699, %v2091
        %v2093 = vpop.f32.mrf.mxu0
        %v2094 = vadd.f32 %v1699, %v2093
        %2095 = vmatmul.bf16.gmra.mxu0 %v1689
        %v2096 = vpop.f32.mrf.mxu0
        %v2097 = vadd.f32 %v1699, %v2096
        %v2098 = vpop.f32.mrf.mxu0
        %v2099 = vadd.f32 %v1699, %v2098
        %2100 = vmatmul.bf16.gmra.mxu0 %v1691
        %v2101 = vpop.f32.mrf.mxu0
        %v2102 = vadd.f32 %v1699, %v2101
        %v2103 = vpop.f32.mrf.mxu0
        %v2104 = vadd.f32 %v1699, %v2103
        %2105 = vmatmul.bf16.gmra.mxu0 %v1693
        %v2106 = vpop.f32.mrf.mxu0
        %v2107 = vadd.f32 %v1699, %v2106
        %v2108 = vpop.f32.mrf.mxu0
        %v2109 = vadd.f32 %v1699, %v2108
        %2110 = vmatmul.bf16.gmra.mxu0 %v1695
        %v2111 = vpop.f32.mrf.mxu0
        %v2112 = vadd.f32 %v1699, %v2111
        %v2113 = vpop.f32.mrf.mxu0
        %v2114 = vadd.f32 %v1699, %v2113
        %2115 = vdwg.mxu0
        %2116 = vmatpush.bf16.msra.mxu0 %v1959
        %2117 = vmatpush.bf16.msra.mxu0 %v1955
        %2118 = vmatpush.bf16.msra.mxu0 %v1951
        %2119 = vmatpush.bf16.msra.mxu0 %v1947
        %2120 = vmatpush.bf16.msra.mxu0 %v1943
        %2121 = vmatpush.bf16.msra.mxu0 %v1939
        %2122 = vmatpush.bf16.msra.mxu0 %v1935
        %2123 = vmatpush.bf16.msra.mxu0 %v1931
        %2124 = vmatmul.bf16.gmra.mxu0 %v1666
        %v2125 = vpop.f32.mrf.mxu0
        %v2126 = vadd.f32 %v2037, %v2125
        %v2127 = vpop.f32.mrf.mxu0
        %v2128 = vadd.f32 %v2039, %v2127
        %2129 = vmatmul.bf16.gmra.mxu0 %v1668
        %v2130 = vpop.f32.mrf.mxu0
        %v2131 = vadd.f32 %v2042, %v2130
        %v2132 = vpop.f32.mrf.mxu0
        %v2133 = vadd.f32 %v2044, %v2132
        %2134 = vmatmul.bf16.gmra.mxu0 %v1670
        %v2135 = vpop.f32.mrf.mxu0
        %v2136 = vadd.f32 %v2047, %v2135
        %v2137 = vpop.f32.mrf.mxu0
        %v2138 = vadd.f32 %v2049, %v2137
        %2139 = vmatmul.bf16.gmra.mxu0 %v1672
        %v2140 = vpop.f32.mrf.mxu0
        %v2141 = vadd.f32 %v2052, %v2140
        %v2142 = vpop.f32.mrf.mxu0
        %v2143 = vadd.f32 %v2054, %v2142
        %2144 = vmatmul.bf16.gmra.mxu0 %v1674
        %v2145 = vpop.f32.mrf.mxu0
        %v2146 = vadd.f32 %v2057, %v2145
        %v2147 = vpop.f32.mrf.mxu0
        %v2148 = vadd.f32 %v2059, %v2147
        %2149 = vmatmul.bf16.gmra.mxu0 %v1676
        %v2150 = vpop.f32.mrf.mxu0
        %v2151 = vadd.f32 %v2062, %v2150
        %v2152 = vpop.f32.mrf.mxu0
        %v2153 = vadd.f32 %v2064, %v2152
        %2154 = vmatmul.bf16.gmra.mxu0 %v1678
        %v2155 = vpop.f32.mrf.mxu0
        %v2156 = vadd.f32 %v2067, %v2155
        %v2157 = vpop.f32.mrf.mxu0
        %v2158 = vadd.f32 %v2069, %v2157
        %2159 = vmatmul.bf16.gmra.mxu0 %v1680
        %v2160 = vpop.f32.mrf.mxu0
        %v2161 = vadd.f32 %v2072, %v2160
        %v2162 = vpop.f32.mrf.mxu0
        %v2163 = vadd.f32 %v2074, %v2162
        %2164 = vmatmul.bf16.gmra.mxu0 %v1682
        %v2165 = vpop.f32.mrf.mxu0
        %v2166 = vadd.f32 %v2077, %v2165
        %v2167 = vpop.f32.mrf.mxu0
        %v2168 = vadd.f32 %v2079, %v2167
        %2169 = vmatmul.bf16.gmra.mxu0 %v1684
        %v2170 = vpop.f32.mrf.mxu0
        %v2171 = vadd.f32 %v2082, %v2170
        %v2172 = vpop.f32.mrf.mxu0
        %v2173 = vadd.f32 %v2084, %v2172
        %2174 = vmatmul.bf16.gmra.mxu0 %v1686
        %v2175 = vpop.f32.mrf.mxu0
        %v2176 = vadd.f32 %v2087, %v2175
        %v2177 = vpop.f32.mrf.mxu0
        %v2178 = vadd.f32 %v2089, %v2177
        %2179 = vmatmul.bf16.gmra.mxu0 %v1688
        %v2180 = vpop.f32.mrf.mxu0
        %v2181 = vadd.f32 %v2092, %v2180
        %v2182 = vpop.f32.mrf.mxu0
        %v2183 = vadd.f32 %v2094, %v2182
        %2184 = vmatmul.bf16.gmra.mxu0 %v1690
        %v2185 = vpop.f32.mrf.mxu0
        %v2186 = vadd.f32 %v2097, %v2185
        %v2187 = vpop.f32.mrf.mxu0
        %v2188 = vadd.f32 %v2099, %v2187
        %2189 = vmatmul.bf16.gmra.mxu0 %v1692
        %v2190 = vpop.f32.mrf.mxu0
        %v2191 = vadd.f32 %v2102, %v2190
        %v2192 = vpop.f32.mrf.mxu0
        %v2193 = vadd.f32 %v2104, %v2192
        %2194 = vmatmul.bf16.gmra.mxu0 %v1694
        %v2195 = vpop.f32.mrf.mxu0
        %v2196 = vadd.f32 %v2107, %v2195
        %v2197 = vpop.f32.mrf.mxu0
        %v2198 = vadd.f32 %v2109, %v2197
        %2199 = vmatmul.bf16.gmra.mxu0 %v1696
        %v2200 = vpop.f32.mrf.mxu0
        %v2201 = vadd.f32 %v2112, %v2200
        %v2202 = vpop.f32.mrf.mxu0
        %v2203 = vadd.f32 %v2114, %v2202
        %2204 = vdwg.mxu0
        %2205 = vmatpush.bf16.msra.mxu0 %v1928
        %2206 = vmatpush.bf16.msra.mxu0 %v1924
        %2207 = vmatpush.bf16.msra.mxu0 %v1920
        %2208 = vmatpush.bf16.msra.mxu0 %v1916
        %2209 = vmatpush.bf16.msra.mxu0 %v1912
        %2210 = vmatpush.bf16.msra.mxu0 %v1908
        %2211 = vmatpush.bf16.msra.mxu0 %v1904
        %2212 = vmatpush.bf16.msra.mxu0 %v1900
        %2213 = vmatmul.bf16.gmra.mxu0 %v1665
        %v2214 = vpop.f32.mrf.mxu0
        %v2215 = vadd.f32 %v1700, %v2214
        %v2216 = vpop.f32.mrf.mxu0
        %v2217 = vadd.f32 %v1700, %v2216
        %2218 = vmatmul.bf16.gmra.mxu0 %v1667
        %v2219 = vpop.f32.mrf.mxu0
        %v2220 = vadd.f32 %v1700, %v2219
        %v2221 = vpop.f32.mrf.mxu0
        %v2222 = vadd.f32 %v1700, %v2221
        %2223 = vmatmul.bf16.gmra.mxu0 %v1669
        %v2224 = vpop.f32.mrf.mxu0
        %v2225 = vadd.f32 %v1700, %v2224
        %v2226 = vpop.f32.mrf.mxu0
        %v2227 = vadd.f32 %v1700, %v2226
        %2228 = vmatmul.bf16.gmra.mxu0 %v1671
        %v2229 = vpop.f32.mrf.mxu0
        %v2230 = vadd.f32 %v1700, %v2229
        %v2231 = vpop.f32.mrf.mxu0
        %v2232 = vadd.f32 %v1700, %v2231
        %2233 = vmatmul.bf16.gmra.mxu0 %v1673
        %v2234 = vpop.f32.mrf.mxu0
        %v2235 = vadd.f32 %v1700, %v2234
        %v2236 = vpop.f32.mrf.mxu0
        %v2237 = vadd.f32 %v1700, %v2236
        %2238 = vmatmul.bf16.gmra.mxu0 %v1675
        %v2239 = vpop.f32.mrf.mxu0
        %v2240 = vadd.f32 %v1700, %v2239
        %v2241 = vpop.f32.mrf.mxu0
        %v2242 = vadd.f32 %v1700, %v2241
        %2243 = vmatmul.bf16.gmra.mxu0 %v1677
        %v2244 = vpop.f32.mrf.mxu0
        %v2245 = vadd.f32 %v1700, %v2244
        %v2246 = vpop.f32.mrf.mxu0
        %v2247 = vadd.f32 %v1700, %v2246
        %2248 = vmatmul.bf16.gmra.mxu0 %v1679
        %v2249 = vpop.f32.mrf.mxu0
        %v2250 = vadd.f32 %v1700, %v2249
        %v2251 = vpop.f32.mrf.mxu0
        %v2252 = vadd.f32 %v1700, %v2251
        %2253 = vmatmul.bf16.gmra.mxu0 %v1681
        %v2254 = vpop.f32.mrf.mxu0
        %v2255 = vadd.f32 %v1700, %v2254
        %v2256 = vpop.f32.mrf.mxu0
        %v2257 = vadd.f32 %v1700, %v2256
        %2258 = vmatmul.bf16.gmra.mxu0 %v1683
        %v2259 = vpop.f32.mrf.mxu0
        %v2260 = vadd.f32 %v1700, %v2259
        %v2261 = vpop.f32.mrf.mxu0
        %v2262 = vadd.f32 %v1700, %v2261
        %2263 = vmatmul.bf16.gmra.mxu0 %v1685
        %v2264 = vpop.f32.mrf.mxu0
        %v2265 = vadd.f32 %v1700, %v2264
        %v2266 = vpop.f32.mrf.mxu0
        %v2267 = vadd.f32 %v1700, %v2266
        %2268 = vmatmul.bf16.gmra.mxu0 %v1687
        %v2269 = vpop.f32.mrf.mxu0
        %v2270 = vadd.f32 %v1700, %v2269
        %v2271 = vpop.f32.mrf.mxu0
        %v2272 = vadd.f32 %v1700, %v2271
        %2273 = vmatmul.bf16.gmra.mxu0 %v1689
        %v2274 = vpop.f32.mrf.mxu0
        %v2275 = vadd.f32 %v1700, %v2274
        %v2276 = vpop.f32.mrf.mxu0
        %v2277 = vadd.f32 %v1700, %v2276
        %2278 = vmatmul.bf16.gmra.mxu0 %v1691
        %v2279 = vpop.f32.mrf.mxu0
        %v2280 = vadd.f32 %v1700, %v2279
        %v2281 = vpop.f32.mrf.mxu0
        %v2282 = vadd.f32 %v1700, %v2281
        %2283 = vmatmul.bf16.gmra.mxu0 %v1693
        %v2284 = vpop.f32.mrf.mxu0
        %v2285 = vadd.f32 %v1700, %v2284
        %v2286 = vpop.f32.mrf.mxu0
        %v2287 = vadd.f32 %v1700, %v2286
        %2288 = vmatmul.bf16.gmra.mxu0 %v1695
        %v2289 = vpop.f32.mrf.mxu0
        %v2290 = vadd.f32 %v1700, %v2289
        %v2291 = vpop.f32.mrf.mxu0
        %v2292 = vadd.f32 %v1700, %v2291
        %2293 = vdwg.mxu0
        %2294 = vmatpush.bf16.msra.mxu0 %v1960
        %2295 = vmatpush.bf16.msra.mxu0 %v1956
        %2296 = vmatpush.bf16.msra.mxu0 %v1952
        %2297 = vmatpush.bf16.msra.mxu0 %v1948
        %2298 = vmatpush.bf16.msra.mxu0 %v1944
        %2299 = vmatpush.bf16.msra.mxu0 %v1940
        %2300 = vmatpush.bf16.msra.mxu0 %v1936
        %2301 = vmatpush.bf16.msra.mxu0 %v1932
        %2302 = vmatmul.bf16.gmra.mxu0 %v1666
        %v2303 = vpop.f32.mrf.mxu0
        %v2304 = vadd.f32 %v2215, %v2303
        %v2305 = vpop.f32.mrf.mxu0
        %v2306 = vadd.f32 %v2217, %v2305
        %2307 = vmatmul.bf16.gmra.mxu0 %v1668
        %v2308 = vpop.f32.mrf.mxu0
        %v2309 = vadd.f32 %v2220, %v2308
        %v2310 = vpop.f32.mrf.mxu0
        %v2311 = vadd.f32 %v2222, %v2310
        %2312 = vmatmul.bf16.gmra.mxu0 %v1670
        %v2313 = vpop.f32.mrf.mxu0
        %v2314 = vadd.f32 %v2225, %v2313
        %v2315 = vpop.f32.mrf.mxu0
        %v2316 = vadd.f32 %v2227, %v2315
        %2317 = vmatmul.bf16.gmra.mxu0 %v1672
        %v2318 = vpop.f32.mrf.mxu0
        %v2319 = vadd.f32 %v2230, %v2318
        %v2320 = vpop.f32.mrf.mxu0
        %v2321 = vadd.f32 %v2232, %v2320
        %2322 = vmatmul.bf16.gmra.mxu0 %v1674
        %v2323 = vpop.f32.mrf.mxu0
        %v2324 = vadd.f32 %v2235, %v2323
        %v2325 = vpop.f32.mrf.mxu0
        %v2326 = vadd.f32 %v2237, %v2325
        %2327 = vmatmul.bf16.gmra.mxu0 %v1676
        %v2328 = vpop.f32.mrf.mxu0
        %v2329 = vadd.f32 %v2240, %v2328
        %v2330 = vpop.f32.mrf.mxu0
        %v2331 = vadd.f32 %v2242, %v2330
        %2332 = vmatmul.bf16.gmra.mxu0 %v1678
        %v2333 = vpop.f32.mrf.mxu0
        %v2334 = vadd.f32 %v2245, %v2333
        %v2335 = vpop.f32.mrf.mxu0
        %v2336 = vadd.f32 %v2247, %v2335
        %2337 = vmatmul.bf16.gmra.mxu0 %v1680
        %v2338 = vpop.f32.mrf.mxu0
        %v2339 = vadd.f32 %v2250, %v2338
        %v2340 = vpop.f32.mrf.mxu0
        %v2341 = vadd.f32 %v2252, %v2340
        %2342 = vmatmul.bf16.gmra.mxu0 %v1682
        %v2343 = vpop.f32.mrf.mxu0
        %v2344 = vadd.f32 %v2255, %v2343
        %v2345 = vpop.f32.mrf.mxu0
        %v2346 = vadd.f32 %v2257, %v2345
        %2347 = vmatmul.bf16.gmra.mxu0 %v1684
        %v2348 = vpop.f32.mrf.mxu0
        %v2349 = vadd.f32 %v2260, %v2348
        %v2350 = vpop.f32.mrf.mxu0
        %v2351 = vadd.f32 %v2262, %v2350
        %2352 = vmatmul.bf16.gmra.mxu0 %v1686
        %v2353 = vpop.f32.mrf.mxu0
        %v2354 = vadd.f32 %v2265, %v2353
        %v2355 = vpop.f32.mrf.mxu0
        %v2356 = vadd.f32 %v2267, %v2355
        %2357 = vmatmul.bf16.gmra.mxu0 %v1688
        %v2358 = vpop.f32.mrf.mxu0
        %v2359 = vadd.f32 %v2270, %v2358
        %v2360 = vpop.f32.mrf.mxu0
        %v2361 = vadd.f32 %v2272, %v2360
        %2362 = vmatmul.bf16.gmra.mxu0 %v1690
        %v2363 = vpop.f32.mrf.mxu0
        %v2364 = vadd.f32 %v2275, %v2363
        %v2365 = vpop.f32.mrf.mxu0
        %v2366 = vadd.f32 %v2277, %v2365
        %2367 = vmatmul.bf16.gmra.mxu0 %v1692
        %v2368 = vpop.f32.mrf.mxu0
        %v2369 = vadd.f32 %v2280, %v2368
        %v2370 = vpop.f32.mrf.mxu0
        %v2371 = vadd.f32 %v2282, %v2370
        %2372 = vmatmul.bf16.gmra.mxu0 %v1694
        %v2373 = vpop.f32.mrf.mxu0
        %v2374 = vadd.f32 %v2285, %v2373
        %v2375 = vpop.f32.mrf.mxu0
        %v2376 = vadd.f32 %v2287, %v2375
        %2377 = vmatmul.bf16.gmra.mxu0 %v1696
        %v2378 = vpop.f32.mrf.mxu0
        %v2379 = vadd.f32 %v2290, %v2378
        %v2380 = vpop.f32.mrf.mxu0
        %v2381 = vadd.f32 %v2292, %v2380
        %2382 = vdwg.mxu0
        %2383 = vmatpush.bf16.msra.mxu0 %v1929
        %2384 = vmatpush.bf16.msra.mxu0 %v1925
        %2385 = vmatpush.bf16.msra.mxu0 %v1921
        %2386 = vmatpush.bf16.msra.mxu0 %v1917
        %2387 = vmatpush.bf16.msra.mxu0 %v1913
        %2388 = vmatpush.bf16.msra.mxu0 %v1909
        %2389 = vmatpush.bf16.msra.mxu0 %v1905
        %2390 = vmatpush.bf16.msra.mxu0 %v1901
        %2391 = vmatmul.bf16.gmra.mxu0 %v1665
        %v2392 = vpop.f32.mrf.mxu0
        %v2393 = vadd.f32 %v1701, %v2392
        %v2394 = vpop.f32.mrf.mxu0
        %v2395 = vadd.f32 %v1701, %v2394
        %2396 = vmatmul.bf16.gmra.mxu0 %v1667
        %v2397 = vpop.f32.mrf.mxu0
        %v2398 = vadd.f32 %v1701, %v2397
        %v2399 = vpop.f32.mrf.mxu0
        %v2400 = vadd.f32 %v1701, %v2399
        %2401 = vmatmul.bf16.gmra.mxu0 %v1669
        %v2402 = vpop.f32.mrf.mxu0
        %v2403 = vadd.f32 %v1701, %v2402
        %v2404 = vpop.f32.mrf.mxu0
        %v2405 = vadd.f32 %v1701, %v2404
        %2406 = vmatmul.bf16.gmra.mxu0 %v1671
        %v2407 = vpop.f32.mrf.mxu0
        %v2408 = vadd.f32 %v1701, %v2407
        %v2409 = vpop.f32.mrf.mxu0
        %v2410 = vadd.f32 %v1701, %v2409
        %2411 = vmatmul.bf16.gmra.mxu0 %v1673
        %v2412 = vpop.f32.mrf.mxu0
        %v2413 = vadd.f32 %v1701, %v2412
        %v2414 = vpop.f32.mrf.mxu0
        %v2415 = vadd.f32 %v1701, %v2414
        %2416 = vmatmul.bf16.gmra.mxu0 %v1675
        %v2417 = vpop.f32.mrf.mxu0
        %v2418 = vadd.f32 %v1701, %v2417
        %v2419 = vpop.f32.mrf.mxu0
        %v2420 = vadd.f32 %v1701, %v2419
        %2421 = vmatmul.bf16.gmra.mxu0 %v1677
        %v2422 = vpop.f32.mrf.mxu0
        %v2423 = vadd.f32 %v1701, %v2422
        %v2424 = vpop.f32.mrf.mxu0
        %v2425 = vadd.f32 %v1701, %v2424
        %2426 = vmatmul.bf16.gmra.mxu0 %v1679
        %v2427 = vpop.f32.mrf.mxu0
        %v2428 = vadd.f32 %v1701, %v2427
        %v2429 = vpop.f32.mrf.mxu0
        %v2430 = vadd.f32 %v1701, %v2429
        %2431 = vmatmul.bf16.gmra.mxu0 %v1681
        %v2432 = vpop.f32.mrf.mxu0
        %v2433 = vadd.f32 %v1701, %v2432
        %v2434 = vpop.f32.mrf.mxu0
        %v2435 = vadd.f32 %v1701, %v2434
        %2436 = vmatmul.bf16.gmra.mxu0 %v1683
        %v2437 = vpop.f32.mrf.mxu0
        %v2438 = vadd.f32 %v1701, %v2437
        %v2439 = vpop.f32.mrf.mxu0
        %v2440 = vadd.f32 %v1701, %v2439
        %2441 = vmatmul.bf16.gmra.mxu0 %v1685
        %v2442 = vpop.f32.mrf.mxu0
        %v2443 = vadd.f32 %v1701, %v2442
        %v2444 = vpop.f32.mrf.mxu0
        %v2445 = vadd.f32 %v1701, %v2444
        %2446 = vmatmul.bf16.gmra.mxu0 %v1687
        %v2447 = vpop.f32.mrf.mxu0
        %v2448 = vadd.f32 %v1701, %v2447
        %v2449 = vpop.f32.mrf.mxu0
        %v2450 = vadd.f32 %v1701, %v2449
        %2451 = vmatmul.bf16.gmra.mxu0 %v1689
        %v2452 = vpop.f32.mrf.mxu0
        %v2453 = vadd.f32 %v1701, %v2452
        %v2454 = vpop.f32.mrf.mxu0
        %v2455 = vadd.f32 %v1701, %v2454
        %2456 = vmatmul.bf16.gmra.mxu0 %v1691
        %v2457 = vpop.f32.mrf.mxu0
        %v2458 = vadd.f32 %v1701, %v2457
        %v2459 = vpop.f32.mrf.mxu0
        %v2460 = vadd.f32 %v1701, %v2459
        %2461 = vmatmul.bf16.gmra.mxu0 %v1693
        %v2462 = vpop.f32.mrf.mxu0
        %v2463 = vadd.f32 %v1701, %v2462
        %v2464 = vpop.f32.mrf.mxu0
        %v2465 = vadd.f32 %v1701, %v2464
        %2466 = vmatmul.bf16.gmra.mxu0 %v1695
        %v2467 = vpop.f32.mrf.mxu0
        %v2468 = vadd.f32 %v1701, %v2467
        %v2469 = vpop.f32.mrf.mxu0
        %v2470 = vadd.f32 %v1701, %v2469
        %2471 = vdwg.mxu0
        %2472 = vmatpush.bf16.msra.mxu0 %v1961
        %2473 = vmatpush.bf16.msra.mxu0 %v1957
        %2474 = vmatpush.bf16.msra.mxu0 %v1953
        %2475 = vmatpush.bf16.msra.mxu0 %v1949
        %2476 = vmatpush.bf16.msra.mxu0 %v1945
        %2477 = vmatpush.bf16.msra.mxu0 %v1941
        %2478 = vmatpush.bf16.msra.mxu0 %v1937
        %2479 = vmatpush.bf16.msra.mxu0 %v1933
        %2480 = vmatmul.bf16.gmra.mxu0 %v1666
        %v2481 = vpop.f32.mrf.mxu0
        %v2482 = vadd.f32 %v2393, %v2481
        %v2483 = vpop.f32.mrf.mxu0
        %v2484 = vadd.f32 %v2395, %v2483
        %2485 = vmatmul.bf16.gmra.mxu0 %v1668
        %v2486 = vpop.f32.mrf.mxu0
        %v2487 = vadd.f32 %v2398, %v2486
        %v2488 = vpop.f32.mrf.mxu0
        %v2489 = vadd.f32 %v2400, %v2488
        %2490 = vmatmul.bf16.gmra.mxu0 %v1670
        %v2491 = vpop.f32.mrf.mxu0
        %v2492 = vadd.f32 %v2403, %v2491
        %v2493 = vpop.f32.mrf.mxu0
        %v2494 = vadd.f32 %v2405, %v2493
        %2495 = vmatmul.bf16.gmra.mxu0 %v1672
        %v2496 = vpop.f32.mrf.mxu0
        %v2497 = vadd.f32 %v2408, %v2496
        %v2498 = vpop.f32.mrf.mxu0
        %v2499 = vadd.f32 %v2410, %v2498
        %2500 = vmatmul.bf16.gmra.mxu0 %v1674
        %v2501 = vpop.f32.mrf.mxu0
        %v2502 = vadd.f32 %v2413, %v2501
        %v2503 = vpop.f32.mrf.mxu0
        %v2504 = vadd.f32 %v2415, %v2503
        %2505 = vmatmul.bf16.gmra.mxu0 %v1676
        %v2506 = vpop.f32.mrf.mxu0
        %v2507 = vadd.f32 %v2418, %v2506
        %v2508 = vpop.f32.mrf.mxu0
        %v2509 = vadd.f32 %v2420, %v2508
        %2510 = vmatmul.bf16.gmra.mxu0 %v1678
        %v2511 = vpop.f32.mrf.mxu0
        %v2512 = vadd.f32 %v2423, %v2511
        %v2513 = vpop.f32.mrf.mxu0
        %v2514 = vadd.f32 %v2425, %v2513
        %2515 = vmatmul.bf16.gmra.mxu0 %v1680
        %v2516 = vpop.f32.mrf.mxu0
        %v2517 = vadd.f32 %v2428, %v2516
        %v2518 = vpop.f32.mrf.mxu0
        %v2519 = vadd.f32 %v2430, %v2518
        %2520 = vmatmul.bf16.gmra.mxu0 %v1682
        %v2521 = vpop.f32.mrf.mxu0
        %v2522 = vadd.f32 %v2433, %v2521
        %v2523 = vpop.f32.mrf.mxu0
        %v2524 = vadd.f32 %v2435, %v2523
        %2525 = vmatmul.bf16.gmra.mxu0 %v1684
        %v2526 = vpop.f32.mrf.mxu0
        %v2527 = vadd.f32 %v2438, %v2526
        %v2528 = vpop.f32.mrf.mxu0
        %v2529 = vadd.f32 %v2440, %v2528
        %2530 = vmatmul.bf16.gmra.mxu0 %v1686
        %v2531 = vpop.f32.mrf.mxu0
        %v2532 = vadd.f32 %v2443, %v2531
        %v2533 = vpop.f32.mrf.mxu0
        %v2534 = vadd.f32 %v2445, %v2533
        %2535 = vmatmul.bf16.gmra.mxu0 %v1688
        %v2536 = vpop.f32.mrf.mxu0
        %v2537 = vadd.f32 %v2448, %v2536
        %v2538 = vpop.f32.mrf.mxu0
        %v2539 = vadd.f32 %v2450, %v2538
        %2540 = vmatmul.bf16.gmra.mxu0 %v1690
        %v2541 = vpop.f32.mrf.mxu0
        %v2542 = vadd.f32 %v2453, %v2541
        %v2543 = vpop.f32.mrf.mxu0
        %v2544 = vadd.f32 %v2455, %v2543
        %2545 = vmatmul.bf16.gmra.mxu0 %v1692
        %v2546 = vpop.f32.mrf.mxu0
        %v2547 = vadd.f32 %v2458, %v2546
        %v2548 = vpop.f32.mrf.mxu0
        %v2549 = vadd.f32 %v2460, %v2548
        %2550 = vmatmul.bf16.gmra.mxu0 %v1694
        %v2551 = vpop.f32.mrf.mxu0
        %v2552 = vadd.f32 %v2463, %v2551
        %v2553 = vpop.f32.mrf.mxu0
        %v2554 = vadd.f32 %v2465, %v2553
        %2555 = vmatmul.bf16.gmra.mxu0 %v1696
        %v2556 = vpop.f32.mrf.mxu0
        %v2557 = vadd.f32 %v2468, %v2556
        %v2558 = vpop.f32.mrf.mxu0
        %v2559 = vadd.f32 %v2470, %v2558
        %2560 = vdwg.mxu0
        %2561 = vmatpush.bf16.msra.mxu0 %v1930
        %2562 = vmatpush.bf16.msra.mxu0 %v1926
        %2563 = vmatpush.bf16.msra.mxu0 %v1922
        %2564 = vmatpush.bf16.msra.mxu0 %v1918
        %2565 = vmatpush.bf16.msra.mxu0 %v1914
        %2566 = vmatpush.bf16.msra.mxu0 %v1910
        %2567 = vmatpush.bf16.msra.mxu0 %v1906
        %2568 = vmatpush.bf16.msra.mxu0 %v1902
        %2569 = vmatmul.bf16.gmra.mxu0 %v1665
        %v2570 = vpop.f32.mrf.mxu0
        %v2571 = vadd.f32 %v1702, %v2570
        %v2572 = vpop.f32.mrf.mxu0
        %v2573 = vadd.f32 %v1702, %v2572
        %2574 = vmatmul.bf16.gmra.mxu0 %v1667
        %v2575 = vpop.f32.mrf.mxu0
        %v2576 = vadd.f32 %v1702, %v2575
        %v2577 = vpop.f32.mrf.mxu0
        %v2578 = vadd.f32 %v1702, %v2577
        %2579 = vmatmul.bf16.gmra.mxu0 %v1669
        %v2580 = vpop.f32.mrf.mxu0
        %v2581 = vadd.f32 %v1702, %v2580
        %v2582 = vpop.f32.mrf.mxu0
        %v2583 = vadd.f32 %v1702, %v2582
        %2584 = vmatmul.bf16.gmra.mxu0 %v1671
        %v2585 = vpop.f32.mrf.mxu0
        %v2586 = vadd.f32 %v1702, %v2585
        %v2587 = vpop.f32.mrf.mxu0
        %v2588 = vadd.f32 %v1702, %v2587
        %2589 = vmatmul.bf16.gmra.mxu0 %v1673
        %v2590 = vpop.f32.mrf.mxu0
        %v2591 = vadd.f32 %v1702, %v2590
        %v2592 = vpop.f32.mrf.mxu0
        %v2593 = vadd.f32 %v1702, %v2592
        %2594 = vmatmul.bf16.gmra.mxu0 %v1675
        %v2595 = vpop.f32.mrf.mxu0
        %v2596 = vadd.f32 %v1702, %v2595
        %v2597 = vpop.f32.mrf.mxu0
        %v2598 = vadd.f32 %v1702, %v2597
        %2599 = vmatmul.bf16.gmra.mxu0 %v1677
        %v2600 = vpop.f32.mrf.mxu0
        %v2601 = vadd.f32 %v1702, %v2600
        %v2602 = vpop.f32.mrf.mxu0
        %v2603 = vadd.f32 %v1702, %v2602
        %2604 = vmatmul.bf16.gmra.mxu0 %v1679
        %v2605 = vpop.f32.mrf.mxu0
        %v2606 = vadd.f32 %v1702, %v2605
        %v2607 = vpop.f32.mrf.mxu0
        %v2608 = vadd.f32 %v1702, %v2607
        %2609 = vmatmul.bf16.gmra.mxu0 %v1681
        %v2610 = vpop.f32.mrf.mxu0
        %v2611 = vadd.f32 %v1702, %v2610
        %v2612 = vpop.f32.mrf.mxu0
        %v2613 = vadd.f32 %v1702, %v2612
        %2614 = vmatmul.bf16.gmra.mxu0 %v1683
        %v2615 = vpop.f32.mrf.mxu0
        %v2616 = vadd.f32 %v1702, %v2615
        %v2617 = vpop.f32.mrf.mxu0
        %v2618 = vadd.f32 %v1702, %v2617
        %2619 = vmatmul.bf16.gmra.mxu0 %v1685
        %v2620 = vpop.f32.mrf.mxu0
        %v2621 = vadd.f32 %v1702, %v2620
        %v2622 = vpop.f32.mrf.mxu0
        %v2623 = vadd.f32 %v1702, %v2622
        %2624 = vmatmul.bf16.gmra.mxu0 %v1687
        %v2625 = vpop.f32.mrf.mxu0
        %v2626 = vadd.f32 %v1702, %v2625
        %v2627 = vpop.f32.mrf.mxu0
        %v2628 = vadd.f32 %v1702, %v2627
        %2629 = vmatmul.bf16.gmra.mxu0 %v1689
        %v2630 = vpop.f32.mrf.mxu0
        %v2631 = vadd.f32 %v1702, %v2630
        %v2632 = vpop.f32.mrf.mxu0
        %v2633 = vadd.f32 %v1702, %v2632
        %2634 = vmatmul.bf16.gmra.mxu0 %v1691
        %v2635 = vpop.f32.mrf.mxu0
        %v2636 = vadd.f32 %v1702, %v2635
        %v2637 = vpop.f32.mrf.mxu0
        %v2638 = vadd.f32 %v1702, %v2637
        %2639 = vmatmul.bf16.gmra.mxu0 %v1693
        %v2640 = vpop.f32.mrf.mxu0
        %v2641 = vadd.f32 %v1702, %v2640
        %v2642 = vpop.f32.mrf.mxu0
        %v2643 = vadd.f32 %v1702, %v2642
        %2644 = vmatmul.bf16.gmra.mxu0 %v1695
        %v2645 = vpop.f32.mrf.mxu0
        %v2646 = vadd.f32 %v1702, %v2645
        %v2647 = vpop.f32.mrf.mxu0
        %v2648 = vadd.f32 %v1702, %v2647
        %2649 = vdwg.mxu0
        %2650 = vmatpush.bf16.msra.mxu0 %v1962
        %2651 = vmatpush.bf16.msra.mxu0 %v1958
        %2652 = vmatpush.bf16.msra.mxu0 %v1954
        %2653 = vmatpush.bf16.msra.mxu0 %v1950
        %2654 = vmatpush.bf16.msra.mxu0 %v1946
        %2655 = vmatpush.bf16.msra.mxu0 %v1942
        %2656 = vmatpush.bf16.msra.mxu0 %v1938
        %2657 = vmatpush.bf16.msra.mxu0 %v1934
        %2658 = vmatmul.bf16.gmra.mxu0 %v1666
        %v2659 = vpop.f32.mrf.mxu0
        %v2660 = vadd.f32 %v2571, %v2659
        %v2661 = vpop.f32.mrf.mxu0
        %v2662 = vadd.f32 %v2573, %v2661
        %2663 = vmatmul.bf16.gmra.mxu0 %v1668
        %v2664 = vpop.f32.mrf.mxu0
        %v2665 = vadd.f32 %v2576, %v2664
        %v2666 = vpop.f32.mrf.mxu0
        %v2667 = vadd.f32 %v2578, %v2666
        %2668 = vmatmul.bf16.gmra.mxu0 %v1670
        %v2669 = vpop.f32.mrf.mxu0
        %v2670 = vadd.f32 %v2581, %v2669
        %v2671 = vpop.f32.mrf.mxu0
        %v2672 = vadd.f32 %v2583, %v2671
        %2673 = vmatmul.bf16.gmra.mxu0 %v1672
        %v2674 = vpop.f32.mrf.mxu0
        %v2675 = vadd.f32 %v2586, %v2674
        %v2676 = vpop.f32.mrf.mxu0
        %v2677 = vadd.f32 %v2588, %v2676
        %2678 = vmatmul.bf16.gmra.mxu0 %v1674
        %v2679 = vpop.f32.mrf.mxu0
        %v2680 = vadd.f32 %v2591, %v2679
        %v2681 = vpop.f32.mrf.mxu0
        %v2682 = vadd.f32 %v2593, %v2681
        %2683 = vmatmul.bf16.gmra.mxu0 %v1676
        %v2684 = vpop.f32.mrf.mxu0
        %v2685 = vadd.f32 %v2596, %v2684
        %v2686 = vpop.f32.mrf.mxu0
        %v2687 = vadd.f32 %v2598, %v2686
        %2688 = vmatmul.bf16.gmra.mxu0 %v1678
        %v2689 = vpop.f32.mrf.mxu0
        %v2690 = vadd.f32 %v2601, %v2689
        %v2691 = vpop.f32.mrf.mxu0
        %v2692 = vadd.f32 %v2603, %v2691
        %2693 = vmatmul.bf16.gmra.mxu0 %v1680
        %v2694 = vpop.f32.mrf.mxu0
        %v2695 = vadd.f32 %v2606, %v2694
        %v2696 = vpop.f32.mrf.mxu0
        %v2697 = vadd.f32 %v2608, %v2696
        %2698 = vmatmul.bf16.gmra.mxu0 %v1682
        %v2699 = vpop.f32.mrf.mxu0
        %v2700 = vadd.f32 %v2611, %v2699
        %v2701 = vpop.f32.mrf.mxu0
        %v2702 = vadd.f32 %v2613, %v2701
        %2703 = vmatmul.bf16.gmra.mxu0 %v1684
        %v2704 = vpop.f32.mrf.mxu0
        %v2705 = vadd.f32 %v2616, %v2704
        %v2706 = vpop.f32.mrf.mxu0
        %v2707 = vadd.f32 %v2618, %v2706
        %2708 = vmatmul.bf16.gmra.mxu0 %v1686
        %v2709 = vpop.f32.mrf.mxu0
        %v2710 = vadd.f32 %v2621, %v2709
        %v2711 = vpop.f32.mrf.mxu0
        %v2712 = vadd.f32 %v2623, %v2711
        %2713 = vmatmul.bf16.gmra.mxu0 %v1688
        %v2714 = vpop.f32.mrf.mxu0
        %v2715 = vadd.f32 %v2626, %v2714
        %v2716 = vpop.f32.mrf.mxu0
        %v2717 = vadd.f32 %v2628, %v2716
        %2718 = vmatmul.bf16.gmra.mxu0 %v1690
        %v2719 = vpop.f32.mrf.mxu0
        %v2720 = vadd.f32 %v2631, %v2719
        %v2721 = vpop.f32.mrf.mxu0
        %v2722 = vadd.f32 %v2633, %v2721
        %2723 = vmatmul.bf16.gmra.mxu0 %v1692
        %v2724 = vpop.f32.mrf.mxu0
        %v2725 = vadd.f32 %v2636, %v2724
        %v2726 = vpop.f32.mrf.mxu0
        %v2727 = vadd.f32 %v2638, %v2726
        %2728 = vmatmul.bf16.gmra.mxu0 %v1694
        %v2729 = vpop.f32.mrf.mxu0
        %v2730 = vadd.f32 %v2641, %v2729
        %v2731 = vpop.f32.mrf.mxu0
        %v2732 = vadd.f32 %v2643, %v2731
        %2733 = vmatmul.bf16.gmra.mxu0 %v1696
        %v2734 = vpop.f32.mrf.mxu0
        %v2735 = vadd.f32 %v2646, %v2734
        %v2736 = vpop.f32.mrf.mxu0
        %v2737 = vadd.f32 %v2648, %v2736
        %2738 = vdwg.mxu0
        %v2739 = vmax.f32 %v2126, 0.0
        %v2740 = vmax.f32 %v2304, 0.0
        %v2741 = vmax.f32 %v2482, 0.0
        %v2742 = vmax.f32 %v2660, 0.0
        %v2743 = vmax.f32 %v2128, 0.0
        %v2744 = vmax.f32 %v2306, 0.0
        %v2745 = vmax.f32 %v2484, 0.0
        %v2746 = vmax.f32 %v2662, 0.0
        %v2747 = vmax.f32 %v2131, 0.0
        %v2748 = vmax.f32 %v2309, 0.0
        %v2749 = vmax.f32 %v2487, 0.0
        %v2750 = vmax.f32 %v2665, 0.0
        %v2751 = vmax.f32 %v2133, 0.0
        %v2752 = vmax.f32 %v2311, 0.0
        %v2753 = vmax.f32 %v2489, 0.0
        %v2754 = vmax.f32 %v2667, 0.0
        %v2755 = vmax.f32 %v2136, 0.0
        %v2756 = vmax.f32 %v2314, 0.0
        %v2757 = vmax.f32 %v2492, 0.0
        %v2758 = vmax.f32 %v2670, 0.0
        %v2759 = vmax.f32 %v2138, 0.0
        %v2760 = vmax.f32 %v2316, 0.0
        %v2761 = vmax.f32 %v2494, 0.0
        %v2762 = vmax.f32 %v2672, 0.0
        %v2763 = vmax.f32 %v2141, 0.0
        %v2764 = vmax.f32 %v2319, 0.0
        %v2765 = vmax.f32 %v2497, 0.0
        %v2766 = vmax.f32 %v2675, 0.0
        %v2767 = vmax.f32 %v2143, 0.0
        %v2768 = vmax.f32 %v2321, 0.0
        %v2769 = vmax.f32 %v2499, 0.0
        %v2770 = vmax.f32 %v2677, 0.0
        %v2771 = vmax.f32 %v2146, 0.0
        %v2772 = vmax.f32 %v2324, 0.0
        %v2773 = vmax.f32 %v2502, 0.0
        %v2774 = vmax.f32 %v2680, 0.0
        %v2775 = vmax.f32 %v2148, 0.0
        %v2776 = vmax.f32 %v2326, 0.0
        %v2777 = vmax.f32 %v2504, 0.0
        %v2778 = vmax.f32 %v2682, 0.0
        %v2779 = vmax.f32 %v2151, 0.0
        %v2780 = vmax.f32 %v2329, 0.0
        %v2781 = vmax.f32 %v2507, 0.0
        %v2782 = vmax.f32 %v2685, 0.0
        %v2783 = vmax.f32 %v2153, 0.0
        %v2784 = vmax.f32 %v2331, 0.0
        %v2785 = vmax.f32 %v2509, 0.0
        %v2786 = vmax.f32 %v2687, 0.0
        %v2787 = vmax.f32 %v2156, 0.0
        %v2788 = vmax.f32 %v2334, 0.0
        %v2789 = vmax.f32 %v2512, 0.0
        %v2790 = vmax.f32 %v2690, 0.0
        %v2791 = vmax.f32 %v2158, 0.0
        %v2792 = vmax.f32 %v2336, 0.0
        %v2793 = vmax.f32 %v2514, 0.0
        %v2794 = vmax.f32 %v2692, 0.0
        %v2795 = vmax.f32 %v2161, 0.0
        %v2796 = vmax.f32 %v2339, 0.0
        %v2797 = vmax.f32 %v2517, 0.0
        %v2798 = vmax.f32 %v2695, 0.0
        %v2799 = vmax.f32 %v2163, 0.0
        %v2800 = vmax.f32 %v2341, 0.0
        %v2801 = vmax.f32 %v2519, 0.0
        %v2802 = vmax.f32 %v2697, 0.0
        %v2803 = vmax.f32 %v2166, 0.0
        %v2804 = vmax.f32 %v2344, 0.0
        %v2805 = vmax.f32 %v2522, 0.0
        %v2806 = vmax.f32 %v2700, 0.0
        %v2807 = vmax.f32 %v2168, 0.0
        %v2808 = vmax.f32 %v2346, 0.0
        %v2809 = vmax.f32 %v2524, 0.0
        %v2810 = vmax.f32 %v2702, 0.0
        %v2811 = vmax.f32 %v2171, 0.0
        %v2812 = vmax.f32 %v2349, 0.0
        %v2813 = vmax.f32 %v2527, 0.0
        %v2814 = vmax.f32 %v2705, 0.0
        %v2815 = vmax.f32 %v2173, 0.0
        %v2816 = vmax.f32 %v2351, 0.0
        %v2817 = vmax.f32 %v2529, 0.0
        %v2818 = vmax.f32 %v2707, 0.0
        %v2819 = vmax.f32 %v2176, 0.0
        %v2820 = vmax.f32 %v2354, 0.0
        %v2821 = vmax.f32 %v2532, 0.0
        %v2822 = vmax.f32 %v2710, 0.0
        %v2823 = vmax.f32 %v2178, 0.0
        %v2824 = vmax.f32 %v2356, 0.0
        %v2825 = vmax.f32 %v2534, 0.0
        %v2826 = vmax.f32 %v2712, 0.0
        %v2827 = vmax.f32 %v2181, 0.0
        %v2828 = vmax.f32 %v2359, 0.0
        %v2829 = vmax.f32 %v2537, 0.0
        %v2830 = vmax.f32 %v2715, 0.0
        %v2831 = vmax.f32 %v2183, 0.0
        %v2832 = vmax.f32 %v2361, 0.0
        %v2833 = vmax.f32 %v2539, 0.0
        %v2834 = vmax.f32 %v2717, 0.0
        %v2835 = vmax.f32 %v2186, 0.0
        %v2836 = vmax.f32 %v2364, 0.0
        %v2837 = vmax.f32 %v2542, 0.0
        %v2838 = vmax.f32 %v2720, 0.0
        %v2839 = vmax.f32 %v2188, 0.0
        %v2840 = vmax.f32 %v2366, 0.0
        %v2841 = vmax.f32 %v2544, 0.0
        %v2842 = vmax.f32 %v2722, 0.0
        %v2843 = vmax.f32 %v2191, 0.0
        %v2844 = vmax.f32 %v2369, 0.0
        %v2845 = vmax.f32 %v2547, 0.0
        %v2846 = vmax.f32 %v2725, 0.0
        %v2847 = vmax.f32 %v2193, 0.0
        %v2848 = vmax.f32 %v2371, 0.0
        %v2849 = vmax.f32 %v2549, 0.0
        %v2850 = vmax.f32 %v2727, 0.0
        %v2851 = vmax.f32 %v2196, 0.0
        %v2852 = vmax.f32 %v2374, 0.0
        %v2853 = vmax.f32 %v2552, 0.0
        %v2854 = vmax.f32 %v2730, 0.0
        %v2855 = vmax.f32 %v2198, 0.0
        %v2856 = vmax.f32 %v2376, 0.0
        %v2857 = vmax.f32 %v2554, 0.0
        %v2858 = vmax.f32 %v2732, 0.0
        %v2859 = vmax.f32 %v2201, 0.0
        %v2860 = vmax.f32 %v2379, 0.0
        %v2861 = vmax.f32 %v2557, 0.0
        %v2862 = vmax.f32 %v2735, 0.0
        %v2863 = vmax.f32 %v2203, 0.0
        %v2864 = vmax.f32 %v2381, 0.0
        %v2865 = vmax.f32 %v2559, 0.0
        %v2866 = vmax.f32 %v2737, 0.0
        %v2867 = vld [vmem:[#allocation3] sm:$0xff]
        %v2868 = vld [vmem:[#allocation3 + $0x8] sm:$0xff]
        %v2869 = vld [vmem:[#allocation3 + $0x10] sm:$0xff]
        %v2870 = vld [vmem:[#allocation3 + $0x18] sm:$0xff]
        %v2871 = vld [vmem:[#allocation3 + $0x20] sm:$0xff]
        %v2872 = vld [vmem:[#allocation3 + $0x28] sm:$0xff]
        %v2873 = vld [vmem:[#allocation3 + $0x30] sm:$0xff]
        %v2874 = vld [vmem:[#allocation3 + $0x38] sm:$0xff]
        %v2875 = vld [vmem:[#allocation3 + $0x40] sm:$0xff]
        %v2876 = vld [vmem:[#allocation3 + $0x48] sm:$0xff]
        %v2877 = vld [vmem:[#allocation3 + $0x50] sm:$0xff]
        %v2878 = vld [vmem:[#allocation3 + $0x58] sm:$0xff]
        %v2879 = vld [vmem:[#allocation3 + $0x60] sm:$0xff]
        %v2880 = vld [vmem:[#allocation3 + $0x68] sm:$0xff]
        %v2881 = vld [vmem:[#allocation3 + $0x70] sm:$0xff]
        %v2882 = vld [vmem:[#allocation3 + $0x78] sm:$0xff]
        %v2883 = vld [vmem:[#allocation3 + $0x80] sm:$0xff]
        %v2884 = vld [vmem:[#allocation3 + $0x88] sm:$0xff]
        %v2885 = vld [vmem:[#allocation3 + $0x90] sm:$0xff]
        %v2886 = vld [vmem:[#allocation3 + $0x98] sm:$0xff]
        %v2887 = vld [vmem:[#allocation3 + $0xa0] sm:$0xff]
        %v2888 = vld [vmem:[#allocation3 + $0xa8] sm:$0xff]
        %v2889 = vld [vmem:[#allocation3 + $0xb0] sm:$0xff]
        %v2890 = vld [vmem:[#allocation3 + $0xb8] sm:$0xff]
        %v2891 = vld [vmem:[#allocation3 + $0xc0] sm:$0xff]
        %v2892 = vld [vmem:[#allocation3 + $0xc8] sm:$0xff]
        %v2893 = vld [vmem:[#allocation3 + $0xd0] sm:$0xff]
        %v2894 = vld [vmem:[#allocation3 + $0xd8] sm:$0xff]
        %v2895 = vld [vmem:[#allocation3 + $0xe0] sm:$0xff]
        %v2896 = vld [vmem:[#allocation3 + $0xe8] sm:$0xff]
        %v2897 = vld [vmem:[#allocation3 + $0xf0] sm:$0xff]
        %v2898 = vld [vmem:[#allocation3 + $0xf8] sm:$0xff]
        %v2899 = vld [vmem:[#allocation3 + $0x100] sm:$0xff]
        %v2900 = vld [vmem:[#allocation3 + $0x108] sm:$0xff]
        %v2901 = vld [vmem:[#allocation3 + $0x110] sm:$0xff]
        %v2902 = vld [vmem:[#allocation3 + $0x118] sm:$0xff]
        %v2903 = vld [vmem:[#allocation3 + $0x120] sm:$0xff]
        %v2904 = vld [vmem:[#allocation3 + $0x128] sm:$0xff]
        %v2905 = vld [vmem:[#allocation3 + $0x130] sm:$0xff]
        %v2906 = vld [vmem:[#allocation3 + $0x138] sm:$0xff]
        %v2907 = vld [vmem:[#allocation3 + $0x140] sm:$0xff]
        %v2908 = vld [vmem:[#allocation3 + $0x148] sm:$0xff]
        %v2909 = vld [vmem:[#allocation3 + $0x150] sm:$0xff]
        %v2910 = vld [vmem:[#allocation3 + $0x158] sm:$0xff]
        %v2911 = vld [vmem:[#allocation3 + $0x160] sm:$0xff]
        %v2912 = vld [vmem:[#allocation3 + $0x168] sm:$0xff]
        %v2913 = vld [vmem:[#allocation3 + $0x170] sm:$0xff]
        %v2914 = vld [vmem:[#allocation3 + $0x178] sm:$0xff]
        %v2915 = vld [vmem:[#allocation3 + $0x180] sm:$0xff]
        %v2916 = vld [vmem:[#allocation3 + $0x188] sm:$0xff]
        %v2917 = vld [vmem:[#allocation3 + $0x190] sm:$0xff]
        %v2918 = vld [vmem:[#allocation3 + $0x198] sm:$0xff]
        %v2919 = vld [vmem:[#allocation3 + $0x1a0] sm:$0xff]
        %v2920 = vld [vmem:[#allocation3 + $0x1a8] sm:$0xff]
        %v2921 = vld [vmem:[#allocation3 + $0x1b0] sm:$0xff]
        %v2922 = vld [vmem:[#allocation3 + $0x1b8] sm:$0xff]
        %v2923 = vld [vmem:[#allocation3 + $0x1c0] sm:$0xff]
        %v2924 = vld [vmem:[#allocation3 + $0x1c8] sm:$0xff]
        %v2925 = vld [vmem:[#allocation3 + $0x1d0] sm:$0xff]
        %v2926 = vld [vmem:[#allocation3 + $0x1d8] sm:$0xff]
        %v2927 = vld [vmem:[#allocation3 + $0x1e0] sm:$0xff]
        %v2928 = vld [vmem:[#allocation3 + $0x1e8] sm:$0xff]
        %v2929 = vld [vmem:[#allocation3 + $0x1f0] sm:$0xff]
        %v2930 = vld [vmem:[#allocation3 + $0x1f8] sm:$0xff]
        %v2931 = vld [vmem:[#allocation3 + $0x200] sm:$0xff]
        %v2932 = vld [vmem:[#allocation3 + $0x208] sm:$0xff]
        %v2933 = vld [vmem:[#allocation3 + $0x210] sm:$0xff]
        %v2934 = vld [vmem:[#allocation3 + $0x218] sm:$0xff]
        %v2935 = vld [vmem:[#allocation3 + $0x220] sm:$0xff]
        %v2936 = vld [vmem:[#allocation3 + $0x228] sm:$0xff]
        %v2937 = vld [vmem:[#allocation3 + $0x230] sm:$0xff]
        %v2938 = vld [vmem:[#allocation3 + $0x238] sm:$0xff]
        %v2939 = vld [vmem:[#allocation3 + $0x240] sm:$0xff]
        %v2940 = vld [vmem:[#allocation3 + $0x248] sm:$0xff]
        %v2941 = vld [vmem:[#allocation3 + $0x250] sm:$0xff]
        %v2942 = vld [vmem:[#allocation3 + $0x258] sm:$0xff]
        %v2943 = vld [vmem:[#allocation3 + $0x260] sm:$0xff]
        %v2944 = vld [vmem:[#allocation3 + $0x268] sm:$0xff]
        %v2945 = vld [vmem:[#allocation3 + $0x270] sm:$0xff]
        %v2946 = vld [vmem:[#allocation3 + $0x278] sm:$0xff]
        %v2947 = vld [vmem:[#allocation3 + $0x280] sm:$0xff]
        %v2948 = vld [vmem:[#allocation3 + $0x288] sm:$0xff]
        %v2949 = vld [vmem:[#allocation3 + $0x290] sm:$0xff]
        %v2950 = vld [vmem:[#allocation3 + $0x298] sm:$0xff]
        %v2951 = vld [vmem:[#allocation3 + $0x2a0] sm:$0xff]
        %v2952 = vld [vmem:[#allocation3 + $0x2a8] sm:$0xff]
        %v2953 = vld [vmem:[#allocation3 + $0x2b0] sm:$0xff]
        %v2954 = vld [vmem:[#allocation3 + $0x2b8] sm:$0xff]
        %v2955 = vld [vmem:[#allocation3 + $0x2c0] sm:$0xff]
        %v2956 = vld [vmem:[#allocation3 + $0x2c8] sm:$0xff]
        %v2957 = vld [vmem:[#allocation3 + $0x2d0] sm:$0xff]
        %v2958 = vld [vmem:[#allocation3 + $0x2d8] sm:$0xff]
        %v2959 = vld [vmem:[#allocation3 + $0x2e0] sm:$0xff]
        %v2960 = vld [vmem:[#allocation3 + $0x2e8] sm:$0xff]
        %v2961 = vld [vmem:[#allocation3 + $0x2f0] sm:$0xff]
        %v2962 = vld [vmem:[#allocation3 + $0x2f8] sm:$0xff]
        %v2963 = vld [vmem:[#allocation3 + $0x300] sm:$0xff]
        %v2964 = vld [vmem:[#allocation3 + $0x308] sm:$0xff]
        %v2965 = vld [vmem:[#allocation3 + $0x310] sm:$0xff]
        %v2966 = vld [vmem:[#allocation3 + $0x318] sm:$0xff]
        %v2967 = vld [vmem:[#allocation3 + $0x320] sm:$0xff]
        %v2968 = vld [vmem:[#allocation3 + $0x328] sm:$0xff]
        %v2969 = vld [vmem:[#allocation3 + $0x330] sm:$0xff]
        %v2970 = vld [vmem:[#allocation3 + $0x338] sm:$0xff]
        %v2971 = vld [vmem:[#allocation3 + $0x340] sm:$0xff]
        %v2972 = vld [vmem:[#allocation3 + $0x348] sm:$0xff]
        %v2973 = vld [vmem:[#allocation3 + $0x350] sm:$0xff]
        %v2974 = vld [vmem:[#allocation3 + $0x358] sm:$0xff]
        %v2975 = vld [vmem:[#allocation3 + $0x360] sm:$0xff]
        %v2976 = vld [vmem:[#allocation3 + $0x368] sm:$0xff]
        %v2977 = vld [vmem:[#allocation3 + $0x370] sm:$0xff]
        %v2978 = vld [vmem:[#allocation3 + $0x378] sm:$0xff]
        %v2979 = vld [vmem:[#allocation3 + $0x380] sm:$0xff]
        %v2980 = vld [vmem:[#allocation3 + $0x388] sm:$0xff]
        %v2981 = vld [vmem:[#allocation3 + $0x390] sm:$0xff]
        %v2982 = vld [vmem:[#allocation3 + $0x398] sm:$0xff]
        %v2983 = vld [vmem:[#allocation3 + $0x3a0] sm:$0xff]
        %v2984 = vld [vmem:[#allocation3 + $0x3a8] sm:$0xff]
        %v2985 = vld [vmem:[#allocation3 + $0x3b0] sm:$0xff]
        %v2986 = vld [vmem:[#allocation3 + $0x3b8] sm:$0xff]
        %v2987 = vld [vmem:[#allocation3 + $0x3c0] sm:$0xff]
        %v2988 = vld [vmem:[#allocation3 + $0x3c8] sm:$0xff]
        %v2989 = vld [vmem:[#allocation3 + $0x3d0] sm:$0xff]
        %v2990 = vld [vmem:[#allocation3 + $0x3d8] sm:$0xff]
        %v2991 = vld [vmem:[#allocation3 + $0x3e0] sm:$0xff]
        %v2992 = vld [vmem:[#allocation3 + $0x3e8] sm:$0xff]
        %v2993 = vld [vmem:[#allocation3 + $0x3f0] sm:$0xff]
        %v2994 = vld [vmem:[#allocation3 + $0x3f8] sm:$0xff]
        %v2995 = vld [vmem:[#allocation3 + $0x400] sm:$0xff]
        %v2996 = vld [vmem:[#allocation3 + $0x408] sm:$0xff]
        %v2997 = vld [vmem:[#allocation3 + $0x410] sm:$0xff]
        %v2998 = vld [vmem:[#allocation3 + $0x418] sm:$0xff]
        %v2999 = vld [vmem:[#allocation3 + $0x420] sm:$0xff]
        %v3000 = vld [vmem:[#allocation3 + $0x428] sm:$0xff]
        %v3001 = vld [vmem:[#allocation3 + $0x430] sm:$0xff]
        %v3002 = vld [vmem:[#allocation3 + $0x438] sm:$0xff]
        %v3003 = vld [vmem:[#allocation3 + $0x440] sm:$0xff]
        %v3004 = vld [vmem:[#allocation3 + $0x448] sm:$0xff]
        %v3005 = vld [vmem:[#allocation3 + $0x450] sm:$0xff]
        %v3006 = vld [vmem:[#allocation3 + $0x458] sm:$0xff]
        %v3007 = vld [vmem:[#allocation3 + $0x460] sm:$0xff]
        %v3008 = vld [vmem:[#allocation3 + $0x468] sm:$0xff]
        %v3009 = vld [vmem:[#allocation3 + $0x470] sm:$0xff]
        %v3010 = vld [vmem:[#allocation3 + $0x478] sm:$0xff]
        %v3011 = vld [vmem:[#allocation3 + $0x480] sm:$0xff]
        %v3012 = vld [vmem:[#allocation3 + $0x488] sm:$0xff]
        %v3013 = vld [vmem:[#allocation3 + $0x490] sm:$0xff]
        %v3014 = vld [vmem:[#allocation3 + $0x498] sm:$0xff]
        %v3015 = vld [vmem:[#allocation3 + $0x4a0] sm:$0xff]
        %v3016 = vld [vmem:[#allocation3 + $0x4a8] sm:$0xff]
        %v3017 = vld [vmem:[#allocation3 + $0x4b0] sm:$0xff]
        %v3018 = vld [vmem:[#allocation3 + $0x4b8] sm:$0xff]
        %v3019 = vld [vmem:[#allocation3 + $0x4c0] sm:$0xff]
        %v3020 = vld [vmem:[#allocation3 + $0x4c8] sm:$0xff]
        %v3021 = vld [vmem:[#allocation3 + $0x4d0] sm:$0xff]
        %v3022 = vld [vmem:[#allocation3 + $0x4d8] sm:$0xff]
        %v3023 = vld [vmem:[#allocation3 + $0x4e0] sm:$0xff]
        %v3024 = vld [vmem:[#allocation3 + $0x4e8] sm:$0xff]
        %v3025 = vld [vmem:[#allocation3 + $0x4f0] sm:$0xff]
        %v3026 = vld [vmem:[#allocation3 + $0x4f8] sm:$0xff]
        %v3027 = vld [vmem:[#allocation3 + $0x500] sm:$0xff]
        %v3028 = vld [vmem:[#allocation3 + $0x508] sm:$0xff]
        %v3029 = vld [vmem:[#allocation3 + $0x510] sm:$0xff]
        %v3030 = vld [vmem:[#allocation3 + $0x518] sm:$0xff]
        %v3031 = vld [vmem:[#allocation3 + $0x520] sm:$0xff]
        %v3032 = vld [vmem:[#allocation3 + $0x528] sm:$0xff]
        %v3033 = vld [vmem:[#allocation3 + $0x530] sm:$0xff]
        %v3034 = vld [vmem:[#allocation3 + $0x538] sm:$0xff]
        %v3035 = vld [vmem:[#allocation3 + $0x540] sm:$0xff]
        %v3036 = vld [vmem:[#allocation3 + $0x548] sm:$0xff]
        %v3037 = vld [vmem:[#allocation3 + $0x550] sm:$0xff]
        %v3038 = vld [vmem:[#allocation3 + $0x558] sm:$0xff]
        %v3039 = vld [vmem:[#allocation3 + $0x560] sm:$0xff]
        %v3040 = vld [vmem:[#allocation3 + $0x568] sm:$0xff]
        %v3041 = vld [vmem:[#allocation3 + $0x570] sm:$0xff]
        %v3042 = vld [vmem:[#allocation3 + $0x578] sm:$0xff]
        %v3043 = vld [vmem:[#allocation3 + $0x580] sm:$0xff]
        %v3044 = vld [vmem:[#allocation3 + $0x588] sm:$0xff]
        %v3045 = vld [vmem:[#allocation3 + $0x590] sm:$0xff]
        %v3046 = vld [vmem:[#allocation3 + $0x598] sm:$0xff]
        %v3047 = vld [vmem:[#allocation3 + $0x5a0] sm:$0xff]
        %v3048 = vld [vmem:[#allocation3 + $0x5a8] sm:$0xff]
        %v3049 = vld [vmem:[#allocation3 + $0x5b0] sm:$0xff]
        %v3050 = vld [vmem:[#allocation3 + $0x5b8] sm:$0xff]
        %v3051 = vld [vmem:[#allocation3 + $0x5c0] sm:$0xff]
        %v3052 = vld [vmem:[#allocation3 + $0x5c8] sm:$0xff]
        %v3053 = vld [vmem:[#allocation3 + $0x5d0] sm:$0xff]
        %v3054 = vld [vmem:[#allocation3 + $0x5d8] sm:$0xff]
        %v3055 = vld [vmem:[#allocation3 + $0x5e0] sm:$0xff]
        %v3056 = vld [vmem:[#allocation3 + $0x5e8] sm:$0xff]
        %v3057 = vld [vmem:[#allocation3 + $0x5f0] sm:$0xff]
        %v3058 = vld [vmem:[#allocation3 + $0x5f8] sm:$0xff]
        %v3059 = vld [vmem:[#allocation3 + $0x600] sm:$0xff]
        %v3060 = vld [vmem:[#allocation3 + $0x608] sm:$0xff]
        %v3061 = vld [vmem:[#allocation3 + $0x610] sm:$0xff]
        %v3062 = vld [vmem:[#allocation3 + $0x618] sm:$0xff]
        %v3063 = vld [vmem:[#allocation3 + $0x620] sm:$0xff]
        %v3064 = vld [vmem:[#allocation3 + $0x628] sm:$0xff]
        %v3065 = vld [vmem:[#allocation3 + $0x630] sm:$0xff]
        %v3066 = vld [vmem:[#allocation3 + $0x638] sm:$0xff]
        %v3067 = vld [vmem:[#allocation3 + $0x640] sm:$0xff]
        %v3068 = vld [vmem:[#allocation3 + $0x648] sm:$0xff]
        %v3069 = vld [vmem:[#allocation3 + $0x650] sm:$0xff]
        %v3070 = vld [vmem:[#allocation3 + $0x658] sm:$0xff]
        %v3071 = vld [vmem:[#allocation3 + $0x660] sm:$0xff]
        %v3072 = vld [vmem:[#allocation3 + $0x668] sm:$0xff]
        %v3073 = vld [vmem:[#allocation3 + $0x670] sm:$0xff]
        %v3074 = vld [vmem:[#allocation3 + $0x678] sm:$0xff]
        %v3075 = vld [vmem:[#allocation3 + $0x680] sm:$0xff]
        %v3076 = vld [vmem:[#allocation3 + $0x688] sm:$0xff]
        %v3077 = vld [vmem:[#allocation3 + $0x690] sm:$0xff]
        %v3078 = vld [vmem:[#allocation3 + $0x698] sm:$0xff]
        %v3079 = vld [vmem:[#allocation3 + $0x6a0] sm:$0xff]
        %v3080 = vld [vmem:[#allocation3 + $0x6a8] sm:$0xff]
        %v3081 = vld [vmem:[#allocation3 + $0x6b0] sm:$0xff]
        %v3082 = vld [vmem:[#allocation3 + $0x6b8] sm:$0xff]
        %v3083 = vld [vmem:[#allocation3 + $0x6c0] sm:$0xff]
        %v3084 = vld [vmem:[#allocation3 + $0x6c8] sm:$0xff]
        %v3085 = vld [vmem:[#allocation3 + $0x6d0] sm:$0xff]
        %v3086 = vld [vmem:[#allocation3 + $0x6d8] sm:$0xff]
        %v3087 = vld [vmem:[#allocation3 + $0x6e0] sm:$0xff]
        %v3088 = vld [vmem:[#allocation3 + $0x6e8] sm:$0xff]
        %v3089 = vld [vmem:[#allocation3 + $0x6f0] sm:$0xff]
        %v3090 = vld [vmem:[#allocation3 + $0x6f8] sm:$0xff]
        %v3091 = vld [vmem:[#allocation3 + $0x700] sm:$0xff]
        %v3092 = vld [vmem:[#allocation3 + $0x708] sm:$0xff]
        %v3093 = vld [vmem:[#allocation3 + $0x710] sm:$0xff]
        %v3094 = vld [vmem:[#allocation3 + $0x718] sm:$0xff]
        %v3095 = vld [vmem:[#allocation3 + $0x720] sm:$0xff]
        %v3096 = vld [vmem:[#allocation3 + $0x728] sm:$0xff]
        %v3097 = vld [vmem:[#allocation3 + $0x730] sm:$0xff]
        %v3098 = vld [vmem:[#allocation3 + $0x738] sm:$0xff]
        %v3099 = vld [vmem:[#allocation3 + $0x740] sm:$0xff]
        %v3100 = vld [vmem:[#allocation3 + $0x748] sm:$0xff]
        %v3101 = vld [vmem:[#allocation3 + $0x750] sm:$0xff]
        %v3102 = vld [vmem:[#allocation3 + $0x758] sm:$0xff]
        %v3103 = vld [vmem:[#allocation3 + $0x760] sm:$0xff]
        %v3104 = vld [vmem:[#allocation3 + $0x768] sm:$0xff]
        %v3105 = vld [vmem:[#allocation3 + $0x770] sm:$0xff]
        %v3106 = vld [vmem:[#allocation3 + $0x778] sm:$0xff]
        %v3107 = vld [vmem:[#allocation3 + $0x780] sm:$0xff]
        %v3108 = vld [vmem:[#allocation3 + $0x788] sm:$0xff]
        %v3109 = vld [vmem:[#allocation3 + $0x790] sm:$0xff]
        %v3110 = vld [vmem:[#allocation3 + $0x798] sm:$0xff]
        %v3111 = vld [vmem:[#allocation3 + $0x7a0] sm:$0xff]
        %v3112 = vld [vmem:[#allocation3 + $0x7a8] sm:$0xff]
        %v3113 = vld [vmem:[#allocation3 + $0x7b0] sm:$0xff]
        %v3114 = vld [vmem:[#allocation3 + $0x7b8] sm:$0xff]
        %v3115 = vld [vmem:[#allocation3 + $0x7c0] sm:$0xff]
        %v3116 = vld [vmem:[#allocation3 + $0x7c8] sm:$0xff]
        %v3117 = vld [vmem:[#allocation3 + $0x7d0] sm:$0xff]
        %v3118 = vld [vmem:[#allocation3 + $0x7d8] sm:$0xff]
        %v3119 = vld [vmem:[#allocation3 + $0x7e0] sm:$0xff]
        %v3120 = vld [vmem:[#allocation3 + $0x7e8] sm:$0xff]
        %v3121 = vld [vmem:[#allocation3 + $0x7f0] sm:$0xff]
        %v3122 = vld [vmem:[#allocation3 + $0x7f8] sm:$0xff]
        %v3123 = vpack.c.bf16 %v2743, %v2739
        %v3124 = vpack.c.bf16 %v2744, %v2740
        %v3125 = vpack.c.bf16 %v2745, %v2741
        %v3126 = vpack.c.bf16 %v2746, %v2742
        %v3127 = vpack.c.bf16 %v2751, %v2747
        %v3128 = vpack.c.bf16 %v2752, %v2748
        %v3129 = vpack.c.bf16 %v2753, %v2749
        %v3130 = vpack.c.bf16 %v2754, %v2750
        %v3131 = vpack.c.bf16 %v2759, %v2755
        %v3132 = vpack.c.bf16 %v2760, %v2756
        %v3133 = vpack.c.bf16 %v2761, %v2757
        %v3134 = vpack.c.bf16 %v2762, %v2758
        %v3135 = vpack.c.bf16 %v2767, %v2763
        %v3136 = vpack.c.bf16 %v2768, %v2764
        %v3137 = vpack.c.bf16 %v2769, %v2765
        %v3138 = vpack.c.bf16 %v2770, %v2766
        %v3139 = vpack.c.bf16 %v2775, %v2771
        %v3140 = vpack.c.bf16 %v2776, %v2772
        %v3141 = vpack.c.bf16 %v2777, %v2773
        %v3142 = vpack.c.bf16 %v2778, %v2774
        %v3143 = vpack.c.bf16 %v2783, %v2779
        %v3144 = vpack.c.bf16 %v2784, %v2780
        %v3145 = vpack.c.bf16 %v2785, %v2781
        %v3146 = vpack.c.bf16 %v2786, %v2782
        %v3147 = vpack.c.bf16 %v2791, %v2787
        %v3148 = vpack.c.bf16 %v2792, %v2788
        %v3149 = vpack.c.bf16 %v2793, %v2789
        %v3150 = vpack.c.bf16 %v2794, %v2790
        %v3151 = vpack.c.bf16 %v2799, %v2795
        %v3152 = vpack.c.bf16 %v2800, %v2796
        %v3153 = vpack.c.bf16 %v2801, %v2797
        %v3154 = vpack.c.bf16 %v2802, %v2798
        %v3155 = vpack.c.bf16 %v2807, %v2803
        %v3156 = vpack.c.bf16 %v2808, %v2804
        %v3157 = vpack.c.bf16 %v2809, %v2805
        %v3158 = vpack.c.bf16 %v2810, %v2806
        %v3159 = vpack.c.bf16 %v2815, %v2811
        %v3160 = vpack.c.bf16 %v2816, %v2812
        %v3161 = vpack.c.bf16 %v2817, %v2813
        %v3162 = vpack.c.bf16 %v2818, %v2814
        %v3163 = vpack.c.bf16 %v2823, %v2819
        %v3164 = vpack.c.bf16 %v2824, %v2820
        %v3165 = vpack.c.bf16 %v2825, %v2821
        %v3166 = vpack.c.bf16 %v2826, %v2822
        %v3167 = vpack.c.bf16 %v2831, %v2827
        %v3168 = vpack.c.bf16 %v2832, %v2828
        %v3169 = vpack.c.bf16 %v2833, %v2829
        %v3170 = vpack.c.bf16 %v2834, %v2830
        %v3171 = vpack.c.bf16 %v2839, %v2835
        %v3172 = vpack.c.bf16 %v2840, %v2836
        %v3173 = vpack.c.bf16 %v2841, %v2837
        %v3174 = vpack.c.bf16 %v2842, %v2838
        %v3175 = vpack.c.bf16 %v2847, %v2843
        %v3176 = vpack.c.bf16 %v2848, %v2844
        %v3177 = vpack.c.bf16 %v2849, %v2845
        %v3178 = vpack.c.bf16 %v2850, %v2846
        %v3179 = vpack.c.bf16 %v2855, %v2851
        %v3180 = vpack.c.bf16 %v2856, %v2852
        %v3181 = vpack.c.bf16 %v2857, %v2853
        %v3182 = vpack.c.bf16 %v2858, %v2854
        %v3183 = vpack.c.bf16 %v2863, %v2859
        %v3184 = vpack.c.bf16 %v2864, %v2860
        %v3185 = vpack.c.bf16 %v2865, %v2861
        %v3186 = vpack.c.bf16 %v2866, %v2862
        %v3187 = vld [vmem:[%s12] sm:$0xff]
        %v3189 = vperm.slane %v3187, 0
        %v3190 = vperm.slane %v3187, 1
        %v3191 = vperm.slane %v3187, 2
        %v3192 = vperm.slane %v3187, 3
        %v3193 = vperm.slane %v3187, 4
        %v3194 = vperm.slane %v3187, 5
        %v3195 = vperm.slane %v3187, 6
        %v3196 = vperm.slane %v3187, 7
        %v3461 = vunpack.c.l.b16 %v2867
        %v3462 = vunpack.c.h.b16 %v2867
        %v3463 = vunpack.c.l.b16 %v2868
        %v3464 = vunpack.c.h.b16 %v2868
        %v3465 = vunpack.c.l.b16 %v2869
        %v3466 = vunpack.c.h.b16 %v2869
        %v3467 = vunpack.c.l.b16 %v2870
        %v3468 = vunpack.c.h.b16 %v2870
        %v3469 = vunpack.c.l.b16 %v2871
        %v3470 = vunpack.c.h.b16 %v2871
        %v3471 = vunpack.c.l.b16 %v2872
        %v3472 = vunpack.c.h.b16 %v2872
        %v3473 = vunpack.c.l.b16 %v2873
        %v3474 = vunpack.c.h.b16 %v2873
        %v3475 = vunpack.c.l.b16 %v2874
        %v3476 = vunpack.c.h.b16 %v2874
        %v3477 = vunpack.c.l.b16 %v2875
        %v3478 = vunpack.c.h.b16 %v2875
        %v3479 = vunpack.c.l.b16 %v2876
        %v3480 = vunpack.c.h.b16 %v2876
        %v3481 = vunpack.c.l.b16 %v2877
        %v3482 = vunpack.c.h.b16 %v2877
        %v3483 = vunpack.c.l.b16 %v2878
        %v3484 = vunpack.c.h.b16 %v2878
        %v3485 = vunpack.c.l.b16 %v2879
        %v3486 = vunpack.c.h.b16 %v2879
        %v3487 = vunpack.c.l.b16 %v2880
        %v3488 = vunpack.c.h.b16 %v2880
        %v3489 = vunpack.c.l.b16 %v2881
        %v3490 = vunpack.c.h.b16 %v2881
        %v3491 = vunpack.c.l.b16 %v2882
        %v3492 = vunpack.c.h.b16 %v2882
        %v3493 = vunpack.c.l.b16 %v2883
        %v3494 = vunpack.c.h.b16 %v2883
        %v3495 = vunpack.c.l.b16 %v2884
        %v3496 = vunpack.c.h.b16 %v2884
        %v3497 = vunpack.c.l.b16 %v2885
        %v3498 = vunpack.c.h.b16 %v2885
        %v3499 = vunpack.c.l.b16 %v2886
        %v3500 = vunpack.c.h.b16 %v2886
        %v3501 = vunpack.c.l.b16 %v2887
        %v3502 = vunpack.c.h.b16 %v2887
        %v3503 = vunpack.c.l.b16 %v2888
        %v3504 = vunpack.c.h.b16 %v2888
        %v3505 = vunpack.c.l.b16 %v2889
        %v3506 = vunpack.c.h.b16 %v2889
        %v3507 = vunpack.c.l.b16 %v2890
        %v3508 = vunpack.c.h.b16 %v2890
        %v3509 = vunpack.c.l.b16 %v2891
        %v3510 = vunpack.c.h.b16 %v2891
        %v3511 = vunpack.c.l.b16 %v2892
        %v3512 = vunpack.c.h.b16 %v2892
        %v3513 = vunpack.c.l.b16 %v2893
        %v3514 = vunpack.c.h.b16 %v2893
        %v3515 = vunpack.c.l.b16 %v2894
        %v3516 = vunpack.c.h.b16 %v2894
        %v3517 = vunpack.c.l.b16 %v2895
        %v3518 = vunpack.c.h.b16 %v2895
        %v3519 = vunpack.c.l.b16 %v2896
        %v3520 = vunpack.c.h.b16 %v2896
        %v3521 = vunpack.c.l.b16 %v2897
        %v3522 = vunpack.c.h.b16 %v2897
        %v3523 = vunpack.c.l.b16 %v2898
        %v3524 = vunpack.c.h.b16 %v2898
        %v3525 = vunpack.c.l.b16 %v2899
        %v3526 = vunpack.c.h.b16 %v2899
        %v3527 = vunpack.c.l.b16 %v2900
        %v3528 = vunpack.c.h.b16 %v2900
        %v3529 = vunpack.c.l.b16 %v2901
        %v3530 = vunpack.c.h.b16 %v2901
        %v3531 = vunpack.c.l.b16 %v2902
        %v3532 = vunpack.c.h.b16 %v2902
        %v3533 = vunpack.c.l.b16 %v2903
        %v3534 = vunpack.c.h.b16 %v2903
        %v3535 = vunpack.c.l.b16 %v2904
        %v3536 = vunpack.c.h.b16 %v2904
        %v3537 = vunpack.c.l.b16 %v2905
        %v3538 = vunpack.c.h.b16 %v2905
        %v3539 = vunpack.c.l.b16 %v2906
        %v3540 = vunpack.c.h.b16 %v2906
        %v3541 = vunpack.c.l.b16 %v2907
        %v3542 = vunpack.c.h.b16 %v2907
        %v3543 = vunpack.c.l.b16 %v2908
        %v3544 = vunpack.c.h.b16 %v2908
        %v3545 = vunpack.c.l.b16 %v2909
        %v3546 = vunpack.c.h.b16 %v2909
        %v3547 = vunpack.c.l.b16 %v2910
        %v3548 = vunpack.c.h.b16 %v2910
        %v3549 = vunpack.c.l.b16 %v2911
        %v3550 = vunpack.c.h.b16 %v2911
        %v3551 = vunpack.c.l.b16 %v2912
        %v3552 = vunpack.c.h.b16 %v2912
        %v3553 = vunpack.c.l.b16 %v2913
        %v3554 = vunpack.c.h.b16 %v2913
        %v3555 = vunpack.c.l.b16 %v2914
        %v3556 = vunpack.c.h.b16 %v2914
        %v3557 = vunpack.c.l.b16 %v2915
        %v3558 = vunpack.c.h.b16 %v2915
        %v3559 = vunpack.c.l.b16 %v2916
        %v3560 = vunpack.c.h.b16 %v2916
        %v3561 = vunpack.c.l.b16 %v2917
        %v3562 = vunpack.c.h.b16 %v2917
        %v3563 = vunpack.c.l.b16 %v2918
        %v3564 = vunpack.c.h.b16 %v2918
        %v3565 = vunpack.c.l.b16 %v2919
        %v3566 = vunpack.c.h.b16 %v2919
        %v3567 = vunpack.c.l.b16 %v2920
        %v3568 = vunpack.c.h.b16 %v2920
        %v3569 = vunpack.c.l.b16 %v2921
        %v3570 = vunpack.c.h.b16 %v2921
        %v3571 = vunpack.c.l.b16 %v2922
        %v3572 = vunpack.c.h.b16 %v2922
        %v3573 = vunpack.c.l.b16 %v2923
        %v3574 = vunpack.c.h.b16 %v2923
        %v3575 = vunpack.c.l.b16 %v2924
        %v3576 = vunpack.c.h.b16 %v2924
        %v3577 = vunpack.c.l.b16 %v2925
        %v3578 = vunpack.c.h.b16 %v2925
        %v3579 = vunpack.c.l.b16 %v2926
        %v3580 = vunpack.c.h.b16 %v2926
        %v3581 = vunpack.c.l.b16 %v2927
        %v3582 = vunpack.c.h.b16 %v2927
        %v3583 = vunpack.c.l.b16 %v2928
        %v3584 = vunpack.c.h.b16 %v2928
        %v3585 = vunpack.c.l.b16 %v2929
        %v3586 = vunpack.c.h.b16 %v2929
        %v3587 = vunpack.c.l.b16 %v2930
        %v3588 = vunpack.c.h.b16 %v2930
        %v3589 = vunpack.c.l.b16 %v2931
        %v3590 = vunpack.c.h.b16 %v2931
        %v3591 = vunpack.c.l.b16 %v2932
        %v3592 = vunpack.c.h.b16 %v2932
        %v3593 = vunpack.c.l.b16 %v2933
        %v3594 = vunpack.c.h.b16 %v2933
        %v3595 = vunpack.c.l.b16 %v2934
        %v3596 = vunpack.c.h.b16 %v2934
        %v3597 = vunpack.c.l.b16 %v2935
        %v3598 = vunpack.c.h.b16 %v2935
        %v3599 = vunpack.c.l.b16 %v2936
        %v3600 = vunpack.c.h.b16 %v2936
        %v3601 = vunpack.c.l.b16 %v2937
        %v3602 = vunpack.c.h.b16 %v2937
        %v3603 = vunpack.c.l.b16 %v2938
        %v3604 = vunpack.c.h.b16 %v2938
        %v3605 = vunpack.c.l.b16 %v2939
        %v3606 = vunpack.c.h.b16 %v2939
        %v3607 = vunpack.c.l.b16 %v2940
        %v3608 = vunpack.c.h.b16 %v2940
        %v3609 = vunpack.c.l.b16 %v2941
        %v3610 = vunpack.c.h.b16 %v2941
        %v3611 = vunpack.c.l.b16 %v2942
        %v3612 = vunpack.c.h.b16 %v2942
        %v3613 = vunpack.c.l.b16 %v2943
        %v3614 = vunpack.c.h.b16 %v2943
        %v3615 = vunpack.c.l.b16 %v2944
        %v3616 = vunpack.c.h.b16 %v2944
        %v3617 = vunpack.c.l.b16 %v2945
        %v3618 = vunpack.c.h.b16 %v2945
        %v3619 = vunpack.c.l.b16 %v2946
        %v3620 = vunpack.c.h.b16 %v2946
        %v3621 = vunpack.c.l.b16 %v2947
        %v3622 = vunpack.c.h.b16 %v2947
        %v3623 = vunpack.c.l.b16 %v2948
        %v3624 = vunpack.c.h.b16 %v2948
        %v3625 = vunpack.c.l.b16 %v2949
        %v3626 = vunpack.c.h.b16 %v2949
        %v3627 = vunpack.c.l.b16 %v2950
        %v3628 = vunpack.c.h.b16 %v2950
        %v3629 = vunpack.c.l.b16 %v2951
        %v3630 = vunpack.c.h.b16 %v2951
        %v3631 = vunpack.c.l.b16 %v2952
        %v3632 = vunpack.c.h.b16 %v2952
        %v3633 = vunpack.c.l.b16 %v2953
        %v3634 = vunpack.c.h.b16 %v2953
        %v3635 = vunpack.c.l.b16 %v2954
        %v3636 = vunpack.c.h.b16 %v2954
        %v3637 = vunpack.c.l.b16 %v2955
        %v3638 = vunpack.c.h.b16 %v2955
        %v3639 = vunpack.c.l.b16 %v2956
        %v3640 = vunpack.c.h.b16 %v2956
        %v3641 = vunpack.c.l.b16 %v2957
        %v3642 = vunpack.c.h.b16 %v2957
        %v3643 = vunpack.c.l.b16 %v2958
        %v3644 = vunpack.c.h.b16 %v2958
        %v3645 = vunpack.c.l.b16 %v2959
        %v3646 = vunpack.c.h.b16 %v2959
        %v3647 = vunpack.c.l.b16 %v2960
        %v3648 = vunpack.c.h.b16 %v2960
        %v3649 = vunpack.c.l.b16 %v2961
        %v3650 = vunpack.c.h.b16 %v2961
        %v3651 = vunpack.c.l.b16 %v2962
        %v3652 = vunpack.c.h.b16 %v2962
        %v3653 = vunpack.c.l.b16 %v2963
        %v3654 = vunpack.c.h.b16 %v2963
        %v3655 = vunpack.c.l.b16 %v2964
        %v3656 = vunpack.c.h.b16 %v2964
        %v3657 = vunpack.c.l.b16 %v2965
        %v3658 = vunpack.c.h.b16 %v2965
        %v3659 = vunpack.c.l.b16 %v2966
        %v3660 = vunpack.c.h.b16 %v2966
        %v3661 = vunpack.c.l.b16 %v2967
        %v3662 = vunpack.c.h.b16 %v2967
        %v3663 = vunpack.c.l.b16 %v2968
        %v3664 = vunpack.c.h.b16 %v2968
        %v3665 = vunpack.c.l.b16 %v2969
        %v3666 = vunpack.c.h.b16 %v2969
        %v3667 = vunpack.c.l.b16 %v2970
        %v3668 = vunpack.c.h.b16 %v2970
        %v3669 = vunpack.c.l.b16 %v2971
        %v3670 = vunpack.c.h.b16 %v2971
        %v3671 = vunpack.c.l.b16 %v2972
        %v3672 = vunpack.c.h.b16 %v2972
        %v3673 = vunpack.c.l.b16 %v2973
        %v3674 = vunpack.c.h.b16 %v2973
        %v3675 = vunpack.c.l.b16 %v2974
        %v3676 = vunpack.c.h.b16 %v2974
        %v3677 = vunpack.c.l.b16 %v2975
        %v3678 = vunpack.c.h.b16 %v2975
        %v3679 = vunpack.c.l.b16 %v2976
        %v3680 = vunpack.c.h.b16 %v2976
        %v3681 = vunpack.c.l.b16 %v2977
        %v3682 = vunpack.c.h.b16 %v2977
        %v3683 = vunpack.c.l.b16 %v2978
        %v3684 = vunpack.c.h.b16 %v2978
        %v3685 = vunpack.c.l.b16 %v2979
        %v3686 = vunpack.c.h.b16 %v2979
        %v3687 = vunpack.c.l.b16 %v2980
        %v3688 = vunpack.c.h.b16 %v2980
        %v3689 = vunpack.c.l.b16 %v2981
        %v3690 = vunpack.c.h.b16 %v2981
        %v3691 = vunpack.c.l.b16 %v2982
        %v3692 = vunpack.c.h.b16 %v2982
        %v3693 = vunpack.c.l.b16 %v2983
        %v3694 = vunpack.c.h.b16 %v2983
        %v3695 = vunpack.c.l.b16 %v2984
        %v3696 = vunpack.c.h.b16 %v2984
        %v3697 = vunpack.c.l.b16 %v2985
        %v3698 = vunpack.c.h.b16 %v2985
        %v3699 = vunpack.c.l.b16 %v2986
        %v3700 = vunpack.c.h.b16 %v2986
        %v3701 = vunpack.c.l.b16 %v2987
        %v3702 = vunpack.c.h.b16 %v2987
        %v3703 = vunpack.c.l.b16 %v2988
        %v3704 = vunpack.c.h.b16 %v2988
        %v3705 = vunpack.c.l.b16 %v2989
        %v3706 = vunpack.c.h.b16 %v2989
        %v3707 = vunpack.c.l.b16 %v2990
        %v3708 = vunpack.c.h.b16 %v2990
        %v3709 = vunpack.c.l.b16 %v2991
        %v3710 = vunpack.c.h.b16 %v2991
        %v3711 = vunpack.c.l.b16 %v2992
        %v3712 = vunpack.c.h.b16 %v2992
        %v3713 = vunpack.c.l.b16 %v2993
        %v3714 = vunpack.c.h.b16 %v2993
        %v3715 = vunpack.c.l.b16 %v2994
        %v3716 = vunpack.c.h.b16 %v2994
        %v3717 = vunpack.c.l.b16 %v2995
        %v3718 = vunpack.c.h.b16 %v2995
        %v3719 = vunpack.c.l.b16 %v2996
        %v3720 = vunpack.c.h.b16 %v2996
        %v3721 = vunpack.c.l.b16 %v2997
        %v3722 = vunpack.c.h.b16 %v2997
        %v3723 = vunpack.c.l.b16 %v2998
        %v3724 = vunpack.c.h.b16 %v2998
        %v3725 = vunpack.c.l.b16 %v2999
        %v3726 = vunpack.c.h.b16 %v2999
        %v3727 = vunpack.c.l.b16 %v3000
        %v3728 = vunpack.c.h.b16 %v3000
        %v3729 = vunpack.c.l.b16 %v3001
        %v3730 = vunpack.c.h.b16 %v3001
        %v3731 = vunpack.c.l.b16 %v3002
        %v3732 = vunpack.c.h.b16 %v3002
        %v3733 = vunpack.c.l.b16 %v3003
        %v3734 = vunpack.c.h.b16 %v3003
        %v3735 = vunpack.c.l.b16 %v3004
        %v3736 = vunpack.c.h.b16 %v3004
        %v3737 = vunpack.c.l.b16 %v3005
        %v3738 = vunpack.c.h.b16 %v3005
        %v3739 = vunpack.c.l.b16 %v3006
        %v3740 = vunpack.c.h.b16 %v3006
        %v3741 = vunpack.c.l.b16 %v3007
        %v3742 = vunpack.c.h.b16 %v3007
        %v3743 = vunpack.c.l.b16 %v3008
        %v3744 = vunpack.c.h.b16 %v3008
        %v3745 = vunpack.c.l.b16 %v3009
        %v3746 = vunpack.c.h.b16 %v3009
        %v3747 = vunpack.c.l.b16 %v3010
        %v3748 = vunpack.c.h.b16 %v3010
        %v3749 = vunpack.c.l.b16 %v3011
        %v3750 = vunpack.c.h.b16 %v3011
        %v3751 = vunpack.c.l.b16 %v3012
        %v3752 = vunpack.c.h.b16 %v3012
        %v3753 = vunpack.c.l.b16 %v3013
        %v3754 = vunpack.c.h.b16 %v3013
        %v3755 = vunpack.c.l.b16 %v3014
        %v3756 = vunpack.c.h.b16 %v3014
        %v3757 = vunpack.c.l.b16 %v3015
        %v3758 = vunpack.c.h.b16 %v3015
        %v3759 = vunpack.c.l.b16 %v3016
        %v3760 = vunpack.c.h.b16 %v3016
        %v3761 = vunpack.c.l.b16 %v3017
        %v3762 = vunpack.c.h.b16 %v3017
        %v3763 = vunpack.c.l.b16 %v3018
        %v3764 = vunpack.c.h.b16 %v3018
        %v3765 = vunpack.c.l.b16 %v3019
        %v3766 = vunpack.c.h.b16 %v3019
        %v3767 = vunpack.c.l.b16 %v3020
        %v3768 = vunpack.c.h.b16 %v3020
        %v3769 = vunpack.c.l.b16 %v3021
        %v3770 = vunpack.c.h.b16 %v3021
        %v3771 = vunpack.c.l.b16 %v3022
        %v3772 = vunpack.c.h.b16 %v3022
        %v3773 = vunpack.c.l.b16 %v3023
        %v3774 = vunpack.c.h.b16 %v3023
        %v3775 = vunpack.c.l.b16 %v3024
        %v3776 = vunpack.c.h.b16 %v3024
        %v3777 = vunpack.c.l.b16 %v3025
        %v3778 = vunpack.c.h.b16 %v3025
        %v3779 = vunpack.c.l.b16 %v3026
        %v3780 = vunpack.c.h.b16 %v3026
        %v3781 = vunpack.c.l.b16 %v3027
        %v3782 = vunpack.c.h.b16 %v3027
        %v3783 = vunpack.c.l.b16 %v3028
        %v3784 = vunpack.c.h.b16 %v3028
        %v3785 = vunpack.c.l.b16 %v3029
        %v3786 = vunpack.c.h.b16 %v3029
        %v3787 = vunpack.c.l.b16 %v3030
        %v3788 = vunpack.c.h.b16 %v3030
        %v3789 = vunpack.c.l.b16 %v3031
        %v3790 = vunpack.c.h.b16 %v3031
        %v3791 = vunpack.c.l.b16 %v3032
        %v3792 = vunpack.c.h.b16 %v3032
        %v3793 = vunpack.c.l.b16 %v3033
        %v3794 = vunpack.c.h.b16 %v3033
        %v3795 = vunpack.c.l.b16 %v3034
        %v3796 = vunpack.c.h.b16 %v3034
        %v3797 = vunpack.c.l.b16 %v3035
        %v3798 = vunpack.c.h.b16 %v3035
        %v3799 = vunpack.c.l.b16 %v3036
        %v3800 = vunpack.c.h.b16 %v3036
        %v3801 = vunpack.c.l.b16 %v3037
        %v3802 = vunpack.c.h.b16 %v3037
        %v3803 = vunpack.c.l.b16 %v3038
        %v3804 = vunpack.c.h.b16 %v3038
        %v3805 = vunpack.c.l.b16 %v3039
        %v3806 = vunpack.c.h.b16 %v3039
        %v3807 = vunpack.c.l.b16 %v3040
        %v3808 = vunpack.c.h.b16 %v3040
        %v3809 = vunpack.c.l.b16 %v3041
        %v3810 = vunpack.c.h.b16 %v3041
        %v3811 = vunpack.c.l.b16 %v3042
        %v3812 = vunpack.c.h.b16 %v3042
        %v3813 = vunpack.c.l.b16 %v3043
        %v3814 = vunpack.c.h.b16 %v3043
        %v3815 = vunpack.c.l.b16 %v3044
        %v3816 = vunpack.c.h.b16 %v3044
        %v3817 = vunpack.c.l.b16 %v3045
        %v3818 = vunpack.c.h.b16 %v3045
        %v3819 = vunpack.c.l.b16 %v3046
        %v3820 = vunpack.c.h.b16 %v3046
        %v3821 = vunpack.c.l.b16 %v3047
        %v3822 = vunpack.c.h.b16 %v3047
        %v3823 = vunpack.c.l.b16 %v3048
        %v3824 = vunpack.c.h.b16 %v3048
        %v3825 = vunpack.c.l.b16 %v3049
        %v3826 = vunpack.c.h.b16 %v3049
        %v3827 = vunpack.c.l.b16 %v3050
        %v3828 = vunpack.c.h.b16 %v3050
        %v3829 = vunpack.c.l.b16 %v3051
        %v3830 = vunpack.c.h.b16 %v3051
        %v3831 = vunpack.c.l.b16 %v3052
        %v3832 = vunpack.c.h.b16 %v3052
        %v3833 = vunpack.c.l.b16 %v3053
        %v3834 = vunpack.c.h.b16 %v3053
        %v3835 = vunpack.c.l.b16 %v3054
        %v3836 = vunpack.c.h.b16 %v3054
        %v3837 = vunpack.c.l.b16 %v3055
        %v3838 = vunpack.c.h.b16 %v3055
        %v3839 = vunpack.c.l.b16 %v3056
        %v3840 = vunpack.c.h.b16 %v3056
        %v3841 = vunpack.c.l.b16 %v3057
        %v3842 = vunpack.c.h.b16 %v3057
        %v3843 = vunpack.c.l.b16 %v3058
        %v3844 = vunpack.c.h.b16 %v3058
        %v3845 = vunpack.c.l.b16 %v3059
        %v3846 = vunpack.c.h.b16 %v3059
        %v3847 = vunpack.c.l.b16 %v3060
        %v3848 = vunpack.c.h.b16 %v3060
        %v3849 = vunpack.c.l.b16 %v3061
        %v3850 = vunpack.c.h.b16 %v3061
        %v3851 = vunpack.c.l.b16 %v3062
        %v3852 = vunpack.c.h.b16 %v3062
        %v3853 = vunpack.c.l.b16 %v3063
        %v3854 = vunpack.c.h.b16 %v3063
        %v3855 = vunpack.c.l.b16 %v3064
        %v3856 = vunpack.c.h.b16 %v3064
        %v3857 = vunpack.c.l.b16 %v3065
        %v3858 = vunpack.c.h.b16 %v3065
        %v3859 = vunpack.c.l.b16 %v3066
        %v3860 = vunpack.c.h.b16 %v3066
        %v3861 = vunpack.c.l.b16 %v3067
        %v3862 = vunpack.c.h.b16 %v3067
        %v3863 = vunpack.c.l.b16 %v3068
        %v3864 = vunpack.c.h.b16 %v3068
        %v3865 = vunpack.c.l.b16 %v3069
        %v3866 = vunpack.c.h.b16 %v3069
        %v3867 = vunpack.c.l.b16 %v3070
        %v3868 = vunpack.c.h.b16 %v3070
        %v3869 = vunpack.c.l.b16 %v3071
        %v3870 = vunpack.c.h.b16 %v3071
        %v3871 = vunpack.c.l.b16 %v3072
        %v3872 = vunpack.c.h.b16 %v3072
        %v3873 = vunpack.c.l.b16 %v3073
        %v3874 = vunpack.c.h.b16 %v3073
        %v3875 = vunpack.c.l.b16 %v3074
        %v3876 = vunpack.c.h.b16 %v3074
        %v3877 = vunpack.c.l.b16 %v3075
        %v3878 = vunpack.c.h.b16 %v3075
        %v3879 = vunpack.c.l.b16 %v3076
        %v3880 = vunpack.c.h.b16 %v3076
        %v3881 = vunpack.c.l.b16 %v3077
        %v3882 = vunpack.c.h.b16 %v3077
        %v3883 = vunpack.c.l.b16 %v3078
        %v3884 = vunpack.c.h.b16 %v3078
        %v3885 = vunpack.c.l.b16 %v3079
        %v3886 = vunpack.c.h.b16 %v3079
        %v3887 = vunpack.c.l.b16 %v3080
        %v3888 = vunpack.c.h.b16 %v3080
        %v3889 = vunpack.c.l.b16 %v3081
        %v3890 = vunpack.c.h.b16 %v3081
        %v3891 = vunpack.c.l.b16 %v3082
        %v3892 = vunpack.c.h.b16 %v3082
        %v3893 = vunpack.c.l.b16 %v3083
        %v3894 = vunpack.c.h.b16 %v3083
        %v3895 = vunpack.c.l.b16 %v3084
        %v3896 = vunpack.c.h.b16 %v3084
        %v3897 = vunpack.c.l.b16 %v3085
        %v3898 = vunpack.c.h.b16 %v3085
        %v3899 = vunpack.c.l.b16 %v3086
        %v3900 = vunpack.c.h.b16 %v3086
        %v3901 = vunpack.c.l.b16 %v3087
        %v3902 = vunpack.c.h.b16 %v3087
        %v3903 = vunpack.c.l.b16 %v3088
        %v3904 = vunpack.c.h.b16 %v3088
        %v3905 = vunpack.c.l.b16 %v3089
        %v3906 = vunpack.c.h.b16 %v3089
        %v3907 = vunpack.c.l.b16 %v3090
        %v3908 = vunpack.c.h.b16 %v3090
        %v3909 = vunpack.c.l.b16 %v3091
        %v3910 = vunpack.c.h.b16 %v3091
        %v3911 = vunpack.c.l.b16 %v3092
        %v3912 = vunpack.c.h.b16 %v3092
        %v3913 = vunpack.c.l.b16 %v3093
        %v3914 = vunpack.c.h.b16 %v3093
        %v3915 = vunpack.c.l.b16 %v3094
        %v3916 = vunpack.c.h.b16 %v3094
        %v3917 = vunpack.c.l.b16 %v3095
        %v3918 = vunpack.c.h.b16 %v3095
        %v3919 = vunpack.c.l.b16 %v3096
        %v3920 = vunpack.c.h.b16 %v3096
        %v3921 = vunpack.c.l.b16 %v3097
        %v3922 = vunpack.c.h.b16 %v3097
        %v3923 = vunpack.c.l.b16 %v3098
        %v3924 = vunpack.c.h.b16 %v3098
        %v3925 = vunpack.c.l.b16 %v3099
        %v3926 = vunpack.c.h.b16 %v3099
        %v3927 = vunpack.c.l.b16 %v3100
        %v3928 = vunpack.c.h.b16 %v3100
        %v3929 = vunpack.c.l.b16 %v3101
        %v3930 = vunpack.c.h.b16 %v3101
        %v3931 = vunpack.c.l.b16 %v3102
        %v3932 = vunpack.c.h.b16 %v3102
        %v3933 = vunpack.c.l.b16 %v3103
        %v3934 = vunpack.c.h.b16 %v3103
        %v3935 = vunpack.c.l.b16 %v3104
        %v3936 = vunpack.c.h.b16 %v3104
        %v3937 = vunpack.c.l.b16 %v3105
        %v3938 = vunpack.c.h.b16 %v3105
        %v3939 = vunpack.c.l.b16 %v3106
        %v3940 = vunpack.c.h.b16 %v3106
        %v3941 = vunpack.c.l.b16 %v3107
        %v3942 = vunpack.c.h.b16 %v3107
        %v3943 = vunpack.c.l.b16 %v3108
        %v3944 = vunpack.c.h.b16 %v3108
        %v3945 = vunpack.c.l.b16 %v3109
        %v3946 = vunpack.c.h.b16 %v3109
        %v3947 = vunpack.c.l.b16 %v3110
        %v3948 = vunpack.c.h.b16 %v3110
        %v3949 = vunpack.c.l.b16 %v3111
        %v3950 = vunpack.c.h.b16 %v3111
        %v3951 = vunpack.c.l.b16 %v3112
        %v3952 = vunpack.c.h.b16 %v3112
        %v3953 = vunpack.c.l.b16 %v3113
        %v3954 = vunpack.c.h.b16 %v3113
        %v3955 = vunpack.c.l.b16 %v3114
        %v3956 = vunpack.c.h.b16 %v3114
        %v3957 = vunpack.c.l.b16 %v3115
        %v3958 = vunpack.c.h.b16 %v3115
        %v3959 = vunpack.c.l.b16 %v3116
        %v3960 = vunpack.c.h.b16 %v3116
        %v3961 = vunpack.c.l.b16 %v3117
        %v3962 = vunpack.c.h.b16 %v3117
        %v3963 = vunpack.c.l.b16 %v3118
        %v3964 = vunpack.c.h.b16 %v3118
        %v3965 = vunpack.c.l.b16 %v3119
        %v3966 = vunpack.c.h.b16 %v3119
        %v3967 = vunpack.c.l.b16 %v3120
        %v3968 = vunpack.c.h.b16 %v3120
        %v3969 = vunpack.c.l.b16 %v3121
        %v3970 = vunpack.c.h.b16 %v3121
        %v3971 = vunpack.c.l.b16 %v3122
        %v3972 = vunpack.c.h.b16 %v3122
        %v3973 = vpack.c.b16 %v3469, %v3461
        %v3974 = vpack.c.b16 %v3470, %v3462
        %v3975 = vpack.c.b16 %v3471, %v3463
        %v3976 = vpack.c.b16 %v3472, %v3464
        %v3977 = vpack.c.b16 %v3473, %v3465
        %v3978 = vpack.c.b16 %v3474, %v3466
        %v3979 = vpack.c.b16 %v3475, %v3467
        %v3980 = vpack.c.b16 %v3476, %v3468
        %v3981 = vpack.c.b16 %v3485, %v3477
        %v3982 = vpack.c.b16 %v3486, %v3478
        %v3983 = vpack.c.b16 %v3487, %v3479
        %v3984 = vpack.c.b16 %v3488, %v3480
        %v3985 = vpack.c.b16 %v3489, %v3481
        %v3986 = vpack.c.b16 %v3490, %v3482
        %v3987 = vpack.c.b16 %v3491, %v3483
        %v3988 = vpack.c.b16 %v3492, %v3484
        %v3989 = vpack.c.b16 %v3501, %v3493
        %v3990 = vpack.c.b16 %v3502, %v3494
        %v3991 = vpack.c.b16 %v3503, %v3495
        %v3992 = vpack.c.b16 %v3504, %v3496
        %v3993 = vpack.c.b16 %v3505, %v3497
        %v3994 = vpack.c.b16 %v3506, %v3498
        %v3995 = vpack.c.b16 %v3507, %v3499
        %v3996 = vpack.c.b16 %v3508, %v3500
        %v3997 = vpack.c.b16 %v3517, %v3509
        %v3998 = vpack.c.b16 %v3518, %v3510
        %v3999 = vpack.c.b16 %v3519, %v3511
        %v4000 = vpack.c.b16 %v3520, %v3512
        %v4001 = vpack.c.b16 %v3521, %v3513
        %v4002 = vpack.c.b16 %v3522, %v3514
        %v4003 = vpack.c.b16 %v3523, %v3515
        %v4004 = vpack.c.b16 %v3524, %v3516
        %v4005 = vpack.c.b16 %v3533, %v3525
        %v4006 = vpack.c.b16 %v3534, %v3526
        %v4007 = vpack.c.b16 %v3535, %v3527
        %v4008 = vpack.c.b16 %v3536, %v3528
        %v4009 = vpack.c.b16 %v3537, %v3529
        %v4010 = vpack.c.b16 %v3538, %v3530
        %v4011 = vpack.c.b16 %v3539, %v3531
        %v4012 = vpack.c.b16 %v3540, %v3532
        %v4013 = vpack.c.b16 %v3549, %v3541
        %v4014 = vpack.c.b16 %v3550, %v3542
        %v4015 = vpack.c.b16 %v3551, %v3543
        %v4016 = vpack.c.b16 %v3552, %v3544
        %v4017 = vpack.c.b16 %v3553, %v3545
        %v4018 = vpack.c.b16 %v3554, %v3546
        %v4019 = vpack.c.b16 %v3555, %v3547
        %v4020 = vpack.c.b16 %v3556, %v3548
        %v4021 = vpack.c.b16 %v3565, %v3557
        %v4022 = vpack.c.b16 %v3566, %v3558
        %v4023 = vpack.c.b16 %v3567, %v3559
        %v4024 = vpack.c.b16 %v3568, %v3560
        %v4025 = vpack.c.b16 %v3569, %v3561
        %v4026 = vpack.c.b16 %v3570, %v3562
        %v4027 = vpack.c.b16 %v3571, %v3563
        %v4028 = vpack.c.b16 %v3572, %v3564
        %v4029 = vpack.c.b16 %v3581, %v3573
        %v4030 = vpack.c.b16 %v3582, %v3574
        %v4031 = vpack.c.b16 %v3583, %v3575
        %v4032 = vpack.c.b16 %v3584, %v3576
        %v4033 = vpack.c.b16 %v3585, %v3577
        %v4034 = vpack.c.b16 %v3586, %v3578
        %v4035 = vpack.c.b16 %v3587, %v3579
        %v4036 = vpack.c.b16 %v3588, %v3580
        %v4037 = vpack.c.b16 %v3597, %v3589
        %v4038 = vpack.c.b16 %v3598, %v3590
        %v4039 = vpack.c.b16 %v3599, %v3591
        %v4040 = vpack.c.b16 %v3600, %v3592
        %v4041 = vpack.c.b16 %v3601, %v3593
        %v4042 = vpack.c.b16 %v3602, %v3594
        %v4043 = vpack.c.b16 %v3603, %v3595
        %v4044 = vpack.c.b16 %v3604, %v3596
        %v4045 = vpack.c.b16 %v3613, %v3605
        %v4046 = vpack.c.b16 %v3614, %v3606
        %v4047 = vpack.c.b16 %v3615, %v3607
        %v4048 = vpack.c.b16 %v3616, %v3608
        %v4049 = vpack.c.b16 %v3617, %v3609
        %v4050 = vpack.c.b16 %v3618, %v3610
        %v4051 = vpack.c.b16 %v3619, %v3611
        %v4052 = vpack.c.b16 %v3620, %v3612
        %v4053 = vpack.c.b16 %v3629, %v3621
        %v4054 = vpack.c.b16 %v3630, %v3622
        %v4055 = vpack.c.b16 %v3631, %v3623
        %v4056 = vpack.c.b16 %v3632, %v3624
        %v4057 = vpack.c.b16 %v3633, %v3625
        %v4058 = vpack.c.b16 %v3634, %v3626
        %v4059 = vpack.c.b16 %v3635, %v3627
        %v4060 = vpack.c.b16 %v3636, %v3628
        %v4061 = vpack.c.b16 %v3645, %v3637
        %v4062 = vpack.c.b16 %v3646, %v3638
        %v4063 = vpack.c.b16 %v3647, %v3639
        %v4064 = vpack.c.b16 %v3648, %v3640
        %v4065 = vpack.c.b16 %v3649, %v3641
        %v4066 = vpack.c.b16 %v3650, %v3642
        %v4067 = vpack.c.b16 %v3651, %v3643
        %v4068 = vpack.c.b16 %v3652, %v3644
        %v4069 = vpack.c.b16 %v3661, %v3653
        %v4070 = vpack.c.b16 %v3662, %v3654
        %v4071 = vpack.c.b16 %v3663, %v3655
        %v4072 = vpack.c.b16 %v3664, %v3656
        %v4073 = vpack.c.b16 %v3665, %v3657
        %v4074 = vpack.c.b16 %v3666, %v3658
        %v4075 = vpack.c.b16 %v3667, %v3659
        %v4076 = vpack.c.b16 %v3668, %v3660
        %v4077 = vpack.c.b16 %v3677, %v3669
        %v4078 = vpack.c.b16 %v3678, %v3670
        %v4079 = vpack.c.b16 %v3679, %v3671
        %v4080 = vpack.c.b16 %v3680, %v3672
        %v4081 = vpack.c.b16 %v3681, %v3673
        %v4082 = vpack.c.b16 %v3682, %v3674
        %v4083 = vpack.c.b16 %v3683, %v3675
        %v4084 = vpack.c.b16 %v3684, %v3676
        %v4085 = vpack.c.b16 %v3693, %v3685
        %v4086 = vpack.c.b16 %v3694, %v3686
        %v4087 = vpack.c.b16 %v3695, %v3687
        %v4088 = vpack.c.b16 %v3696, %v3688
        %v4089 = vpack.c.b16 %v3697, %v3689
        %v4090 = vpack.c.b16 %v3698, %v3690
        %v4091 = vpack.c.b16 %v3699, %v3691
        %v4092 = vpack.c.b16 %v3700, %v3692
        %v4093 = vpack.c.b16 %v3709, %v3701
        %v4094 = vpack.c.b16 %v3710, %v3702
        %v4095 = vpack.c.b16 %v3711, %v3703
        %v4096 = vpack.c.b16 %v3712, %v3704
        %v4097 = vpack.c.b16 %v3713, %v3705
        %v4098 = vpack.c.b16 %v3714, %v3706
        %v4099 = vpack.c.b16 %v3715, %v3707
        %v4100 = vpack.c.b16 %v3716, %v3708
        %v4101 = vpack.c.b16 %v3725, %v3717
        %v4102 = vpack.c.b16 %v3726, %v3718
        %v4103 = vpack.c.b16 %v3727, %v3719
        %v4104 = vpack.c.b16 %v3728, %v3720
        %v4105 = vpack.c.b16 %v3729, %v3721
        %v4106 = vpack.c.b16 %v3730, %v3722
        %v4107 = vpack.c.b16 %v3731, %v3723
        %v4108 = vpack.c.b16 %v3732, %v3724
        %v4109 = vpack.c.b16 %v3741, %v3733
        %v4110 = vpack.c.b16 %v3742, %v3734
        %v4111 = vpack.c.b16 %v3743, %v3735
        %v4112 = vpack.c.b16 %v3744, %v3736
        %v4113 = vpack.c.b16 %v3745, %v3737
        %v4114 = vpack.c.b16 %v3746, %v3738
        %v4115 = vpack.c.b16 %v3747, %v3739
        %v4116 = vpack.c.b16 %v3748, %v3740
        %v4117 = vpack.c.b16 %v3757, %v3749
        %v4118 = vpack.c.b16 %v3758, %v3750
        %v4119 = vpack.c.b16 %v3759, %v3751
        %v4120 = vpack.c.b16 %v3760, %v3752
        %v4121 = vpack.c.b16 %v3761, %v3753
        %v4122 = vpack.c.b16 %v3762, %v3754
        %v4123 = vpack.c.b16 %v3763, %v3755
        %v4124 = vpack.c.b16 %v3764, %v3756
        %v4125 = vpack.c.b16 %v3773, %v3765
        %v4126 = vpack.c.b16 %v3774, %v3766
        %v4127 = vpack.c.b16 %v3775, %v3767
        %v4128 = vpack.c.b16 %v3776, %v3768
        %v4129 = vpack.c.b16 %v3777, %v3769
        %v4130 = vpack.c.b16 %v3778, %v3770
        %v4131 = vpack.c.b16 %v3779, %v3771
        %v4132 = vpack.c.b16 %v3780, %v3772
        %v4133 = vpack.c.b16 %v3789, %v3781
        %v4134 = vpack.c.b16 %v3790, %v3782
        %v4135 = vpack.c.b16 %v3791, %v3783
        %v4136 = vpack.c.b16 %v3792, %v3784
        %v4137 = vpack.c.b16 %v3793, %v3785
        %v4138 = vpack.c.b16 %v3794, %v3786
        %v4139 = vpack.c.b16 %v3795, %v3787
        %v4140 = vpack.c.b16 %v3796, %v3788
        %v4141 = vpack.c.b16 %v3805, %v3797
        %v4142 = vpack.c.b16 %v3806, %v3798
        %v4143 = vpack.c.b16 %v3807, %v3799
        %v4144 = vpack.c.b16 %v3808, %v3800
        %v4145 = vpack.c.b16 %v3809, %v3801
        %v4146 = vpack.c.b16 %v3810, %v3802
        %v4147 = vpack.c.b16 %v3811, %v3803
        %v4148 = vpack.c.b16 %v3812, %v3804
        %v4149 = vpack.c.b16 %v3821, %v3813
        %v4150 = vpack.c.b16 %v3822, %v3814
        %v4151 = vpack.c.b16 %v3823, %v3815
        %v4152 = vpack.c.b16 %v3824, %v3816
        %v4153 = vpack.c.b16 %v3825, %v3817
        %v4154 = vpack.c.b16 %v3826, %v3818
        %v4155 = vpack.c.b16 %v3827, %v3819
        %v4156 = vpack.c.b16 %v3828, %v3820
        %v4157 = vpack.c.b16 %v3837, %v3829
        %v4158 = vpack.c.b16 %v3838, %v3830
        %v4159 = vpack.c.b16 %v3839, %v3831
        %v4160 = vpack.c.b16 %v3840, %v3832
        %v4161 = vpack.c.b16 %v3841, %v3833
        %v4162 = vpack.c.b16 %v3842, %v3834
        %v4163 = vpack.c.b16 %v3843, %v3835
        %v4164 = vpack.c.b16 %v3844, %v3836
        %v4165 = vpack.c.b16 %v3853, %v3845
        %v4166 = vpack.c.b16 %v3854, %v3846
        %v4167 = vpack.c.b16 %v3855, %v3847
        %v4168 = vpack.c.b16 %v3856, %v3848
        %v4169 = vpack.c.b16 %v3857, %v3849
        %v4170 = vpack.c.b16 %v3858, %v3850
        %v4171 = vpack.c.b16 %v3859, %v3851
        %v4172 = vpack.c.b16 %v3860, %v3852
        %v4173 = vpack.c.b16 %v3869, %v3861
        %v4174 = vpack.c.b16 %v3870, %v3862
        %v4175 = vpack.c.b16 %v3871, %v3863
        %v4176 = vpack.c.b16 %v3872, %v3864
        %v4177 = vpack.c.b16 %v3873, %v3865
        %v4178 = vpack.c.b16 %v3874, %v3866
        %v4179 = vpack.c.b16 %v3875, %v3867
        %v4180 = vpack.c.b16 %v3876, %v3868
        %v4181 = vpack.c.b16 %v3885, %v3877
        %v4182 = vpack.c.b16 %v3886, %v3878
        %v4183 = vpack.c.b16 %v3887, %v3879
        %v4184 = vpack.c.b16 %v3888, %v3880
        %v4185 = vpack.c.b16 %v3889, %v3881
        %v4186 = vpack.c.b16 %v3890, %v3882
        %v4187 = vpack.c.b16 %v3891, %v3883
        %v4188 = vpack.c.b16 %v3892, %v3884
        %v4189 = vpack.c.b16 %v3901, %v3893
        %v4190 = vpack.c.b16 %v3902, %v3894
        %v4191 = vpack.c.b16 %v3903, %v3895
        %v4192 = vpack.c.b16 %v3904, %v3896
        %v4193 = vpack.c.b16 %v3905, %v3897
        %v4194 = vpack.c.b16 %v3906, %v3898
        %v4195 = vpack.c.b16 %v3907, %v3899
        %v4196 = vpack.c.b16 %v3908, %v3900
        %v4197 = vpack.c.b16 %v3917, %v3909
        %v4198 = vpack.c.b16 %v3918, %v3910
        %v4199 = vpack.c.b16 %v3919, %v3911
        %v4200 = vpack.c.b16 %v3920, %v3912
        %v4201 = vpack.c.b16 %v3921, %v3913
        %v4202 = vpack.c.b16 %v3922, %v3914
        %v4203 = vpack.c.b16 %v3923, %v3915
        %v4204 = vpack.c.b16 %v3924, %v3916
        %v4205 = vpack.c.b16 %v3933, %v3925
        %v4206 = vpack.c.b16 %v3934, %v3926
        %v4207 = vpack.c.b16 %v3935, %v3927
        %v4208 = vpack.c.b16 %v3936, %v3928
        %v4209 = vpack.c.b16 %v3937, %v3929
        %v4210 = vpack.c.b16 %v3938, %v3930
        %v4211 = vpack.c.b16 %v3939, %v3931
        %v4212 = vpack.c.b16 %v3940, %v3932
        %v4213 = vpack.c.b16 %v3949, %v3941
        %v4214 = vpack.c.b16 %v3950, %v3942
        %v4215 = vpack.c.b16 %v3951, %v3943
        %v4216 = vpack.c.b16 %v3952, %v3944
        %v4217 = vpack.c.b16 %v3953, %v3945
        %v4218 = vpack.c.b16 %v3954, %v3946
        %v4219 = vpack.c.b16 %v3955, %v3947
        %v4220 = vpack.c.b16 %v3956, %v3948
        %v4221 = vpack.c.b16 %v3965, %v3957
        %v4222 = vpack.c.b16 %v3966, %v3958
        %v4223 = vpack.c.b16 %v3967, %v3959
        %v4224 = vpack.c.b16 %v3968, %v3960
        %v4225 = vpack.c.b16 %v3969, %v3961
        %v4226 = vpack.c.b16 %v3970, %v3962
        %v4227 = vpack.c.b16 %v3971, %v3963
        %v4228 = vpack.c.b16 %v3972, %v3964
        %4485 = vmatpush.bf16.msra.mxu0 %v4029
        %4486 = vmatpush.bf16.msra.mxu0 %v4021
        %4487 = vmatpush.bf16.msra.mxu0 %v4013
        %4488 = vmatpush.bf16.msra.mxu0 %v4005
        %4489 = vmatpush.bf16.msra.mxu0 %v3997
        %4490 = vmatpush.bf16.msra.mxu0 %v3989
        %4491 = vmatpush.bf16.msra.mxu0 %v3981
        %4492 = vmatpush.bf16.msra.mxu0 %v3973
        %4493 = vmatmul.bf16.gmra.mxu0 %v3123
        %v4494 = vpop.f32.mrf.mxu0
        %v4495 = vadd.f32 %v3189, %v4494
        %v4496 = vpop.f32.mrf.mxu0
        %v4497 = vadd.f32 %v3189, %v4496
        %4498 = vmatmul.bf16.gmra.mxu0 %v3127
        %v4499 = vpop.f32.mrf.mxu0
        %v4500 = vadd.f32 %v3189, %v4499
        %v4501 = vpop.f32.mrf.mxu0
        %v4502 = vadd.f32 %v3189, %v4501
        %4503 = vmatmul.bf16.gmra.mxu0 %v3131
        %v4504 = vpop.f32.mrf.mxu0
        %v4505 = vadd.f32 %v3189, %v4504
        %v4506 = vpop.f32.mrf.mxu0
        %v4507 = vadd.f32 %v3189, %v4506
        %4508 = vmatmul.bf16.gmra.mxu0 %v3135
        %v4509 = vpop.f32.mrf.mxu0
        %v4510 = vadd.f32 %v3189, %v4509
        %v4511 = vpop.f32.mrf.mxu0
        %v4512 = vadd.f32 %v3189, %v4511
        %4513 = vmatmul.bf16.gmra.mxu0 %v3139
        %v4514 = vpop.f32.mrf.mxu0
        %v4515 = vadd.f32 %v3189, %v4514
        %v4516 = vpop.f32.mrf.mxu0
        %v4517 = vadd.f32 %v3189, %v4516
        %4518 = vmatmul.bf16.gmra.mxu0 %v3143
        %v4519 = vpop.f32.mrf.mxu0
        %v4520 = vadd.f32 %v3189, %v4519
        %v4521 = vpop.f32.mrf.mxu0
        %v4522 = vadd.f32 %v3189, %v4521
        %4523 = vmatmul.bf16.gmra.mxu0 %v3147
        %v4524 = vpop.f32.mrf.mxu0
        %v4525 = vadd.f32 %v3189, %v4524
        %v4526 = vpop.f32.mrf.mxu0
        %v4527 = vadd.f32 %v3189, %v4526
        %4528 = vmatmul.bf16.gmra.mxu0 %v3151
        %v4529 = vpop.f32.mrf.mxu0
        %v4530 = vadd.f32 %v3189, %v4529
        %v4531 = vpop.f32.mrf.mxu0
        %v4532 = vadd.f32 %v3189, %v4531
        %4533 = vmatmul.bf16.gmra.mxu0 %v3155
        %v4534 = vpop.f32.mrf.mxu0
        %v4535 = vadd.f32 %v3189, %v4534
        %v4536 = vpop.f32.mrf.mxu0
        %v4537 = vadd.f32 %v3189, %v4536
        %4538 = vmatmul.bf16.gmra.mxu0 %v3159
        %v4539 = vpop.f32.mrf.mxu0
        %v4540 = vadd.f32 %v3189, %v4539
        %v4541 = vpop.f32.mrf.mxu0
        %v4542 = vadd.f32 %v3189, %v4541
        %4543 = vmatmul.bf16.gmra.mxu0 %v3163
        %v4544 = vpop.f32.mrf.mxu0
        %v4545 = vadd.f32 %v3189, %v4544
        %v4546 = vpop.f32.mrf.mxu0
        %v4547 = vadd.f32 %v3189, %v4546
        %4548 = vmatmul.bf16.gmra.mxu0 %v3167
        %v4549 = vpop.f32.mrf.mxu0
        %v4550 = vadd.f32 %v3189, %v4549
        %v4551 = vpop.f32.mrf.mxu0
        %v4552 = vadd.f32 %v3189, %v4551
        %4553 = vmatmul.bf16.gmra.mxu0 %v3171
        %v4554 = vpop.f32.mrf.mxu0
        %v4555 = vadd.f32 %v3189, %v4554
        %v4556 = vpop.f32.mrf.mxu0
        %v4557 = vadd.f32 %v3189, %v4556
        %4558 = vmatmul.bf16.gmra.mxu0 %v3175
        %v4559 = vpop.f32.mrf.mxu0
        %v4560 = vadd.f32 %v3189, %v4559
        %v4561 = vpop.f32.mrf.mxu0
        %v4562 = vadd.f32 %v3189, %v4561
        %4563 = vmatmul.bf16.gmra.mxu0 %v3179
        %v4564 = vpop.f32.mrf.mxu0
        %v4565 = vadd.f32 %v3189, %v4564
        %v4566 = vpop.f32.mrf.mxu0
        %v4567 = vadd.f32 %v3189, %v4566
        %4568 = vmatmul.bf16.gmra.mxu0 %v3183
        %v4569 = vpop.f32.mrf.mxu0
        %v4570 = vadd.f32 %v3189, %v4569
        %v4571 = vpop.f32.mrf.mxu0
        %v4572 = vadd.f32 %v3189, %v4571
        %4573 = vdwg.mxu0
        %4574 = vmatpush.bf16.msra.mxu0 %v4093
        %4575 = vmatpush.bf16.msra.mxu0 %v4085
        %4576 = vmatpush.bf16.msra.mxu0 %v4077
        %4577 = vmatpush.bf16.msra.mxu0 %v4069
        %4578 = vmatpush.bf16.msra.mxu0 %v4061
        %4579 = vmatpush.bf16.msra.mxu0 %v4053
        %4580 = vmatpush.bf16.msra.mxu0 %v4045
        %4581 = vmatpush.bf16.msra.mxu0 %v4037
        %4582 = vmatmul.bf16.gmra.mxu0 %v3124
        %v4583 = vpop.f32.mrf.mxu0
        %v4584 = vadd.f32 %v4495, %v4583
        %v4585 = vpop.f32.mrf.mxu0
        %v4586 = vadd.f32 %v4497, %v4585
        %4587 = vmatmul.bf16.gmra.mxu0 %v3128
        %v4588 = vpop.f32.mrf.mxu0
        %v4589 = vadd.f32 %v4500, %v4588
        %v4590 = vpop.f32.mrf.mxu0
        %v4591 = vadd.f32 %v4502, %v4590
        %4592 = vmatmul.bf16.gmra.mxu0 %v3132
        %v4593 = vpop.f32.mrf.mxu0
        %v4594 = vadd.f32 %v4505, %v4593
        %v4595 = vpop.f32.mrf.mxu0
        %v4596 = vadd.f32 %v4507, %v4595
        %4597 = vmatmul.bf16.gmra.mxu0 %v3136
        %v4598 = vpop.f32.mrf.mxu0
        %v4599 = vadd.f32 %v4510, %v4598
        %v4600 = vpop.f32.mrf.mxu0
        %v4601 = vadd.f32 %v4512, %v4600
        %4602 = vmatmul.bf16.gmra.mxu0 %v3140
        %v4603 = vpop.f32.mrf.mxu0
        %v4604 = vadd.f32 %v4515, %v4603
        %v4605 = vpop.f32.mrf.mxu0
        %v4606 = vadd.f32 %v4517, %v4605
        %4607 = vmatmul.bf16.gmra.mxu0 %v3144
        %v4608 = vpop.f32.mrf.mxu0
        %v4609 = vadd.f32 %v4520, %v4608
        %v4610 = vpop.f32.mrf.mxu0
        %v4611 = vadd.f32 %v4522, %v4610
        %4612 = vmatmul.bf16.gmra.mxu0 %v3148
        %v4613 = vpop.f32.mrf.mxu0
        %v4614 = vadd.f32 %v4525, %v4613
        %v4615 = vpop.f32.mrf.mxu0
        %v4616 = vadd.f32 %v4527, %v4615
        %4617 = vmatmul.bf16.gmra.mxu0 %v3152
        %v4618 = vpop.f32.mrf.mxu0
        %v4619 = vadd.f32 %v4530, %v4618
        %v4620 = vpop.f32.mrf.mxu0
        %v4621 = vadd.f32 %v4532, %v4620
        %4622 = vmatmul.bf16.gmra.mxu0 %v3156
        %v4623 = vpop.f32.mrf.mxu0
        %v4624 = vadd.f32 %v4535, %v4623
        %v4625 = vpop.f32.mrf.mxu0
        %v4626 = vadd.f32 %v4537, %v4625
        %4627 = vmatmul.bf16.gmra.mxu0 %v3160
        %v4628 = vpop.f32.mrf.mxu0
        %v4629 = vadd.f32 %v4540, %v4628
        %v4630 = vpop.f32.mrf.mxu0
        %v4631 = vadd.f32 %v4542, %v4630
        %4632 = vmatmul.bf16.gmra.mxu0 %v3164
        %v4633 = vpop.f32.mrf.mxu0
        %v4634 = vadd.f32 %v4545, %v4633
        %v4635 = vpop.f32.mrf.mxu0
        %v4636 = vadd.f32 %v4547, %v4635
        %4637 = vmatmul.bf16.gmra.mxu0 %v3168
        %v4638 = vpop.f32.mrf.mxu0
        %v4639 = vadd.f32 %v4550, %v4638
        %v4640 = vpop.f32.mrf.mxu0
        %v4641 = vadd.f32 %v4552, %v4640
        %4642 = vmatmul.bf16.gmra.mxu0 %v3172
        %v4643 = vpop.f32.mrf.mxu0
        %v4644 = vadd.f32 %v4555, %v4643
        %v4645 = vpop.f32.mrf.mxu0
        %v4646 = vadd.f32 %v4557, %v4645
        %4647 = vmatmul.bf16.gmra.mxu0 %v3176
        %v4648 = vpop.f32.mrf.mxu0
        %v4649 = vadd.f32 %v4560, %v4648
        %v4650 = vpop.f32.mrf.mxu0
        %v4651 = vadd.f32 %v4562, %v4650
        %4652 = vmatmul.bf16.gmra.mxu0 %v3180
        %v4653 = vpop.f32.mrf.mxu0
        %v4654 = vadd.f32 %v4565, %v4653
        %v4655 = vpop.f32.mrf.mxu0
        %v4656 = vadd.f32 %v4567, %v4655
        %4657 = vmatmul.bf16.gmra.mxu0 %v3184
        %v4658 = vpop.f32.mrf.mxu0
        %v4659 = vadd.f32 %v4570, %v4658
        %v4660 = vpop.f32.mrf.mxu0
        %v4661 = vadd.f32 %v4572, %v4660
        %4662 = vdwg.mxu0
        %4663 = vmatpush.bf16.msra.mxu0 %v4157
        %4664 = vmatpush.bf16.msra.mxu0 %v4149
        %4665 = vmatpush.bf16.msra.mxu0 %v4141
        %4666 = vmatpush.bf16.msra.mxu0 %v4133
        %4667 = vmatpush.bf16.msra.mxu0 %v4125
        %4668 = vmatpush.bf16.msra.mxu0 %v4117
        %4669 = vmatpush.bf16.msra.mxu0 %v4109
        %4670 = vmatpush.bf16.msra.mxu0 %v4101
        %4671 = vmatmul.bf16.gmra.mxu0 %v3125
        %v4672 = vpop.f32.mrf.mxu0
        %v4673 = vadd.f32 %v4584, %v4672
        %v4674 = vpop.f32.mrf.mxu0
        %v4675 = vadd.f32 %v4586, %v4674
        %4676 = vmatmul.bf16.gmra.mxu0 %v3129
        %v4677 = vpop.f32.mrf.mxu0
        %v4678 = vadd.f32 %v4589, %v4677
        %v4679 = vpop.f32.mrf.mxu0
        %v4680 = vadd.f32 %v4591, %v4679
        %4681 = vmatmul.bf16.gmra.mxu0 %v3133
        %v4682 = vpop.f32.mrf.mxu0
        %v4683 = vadd.f32 %v4594, %v4682
        %v4684 = vpop.f32.mrf.mxu0
        %v4685 = vadd.f32 %v4596, %v4684
        %4686 = vmatmul.bf16.gmra.mxu0 %v3137
        %v4687 = vpop.f32.mrf.mxu0
        %v4688 = vadd.f32 %v4599, %v4687
        %v4689 = vpop.f32.mrf.mxu0
        %v4690 = vadd.f32 %v4601, %v4689
        %4691 = vmatmul.bf16.gmra.mxu0 %v3141
        %v4692 = vpop.f32.mrf.mxu0
        %v4693 = vadd.f32 %v4604, %v4692
        %v4694 = vpop.f32.mrf.mxu0
        %v4695 = vadd.f32 %v4606, %v4694
        %4696 = vmatmul.bf16.gmra.mxu0 %v3145
        %v4697 = vpop.f32.mrf.mxu0
        %v4698 = vadd.f32 %v4609, %v4697
        %v4699 = vpop.f32.mrf.mxu0
        %v4700 = vadd.f32 %v4611, %v4699
        %4701 = vmatmul.bf16.gmra.mxu0 %v3149
        %v4702 = vpop.f32.mrf.mxu0
        %v4703 = vadd.f32 %v4614, %v4702
        %v4704 = vpop.f32.mrf.mxu0
        %v4705 = vadd.f32 %v4616, %v4704
        %4706 = vmatmul.bf16.gmra.mxu0 %v3153
        %v4707 = vpop.f32.mrf.mxu0
        %v4708 = vadd.f32 %v4619, %v4707
        %v4709 = vpop.f32.mrf.mxu0
        %v4710 = vadd.f32 %v4621, %v4709
        %4711 = vmatmul.bf16.gmra.mxu0 %v3157
        %v4712 = vpop.f32.mrf.mxu0
        %v4713 = vadd.f32 %v4624, %v4712
        %v4714 = vpop.f32.mrf.mxu0
        %v4715 = vadd.f32 %v4626, %v4714
        %4716 = vmatmul.bf16.gmra.mxu0 %v3161
        %v4717 = vpop.f32.mrf.mxu0
        %v4718 = vadd.f32 %v4629, %v4717
        %v4719 = vpop.f32.mrf.mxu0
        %v4720 = vadd.f32 %v4631, %v4719
        %4721 = vmatmul.bf16.gmra.mxu0 %v3165
        %v4722 = vpop.f32.mrf.mxu0
        %v4723 = vadd.f32 %v4634, %v4722
        %v4724 = vpop.f32.mrf.mxu0
        %v4725 = vadd.f32 %v4636, %v4724
        %4726 = vmatmul.bf16.gmra.mxu0 %v3169
        %v4727 = vpop.f32.mrf.mxu0
        %v4728 = vadd.f32 %v4639, %v4727
        %v4729 = vpop.f32.mrf.mxu0
        %v4730 = vadd.f32 %v4641, %v4729
        %4731 = vmatmul.bf16.gmra.mxu0 %v3173
        %v4732 = vpop.f32.mrf.mxu0
        %v4733 = vadd.f32 %v4644, %v4732
        %v4734 = vpop.f32.mrf.mxu0
        %v4735 = vadd.f32 %v4646, %v4734
        %4736 = vmatmul.bf16.gmra.mxu0 %v3177
        %v4737 = vpop.f32.mrf.mxu0
        %v4738 = vadd.f32 %v4649, %v4737
        %v4739 = vpop.f32.mrf.mxu0
        %v4740 = vadd.f32 %v4651, %v4739
        %4741 = vmatmul.bf16.gmra.mxu0 %v3181
        %v4742 = vpop.f32.mrf.mxu0
        %v4743 = vadd.f32 %v4654, %v4742
        %v4744 = vpop.f32.mrf.mxu0
        %v4745 = vadd.f32 %v4656, %v4744
        %4746 = vmatmul.bf16.gmra.mxu0 %v3185
        %v4747 = vpop.f32.mrf.mxu0
        %v4748 = vadd.f32 %v4659, %v4747
        %v4749 = vpop.f32.mrf.mxu0
        %v4750 = vadd.f32 %v4661, %v4749
        %4751 = vdwg.mxu0
        %4752 = vmatpush.bf16.msra.mxu0 %v4221
        %4753 = vmatpush.bf16.msra.mxu0 %v4213
        %4754 = vmatpush.bf16.msra.mxu0 %v4205
        %4755 = vmatpush.bf16.msra.mxu0 %v4197
        %4756 = vmatpush.bf16.msra.mxu0 %v4189
        %4757 = vmatpush.bf16.msra.mxu0 %v4181
        %4758 = vmatpush.bf16.msra.mxu0 %v4173
        %4759 = vmatpush.bf16.msra.mxu0 %v4165
        %4760 = vmatmul.bf16.gmra.mxu0 %v3126
        %v4761 = vpop.f32.mrf.mxu0
        %v4762 = vadd.f32 %v4673, %v4761
        %v4763 = vpop.f32.mrf.mxu0
        %v4764 = vadd.f32 %v4675, %v4763
        %4765 = vmatmul.bf16.gmra.mxu0 %v3130
        %v4766 = vpop.f32.mrf.mxu0
        %v4767 = vadd.f32 %v4678, %v4766
        %v4768 = vpop.f32.mrf.mxu0
        %v4769 = vadd.f32 %v4680, %v4768
        %4770 = vmatmul.bf16.gmra.mxu0 %v3134
        %v4771 = vpop.f32.mrf.mxu0
        %v4772 = vadd.f32 %v4683, %v4771
        %v4773 = vpop.f32.mrf.mxu0
        %v4774 = vadd.f32 %v4685, %v4773
        %4775 = vmatmul.bf16.gmra.mxu0 %v3138
        %v4776 = vpop.f32.mrf.mxu0
        %v4777 = vadd.f32 %v4688, %v4776
        %v4778 = vpop.f32.mrf.mxu0
        %v4779 = vadd.f32 %v4690, %v4778
        %4780 = vmatmul.bf16.gmra.mxu0 %v3142
        %v4781 = vpop.f32.mrf.mxu0
        %v4782 = vadd.f32 %v4693, %v4781
        %v4783 = vpop.f32.mrf.mxu0
        %v4784 = vadd.f32 %v4695, %v4783
        %4785 = vmatmul.bf16.gmra.mxu0 %v3146
        %v4786 = vpop.f32.mrf.mxu0
        %v4787 = vadd.f32 %v4698, %v4786
        %v4788 = vpop.f32.mrf.mxu0
        %v4789 = vadd.f32 %v4700, %v4788
        %4790 = vmatmul.bf16.gmra.mxu0 %v3150
        %v4791 = vpop.f32.mrf.mxu0
        %v4792 = vadd.f32 %v4703, %v4791
        %v4793 = vpop.f32.mrf.mxu0
        %v4794 = vadd.f32 %v4705, %v4793
        %4795 = vmatmul.bf16.gmra.mxu0 %v3154
        %v4796 = vpop.f32.mrf.mxu0
        %v4797 = vadd.f32 %v4708, %v4796
        %v4798 = vpop.f32.mrf.mxu0
        %v4799 = vadd.f32 %v4710, %v4798
        %4800 = vmatmul.bf16.gmra.mxu0 %v3158
        %v4801 = vpop.f32.mrf.mxu0
        %v4802 = vadd.f32 %v4713, %v4801
        %v4803 = vpop.f32.mrf.mxu0
        %v4804 = vadd.f32 %v4715, %v4803
        %4805 = vmatmul.bf16.gmra.mxu0 %v3162
        %v4806 = vpop.f32.mrf.mxu0
        %v4807 = vadd.f32 %v4718, %v4806
        %v4808 = vpop.f32.mrf.mxu0
        %v4809 = vadd.f32 %v4720, %v4808
        %4810 = vmatmul.bf16.gmra.mxu0 %v3166
        %v4811 = vpop.f32.mrf.mxu0
        %v4812 = vadd.f32 %v4723, %v4811
        %v4813 = vpop.f32.mrf.mxu0
        %v4814 = vadd.f32 %v4725, %v4813
        %4815 = vmatmul.bf16.gmra.mxu0 %v3170
        %v4816 = vpop.f32.mrf.mxu0
        %v4817 = vadd.f32 %v4728, %v4816
        %v4818 = vpop.f32.mrf.mxu0
        %v4819 = vadd.f32 %v4730, %v4818
        %4820 = vmatmul.bf16.gmra.mxu0 %v3174
        %v4821 = vpop.f32.mrf.mxu0
        %v4822 = vadd.f32 %v4733, %v4821
        %v4823 = vpop.f32.mrf.mxu0
        %v4824 = vadd.f32 %v4735, %v4823
        %4825 = vmatmul.bf16.gmra.mxu0 %v3178
        %v4826 = vpop.f32.mrf.mxu0
        %v4827 = vadd.f32 %v4738, %v4826
        %v4828 = vpop.f32.mrf.mxu0
        %v4829 = vadd.f32 %v4740, %v4828
        %4830 = vmatmul.bf16.gmra.mxu0 %v3182
        %v4831 = vpop.f32.mrf.mxu0
        %v4832 = vadd.f32 %v4743, %v4831
        %v4833 = vpop.f32.mrf.mxu0
        %v4834 = vadd.f32 %v4745, %v4833
        %4835 = vmatmul.bf16.gmra.mxu0 %v3186
        %v4836 = vpop.f32.mrf.mxu0
        %v4837 = vadd.f32 %v4748, %v4836
        %v4838 = vpop.f32.mrf.mxu0
        %v4839 = vadd.f32 %v4750, %v4838
        %4840 = vdwg.mxu0
        %4841 = vmatpush.bf16.msra.mxu0 %v4030
        %4842 = vmatpush.bf16.msra.mxu0 %v4022
        %4843 = vmatpush.bf16.msra.mxu0 %v4014
        %4844 = vmatpush.bf16.msra.mxu0 %v4006
        %4845 = vmatpush.bf16.msra.mxu0 %v3998
        %4846 = vmatpush.bf16.msra.mxu0 %v3990
        %4847 = vmatpush.bf16.msra.mxu0 %v3982
        %4848 = vmatpush.bf16.msra.mxu0 %v3974
        %4849 = vmatmul.bf16.gmra.mxu0 %v3123
        %v4850 = vpop.f32.mrf.mxu0
        %v4851 = vadd.f32 %v3190, %v4850
        %v4852 = vpop.f32.mrf.mxu0
        %v4853 = vadd.f32 %v3190, %v4852
        %4854 = vmatmul.bf16.gmra.mxu0 %v3127
        %v4855 = vpop.f32.mrf.mxu0
        %v4856 = vadd.f32 %v3190, %v4855
        %v4857 = vpop.f32.mrf.mxu0
        %v4858 = vadd.f32 %v3190, %v4857
        %4859 = vmatmul.bf16.gmra.mxu0 %v3131
        %v4860 = vpop.f32.mrf.mxu0
        %v4861 = vadd.f32 %v3190, %v4860
        %v4862 = vpop.f32.mrf.mxu0
        %v4863 = vadd.f32 %v3190, %v4862
        %4864 = vmatmul.bf16.gmra.mxu0 %v3135
        %v4865 = vpop.f32.mrf.mxu0
        %v4866 = vadd.f32 %v3190, %v4865
        %v4867 = vpop.f32.mrf.mxu0
        %v4868 = vadd.f32 %v3190, %v4867
        %4869 = vmatmul.bf16.gmra.mxu0 %v3139
        %v4870 = vpop.f32.mrf.mxu0
        %v4871 = vadd.f32 %v3190, %v4870
        %v4872 = vpop.f32.mrf.mxu0
        %v4873 = vadd.f32 %v3190, %v4872
        %4874 = vmatmul.bf16.gmra.mxu0 %v3143
        %v4875 = vpop.f32.mrf.mxu0
        %v4876 = vadd.f32 %v3190, %v4875
        %v4877 = vpop.f32.mrf.mxu0
        %v4878 = vadd.f32 %v3190, %v4877
        %4879 = vmatmul.bf16.gmra.mxu0 %v3147
        %v4880 = vpop.f32.mrf.mxu0
        %v4881 = vadd.f32 %v3190, %v4880
        %v4882 = vpop.f32.mrf.mxu0
        %v4883 = vadd.f32 %v3190, %v4882
        %4884 = vmatmul.bf16.gmra.mxu0 %v3151
        %v4885 = vpop.f32.mrf.mxu0
        %v4886 = vadd.f32 %v3190, %v4885
        %v4887 = vpop.f32.mrf.mxu0
        %v4888 = vadd.f32 %v3190, %v4887
        %4889 = vmatmul.bf16.gmra.mxu0 %v3155
        %v4890 = vpop.f32.mrf.mxu0
        %v4891 = vadd.f32 %v3190, %v4890
        %v4892 = vpop.f32.mrf.mxu0
        %v4893 = vadd.f32 %v3190, %v4892
        %4894 = vmatmul.bf16.gmra.mxu0 %v3159
        %v4895 = vpop.f32.mrf.mxu0
        %v4896 = vadd.f32 %v3190, %v4895
        %v4897 = vpop.f32.mrf.mxu0
        %v4898 = vadd.f32 %v3190, %v4897
        %4899 = vmatmul.bf16.gmra.mxu0 %v3163
        %v4900 = vpop.f32.mrf.mxu0
        %v4901 = vadd.f32 %v3190, %v4900
        %v4902 = vpop.f32.mrf.mxu0
        %v4903 = vadd.f32 %v3190, %v4902
        %4904 = vmatmul.bf16.gmra.mxu0 %v3167
        %v4905 = vpop.f32.mrf.mxu0
        %v4906 = vadd.f32 %v3190, %v4905
        %v4907 = vpop.f32.mrf.mxu0
        %v4908 = vadd.f32 %v3190, %v4907
        %4909 = vmatmul.bf16.gmra.mxu0 %v3171
        %v4910 = vpop.f32.mrf.mxu0
        %v4911 = vadd.f32 %v3190, %v4910
        %v4912 = vpop.f32.mrf.mxu0
        %v4913 = vadd.f32 %v3190, %v4912
        %4914 = vmatmul.bf16.gmra.mxu0 %v3175
        %v4915 = vpop.f32.mrf.mxu0
        %v4916 = vadd.f32 %v3190, %v4915
        %v4917 = vpop.f32.mrf.mxu0
        %v4918 = vadd.f32 %v3190, %v4917
        %4919 = vmatmul.bf16.gmra.mxu0 %v3179
        %v4920 = vpop.f32.mrf.mxu0
        %v4921 = vadd.f32 %v3190, %v4920
        %v4922 = vpop.f32.mrf.mxu0
        %v4923 = vadd.f32 %v3190, %v4922
        %4924 = vmatmul.bf16.gmra.mxu0 %v3183
        %v4925 = vpop.f32.mrf.mxu0
        %v4926 = vadd.f32 %v3190, %v4925
        %v4927 = vpop.f32.mrf.mxu0
        %v4928 = vadd.f32 %v3190, %v4927
        %4929 = vdwg.mxu0
        %4930 = vmatpush.bf16.msra.mxu0 %v4094
        %4931 = vmatpush.bf16.msra.mxu0 %v4086
        %4932 = vmatpush.bf16.msra.mxu0 %v4078
        %4933 = vmatpush.bf16.msra.mxu0 %v4070
        %4934 = vmatpush.bf16.msra.mxu0 %v4062
        %4935 = vmatpush.bf16.msra.mxu0 %v4054
        %4936 = vmatpush.bf16.msra.mxu0 %v4046
        %4937 = vmatpush.bf16.msra.mxu0 %v4038
        %4938 = vmatmul.bf16.gmra.mxu0 %v3124
        %v4939 = vpop.f32.mrf.mxu0
        %v4940 = vadd.f32 %v4851, %v4939
        %v4941 = vpop.f32.mrf.mxu0
        %v4942 = vadd.f32 %v4853, %v4941
        %4943 = vmatmul.bf16.gmra.mxu0 %v3128
        %v4944 = vpop.f32.mrf.mxu0
        %v4945 = vadd.f32 %v4856, %v4944
        %v4946 = vpop.f32.mrf.mxu0
        %v4947 = vadd.f32 %v4858, %v4946
        %4948 = vmatmul.bf16.gmra.mxu0 %v3132
        %v4949 = vpop.f32.mrf.mxu0
        %v4950 = vadd.f32 %v4861, %v4949
        %v4951 = vpop.f32.mrf.mxu0
        %v4952 = vadd.f32 %v4863, %v4951
        %4953 = vmatmul.bf16.gmra.mxu0 %v3136
        %v4954 = vpop.f32.mrf.mxu0
        %v4955 = vadd.f32 %v4866, %v4954
        %v4956 = vpop.f32.mrf.mxu0
        %v4957 = vadd.f32 %v4868, %v4956
        %4958 = vmatmul.bf16.gmra.mxu0 %v3140
        %v4959 = vpop.f32.mrf.mxu0
        %v4960 = vadd.f32 %v4871, %v4959
        %v4961 = vpop.f32.mrf.mxu0
        %v4962 = vadd.f32 %v4873, %v4961
        %4963 = vmatmul.bf16.gmra.mxu0 %v3144
        %v4964 = vpop.f32.mrf.mxu0
        %v4965 = vadd.f32 %v4876, %v4964
        %v4966 = vpop.f32.mrf.mxu0
        %v4967 = vadd.f32 %v4878, %v4966
        %4968 = vmatmul.bf16.gmra.mxu0 %v3148
        %v4969 = vpop.f32.mrf.mxu0
        %v4970 = vadd.f32 %v4881, %v4969
        %v4971 = vpop.f32.mrf.mxu0
        %v4972 = vadd.f32 %v4883, %v4971
        %4973 = vmatmul.bf16.gmra.mxu0 %v3152
        %v4974 = vpop.f32.mrf.mxu0
        %v4975 = vadd.f32 %v4886, %v4974
        %v4976 = vpop.f32.mrf.mxu0
        %v4977 = vadd.f32 %v4888, %v4976
        %4978 = vmatmul.bf16.gmra.mxu0 %v3156
        %v4979 = vpop.f32.mrf.mxu0
        %v4980 = vadd.f32 %v4891, %v4979
        %v4981 = vpop.f32.mrf.mxu0
        %v4982 = vadd.f32 %v4893, %v4981
        %4983 = vmatmul.bf16.gmra.mxu0 %v3160
        %v4984 = vpop.f32.mrf.mxu0
        %v4985 = vadd.f32 %v4896, %v4984
        %v4986 = vpop.f32.mrf.mxu0
        %v4987 = vadd.f32 %v4898, %v4986
        %4988 = vmatmul.bf16.gmra.mxu0 %v3164
        %v4989 = vpop.f32.mrf.mxu0
        %v4990 = vadd.f32 %v4901, %v4989
        %v4991 = vpop.f32.mrf.mxu0
        %v4992 = vadd.f32 %v4903, %v4991
        %4993 = vmatmul.bf16.gmra.mxu0 %v3168
        %v4994 = vpop.f32.mrf.mxu0
        %v4995 = vadd.f32 %v4906, %v4994
        %v4996 = vpop.f32.mrf.mxu0
        %v4997 = vadd.f32 %v4908, %v4996
        %4998 = vmatmul.bf16.gmra.mxu0 %v3172
        %v4999 = vpop.f32.mrf.mxu0
        %v5000 = vadd.f32 %v4911, %v4999
        %v5001 = vpop.f32.mrf.mxu0
        %v5002 = vadd.f32 %v4913, %v5001
        %5003 = vmatmul.bf16.gmra.mxu0 %v3176
        %v5004 = vpop.f32.mrf.mxu0
        %v5005 = vadd.f32 %v4916, %v5004
        %v5006 = vpop.f32.mrf.mxu0
        %v5007 = vadd.f32 %v4918, %v5006
        %5008 = vmatmul.bf16.gmra.mxu0 %v3180
        %v5009 = vpop.f32.mrf.mxu0
        %v5010 = vadd.f32 %v4921, %v5009
        %v5011 = vpop.f32.mrf.mxu0
        %v5012 = vadd.f32 %v4923, %v5011
        %5013 = vmatmul.bf16.gmra.mxu0 %v3184
        %v5014 = vpop.f32.mrf.mxu0
        %v5015 = vadd.f32 %v4926, %v5014
        %v5016 = vpop.f32.mrf.mxu0
        %v5017 = vadd.f32 %v4928, %v5016
        %5018 = vdwg.mxu0
        %5019 = vmatpush.bf16.msra.mxu0 %v4158
        %5020 = vmatpush.bf16.msra.mxu0 %v4150
        %5021 = vmatpush.bf16.msra.mxu0 %v4142
        %5022 = vmatpush.bf16.msra.mxu0 %v4134
        %5023 = vmatpush.bf16.msra.mxu0 %v4126
        %5024 = vmatpush.bf16.msra.mxu0 %v4118
        %5025 = vmatpush.bf16.msra.mxu0 %v4110
        %5026 = vmatpush.bf16.msra.mxu0 %v4102
        %5027 = vmatmul.bf16.gmra.mxu0 %v3125
        %v5028 = vpop.f32.mrf.mxu0
        %v5029 = vadd.f32 %v4940, %v5028
        %v5030 = vpop.f32.mrf.mxu0
        %v5031 = vadd.f32 %v4942, %v5030
        %5032 = vmatmul.bf16.gmra.mxu0 %v3129
        %v5033 = vpop.f32.mrf.mxu0
        %v5034 = vadd.f32 %v4945, %v5033
        %v5035 = vpop.f32.mrf.mxu0
        %v5036 = vadd.f32 %v4947, %v5035
        %5037 = vmatmul.bf16.gmra.mxu0 %v3133
        %v5038 = vpop.f32.mrf.mxu0
        %v5039 = vadd.f32 %v4950, %v5038
        %v5040 = vpop.f32.mrf.mxu0
        %v5041 = vadd.f32 %v4952, %v5040
        %5042 = vmatmul.bf16.gmra.mxu0 %v3137
        %v5043 = vpop.f32.mrf.mxu0
        %v5044 = vadd.f32 %v4955, %v5043
        %v5045 = vpop.f32.mrf.mxu0
        %v5046 = vadd.f32 %v4957, %v5045
        %5047 = vmatmul.bf16.gmra.mxu0 %v3141
        %v5048 = vpop.f32.mrf.mxu0
        %v5049 = vadd.f32 %v4960, %v5048
        %v5050 = vpop.f32.mrf.mxu0
        %v5051 = vadd.f32 %v4962, %v5050
        %5052 = vmatmul.bf16.gmra.mxu0 %v3145
        %v5053 = vpop.f32.mrf.mxu0
        %v5054 = vadd.f32 %v4965, %v5053
        %v5055 = vpop.f32.mrf.mxu0
        %v5056 = vadd.f32 %v4967, %v5055
        %5057 = vmatmul.bf16.gmra.mxu0 %v3149
        %v5058 = vpop.f32.mrf.mxu0
        %v5059 = vadd.f32 %v4970, %v5058
        %v5060 = vpop.f32.mrf.mxu0
        %v5061 = vadd.f32 %v4972, %v5060
        %5062 = vmatmul.bf16.gmra.mxu0 %v3153
        %v5063 = vpop.f32.mrf.mxu0
        %v5064 = vadd.f32 %v4975, %v5063
        %v5065 = vpop.f32.mrf.mxu0
        %v5066 = vadd.f32 %v4977, %v5065
        %5067 = vmatmul.bf16.gmra.mxu0 %v3157
        %v5068 = vpop.f32.mrf.mxu0
        %v5069 = vadd.f32 %v4980, %v5068
        %v5070 = vpop.f32.mrf.mxu0
        %v5071 = vadd.f32 %v4982, %v5070
        %5072 = vmatmul.bf16.gmra.mxu0 %v3161
        %v5073 = vpop.f32.mrf.mxu0
        %v5074 = vadd.f32 %v4985, %v5073
        %v5075 = vpop.f32.mrf.mxu0
        %v5076 = vadd.f32 %v4987, %v5075
        %5077 = vmatmul.bf16.gmra.mxu0 %v3165
        %v5078 = vpop.f32.mrf.mxu0
        %v5079 = vadd.f32 %v4990, %v5078
        %v5080 = vpop.f32.mrf.mxu0
        %v5081 = vadd.f32 %v4992, %v5080
        %5082 = vmatmul.bf16.gmra.mxu0 %v3169
        %v5083 = vpop.f32.mrf.mxu0
        %v5084 = vadd.f32 %v4995, %v5083
        %v5085 = vpop.f32.mrf.mxu0
        %v5086 = vadd.f32 %v4997, %v5085
        %5087 = vmatmul.bf16.gmra.mxu0 %v3173
        %v5088 = vpop.f32.mrf.mxu0
        %v5089 = vadd.f32 %v5000, %v5088
        %v5090 = vpop.f32.mrf.mxu0
        %v5091 = vadd.f32 %v5002, %v5090
        %5092 = vmatmul.bf16.gmra.mxu0 %v3177
        %v5093 = vpop.f32.mrf.mxu0
        %v5094 = vadd.f32 %v5005, %v5093
        %v5095 = vpop.f32.mrf.mxu0
        %v5096 = vadd.f32 %v5007, %v5095
        %5097 = vmatmul.bf16.gmra.mxu0 %v3181
        %v5098 = vpop.f32.mrf.mxu0
        %v5099 = vadd.f32 %v5010, %v5098
        %v5100 = vpop.f32.mrf.mxu0
        %v5101 = vadd.f32 %v5012, %v5100
        %5102 = vmatmul.bf16.gmra.mxu0 %v3185
        %v5103 = vpop.f32.mrf.mxu0
        %v5104 = vadd.f32 %v5015, %v5103
        %v5105 = vpop.f32.mrf.mxu0
        %v5106 = vadd.f32 %v5017, %v5105
        %5107 = vdwg.mxu0
        %5108 = vmatpush.bf16.msra.mxu0 %v4222
        %5109 = vmatpush.bf16.msra.mxu0 %v4214
        %5110 = vmatpush.bf16.msra.mxu0 %v4206
        %5111 = vmatpush.bf16.msra.mxu0 %v4198
        %5112 = vmatpush.bf16.msra.mxu0 %v4190
        %5113 = vmatpush.bf16.msra.mxu0 %v4182
        %5114 = vmatpush.bf16.msra.mxu0 %v4174
        %5115 = vmatpush.bf16.msra.mxu0 %v4166
        %5116 = vmatmul.bf16.gmra.mxu0 %v3126
        %v5117 = vpop.f32.mrf.mxu0
        %v5118 = vadd.f32 %v5029, %v5117
        %v5119 = vpop.f32.mrf.mxu0
        %v5120 = vadd.f32 %v5031, %v5119
        %5121 = vmatmul.bf16.gmra.mxu0 %v3130
        %v5122 = vpop.f32.mrf.mxu0
        %v5123 = vadd.f32 %v5034, %v5122
        %v5124 = vpop.f32.mrf.mxu0
        %v5125 = vadd.f32 %v5036, %v5124
        %5126 = vmatmul.bf16.gmra.mxu0 %v3134
        %v5127 = vpop.f32.mrf.mxu0
        %v5128 = vadd.f32 %v5039, %v5127
        %v5129 = vpop.f32.mrf.mxu0
        %v5130 = vadd.f32 %v5041, %v5129
        %5131 = vmatmul.bf16.gmra.mxu0 %v3138
        %v5132 = vpop.f32.mrf.mxu0
        %v5133 = vadd.f32 %v5044, %v5132
        %v5134 = vpop.f32.mrf.mxu0
        %v5135 = vadd.f32 %v5046, %v5134
        %5136 = vmatmul.bf16.gmra.mxu0 %v3142
        %v5137 = vpop.f32.mrf.mxu0
        %v5138 = vadd.f32 %v5049, %v5137
        %v5139 = vpop.f32.mrf.mxu0
        %v5140 = vadd.f32 %v5051, %v5139
        %5141 = vmatmul.bf16.gmra.mxu0 %v3146
        %v5142 = vpop.f32.mrf.mxu0
        %v5143 = vadd.f32 %v5054, %v5142
        %v5144 = vpop.f32.mrf.mxu0
        %v5145 = vadd.f32 %v5056, %v5144
        %5146 = vmatmul.bf16.gmra.mxu0 %v3150
        %v5147 = vpop.f32.mrf.mxu0
        %v5148 = vadd.f32 %v5059, %v5147
        %v5149 = vpop.f32.mrf.mxu0
        %v5150 = vadd.f32 %v5061, %v5149
        %5151 = vmatmul.bf16.gmra.mxu0 %v3154
        %v5152 = vpop.f32.mrf.mxu0
        %v5153 = vadd.f32 %v5064, %v5152
        %v5154 = vpop.f32.mrf.mxu0
        %v5155 = vadd.f32 %v5066, %v5154
        %5156 = vmatmul.bf16.gmra.mxu0 %v3158
        %v5157 = vpop.f32.mrf.mxu0
        %v5158 = vadd.f32 %v5069, %v5157
        %v5159 = vpop.f32.mrf.mxu0
        %v5160 = vadd.f32 %v5071, %v5159
        %5161 = vmatmul.bf16.gmra.mxu0 %v3162
        %v5162 = vpop.f32.mrf.mxu0
        %v5163 = vadd.f32 %v5074, %v5162
        %v5164 = vpop.f32.mrf.mxu0
        %v5165 = vadd.f32 %v5076, %v5164
        %5166 = vmatmul.bf16.gmra.mxu0 %v3166
        %v5167 = vpop.f32.mrf.mxu0
        %v5168 = vadd.f32 %v5079, %v5167
        %v5169 = vpop.f32.mrf.mxu0
        %v5170 = vadd.f32 %v5081, %v5169
        %5171 = vmatmul.bf16.gmra.mxu0 %v3170
        %v5172 = vpop.f32.mrf.mxu0
        %v5173 = vadd.f32 %v5084, %v5172
        %v5174 = vpop.f32.mrf.mxu0
        %v5175 = vadd.f32 %v5086, %v5174
        %5176 = vmatmul.bf16.gmra.mxu0 %v3174
        %v5177 = vpop.f32.mrf.mxu0
        %v5178 = vadd.f32 %v5089, %v5177
        %v5179 = vpop.f32.mrf.mxu0
        %v5180 = vadd.f32 %v5091, %v5179
        %5181 = vmatmul.bf16.gmra.mxu0 %v3178
        %v5182 = vpop.f32.mrf.mxu0
        %v5183 = vadd.f32 %v5094, %v5182
        %v5184 = vpop.f32.mrf.mxu0
        %v5185 = vadd.f32 %v5096, %v5184
        %5186 = vmatmul.bf16.gmra.mxu0 %v3182
        %v5187 = vpop.f32.mrf.mxu0
        %v5188 = vadd.f32 %v5099, %v5187
        %v5189 = vpop.f32.mrf.mxu0
        %v5190 = vadd.f32 %v5101, %v5189
        %5191 = vmatmul.bf16.gmra.mxu0 %v3186
        %v5192 = vpop.f32.mrf.mxu0
        %v5193 = vadd.f32 %v5104, %v5192
        %v5194 = vpop.f32.mrf.mxu0
        %v5195 = vadd.f32 %v5106, %v5194
        %5196 = vdwg.mxu0
        %5197 = vmatpush.bf16.msra.mxu0 %v4031
        %5198 = vmatpush.bf16.msra.mxu0 %v4023
        %5199 = vmatpush.bf16.msra.mxu0 %v4015
        %5200 = vmatpush.bf16.msra.mxu0 %v4007
        %5201 = vmatpush.bf16.msra.mxu0 %v3999
        %5202 = vmatpush.bf16.msra.mxu0 %v3991
        %5203 = vmatpush.bf16.msra.mxu0 %v3983
        %5204 = vmatpush.bf16.msra.mxu0 %v3975
        %5205 = vmatmul.bf16.gmra.mxu0 %v3123
        %v5206 = vpop.f32.mrf.mxu0
        %v5207 = vadd.f32 %v3191, %v5206
        %v5208 = vpop.f32.mrf.mxu0
        %v5209 = vadd.f32 %v3191, %v5208
        %5210 = vmatmul.bf16.gmra.mxu0 %v3127
        %v5211 = vpop.f32.mrf.mxu0
        %v5212 = vadd.f32 %v3191, %v5211
        %v5213 = vpop.f32.mrf.mxu0
        %v5214 = vadd.f32 %v3191, %v5213
        %5215 = vmatmul.bf16.gmra.mxu0 %v3131
        %v5216 = vpop.f32.mrf.mxu0
        %v5217 = vadd.f32 %v3191, %v5216
        %v5218 = vpop.f32.mrf.mxu0
        %v5219 = vadd.f32 %v3191, %v5218
        %5220 = vmatmul.bf16.gmra.mxu0 %v3135
        %v5221 = vpop.f32.mrf.mxu0
        %v5222 = vadd.f32 %v3191, %v5221
        %v5223 = vpop.f32.mrf.mxu0
        %v5224 = vadd.f32 %v3191, %v5223
        %5225 = vmatmul.bf16.gmra.mxu0 %v3139
        %v5226 = vpop.f32.mrf.mxu0
        %v5227 = vadd.f32 %v3191, %v5226
        %v5228 = vpop.f32.mrf.mxu0
        %v5229 = vadd.f32 %v3191, %v5228
        %5230 = vmatmul.bf16.gmra.mxu0 %v3143
        %v5231 = vpop.f32.mrf.mxu0
        %v5232 = vadd.f32 %v3191, %v5231
        %v5233 = vpop.f32.mrf.mxu0
        %v5234 = vadd.f32 %v3191, %v5233
        %5235 = vmatmul.bf16.gmra.mxu0 %v3147
        %v5236 = vpop.f32.mrf.mxu0
        %v5237 = vadd.f32 %v3191, %v5236
        %v5238 = vpop.f32.mrf.mxu0
        %v5239 = vadd.f32 %v3191, %v5238
        %5240 = vmatmul.bf16.gmra.mxu0 %v3151
        %v5241 = vpop.f32.mrf.mxu0
        %v5242 = vadd.f32 %v3191, %v5241
        %v5243 = vpop.f32.mrf.mxu0
        %v5244 = vadd.f32 %v3191, %v5243
        %5245 = vmatmul.bf16.gmra.mxu0 %v3155
        %v5246 = vpop.f32.mrf.mxu0
        %v5247 = vadd.f32 %v3191, %v5246
        %v5248 = vpop.f32.mrf.mxu0
        %v5249 = vadd.f32 %v3191, %v5248
        %5250 = vmatmul.bf16.gmra.mxu0 %v3159
        %v5251 = vpop.f32.mrf.mxu0
        %v5252 = vadd.f32 %v3191, %v5251
        %v5253 = vpop.f32.mrf.mxu0
        %v5254 = vadd.f32 %v3191, %v5253
        %5255 = vmatmul.bf16.gmra.mxu0 %v3163
        %v5256 = vpop.f32.mrf.mxu0
        %v5257 = vadd.f32 %v3191, %v5256
        %v5258 = vpop.f32.mrf.mxu0
        %v5259 = vadd.f32 %v3191, %v5258
        %5260 = vmatmul.bf16.gmra.mxu0 %v3167
        %v5261 = vpop.f32.mrf.mxu0
        %v5262 = vadd.f32 %v3191, %v5261
        %v5263 = vpop.f32.mrf.mxu0
        %v5264 = vadd.f32 %v3191, %v5263
        %5265 = vmatmul.bf16.gmra.mxu0 %v3171
        %v5266 = vpop.f32.mrf.mxu0
        %v5267 = vadd.f32 %v3191, %v5266
        %v5268 = vpop.f32.mrf.mxu0
        %v5269 = vadd.f32 %v3191, %v5268
        %5270 = vmatmul.bf16.gmra.mxu0 %v3175
        %v5271 = vpop.f32.mrf.mxu0
        %v5272 = vadd.f32 %v3191, %v5271
        %v5273 = vpop.f32.mrf.mxu0
        %v5274 = vadd.f32 %v3191, %v5273
        %5275 = vmatmul.bf16.gmra.mxu0 %v3179
        %v5276 = vpop.f32.mrf.mxu0
        %v5277 = vadd.f32 %v3191, %v5276
        %v5278 = vpop.f32.mrf.mxu0
        %v5279 = vadd.f32 %v3191, %v5278
        %5280 = vmatmul.bf16.gmra.mxu0 %v3183
        %v5281 = vpop.f32.mrf.mxu0
        %v5282 = vadd.f32 %v3191, %v5281
        %v5283 = vpop.f32.mrf.mxu0
        %v5284 = vadd.f32 %v3191, %v5283
        %5285 = vdwg.mxu0
        %5286 = vmatpush.bf16.msra.mxu0 %v4095
        %5287 = vmatpush.bf16.msra.mxu0 %v4087
        %5288 = vmatpush.bf16.msra.mxu0 %v4079
        %5289 = vmatpush.bf16.msra.mxu0 %v4071
        %5290 = vmatpush.bf16.msra.mxu0 %v4063
        %5291 = vmatpush.bf16.msra.mxu0 %v4055
        %5292 = vmatpush.bf16.msra.mxu0 %v4047
        %5293 = vmatpush.bf16.msra.mxu0 %v4039
        %5294 = vmatmul.bf16.gmra.mxu0 %v3124
        %v5295 = vpop.f32.mrf.mxu0
        %v5296 = vadd.f32 %v5207, %v5295
        %v5297 = vpop.f32.mrf.mxu0
        %v5298 = vadd.f32 %v5209, %v5297
        %5299 = vmatmul.bf16.gmra.mxu0 %v3128
        %v5300 = vpop.f32.mrf.mxu0
        %v5301 = vadd.f32 %v5212, %v5300
        %v5302 = vpop.f32.mrf.mxu0
        %v5303 = vadd.f32 %v5214, %v5302
        %5304 = vmatmul.bf16.gmra.mxu0 %v3132
        %v5305 = vpop.f32.mrf.mxu0
        %v5306 = vadd.f32 %v5217, %v5305
        %v5307 = vpop.f32.mrf.mxu0
        %v5308 = vadd.f32 %v5219, %v5307
        %5309 = vmatmul.bf16.gmra.mxu0 %v3136
        %v5310 = vpop.f32.mrf.mxu0
        %v5311 = vadd.f32 %v5222, %v5310
        %v5312 = vpop.f32.mrf.mxu0
        %v5313 = vadd.f32 %v5224, %v5312
        %5314 = vmatmul.bf16.gmra.mxu0 %v3140
        %v5315 = vpop.f32.mrf.mxu0
        %v5316 = vadd.f32 %v5227, %v5315
        %v5317 = vpop.f32.mrf.mxu0
        %v5318 = vadd.f32 %v5229, %v5317
        %5319 = vmatmul.bf16.gmra.mxu0 %v3144
        %v5320 = vpop.f32.mrf.mxu0
        %v5321 = vadd.f32 %v5232, %v5320
        %v5322 = vpop.f32.mrf.mxu0
        %v5323 = vadd.f32 %v5234, %v5322
        %5324 = vmatmul.bf16.gmra.mxu0 %v3148
        %v5325 = vpop.f32.mrf.mxu0
        %v5326 = vadd.f32 %v5237, %v5325
        %v5327 = vpop.f32.mrf.mxu0
        %v5328 = vadd.f32 %v5239, %v5327
        %5329 = vmatmul.bf16.gmra.mxu0 %v3152
        %v5330 = vpop.f32.mrf.mxu0
        %v5331 = vadd.f32 %v5242, %v5330
        %v5332 = vpop.f32.mrf.mxu0
        %v5333 = vadd.f32 %v5244, %v5332
        %5334 = vmatmul.bf16.gmra.mxu0 %v3156
        %v5335 = vpop.f32.mrf.mxu0
        %v5336 = vadd.f32 %v5247, %v5335
        %v5337 = vpop.f32.mrf.mxu0
        %v5338 = vadd.f32 %v5249, %v5337
        %5339 = vmatmul.bf16.gmra.mxu0 %v3160
        %v5340 = vpop.f32.mrf.mxu0
        %v5341 = vadd.f32 %v5252, %v5340
        %v5342 = vpop.f32.mrf.mxu0
        %v5343 = vadd.f32 %v5254, %v5342
        %5344 = vmatmul.bf16.gmra.mxu0 %v3164
        %v5345 = vpop.f32.mrf.mxu0
        %v5346 = vadd.f32 %v5257, %v5345
        %v5347 = vpop.f32.mrf.mxu0
        %v5348 = vadd.f32 %v5259, %v5347
        %5349 = vmatmul.bf16.gmra.mxu0 %v3168
        %v5350 = vpop.f32.mrf.mxu0
        %v5351 = vadd.f32 %v5262, %v5350
        %v5352 = vpop.f32.mrf.mxu0
        %v5353 = vadd.f32 %v5264, %v5352
        %5354 = vmatmul.bf16.gmra.mxu0 %v3172
        %v5355 = vpop.f32.mrf.mxu0
        %v5356 = vadd.f32 %v5267, %v5355
        %v5357 = vpop.f32.mrf.mxu0
        %v5358 = vadd.f32 %v5269, %v5357
        %5359 = vmatmul.bf16.gmra.mxu0 %v3176
        %v5360 = vpop.f32.mrf.mxu0
        %v5361 = vadd.f32 %v5272, %v5360
        %v5362 = vpop.f32.mrf.mxu0
        %v5363 = vadd.f32 %v5274, %v5362
        %5364 = vmatmul.bf16.gmra.mxu0 %v3180
        %v5365 = vpop.f32.mrf.mxu0
        %v5366 = vadd.f32 %v5277, %v5365
        %v5367 = vpop.f32.mrf.mxu0
        %v5368 = vadd.f32 %v5279, %v5367
        %5369 = vmatmul.bf16.gmra.mxu0 %v3184
        %v5370 = vpop.f32.mrf.mxu0
        %v5371 = vadd.f32 %v5282, %v5370
        %v5372 = vpop.f32.mrf.mxu0
        %v5373 = vadd.f32 %v5284, %v5372
        %5374 = vdwg.mxu0
        %5375 = vmatpush.bf16.msra.mxu0 %v4159
        %5376 = vmatpush.bf16.msra.mxu0 %v4151
        %5377 = vmatpush.bf16.msra.mxu0 %v4143
        %5378 = vmatpush.bf16.msra.mxu0 %v4135
        %5379 = vmatpush.bf16.msra.mxu0 %v4127
        %5380 = vmatpush.bf16.msra.mxu0 %v4119
        %5381 = vmatpush.bf16.msra.mxu0 %v4111
        %5382 = vmatpush.bf16.msra.mxu0 %v4103
        %5383 = vmatmul.bf16.gmra.mxu0 %v3125
        %v5384 = vpop.f32.mrf.mxu0
        %v5385 = vadd.f32 %v5296, %v5384
        %v5386 = vpop.f32.mrf.mxu0
        %v5387 = vadd.f32 %v5298, %v5386
        %5388 = vmatmul.bf16.gmra.mxu0 %v3129
        %v5389 = vpop.f32.mrf.mxu0
        %v5390 = vadd.f32 %v5301, %v5389
        %v5391 = vpop.f32.mrf.mxu0
        %v5392 = vadd.f32 %v5303, %v5391
        %5393 = vmatmul.bf16.gmra.mxu0 %v3133
        %v5394 = vpop.f32.mrf.mxu0
        %v5395 = vadd.f32 %v5306, %v5394
        %v5396 = vpop.f32.mrf.mxu0
        %v5397 = vadd.f32 %v5308, %v5396
        %5398 = vmatmul.bf16.gmra.mxu0 %v3137
        %v5399 = vpop.f32.mrf.mxu0
        %v5400 = vadd.f32 %v5311, %v5399
        %v5401 = vpop.f32.mrf.mxu0
        %v5402 = vadd.f32 %v5313, %v5401
        %5403 = vmatmul.bf16.gmra.mxu0 %v3141
        %v5404 = vpop.f32.mrf.mxu0
        %v5405 = vadd.f32 %v5316, %v5404
        %v5406 = vpop.f32.mrf.mxu0
        %v5407 = vadd.f32 %v5318, %v5406
        %5408 = vmatmul.bf16.gmra.mxu0 %v3145
        %v5409 = vpop.f32.mrf.mxu0
        %v5410 = vadd.f32 %v5321, %v5409
        %v5411 = vpop.f32.mrf.mxu0
        %v5412 = vadd.f32 %v5323, %v5411
        %5413 = vmatmul.bf16.gmra.mxu0 %v3149
        %v5414 = vpop.f32.mrf.mxu0
        %v5415 = vadd.f32 %v5326, %v5414
        %v5416 = vpop.f32.mrf.mxu0
        %v5417 = vadd.f32 %v5328, %v5416
        %5418 = vmatmul.bf16.gmra.mxu0 %v3153
        %v5419 = vpop.f32.mrf.mxu0
        %v5420 = vadd.f32 %v5331, %v5419
        %v5421 = vpop.f32.mrf.mxu0
        %v5422 = vadd.f32 %v5333, %v5421
        %5423 = vmatmul.bf16.gmra.mxu0 %v3157
        %v5424 = vpop.f32.mrf.mxu0
        %v5425 = vadd.f32 %v5336, %v5424
        %v5426 = vpop.f32.mrf.mxu0
        %v5427 = vadd.f32 %v5338, %v5426
        %5428 = vmatmul.bf16.gmra.mxu0 %v3161
        %v5429 = vpop.f32.mrf.mxu0
        %v5430 = vadd.f32 %v5341, %v5429
        %v5431 = vpop.f32.mrf.mxu0
        %v5432 = vadd.f32 %v5343, %v5431
        %5433 = vmatmul.bf16.gmra.mxu0 %v3165
        %v5434 = vpop.f32.mrf.mxu0
        %v5435 = vadd.f32 %v5346, %v5434
        %v5436 = vpop.f32.mrf.mxu0
        %v5437 = vadd.f32 %v5348, %v5436
        %5438 = vmatmul.bf16.gmra.mxu0 %v3169
        %v5439 = vpop.f32.mrf.mxu0
        %v5440 = vadd.f32 %v5351, %v5439
        %v5441 = vpop.f32.mrf.mxu0
        %v5442 = vadd.f32 %v5353, %v5441
        %5443 = vmatmul.bf16.gmra.mxu0 %v3173
        %v5444 = vpop.f32.mrf.mxu0
        %v5445 = vadd.f32 %v5356, %v5444
        %v5446 = vpop.f32.mrf.mxu0
        %v5447 = vadd.f32 %v5358, %v5446
        %5448 = vmatmul.bf16.gmra.mxu0 %v3177
        %v5449 = vpop.f32.mrf.mxu0
        %v5450 = vadd.f32 %v5361, %v5449
        %v5451 = vpop.f32.mrf.mxu0
        %v5452 = vadd.f32 %v5363, %v5451
        %5453 = vmatmul.bf16.gmra.mxu0 %v3181
        %v5454 = vpop.f32.mrf.mxu0
        %v5455 = vadd.f32 %v5366, %v5454
        %v5456 = vpop.f32.mrf.mxu0
        %v5457 = vadd.f32 %v5368, %v5456
        %5458 = vmatmul.bf16.gmra.mxu0 %v3185
        %v5459 = vpop.f32.mrf.mxu0
        %v5460 = vadd.f32 %v5371, %v5459
        %v5461 = vpop.f32.mrf.mxu0
        %v5462 = vadd.f32 %v5373, %v5461
        %5463 = vdwg.mxu0
        %5464 = vmatpush.bf16.msra.mxu0 %v4223
        %5465 = vmatpush.bf16.msra.mxu0 %v4215
        %5466 = vmatpush.bf16.msra.mxu0 %v4207
        %5467 = vmatpush.bf16.msra.mxu0 %v4199
        %5468 = vmatpush.bf16.msra.mxu0 %v4191
        %5469 = vmatpush.bf16.msra.mxu0 %v4183
        %5470 = vmatpush.bf16.msra.mxu0 %v4175
        %5471 = vmatpush.bf16.msra.mxu0 %v4167
        %5472 = vmatmul.bf16.gmra.mxu0 %v3126
        %v5473 = vpop.f32.mrf.mxu0
        %v5474 = vadd.f32 %v5385, %v5473
        %v5475 = vpop.f32.mrf.mxu0
        %v5476 = vadd.f32 %v5387, %v5475
        %5477 = vmatmul.bf16.gmra.mxu0 %v3130
        %v5478 = vpop.f32.mrf.mxu0
        %v5479 = vadd.f32 %v5390, %v5478
        %v5480 = vpop.f32.mrf.mxu0
        %v5481 = vadd.f32 %v5392, %v5480
        %5482 = vmatmul.bf16.gmra.mxu0 %v3134
        %v5483 = vpop.f32.mrf.mxu0
        %v5484 = vadd.f32 %v5395, %v5483
        %v5485 = vpop.f32.mrf.mxu0
        %v5486 = vadd.f32 %v5397, %v5485
        %5487 = vmatmul.bf16.gmra.mxu0 %v3138
        %v5488 = vpop.f32.mrf.mxu0
        %v5489 = vadd.f32 %v5400, %v5488
        %v5490 = vpop.f32.mrf.mxu0
        %v5491 = vadd.f32 %v5402, %v5490
        %5492 = vmatmul.bf16.gmra.mxu0 %v3142
        %v5493 = vpop.f32.mrf.mxu0
        %v5494 = vadd.f32 %v5405, %v5493
        %v5495 = vpop.f32.mrf.mxu0
        %v5496 = vadd.f32 %v5407, %v5495
        %5497 = vmatmul.bf16.gmra.mxu0 %v3146
        %v5498 = vpop.f32.mrf.mxu0
        %v5499 = vadd.f32 %v5410, %v5498
        %v5500 = vpop.f32.mrf.mxu0
        %v5501 = vadd.f32 %v5412, %v5500
        %5502 = vmatmul.bf16.gmra.mxu0 %v3150
        %v5503 = vpop.f32.mrf.mxu0
        %v5504 = vadd.f32 %v5415, %v5503
        %v5505 = vpop.f32.mrf.mxu0
        %v5506 = vadd.f32 %v5417, %v5505
        %5507 = vmatmul.bf16.gmra.mxu0 %v3154
        %v5508 = vpop.f32.mrf.mxu0
        %v5509 = vadd.f32 %v5420, %v5508
        %v5510 = vpop.f32.mrf.mxu0
        %v5511 = vadd.f32 %v5422, %v5510
        %5512 = vmatmul.bf16.gmra.mxu0 %v3158
        %v5513 = vpop.f32.mrf.mxu0
        %v5514 = vadd.f32 %v5425, %v5513
        %v5515 = vpop.f32.mrf.mxu0
        %v5516 = vadd.f32 %v5427, %v5515
        %5517 = vmatmul.bf16.gmra.mxu0 %v3162
        %v5518 = vpop.f32.mrf.mxu0
        %v5519 = vadd.f32 %v5430, %v5518
        %v5520 = vpop.f32.mrf.mxu0
        %v5521 = vadd.f32 %v5432, %v5520
        %5522 = vmatmul.bf16.gmra.mxu0 %v3166
        %v5523 = vpop.f32.mrf.mxu0
        %v5524 = vadd.f32 %v5435, %v5523
        %v5525 = vpop.f32.mrf.mxu0
        %v5526 = vadd.f32 %v5437, %v5525
        %5527 = vmatmul.bf16.gmra.mxu0 %v3170
        %v5528 = vpop.f32.mrf.mxu0
        %v5529 = vadd.f32 %v5440, %v5528
        %v5530 = vpop.f32.mrf.mxu0
        %v5531 = vadd.f32 %v5442, %v5530
        %5532 = vmatmul.bf16.gmra.mxu0 %v3174
        %v5533 = vpop.f32.mrf.mxu0
        %v5534 = vadd.f32 %v5445, %v5533
        %v5535 = vpop.f32.mrf.mxu0
        %v5536 = vadd.f32 %v5447, %v5535
        %5537 = vmatmul.bf16.gmra.mxu0 %v3178
        %v5538 = vpop.f32.mrf.mxu0
        %v5539 = vadd.f32 %v5450, %v5538
        %v5540 = vpop.f32.mrf.mxu0
        %v5541 = vadd.f32 %v5452, %v5540
        %5542 = vmatmul.bf16.gmra.mxu0 %v3182
        %v5543 = vpop.f32.mrf.mxu0
        %v5544 = vadd.f32 %v5455, %v5543
        %v5545 = vpop.f32.mrf.mxu0
        %v5546 = vadd.f32 %v5457, %v5545
        %5547 = vmatmul.bf16.gmra.mxu0 %v3186
        %v5548 = vpop.f32.mrf.mxu0
        %v5549 = vadd.f32 %v5460, %v5548
        %v5550 = vpop.f32.mrf.mxu0
        %v5551 = vadd.f32 %v5462, %v5550
        %5552 = vdwg.mxu0
        %5553 = vmatpush.bf16.msra.mxu0 %v4032
        %5554 = vmatpush.bf16.msra.mxu0 %v4024
        %5555 = vmatpush.bf16.msra.mxu0 %v4016
        %5556 = vmatpush.bf16.msra.mxu0 %v4008
        %5557 = vmatpush.bf16.msra.mxu0 %v4000
        %5558 = vmatpush.bf16.msra.mxu0 %v3992
        %5559 = vmatpush.bf16.msra.mxu0 %v3984
        %5560 = vmatpush.bf16.msra.mxu0 %v3976
        %5561 = vmatmul.bf16.gmra.mxu0 %v3123
        %v5562 = vpop.f32.mrf.mxu0
        %v5563 = vadd.f32 %v3192, %v5562
        %v5564 = vpop.f32.mrf.mxu0
        %v5565 = vadd.f32 %v3192, %v5564
        %5566 = vmatmul.bf16.gmra.mxu0 %v3127
        %v5567 = vpop.f32.mrf.mxu0
        %v5568 = vadd.f32 %v3192, %v5567
        %v5569 = vpop.f32.mrf.mxu0
        %v5570 = vadd.f32 %v3192, %v5569
        %5571 = vmatmul.bf16.gmra.mxu0 %v3131
        %v5572 = vpop.f32.mrf.mxu0
        %v5573 = vadd.f32 %v3192, %v5572
        %v5574 = vpop.f32.mrf.mxu0
        %v5575 = vadd.f32 %v3192, %v5574
        %5576 = vmatmul.bf16.gmra.mxu0 %v3135
        %v5577 = vpop.f32.mrf.mxu0
        %v5578 = vadd.f32 %v3192, %v5577
        %v5579 = vpop.f32.mrf.mxu0
        %v5580 = vadd.f32 %v3192, %v5579
        %5581 = vmatmul.bf16.gmra.mxu0 %v3139
        %v5582 = vpop.f32.mrf.mxu0
        %v5583 = vadd.f32 %v3192, %v5582
        %v5584 = vpop.f32.mrf.mxu0
        %v5585 = vadd.f32 %v3192, %v5584
        %5586 = vmatmul.bf16.gmra.mxu0 %v3143
        %v5587 = vpop.f32.mrf.mxu0
        %v5588 = vadd.f32 %v3192, %v5587
        %v5589 = vpop.f32.mrf.mxu0
        %v5590 = vadd.f32 %v3192, %v5589
        %5591 = vmatmul.bf16.gmra.mxu0 %v3147
        %v5592 = vpop.f32.mrf.mxu0
        %v5593 = vadd.f32 %v3192, %v5592
        %v5594 = vpop.f32.mrf.mxu0
        %v5595 = vadd.f32 %v3192, %v5594
        %5596 = vmatmul.bf16.gmra.mxu0 %v3151
        %v5597 = vpop.f32.mrf.mxu0
        %v5598 = vadd.f32 %v3192, %v5597
        %v5599 = vpop.f32.mrf.mxu0
        %v5600 = vadd.f32 %v3192, %v5599
        %5601 = vmatmul.bf16.gmra.mxu0 %v3155
        %v5602 = vpop.f32.mrf.mxu0
        %v5603 = vadd.f32 %v3192, %v5602
        %v5604 = vpop.f32.mrf.mxu0
        %v5605 = vadd.f32 %v3192, %v5604
        %5606 = vmatmul.bf16.gmra.mxu0 %v3159
        %v5607 = vpop.f32.mrf.mxu0
        %v5608 = vadd.f32 %v3192, %v5607
        %v5609 = vpop.f32.mrf.mxu0
        %v5610 = vadd.f32 %v3192, %v5609
        %5611 = vmatmul.bf16.gmra.mxu0 %v3163
        %v5612 = vpop.f32.mrf.mxu0
        %v5613 = vadd.f32 %v3192, %v5612
        %v5614 = vpop.f32.mrf.mxu0
        %v5615 = vadd.f32 %v3192, %v5614
        %5616 = vmatmul.bf16.gmra.mxu0 %v3167
        %v5617 = vpop.f32.mrf.mxu0
        %v5618 = vadd.f32 %v3192, %v5617
        %v5619 = vpop.f32.mrf.mxu0
        %v5620 = vadd.f32 %v3192, %v5619
        %5621 = vmatmul.bf16.gmra.mxu0 %v3171
        %v5622 = vpop.f32.mrf.mxu0
        %v5623 = vadd.f32 %v3192, %v5622
        %v5624 = vpop.f32.mrf.mxu0
        %v5625 = vadd.f32 %v3192, %v5624
        %5626 = vmatmul.bf16.gmra.mxu0 %v3175
        %v5627 = vpop.f32.mrf.mxu0
        %v5628 = vadd.f32 %v3192, %v5627
        %v5629 = vpop.f32.mrf.mxu0
        %v5630 = vadd.f32 %v3192, %v5629
        %5631 = vmatmul.bf16.gmra.mxu0 %v3179
        %v5632 = vpop.f32.mrf.mxu0
        %v5633 = vadd.f32 %v3192, %v5632
        %v5634 = vpop.f32.mrf.mxu0
        %v5635 = vadd.f32 %v3192, %v5634
        %5636 = vmatmul.bf16.gmra.mxu0 %v3183
        %v5637 = vpop.f32.mrf.mxu0
        %v5638 = vadd.f32 %v3192, %v5637
        %v5639 = vpop.f32.mrf.mxu0
        %v5640 = vadd.f32 %v3192, %v5639
        %5641 = vdwg.mxu0
        %5642 = vmatpush.bf16.msra.mxu0 %v4096
        %5643 = vmatpush.bf16.msra.mxu0 %v4088
        %5644 = vmatpush.bf16.msra.mxu0 %v4080
        %5645 = vmatpush.bf16.msra.mxu0 %v4072
        %5646 = vmatpush.bf16.msra.mxu0 %v4064
        %5647 = vmatpush.bf16.msra.mxu0 %v4056
        %5648 = vmatpush.bf16.msra.mxu0 %v4048
        %5649 = vmatpush.bf16.msra.mxu0 %v4040
        %5650 = vmatmul.bf16.gmra.mxu0 %v3124
        %v5651 = vpop.f32.mrf.mxu0
        %v5652 = vadd.f32 %v5563, %v5651
        %v5653 = vpop.f32.mrf.mxu0
        %v5654 = vadd.f32 %v5565, %v5653
        %5655 = vmatmul.bf16.gmra.mxu0 %v3128
        %v5656 = vpop.f32.mrf.mxu0
        %v5657 = vadd.f32 %v5568, %v5656
        %v5658 = vpop.f32.mrf.mxu0
        %v5659 = vadd.f32 %v5570, %v5658
        %5660 = vmatmul.bf16.gmra.mxu0 %v3132
        %v5661 = vpop.f32.mrf.mxu0
        %v5662 = vadd.f32 %v5573, %v5661
        %v5663 = vpop.f32.mrf.mxu0
        %v5664 = vadd.f32 %v5575, %v5663
        %5665 = vmatmul.bf16.gmra.mxu0 %v3136
        %v5666 = vpop.f32.mrf.mxu0
        %v5667 = vadd.f32 %v5578, %v5666
        %v5668 = vpop.f32.mrf.mxu0
        %v5669 = vadd.f32 %v5580, %v5668
        %5670 = vmatmul.bf16.gmra.mxu0 %v3140
        %v5671 = vpop.f32.mrf.mxu0
        %v5672 = vadd.f32 %v5583, %v5671
        %v5673 = vpop.f32.mrf.mxu0
        %v5674 = vadd.f32 %v5585, %v5673
        %5675 = vmatmul.bf16.gmra.mxu0 %v3144
        %v5676 = vpop.f32.mrf.mxu0
        %v5677 = vadd.f32 %v5588, %v5676
        %v5678 = vpop.f32.mrf.mxu0
        %v5679 = vadd.f32 %v5590, %v5678
        %5680 = vmatmul.bf16.gmra.mxu0 %v3148
        %v5681 = vpop.f32.mrf.mxu0
        %v5682 = vadd.f32 %v5593, %v5681
        %v5683 = vpop.f32.mrf.mxu0
        %v5684 = vadd.f32 %v5595, %v5683
        %5685 = vmatmul.bf16.gmra.mxu0 %v3152
        %v5686 = vpop.f32.mrf.mxu0
        %v5687 = vadd.f32 %v5598, %v5686
        %v5688 = vpop.f32.mrf.mxu0
        %v5689 = vadd.f32 %v5600, %v5688
        %5690 = vmatmul.bf16.gmra.mxu0 %v3156
        %v5691 = vpop.f32.mrf.mxu0
        %v5692 = vadd.f32 %v5603, %v5691
        %v5693 = vpop.f32.mrf.mxu0
        %v5694 = vadd.f32 %v5605, %v5693
        %5695 = vmatmul.bf16.gmra.mxu0 %v3160
        %v5696 = vpop.f32.mrf.mxu0
        %v5697 = vadd.f32 %v5608, %v5696
        %v5698 = vpop.f32.mrf.mxu0
        %v5699 = vadd.f32 %v5610, %v5698
        %5700 = vmatmul.bf16.gmra.mxu0 %v3164
        %v5701 = vpop.f32.mrf.mxu0
        %v5702 = vadd.f32 %v5613, %v5701
        %v5703 = vpop.f32.mrf.mxu0
        %v5704 = vadd.f32 %v5615, %v5703
        %5705 = vmatmul.bf16.gmra.mxu0 %v3168
        %v5706 = vpop.f32.mrf.mxu0
        %v5707 = vadd.f32 %v5618, %v5706
        %v5708 = vpop.f32.mrf.mxu0
        %v5709 = vadd.f32 %v5620, %v5708
        %5710 = vmatmul.bf16.gmra.mxu0 %v3172
        %v5711 = vpop.f32.mrf.mxu0
        %v5712 = vadd.f32 %v5623, %v5711
        %v5713 = vpop.f32.mrf.mxu0
        %v5714 = vadd.f32 %v5625, %v5713
        %5715 = vmatmul.bf16.gmra.mxu0 %v3176
        %v5716 = vpop.f32.mrf.mxu0
        %v5717 = vadd.f32 %v5628, %v5716
        %v5718 = vpop.f32.mrf.mxu0
        %v5719 = vadd.f32 %v5630, %v5718
        %5720 = vmatmul.bf16.gmra.mxu0 %v3180
        %v5721 = vpop.f32.mrf.mxu0
        %v5722 = vadd.f32 %v5633, %v5721
        %v5723 = vpop.f32.mrf.mxu0
        %v5724 = vadd.f32 %v5635, %v5723
        %5725 = vmatmul.bf16.gmra.mxu0 %v3184
        %v5726 = vpop.f32.mrf.mxu0
        %v5727 = vadd.f32 %v5638, %v5726
        %v5728 = vpop.f32.mrf.mxu0
        %v5729 = vadd.f32 %v5640, %v5728
        %5730 = vdwg.mxu0
        %5731 = vmatpush.bf16.msra.mxu0 %v4160
        %5732 = vmatpush.bf16.msra.mxu0 %v4152
        %5733 = vmatpush.bf16.msra.mxu0 %v4144
        %5734 = vmatpush.bf16.msra.mxu0 %v4136
        %5735 = vmatpush.bf16.msra.mxu0 %v4128
        %5736 = vmatpush.bf16.msra.mxu0 %v4120
        %5737 = vmatpush.bf16.msra.mxu0 %v4112
        %5738 = vmatpush.bf16.msra.mxu0 %v4104
        %5739 = vmatmul.bf16.gmra.mxu0 %v3125
        %v5740 = vpop.f32.mrf.mxu0
        %v5741 = vadd.f32 %v5652, %v5740
        %v5742 = vpop.f32.mrf.mxu0
        %v5743 = vadd.f32 %v5654, %v5742
        %5744 = vmatmul.bf16.gmra.mxu0 %v3129
        %v5745 = vpop.f32.mrf.mxu0
        %v5746 = vadd.f32 %v5657, %v5745
        %v5747 = vpop.f32.mrf.mxu0
        %v5748 = vadd.f32 %v5659, %v5747
        %5749 = vmatmul.bf16.gmra.mxu0 %v3133
        %v5750 = vpop.f32.mrf.mxu0
        %v5751 = vadd.f32 %v5662, %v5750
        %v5752 = vpop.f32.mrf.mxu0
        %v5753 = vadd.f32 %v5664, %v5752
        %5754 = vmatmul.bf16.gmra.mxu0 %v3137
        %v5755 = vpop.f32.mrf.mxu0
        %v5756 = vadd.f32 %v5667, %v5755
        %v5757 = vpop.f32.mrf.mxu0
        %v5758 = vadd.f32 %v5669, %v5757
        %5759 = vmatmul.bf16.gmra.mxu0 %v3141
        %v5760 = vpop.f32.mrf.mxu0
        %v5761 = vadd.f32 %v5672, %v5760
        %v5762 = vpop.f32.mrf.mxu0
        %v5763 = vadd.f32 %v5674, %v5762
        %5764 = vmatmul.bf16.gmra.mxu0 %v3145
        %v5765 = vpop.f32.mrf.mxu0
        %v5766 = vadd.f32 %v5677, %v5765
        %v5767 = vpop.f32.mrf.mxu0
        %v5768 = vadd.f32 %v5679, %v5767
        %5769 = vmatmul.bf16.gmra.mxu0 %v3149
        %v5770 = vpop.f32.mrf.mxu0
        %v5771 = vadd.f32 %v5682, %v5770
        %v5772 = vpop.f32.mrf.mxu0
        %v5773 = vadd.f32 %v5684, %v5772
        %5774 = vmatmul.bf16.gmra.mxu0 %v3153
        %v5775 = vpop.f32.mrf.mxu0
        %v5776 = vadd.f32 %v5687, %v5775
        %v5777 = vpop.f32.mrf.mxu0
        %v5778 = vadd.f32 %v5689, %v5777
        %5779 = vmatmul.bf16.gmra.mxu0 %v3157
        %v5780 = vpop.f32.mrf.mxu0
        %v5781 = vadd.f32 %v5692, %v5780
        %v5782 = vpop.f32.mrf.mxu0
        %v5783 = vadd.f32 %v5694, %v5782
        %5784 = vmatmul.bf16.gmra.mxu0 %v3161
        %v5785 = vpop.f32.mrf.mxu0
        %v5786 = vadd.f32 %v5697, %v5785
        %v5787 = vpop.f32.mrf.mxu0
        %v5788 = vadd.f32 %v5699, %v5787
        %5789 = vmatmul.bf16.gmra.mxu0 %v3165
        %v5790 = vpop.f32.mrf.mxu0
        %v5791 = vadd.f32 %v5702, %v5790
        %v5792 = vpop.f32.mrf.mxu0
        %v5793 = vadd.f32 %v5704, %v5792
        %5794 = vmatmul.bf16.gmra.mxu0 %v3169
        %v5795 = vpop.f32.mrf.mxu0
        %v5796 = vadd.f32 %v5707, %v5795
        %v5797 = vpop.f32.mrf.mxu0
        %v5798 = vadd.f32 %v5709, %v5797
        %5799 = vmatmul.bf16.gmra.mxu0 %v3173
        %v5800 = vpop.f32.mrf.mxu0
        %v5801 = vadd.f32 %v5712, %v5800
        %v5802 = vpop.f32.mrf.mxu0
        %v5803 = vadd.f32 %v5714, %v5802
        %5804 = vmatmul.bf16.gmra.mxu0 %v3177
        %v5805 = vpop.f32.mrf.mxu0
        %v5806 = vadd.f32 %v5717, %v5805
        %v5807 = vpop.f32.mrf.mxu0
        %v5808 = vadd.f32 %v5719, %v5807
        %5809 = vmatmul.bf16.gmra.mxu0 %v3181
        %v5810 = vpop.f32.mrf.mxu0
        %v5811 = vadd.f32 %v5722, %v5810
        %v5812 = vpop.f32.mrf.mxu0
        %v5813 = vadd.f32 %v5724, %v5812
        %5814 = vmatmul.bf16.gmra.mxu0 %v3185
        %v5815 = vpop.f32.mrf.mxu0
        %v5816 = vadd.f32 %v5727, %v5815
        %v5817 = vpop.f32.mrf.mxu0
        %v5818 = vadd.f32 %v5729, %v5817
        %5819 = vdwg.mxu0
        %5820 = vmatpush.bf16.msra.mxu0 %v4224
        %5821 = vmatpush.bf16.msra.mxu0 %v4216
        %5822 = vmatpush.bf16.msra.mxu0 %v4208
        %5823 = vmatpush.bf16.msra.mxu0 %v4200
        %5824 = vmatpush.bf16.msra.mxu0 %v4192
        %5825 = vmatpush.bf16.msra.mxu0 %v4184
        %5826 = vmatpush.bf16.msra.mxu0 %v4176
        %5827 = vmatpush.bf16.msra.mxu0 %v4168
        %5828 = vmatmul.bf16.gmra.mxu0 %v3126
        %v5829 = vpop.f32.mrf.mxu0
        %v5830 = vadd.f32 %v5741, %v5829
        %v5831 = vpop.f32.mrf.mxu0
        %v5832 = vadd.f32 %v5743, %v5831
        %5833 = vmatmul.bf16.gmra.mxu0 %v3130
        %v5834 = vpop.f32.mrf.mxu0
        %v5835 = vadd.f32 %v5746, %v5834
        %v5836 = vpop.f32.mrf.mxu0
        %v5837 = vadd.f32 %v5748, %v5836
        %5838 = vmatmul.bf16.gmra.mxu0 %v3134
        %v5839 = vpop.f32.mrf.mxu0
        %v5840 = vadd.f32 %v5751, %v5839
        %v5841 = vpop.f32.mrf.mxu0
        %v5842 = vadd.f32 %v5753, %v5841
        %5843 = vmatmul.bf16.gmra.mxu0 %v3138
        %v5844 = vpop.f32.mrf.mxu0
        %v5845 = vadd.f32 %v5756, %v5844
        %v5846 = vpop.f32.mrf.mxu0
        %v5847 = vadd.f32 %v5758, %v5846
        %5848 = vmatmul.bf16.gmra.mxu0 %v3142
        %v5849 = vpop.f32.mrf.mxu0
        %v5850 = vadd.f32 %v5761, %v5849
        %v5851 = vpop.f32.mrf.mxu0
        %v5852 = vadd.f32 %v5763, %v5851
        %5853 = vmatmul.bf16.gmra.mxu0 %v3146
        %v5854 = vpop.f32.mrf.mxu0
        %v5855 = vadd.f32 %v5766, %v5854
        %v5856 = vpop.f32.mrf.mxu0
        %v5857 = vadd.f32 %v5768, %v5856
        %5858 = vmatmul.bf16.gmra.mxu0 %v3150
        %v5859 = vpop.f32.mrf.mxu0
        %v5860 = vadd.f32 %v5771, %v5859
        %v5861 = vpop.f32.mrf.mxu0
        %v5862 = vadd.f32 %v5773, %v5861
        %5863 = vmatmul.bf16.gmra.mxu0 %v3154
        %v5864 = vpop.f32.mrf.mxu0
        %v5865 = vadd.f32 %v5776, %v5864
        %v5866 = vpop.f32.mrf.mxu0
        %v5867 = vadd.f32 %v5778, %v5866
        %5868 = vmatmul.bf16.gmra.mxu0 %v3158
        %v5869 = vpop.f32.mrf.mxu0
        %v5870 = vadd.f32 %v5781, %v5869
        %v5871 = vpop.f32.mrf.mxu0
        %v5872 = vadd.f32 %v5783, %v5871
        %5873 = vmatmul.bf16.gmra.mxu0 %v3162
        %v5874 = vpop.f32.mrf.mxu0
        %v5875 = vadd.f32 %v5786, %v5874
        %v5876 = vpop.f32.mrf.mxu0
        %v5877 = vadd.f32 %v5788, %v5876
        %5878 = vmatmul.bf16.gmra.mxu0 %v3166
        %v5879 = vpop.f32.mrf.mxu0
        %v5880 = vadd.f32 %v5791, %v5879
        %v5881 = vpop.f32.mrf.mxu0
        %v5882 = vadd.f32 %v5793, %v5881
        %5883 = vmatmul.bf16.gmra.mxu0 %v3170
        %v5884 = vpop.f32.mrf.mxu0
        %v5885 = vadd.f32 %v5796, %v5884
        %v5886 = vpop.f32.mrf.mxu0
        %v5887 = vadd.f32 %v5798, %v5886
        %5888 = vmatmul.bf16.gmra.mxu0 %v3174
        %v5889 = vpop.f32.mrf.mxu0
        %v5890 = vadd.f32 %v5801, %v5889
        %v5891 = vpop.f32.mrf.mxu0
        %v5892 = vadd.f32 %v5803, %v5891
        %5893 = vmatmul.bf16.gmra.mxu0 %v3178
        %v5894 = vpop.f32.mrf.mxu0
        %v5895 = vadd.f32 %v5806, %v5894
        %v5896 = vpop.f32.mrf.mxu0
        %v5897 = vadd.f32 %v5808, %v5896
        %5898 = vmatmul.bf16.gmra.mxu0 %v3182
        %v5899 = vpop.f32.mrf.mxu0
        %v5900 = vadd.f32 %v5811, %v5899
        %v5901 = vpop.f32.mrf.mxu0
        %v5902 = vadd.f32 %v5813, %v5901
        %5903 = vmatmul.bf16.gmra.mxu0 %v3186
        %v5904 = vpop.f32.mrf.mxu0
        %v5905 = vadd.f32 %v5816, %v5904
        %v5906 = vpop.f32.mrf.mxu0
        %v5907 = vadd.f32 %v5818, %v5906
        %5908 = vdwg.mxu0
        %5909 = vmatpush.bf16.msra.mxu0 %v4033
        %5910 = vmatpush.bf16.msra.mxu0 %v4025
        %5911 = vmatpush.bf16.msra.mxu0 %v4017
        %5912 = vmatpush.bf16.msra.mxu0 %v4009
        %5913 = vmatpush.bf16.msra.mxu0 %v4001
        %5914 = vmatpush.bf16.msra.mxu0 %v3993
        %5915 = vmatpush.bf16.msra.mxu0 %v3985
        %5916 = vmatpush.bf16.msra.mxu0 %v3977
        %5917 = vmatmul.bf16.gmra.mxu0 %v3123
        %v5918 = vpop.f32.mrf.mxu0
        %v5919 = vadd.f32 %v3193, %v5918
        %v5920 = vpop.f32.mrf.mxu0
        %v5921 = vadd.f32 %v3193, %v5920
        %5922 = vmatmul.bf16.gmra.mxu0 %v3127
        %v5923 = vpop.f32.mrf.mxu0
        %v5924 = vadd.f32 %v3193, %v5923
        %v5925 = vpop.f32.mrf.mxu0
        %v5926 = vadd.f32 %v3193, %v5925
        %5927 = vmatmul.bf16.gmra.mxu0 %v3131
        %v5928 = vpop.f32.mrf.mxu0
        %v5929 = vadd.f32 %v3193, %v5928
        %v5930 = vpop.f32.mrf.mxu0
        %v5931 = vadd.f32 %v3193, %v5930
        %5932 = vmatmul.bf16.gmra.mxu0 %v3135
        %v5933 = vpop.f32.mrf.mxu0
        %v5934 = vadd.f32 %v3193, %v5933
        %v5935 = vpop.f32.mrf.mxu0
        %v5936 = vadd.f32 %v3193, %v5935
        %5937 = vmatmul.bf16.gmra.mxu0 %v3139
        %v5938 = vpop.f32.mrf.mxu0
        %v5939 = vadd.f32 %v3193, %v5938
        %v5940 = vpop.f32.mrf.mxu0
        %v5941 = vadd.f32 %v3193, %v5940
        %5942 = vmatmul.bf16.gmra.mxu0 %v3143
        %v5943 = vpop.f32.mrf.mxu0
        %v5944 = vadd.f32 %v3193, %v5943
        %v5945 = vpop.f32.mrf.mxu0
        %v5946 = vadd.f32 %v3193, %v5945
        %5947 = vmatmul.bf16.gmra.mxu0 %v3147
        %v5948 = vpop.f32.mrf.mxu0
        %v5949 = vadd.f32 %v3193, %v5948
        %v5950 = vpop.f32.mrf.mxu0
        %v5951 = vadd.f32 %v3193, %v5950
        %5952 = vmatmul.bf16.gmra.mxu0 %v3151
        %v5953 = vpop.f32.mrf.mxu0
        %v5954 = vadd.f32 %v3193, %v5953
        %v5955 = vpop.f32.mrf.mxu0
        %v5956 = vadd.f32 %v3193, %v5955
        %5957 = vmatmul.bf16.gmra.mxu0 %v3155
        %v5958 = vpop.f32.mrf.mxu0
        %v5959 = vadd.f32 %v3193, %v5958
        %v5960 = vpop.f32.mrf.mxu0
        %v5961 = vadd.f32 %v3193, %v5960
        %5962 = vmatmul.bf16.gmra.mxu0 %v3159
        %v5963 = vpop.f32.mrf.mxu0
        %v5964 = vadd.f32 %v3193, %v5963
        %v5965 = vpop.f32.mrf.mxu0
        %v5966 = vadd.f32 %v3193, %v5965
        %5967 = vmatmul.bf16.gmra.mxu0 %v3163
        %v5968 = vpop.f32.mrf.mxu0
        %v5969 = vadd.f32 %v3193, %v5968
        %v5970 = vpop.f32.mrf.mxu0
        %v5971 = vadd.f32 %v3193, %v5970
        %5972 = vmatmul.bf16.gmra.mxu0 %v3167
        %v5973 = vpop.f32.mrf.mxu0
        %v5974 = vadd.f32 %v3193, %v5973
        %v5975 = vpop.f32.mrf.mxu0
        %v5976 = vadd.f32 %v3193, %v5975
        %5977 = vmatmul.bf16.gmra.mxu0 %v3171
        %v5978 = vpop.f32.mrf.mxu0
        %v5979 = vadd.f32 %v3193, %v5978
        %v5980 = vpop.f32.mrf.mxu0
        %v5981 = vadd.f32 %v3193, %v5980
        %5982 = vmatmul.bf16.gmra.mxu0 %v3175
        %v5983 = vpop.f32.mrf.mxu0
        %v5984 = vadd.f32 %v3193, %v5983
        %v5985 = vpop.f32.mrf.mxu0
        %v5986 = vadd.f32 %v3193, %v5985
        %5987 = vmatmul.bf16.gmra.mxu0 %v3179
        %v5988 = vpop.f32.mrf.mxu0
        %v5989 = vadd.f32 %v3193, %v5988
        %v5990 = vpop.f32.mrf.mxu0
        %v5991 = vadd.f32 %v3193, %v5990
        %5992 = vmatmul.bf16.gmra.mxu0 %v3183
        %v5993 = vpop.f32.mrf.mxu0
        %v5994 = vadd.f32 %v3193, %v5993
        %v5995 = vpop.f32.mrf.mxu0
        %v5996 = vadd.f32 %v3193, %v5995
        %5997 = vdwg.mxu0
        %5998 = vmatpush.bf16.msra.mxu0 %v4097
        %5999 = vmatpush.bf16.msra.mxu0 %v4089
        %6000 = vmatpush.bf16.msra.mxu0 %v4081
        %6001 = vmatpush.bf16.msra.mxu0 %v4073
        %6002 = vmatpush.bf16.msra.mxu0 %v4065
        %6003 = vmatpush.bf16.msra.mxu0 %v4057
        %6004 = vmatpush.bf16.msra.mxu0 %v4049
        %6005 = vmatpush.bf16.msra.mxu0 %v4041
        %6006 = vmatmul.bf16.gmra.mxu0 %v3124
        %v6007 = vpop.f32.mrf.mxu0
        %v6008 = vadd.f32 %v5919, %v6007
        %v6009 = vpop.f32.mrf.mxu0
        %v6010 = vadd.f32 %v5921, %v6009
        %6011 = vmatmul.bf16.gmra.mxu0 %v3128
        %v6012 = vpop.f32.mrf.mxu0
        %v6013 = vadd.f32 %v5924, %v6012
        %v6014 = vpop.f32.mrf.mxu0
        %v6015 = vadd.f32 %v5926, %v6014
        %6016 = vmatmul.bf16.gmra.mxu0 %v3132
        %v6017 = vpop.f32.mrf.mxu0
        %v6018 = vadd.f32 %v5929, %v6017
        %v6019 = vpop.f32.mrf.mxu0
        %v6020 = vadd.f32 %v5931, %v6019
        %6021 = vmatmul.bf16.gmra.mxu0 %v3136
        %v6022 = vpop.f32.mrf.mxu0
        %v6023 = vadd.f32 %v5934, %v6022
        %v6024 = vpop.f32.mrf.mxu0
        %v6025 = vadd.f32 %v5936, %v6024
        %6026 = vmatmul.bf16.gmra.mxu0 %v3140
        %v6027 = vpop.f32.mrf.mxu0
        %v6028 = vadd.f32 %v5939, %v6027
        %v6029 = vpop.f32.mrf.mxu0
        %v6030 = vadd.f32 %v5941, %v6029
        %6031 = vmatmul.bf16.gmra.mxu0 %v3144
        %v6032 = vpop.f32.mrf.mxu0
        %v6033 = vadd.f32 %v5944, %v6032
        %v6034 = vpop.f32.mrf.mxu0
        %v6035 = vadd.f32 %v5946, %v6034
        %6036 = vmatmul.bf16.gmra.mxu0 %v3148
        %v6037 = vpop.f32.mrf.mxu0
        %v6038 = vadd.f32 %v5949, %v6037
        %v6039 = vpop.f32.mrf.mxu0
        %v6040 = vadd.f32 %v5951, %v6039
        %6041 = vmatmul.bf16.gmra.mxu0 %v3152
        %v6042 = vpop.f32.mrf.mxu0
        %v6043 = vadd.f32 %v5954, %v6042
        %v6044 = vpop.f32.mrf.mxu0
        %v6045 = vadd.f32 %v5956, %v6044
        %6046 = vmatmul.bf16.gmra.mxu0 %v3156
        %v6047 = vpop.f32.mrf.mxu0
        %v6048 = vadd.f32 %v5959, %v6047
        %v6049 = vpop.f32.mrf.mxu0
        %v6050 = vadd.f32 %v5961, %v6049
        %6051 = vmatmul.bf16.gmra.mxu0 %v3160
        %v6052 = vpop.f32.mrf.mxu0
        %v6053 = vadd.f32 %v5964, %v6052
        %v6054 = vpop.f32.mrf.mxu0
        %v6055 = vadd.f32 %v5966, %v6054
        %6056 = vmatmul.bf16.gmra.mxu0 %v3164
        %v6057 = vpop.f32.mrf.mxu0
        %v6058 = vadd.f32 %v5969, %v6057
        %v6059 = vpop.f32.mrf.mxu0
        %v6060 = vadd.f32 %v5971, %v6059
        %6061 = vmatmul.bf16.gmra.mxu0 %v3168
        %v6062 = vpop.f32.mrf.mxu0
        %v6063 = vadd.f32 %v5974, %v6062
        %v6064 = vpop.f32.mrf.mxu0
        %v6065 = vadd.f32 %v5976, %v6064
        %6066 = vmatmul.bf16.gmra.mxu0 %v3172
        %v6067 = vpop.f32.mrf.mxu0
        %v6068 = vadd.f32 %v5979, %v6067
        %v6069 = vpop.f32.mrf.mxu0
        %v6070 = vadd.f32 %v5981, %v6069
        %6071 = vmatmul.bf16.gmra.mxu0 %v3176
        %v6072 = vpop.f32.mrf.mxu0
        %v6073 = vadd.f32 %v5984, %v6072
        %v6074 = vpop.f32.mrf.mxu0
        %v6075 = vadd.f32 %v5986, %v6074
        %6076 = vmatmul.bf16.gmra.mxu0 %v3180
        %v6077 = vpop.f32.mrf.mxu0
        %v6078 = vadd.f32 %v5989, %v6077
        %v6079 = vpop.f32.mrf.mxu0
        %v6080 = vadd.f32 %v5991, %v6079
        %6081 = vmatmul.bf16.gmra.mxu0 %v3184
        %v6082 = vpop.f32.mrf.mxu0
        %v6083 = vadd.f32 %v5994, %v6082
        %v6084 = vpop.f32.mrf.mxu0
        %v6085 = vadd.f32 %v5996, %v6084
        %6086 = vdwg.mxu0
        %6087 = vmatpush.bf16.msra.mxu0 %v4161
        %6088 = vmatpush.bf16.msra.mxu0 %v4153
        %6089 = vmatpush.bf16.msra.mxu0 %v4145
        %6090 = vmatpush.bf16.msra.mxu0 %v4137
        %6091 = vmatpush.bf16.msra.mxu0 %v4129
        %6092 = vmatpush.bf16.msra.mxu0 %v4121
        %6093 = vmatpush.bf16.msra.mxu0 %v4113
        %6094 = vmatpush.bf16.msra.mxu0 %v4105
        %6095 = vmatmul.bf16.gmra.mxu0 %v3125
        %v6096 = vpop.f32.mrf.mxu0
        %v6097 = vadd.f32 %v6008, %v6096
        %v6098 = vpop.f32.mrf.mxu0
        %v6099 = vadd.f32 %v6010, %v6098
        %6100 = vmatmul.bf16.gmra.mxu0 %v3129
        %v6101 = vpop.f32.mrf.mxu0
        %v6102 = vadd.f32 %v6013, %v6101
        %v6103 = vpop.f32.mrf.mxu0
        %v6104 = vadd.f32 %v6015, %v6103
        %6105 = vmatmul.bf16.gmra.mxu0 %v3133
        %v6106 = vpop.f32.mrf.mxu0
        %v6107 = vadd.f32 %v6018, %v6106
        %v6108 = vpop.f32.mrf.mxu0
        %v6109 = vadd.f32 %v6020, %v6108
        %6110 = vmatmul.bf16.gmra.mxu0 %v3137
        %v6111 = vpop.f32.mrf.mxu0
        %v6112 = vadd.f32 %v6023, %v6111
        %v6113 = vpop.f32.mrf.mxu0
        %v6114 = vadd.f32 %v6025, %v6113
        %6115 = vmatmul.bf16.gmra.mxu0 %v3141
        %v6116 = vpop.f32.mrf.mxu0
        %v6117 = vadd.f32 %v6028, %v6116
        %v6118 = vpop.f32.mrf.mxu0
        %v6119 = vadd.f32 %v6030, %v6118
        %6120 = vmatmul.bf16.gmra.mxu0 %v3145
        %v6121 = vpop.f32.mrf.mxu0
        %v6122 = vadd.f32 %v6033, %v6121
        %v6123 = vpop.f32.mrf.mxu0
        %v6124 = vadd.f32 %v6035, %v6123
        %6125 = vmatmul.bf16.gmra.mxu0 %v3149
        %v6126 = vpop.f32.mrf.mxu0
        %v6127 = vadd.f32 %v6038, %v6126
        %v6128 = vpop.f32.mrf.mxu0
        %v6129 = vadd.f32 %v6040, %v6128
        %6130 = vmatmul.bf16.gmra.mxu0 %v3153
        %v6131 = vpop.f32.mrf.mxu0
        %v6132 = vadd.f32 %v6043, %v6131
        %v6133 = vpop.f32.mrf.mxu0
        %v6134 = vadd.f32 %v6045, %v6133
        %6135 = vmatmul.bf16.gmra.mxu0 %v3157
        %v6136 = vpop.f32.mrf.mxu0
        %v6137 = vadd.f32 %v6048, %v6136
        %v6138 = vpop.f32.mrf.mxu0
        %v6139 = vadd.f32 %v6050, %v6138
        %6140 = vmatmul.bf16.gmra.mxu0 %v3161
        %v6141 = vpop.f32.mrf.mxu0
        %v6142 = vadd.f32 %v6053, %v6141
        %v6143 = vpop.f32.mrf.mxu0
        %v6144 = vadd.f32 %v6055, %v6143
        %6145 = vmatmul.bf16.gmra.mxu0 %v3165
        %v6146 = vpop.f32.mrf.mxu0
        %v6147 = vadd.f32 %v6058, %v6146
        %v6148 = vpop.f32.mrf.mxu0
        %v6149 = vadd.f32 %v6060, %v6148
        %6150 = vmatmul.bf16.gmra.mxu0 %v3169
        %v6151 = vpop.f32.mrf.mxu0
        %v6152 = vadd.f32 %v6063, %v6151
        %v6153 = vpop.f32.mrf.mxu0
        %v6154 = vadd.f32 %v6065, %v6153
        %6155 = vmatmul.bf16.gmra.mxu0 %v3173
        %v6156 = vpop.f32.mrf.mxu0
        %v6157 = vadd.f32 %v6068, %v6156
        %v6158 = vpop.f32.mrf.mxu0
        %v6159 = vadd.f32 %v6070, %v6158
        %6160 = vmatmul.bf16.gmra.mxu0 %v3177
        %v6161 = vpop.f32.mrf.mxu0
        %v6162 = vadd.f32 %v6073, %v6161
        %v6163 = vpop.f32.mrf.mxu0
        %v6164 = vadd.f32 %v6075, %v6163
        %6165 = vmatmul.bf16.gmra.mxu0 %v3181
        %v6166 = vpop.f32.mrf.mxu0
        %v6167 = vadd.f32 %v6078, %v6166
        %v6168 = vpop.f32.mrf.mxu0
        %v6169 = vadd.f32 %v6080, %v6168
        %6170 = vmatmul.bf16.gmra.mxu0 %v3185
        %v6171 = vpop.f32.mrf.mxu0
        %v6172 = vadd.f32 %v6083, %v6171
        %v6173 = vpop.f32.mrf.mxu0
        %v6174 = vadd.f32 %v6085, %v6173
        %6175 = vdwg.mxu0
        %6176 = vmatpush.bf16.msra.mxu0 %v4225
        %6177 = vmatpush.bf16.msra.mxu0 %v4217
        %6178 = vmatpush.bf16.msra.mxu0 %v4209
        %6179 = vmatpush.bf16.msra.mxu0 %v4201
        %6180 = vmatpush.bf16.msra.mxu0 %v4193
        %6181 = vmatpush.bf16.msra.mxu0 %v4185
        %6182 = vmatpush.bf16.msra.mxu0 %v4177
        %6183 = vmatpush.bf16.msra.mxu0 %v4169
        %6184 = vmatmul.bf16.gmra.mxu0 %v3126
        %v6185 = vpop.f32.mrf.mxu0
        %v6186 = vadd.f32 %v6097, %v6185
        %v6187 = vpop.f32.mrf.mxu0
        %v6188 = vadd.f32 %v6099, %v6187
        %6189 = vmatmul.bf16.gmra.mxu0 %v3130
        %v6190 = vpop.f32.mrf.mxu0
        %v6191 = vadd.f32 %v6102, %v6190
        %v6192 = vpop.f32.mrf.mxu0
        %v6193 = vadd.f32 %v6104, %v6192
        %6194 = vmatmul.bf16.gmra.mxu0 %v3134
        %v6195 = vpop.f32.mrf.mxu0
        %v6196 = vadd.f32 %v6107, %v6195
        %v6197 = vpop.f32.mrf.mxu0
        %v6198 = vadd.f32 %v6109, %v6197
        %6199 = vmatmul.bf16.gmra.mxu0 %v3138
        %v6200 = vpop.f32.mrf.mxu0
        %v6201 = vadd.f32 %v6112, %v6200
        %v6202 = vpop.f32.mrf.mxu0
        %v6203 = vadd.f32 %v6114, %v6202
        %6204 = vmatmul.bf16.gmra.mxu0 %v3142
        %v6205 = vpop.f32.mrf.mxu0
        %v6206 = vadd.f32 %v6117, %v6205
        %v6207 = vpop.f32.mrf.mxu0
        %v6208 = vadd.f32 %v6119, %v6207
        %6209 = vmatmul.bf16.gmra.mxu0 %v3146
        %v6210 = vpop.f32.mrf.mxu0
        %v6211 = vadd.f32 %v6122, %v6210
        %v6212 = vpop.f32.mrf.mxu0
        %v6213 = vadd.f32 %v6124, %v6212
        %6214 = vmatmul.bf16.gmra.mxu0 %v3150
        %v6215 = vpop.f32.mrf.mxu0
        %v6216 = vadd.f32 %v6127, %v6215
        %v6217 = vpop.f32.mrf.mxu0
        %v6218 = vadd.f32 %v6129, %v6217
        %6219 = vmatmul.bf16.gmra.mxu0 %v3154
        %v6220 = vpop.f32.mrf.mxu0
        %v6221 = vadd.f32 %v6132, %v6220
        %v6222 = vpop.f32.mrf.mxu0
        %v6223 = vadd.f32 %v6134, %v6222
        %6224 = vmatmul.bf16.gmra.mxu0 %v3158
        %v6225 = vpop.f32.mrf.mxu0
        %v6226 = vadd.f32 %v6137, %v6225
        %v6227 = vpop.f32.mrf.mxu0
        %v6228 = vadd.f32 %v6139, %v6227
        %6229 = vmatmul.bf16.gmra.mxu0 %v3162
        %v6230 = vpop.f32.mrf.mxu0
        %v6231 = vadd.f32 %v6142, %v6230
        %v6232 = vpop.f32.mrf.mxu0
        %v6233 = vadd.f32 %v6144, %v6232
        %6234 = vmatmul.bf16.gmra.mxu0 %v3166
        %v6235 = vpop.f32.mrf.mxu0
        %v6236 = vadd.f32 %v6147, %v6235
        %v6237 = vpop.f32.mrf.mxu0
        %v6238 = vadd.f32 %v6149, %v6237
        %6239 = vmatmul.bf16.gmra.mxu0 %v3170
        %v6240 = vpop.f32.mrf.mxu0
        %v6241 = vadd.f32 %v6152, %v6240
        %v6242 = vpop.f32.mrf.mxu0
        %v6243 = vadd.f32 %v6154, %v6242
        %6244 = vmatmul.bf16.gmra.mxu0 %v3174
        %v6245 = vpop.f32.mrf.mxu0
        %v6246 = vadd.f32 %v6157, %v6245
        %v6247 = vpop.f32.mrf.mxu0
        %v6248 = vadd.f32 %v6159, %v6247
        %6249 = vmatmul.bf16.gmra.mxu0 %v3178
        %v6250 = vpop.f32.mrf.mxu0
        %v6251 = vadd.f32 %v6162, %v6250
        %v6252 = vpop.f32.mrf.mxu0
        %v6253 = vadd.f32 %v6164, %v6252
        %6254 = vmatmul.bf16.gmra.mxu0 %v3182
        %v6255 = vpop.f32.mrf.mxu0
        %v6256 = vadd.f32 %v6167, %v6255
        %v6257 = vpop.f32.mrf.mxu0
        %v6258 = vadd.f32 %v6169, %v6257
        %6259 = vmatmul.bf16.gmra.mxu0 %v3186
        %v6260 = vpop.f32.mrf.mxu0
        %v6261 = vadd.f32 %v6172, %v6260
        %v6262 = vpop.f32.mrf.mxu0
        %v6263 = vadd.f32 %v6174, %v6262
        %6264 = vdwg.mxu0
        %6265 = vmatpush.bf16.msra.mxu0 %v4034
        %6266 = vmatpush.bf16.msra.mxu0 %v4026
        %6267 = vmatpush.bf16.msra.mxu0 %v4018
        %6268 = vmatpush.bf16.msra.mxu0 %v4010
        %6269 = vmatpush.bf16.msra.mxu0 %v4002
        %6270 = vmatpush.bf16.msra.mxu0 %v3994
        %6271 = vmatpush.bf16.msra.mxu0 %v3986
        %6272 = vmatpush.bf16.msra.mxu0 %v3978
        %6273 = vmatmul.bf16.gmra.mxu0 %v3123
        %v6274 = vpop.f32.mrf.mxu0
        %v6275 = vadd.f32 %v3194, %v6274
        %v6276 = vpop.f32.mrf.mxu0
        %v6277 = vadd.f32 %v3194, %v6276
        %6278 = vmatmul.bf16.gmra.mxu0 %v3127
        %v6279 = vpop.f32.mrf.mxu0
        %v6280 = vadd.f32 %v3194, %v6279
        %v6281 = vpop.f32.mrf.mxu0
        %v6282 = vadd.f32 %v3194, %v6281
        %6283 = vmatmul.bf16.gmra.mxu0 %v3131
        %v6284 = vpop.f32.mrf.mxu0
        %v6285 = vadd.f32 %v3194, %v6284
        %v6286 = vpop.f32.mrf.mxu0
        %v6287 = vadd.f32 %v3194, %v6286
        %6288 = vmatmul.bf16.gmra.mxu0 %v3135
        %v6289 = vpop.f32.mrf.mxu0
        %v6290 = vadd.f32 %v3194, %v6289
        %v6291 = vpop.f32.mrf.mxu0
        %v6292 = vadd.f32 %v3194, %v6291
        %6293 = vmatmul.bf16.gmra.mxu0 %v3139
        %v6294 = vpop.f32.mrf.mxu0
        %v6295 = vadd.f32 %v3194, %v6294
        %v6296 = vpop.f32.mrf.mxu0
        %v6297 = vadd.f32 %v3194, %v6296
        %6298 = vmatmul.bf16.gmra.mxu0 %v3143
        %v6299 = vpop.f32.mrf.mxu0
        %v6300 = vadd.f32 %v3194, %v6299
        %v6301 = vpop.f32.mrf.mxu0
        %v6302 = vadd.f32 %v3194, %v6301
        %6303 = vmatmul.bf16.gmra.mxu0 %v3147
        %v6304 = vpop.f32.mrf.mxu0
        %v6305 = vadd.f32 %v3194, %v6304
        %v6306 = vpop.f32.mrf.mxu0
        %v6307 = vadd.f32 %v3194, %v6306
        %6308 = vmatmul.bf16.gmra.mxu0 %v3151
        %v6309 = vpop.f32.mrf.mxu0
        %v6310 = vadd.f32 %v3194, %v6309
        %v6311 = vpop.f32.mrf.mxu0
        %v6312 = vadd.f32 %v3194, %v6311
        %6313 = vmatmul.bf16.gmra.mxu0 %v3155
        %v6314 = vpop.f32.mrf.mxu0
        %v6315 = vadd.f32 %v3194, %v6314
        %v6316 = vpop.f32.mrf.mxu0
        %v6317 = vadd.f32 %v3194, %v6316
        %6318 = vmatmul.bf16.gmra.mxu0 %v3159
        %v6319 = vpop.f32.mrf.mxu0
        %v6320 = vadd.f32 %v3194, %v6319
        %v6321 = vpop.f32.mrf.mxu0
        %v6322 = vadd.f32 %v3194, %v6321
        %6323 = vmatmul.bf16.gmra.mxu0 %v3163
        %v6324 = vpop.f32.mrf.mxu0
        %v6325 = vadd.f32 %v3194, %v6324
        %v6326 = vpop.f32.mrf.mxu0
        %v6327 = vadd.f32 %v3194, %v6326
        %6328 = vmatmul.bf16.gmra.mxu0 %v3167
        %v6329 = vpop.f32.mrf.mxu0
        %v6330 = vadd.f32 %v3194, %v6329
        %v6331 = vpop.f32.mrf.mxu0
        %v6332 = vadd.f32 %v3194, %v6331
        %6333 = vmatmul.bf16.gmra.mxu0 %v3171
        %v6334 = vpop.f32.mrf.mxu0
        %v6335 = vadd.f32 %v3194, %v6334
        %v6336 = vpop.f32.mrf.mxu0
        %v6337 = vadd.f32 %v3194, %v6336
        %6338 = vmatmul.bf16.gmra.mxu0 %v3175
        %v6339 = vpop.f32.mrf.mxu0
        %v6340 = vadd.f32 %v3194, %v6339
        %v6341 = vpop.f32.mrf.mxu0
        %v6342 = vadd.f32 %v3194, %v6341
        %6343 = vmatmul.bf16.gmra.mxu0 %v3179
        %v6344 = vpop.f32.mrf.mxu0
        %v6345 = vadd.f32 %v3194, %v6344
        %v6346 = vpop.f32.mrf.mxu0
        %v6347 = vadd.f32 %v3194, %v6346
        %6348 = vmatmul.bf16.gmra.mxu0 %v3183
        %v6349 = vpop.f32.mrf.mxu0
        %v6350 = vadd.f32 %v3194, %v6349
        %v6351 = vpop.f32.mrf.mxu0
        %v6352 = vadd.f32 %v3194, %v6351
        %6353 = vdwg.mxu0
        %6354 = vmatpush.bf16.msra.mxu0 %v4098
        %6355 = vmatpush.bf16.msra.mxu0 %v4090
        %6356 = vmatpush.bf16.msra.mxu0 %v4082
        %6357 = vmatpush.bf16.msra.mxu0 %v4074
        %6358 = vmatpush.bf16.msra.mxu0 %v4066
        %6359 = vmatpush.bf16.msra.mxu0 %v4058
        %6360 = vmatpush.bf16.msra.mxu0 %v4050
        %6361 = vmatpush.bf16.msra.mxu0 %v4042
        %6362 = vmatmul.bf16.gmra.mxu0 %v3124
        %v6363 = vpop.f32.mrf.mxu0
        %v6364 = vadd.f32 %v6275, %v6363
        %v6365 = vpop.f32.mrf.mxu0
        %v6366 = vadd.f32 %v6277, %v6365
        %6367 = vmatmul.bf16.gmra.mxu0 %v3128
        %v6368 = vpop.f32.mrf.mxu0
        %v6369 = vadd.f32 %v6280, %v6368
        %v6370 = vpop.f32.mrf.mxu0
        %v6371 = vadd.f32 %v6282, %v6370
        %6372 = vmatmul.bf16.gmra.mxu0 %v3132
        %v6373 = vpop.f32.mrf.mxu0
        %v6374 = vadd.f32 %v6285, %v6373
        %v6375 = vpop.f32.mrf.mxu0
        %v6376 = vadd.f32 %v6287, %v6375
        %6377 = vmatmul.bf16.gmra.mxu0 %v3136
        %v6378 = vpop.f32.mrf.mxu0
        %v6379 = vadd.f32 %v6290, %v6378
        %v6380 = vpop.f32.mrf.mxu0
        %v6381 = vadd.f32 %v6292, %v6380
        %6382 = vmatmul.bf16.gmra.mxu0 %v3140
        %v6383 = vpop.f32.mrf.mxu0
        %v6384 = vadd.f32 %v6295, %v6383
        %v6385 = vpop.f32.mrf.mxu0
        %v6386 = vadd.f32 %v6297, %v6385
        %6387 = vmatmul.bf16.gmra.mxu0 %v3144
        %v6388 = vpop.f32.mrf.mxu0
        %v6389 = vadd.f32 %v6300, %v6388
        %v6390 = vpop.f32.mrf.mxu0
        %v6391 = vadd.f32 %v6302, %v6390
        %6392 = vmatmul.bf16.gmra.mxu0 %v3148
        %v6393 = vpop.f32.mrf.mxu0
        %v6394 = vadd.f32 %v6305, %v6393
        %v6395 = vpop.f32.mrf.mxu0
        %v6396 = vadd.f32 %v6307, %v6395
        %6397 = vmatmul.bf16.gmra.mxu0 %v3152
        %v6398 = vpop.f32.mrf.mxu0
        %v6399 = vadd.f32 %v6310, %v6398
        %v6400 = vpop.f32.mrf.mxu0
        %v6401 = vadd.f32 %v6312, %v6400
        %6402 = vmatmul.bf16.gmra.mxu0 %v3156
        %v6403 = vpop.f32.mrf.mxu0
        %v6404 = vadd.f32 %v6315, %v6403
        %v6405 = vpop.f32.mrf.mxu0
        %v6406 = vadd.f32 %v6317, %v6405
        %6407 = vmatmul.bf16.gmra.mxu0 %v3160
        %v6408 = vpop.f32.mrf.mxu0
        %v6409 = vadd.f32 %v6320, %v6408
        %v6410 = vpop.f32.mrf.mxu0
        %v6411 = vadd.f32 %v6322, %v6410
        %6412 = vmatmul.bf16.gmra.mxu0 %v3164
        %v6413 = vpop.f32.mrf.mxu0
        %v6414 = vadd.f32 %v6325, %v6413
        %v6415 = vpop.f32.mrf.mxu0
        %v6416 = vadd.f32 %v6327, %v6415
        %6417 = vmatmul.bf16.gmra.mxu0 %v3168
        %v6418 = vpop.f32.mrf.mxu0
        %v6419 = vadd.f32 %v6330, %v6418
        %v6420 = vpop.f32.mrf.mxu0
        %v6421 = vadd.f32 %v6332, %v6420
        %6422 = vmatmul.bf16.gmra.mxu0 %v3172
        %v6423 = vpop.f32.mrf.mxu0
        %v6424 = vadd.f32 %v6335, %v6423
        %v6425 = vpop.f32.mrf.mxu0
        %v6426 = vadd.f32 %v6337, %v6425
        %6427 = vmatmul.bf16.gmra.mxu0 %v3176
        %v6428 = vpop.f32.mrf.mxu0
        %v6429 = vadd.f32 %v6340, %v6428
        %v6430 = vpop.f32.mrf.mxu0
        %v6431 = vadd.f32 %v6342, %v6430
        %6432 = vmatmul.bf16.gmra.mxu0 %v3180
        %v6433 = vpop.f32.mrf.mxu0
        %v6434 = vadd.f32 %v6345, %v6433
        %v6435 = vpop.f32.mrf.mxu0
        %v6436 = vadd.f32 %v6347, %v6435
        %6437 = vmatmul.bf16.gmra.mxu0 %v3184
        %v6438 = vpop.f32.mrf.mxu0
        %v6439 = vadd.f32 %v6350, %v6438
        %v6440 = vpop.f32.mrf.mxu0
        %v6441 = vadd.f32 %v6352, %v6440
        %6442 = vdwg.mxu0
        %6443 = vmatpush.bf16.msra.mxu0 %v4162
        %6444 = vmatpush.bf16.msra.mxu0 %v4154
        %6445 = vmatpush.bf16.msra.mxu0 %v4146
        %6446 = vmatpush.bf16.msra.mxu0 %v4138
        %6447 = vmatpush.bf16.msra.mxu0 %v4130
        %6448 = vmatpush.bf16.msra.mxu0 %v4122
        %6449 = vmatpush.bf16.msra.mxu0 %v4114
        %6450 = vmatpush.bf16.msra.mxu0 %v4106
        %6451 = vmatmul.bf16.gmra.mxu0 %v3125
        %v6452 = vpop.f32.mrf.mxu0
        %v6453 = vadd.f32 %v6364, %v6452
        %v6454 = vpop.f32.mrf.mxu0
        %v6455 = vadd.f32 %v6366, %v6454
        %6456 = vmatmul.bf16.gmra.mxu0 %v3129
        %v6457 = vpop.f32.mrf.mxu0
        %v6458 = vadd.f32 %v6369, %v6457
        %v6459 = vpop.f32.mrf.mxu0
        %v6460 = vadd.f32 %v6371, %v6459
        %6461 = vmatmul.bf16.gmra.mxu0 %v3133
        %v6462 = vpop.f32.mrf.mxu0
        %v6463 = vadd.f32 %v6374, %v6462
        %v6464 = vpop.f32.mrf.mxu0
        %v6465 = vadd.f32 %v6376, %v6464
        %6466 = vmatmul.bf16.gmra.mxu0 %v3137
        %v6467 = vpop.f32.mrf.mxu0
        %v6468 = vadd.f32 %v6379, %v6467
        %v6469 = vpop.f32.mrf.mxu0
        %v6470 = vadd.f32 %v6381, %v6469
        %6471 = vmatmul.bf16.gmra.mxu0 %v3141
        %v6472 = vpop.f32.mrf.mxu0
        %v6473 = vadd.f32 %v6384, %v6472
        %v6474 = vpop.f32.mrf.mxu0
        %v6475 = vadd.f32 %v6386, %v6474
        %6476 = vmatmul.bf16.gmra.mxu0 %v3145
        %v6477 = vpop.f32.mrf.mxu0
        %v6478 = vadd.f32 %v6389, %v6477
        %v6479 = vpop.f32.mrf.mxu0
        %v6480 = vadd.f32 %v6391, %v6479
        %6481 = vmatmul.bf16.gmra.mxu0 %v3149
        %v6482 = vpop.f32.mrf.mxu0
        %v6483 = vadd.f32 %v6394, %v6482
        %v6484 = vpop.f32.mrf.mxu0
        %v6485 = vadd.f32 %v6396, %v6484
        %6486 = vmatmul.bf16.gmra.mxu0 %v3153
        %v6487 = vpop.f32.mrf.mxu0
        %v6488 = vadd.f32 %v6399, %v6487
        %v6489 = vpop.f32.mrf.mxu0
        %v6490 = vadd.f32 %v6401, %v6489
        %6491 = vmatmul.bf16.gmra.mxu0 %v3157
        %v6492 = vpop.f32.mrf.mxu0
        %v6493 = vadd.f32 %v6404, %v6492
        %v6494 = vpop.f32.mrf.mxu0
        %v6495 = vadd.f32 %v6406, %v6494
        %6496 = vmatmul.bf16.gmra.mxu0 %v3161
        %v6497 = vpop.f32.mrf.mxu0
        %v6498 = vadd.f32 %v6409, %v6497
        %v6499 = vpop.f32.mrf.mxu0
        %v6500 = vadd.f32 %v6411, %v6499
        %6501 = vmatmul.bf16.gmra.mxu0 %v3165
        %v6502 = vpop.f32.mrf.mxu0
        %v6503 = vadd.f32 %v6414, %v6502
        %v6504 = vpop.f32.mrf.mxu0
        %v6505 = vadd.f32 %v6416, %v6504
        %6506 = vmatmul.bf16.gmra.mxu0 %v3169
        %v6507 = vpop.f32.mrf.mxu0
        %v6508 = vadd.f32 %v6419, %v6507
        %v6509 = vpop.f32.mrf.mxu0
        %v6510 = vadd.f32 %v6421, %v6509
        %6511 = vmatmul.bf16.gmra.mxu0 %v3173
        %v6512 = vpop.f32.mrf.mxu0
        %v6513 = vadd.f32 %v6424, %v6512
        %v6514 = vpop.f32.mrf.mxu0
        %v6515 = vadd.f32 %v6426, %v6514
        %6516 = vmatmul.bf16.gmra.mxu0 %v3177
        %v6517 = vpop.f32.mrf.mxu0
        %v6518 = vadd.f32 %v6429, %v6517
        %v6519 = vpop.f32.mrf.mxu0
        %v6520 = vadd.f32 %v6431, %v6519
        %6521 = vmatmul.bf16.gmra.mxu0 %v3181
        %v6522 = vpop.f32.mrf.mxu0
        %v6523 = vadd.f32 %v6434, %v6522
        %v6524 = vpop.f32.mrf.mxu0
        %v6525 = vadd.f32 %v6436, %v6524
        %6526 = vmatmul.bf16.gmra.mxu0 %v3185
        %v6527 = vpop.f32.mrf.mxu0
        %v6528 = vadd.f32 %v6439, %v6527
        %v6529 = vpop.f32.mrf.mxu0
        %v6530 = vadd.f32 %v6441, %v6529
        %6531 = vdwg.mxu0
        %6532 = vmatpush.bf16.msra.mxu0 %v4226
        %6533 = vmatpush.bf16.msra.mxu0 %v4218
        %6534 = vmatpush.bf16.msra.mxu0 %v4210
        %6535 = vmatpush.bf16.msra.mxu0 %v4202
        %6536 = vmatpush.bf16.msra.mxu0 %v4194
        %6537 = vmatpush.bf16.msra.mxu0 %v4186
        %6538 = vmatpush.bf16.msra.mxu0 %v4178
        %6539 = vmatpush.bf16.msra.mxu0 %v4170
        %6540 = vmatmul.bf16.gmra.mxu0 %v3126
        %v6541 = vpop.f32.mrf.mxu0
        %v6542 = vadd.f32 %v6453, %v6541
        %v6543 = vpop.f32.mrf.mxu0
        %v6544 = vadd.f32 %v6455, %v6543
        %6545 = vmatmul.bf16.gmra.mxu0 %v3130
        %v6546 = vpop.f32.mrf.mxu0
        %v6547 = vadd.f32 %v6458, %v6546
        %v6548 = vpop.f32.mrf.mxu0
        %v6549 = vadd.f32 %v6460, %v6548
        %6550 = vmatmul.bf16.gmra.mxu0 %v3134
        %v6551 = vpop.f32.mrf.mxu0
        %v6552 = vadd.f32 %v6463, %v6551
        %v6553 = vpop.f32.mrf.mxu0
        %v6554 = vadd.f32 %v6465, %v6553
        %6555 = vmatmul.bf16.gmra.mxu0 %v3138
        %v6556 = vpop.f32.mrf.mxu0
        %v6557 = vadd.f32 %v6468, %v6556
        %v6558 = vpop.f32.mrf.mxu0
        %v6559 = vadd.f32 %v6470, %v6558
        %6560 = vmatmul.bf16.gmra.mxu0 %v3142
        %v6561 = vpop.f32.mrf.mxu0
        %v6562 = vadd.f32 %v6473, %v6561
        %v6563 = vpop.f32.mrf.mxu0
        %v6564 = vadd.f32 %v6475, %v6563
        %6565 = vmatmul.bf16.gmra.mxu0 %v3146
        %v6566 = vpop.f32.mrf.mxu0
        %v6567 = vadd.f32 %v6478, %v6566
        %v6568 = vpop.f32.mrf.mxu0
        %v6569 = vadd.f32 %v6480, %v6568
        %6570 = vmatmul.bf16.gmra.mxu0 %v3150
        %v6571 = vpop.f32.mrf.mxu0
        %v6572 = vadd.f32 %v6483, %v6571
        %v6573 = vpop.f32.mrf.mxu0
        %v6574 = vadd.f32 %v6485, %v6573
        %6575 = vmatmul.bf16.gmra.mxu0 %v3154
        %v6576 = vpop.f32.mrf.mxu0
        %v6577 = vadd.f32 %v6488, %v6576
        %v6578 = vpop.f32.mrf.mxu0
        %v6579 = vadd.f32 %v6490, %v6578
        %6580 = vmatmul.bf16.gmra.mxu0 %v3158
        %v6581 = vpop.f32.mrf.mxu0
        %v6582 = vadd.f32 %v6493, %v6581
        %v6583 = vpop.f32.mrf.mxu0
        %v6584 = vadd.f32 %v6495, %v6583
        %6585 = vmatmul.bf16.gmra.mxu0 %v3162
        %v6586 = vpop.f32.mrf.mxu0
        %v6587 = vadd.f32 %v6498, %v6586
        %v6588 = vpop.f32.mrf.mxu0
        %v6589 = vadd.f32 %v6500, %v6588
        %6590 = vmatmul.bf16.gmra.mxu0 %v3166
        %v6591 = vpop.f32.mrf.mxu0
        %v6592 = vadd.f32 %v6503, %v6591
        %v6593 = vpop.f32.mrf.mxu0
        %v6594 = vadd.f32 %v6505, %v6593
        %6595 = vmatmul.bf16.gmra.mxu0 %v3170
        %v6596 = vpop.f32.mrf.mxu0
        %v6597 = vadd.f32 %v6508, %v6596
        %v6598 = vpop.f32.mrf.mxu0
        %v6599 = vadd.f32 %v6510, %v6598
        %6600 = vmatmul.bf16.gmra.mxu0 %v3174
        %v6601 = vpop.f32.mrf.mxu0
        %v6602 = vadd.f32 %v6513, %v6601
        %v6603 = vpop.f32.mrf.mxu0
        %v6604 = vadd.f32 %v6515, %v6603
        %6605 = vmatmul.bf16.gmra.mxu0 %v3178
        %v6606 = vpop.f32.mrf.mxu0
        %v6607 = vadd.f32 %v6518, %v6606
        %v6608 = vpop.f32.mrf.mxu0
        %v6609 = vadd.f32 %v6520, %v6608
        %6610 = vmatmul.bf16.gmra.mxu0 %v3182
        %v6611 = vpop.f32.mrf.mxu0
        %v6612 = vadd.f32 %v6523, %v6611
        %v6613 = vpop.f32.mrf.mxu0
        %v6614 = vadd.f32 %v6525, %v6613
        %6615 = vmatmul.bf16.gmra.mxu0 %v3186
        %v6616 = vpop.f32.mrf.mxu0
        %v6617 = vadd.f32 %v6528, %v6616
        %v6618 = vpop.f32.mrf.mxu0
        %v6619 = vadd.f32 %v6530, %v6618
        %6620 = vdwg.mxu0
        %6621 = vmatpush.bf16.msra.mxu0 %v4035
        %6622 = vmatpush.bf16.msra.mxu0 %v4027
        %6623 = vmatpush.bf16.msra.mxu0 %v4019
        %6624 = vmatpush.bf16.msra.mxu0 %v4011
        %6625 = vmatpush.bf16.msra.mxu0 %v4003
        %6626 = vmatpush.bf16.msra.mxu0 %v3995
        %6627 = vmatpush.bf16.msra.mxu0 %v3987
        %6628 = vmatpush.bf16.msra.mxu0 %v3979
        %6629 = vmatmul.bf16.gmra.mxu0 %v3123
        %v6630 = vpop.f32.mrf.mxu0
        %v6631 = vadd.f32 %v3195, %v6630
        %v6632 = vpop.f32.mrf.mxu0
        %v6633 = vadd.f32 %v3195, %v6632
        %6634 = vmatmul.bf16.gmra.mxu0 %v3127
        %v6635 = vpop.f32.mrf.mxu0
        %v6636 = vadd.f32 %v3195, %v6635
        %v6637 = vpop.f32.mrf.mxu0
        %v6638 = vadd.f32 %v3195, %v6637
        %6639 = vmatmul.bf16.gmra.mxu0 %v3131
        %v6640 = vpop.f32.mrf.mxu0
        %v6641 = vadd.f32 %v3195, %v6640
        %v6642 = vpop.f32.mrf.mxu0
        %v6643 = vadd.f32 %v3195, %v6642
        %6644 = vmatmul.bf16.gmra.mxu0 %v3135
        %v6645 = vpop.f32.mrf.mxu0
        %v6646 = vadd.f32 %v3195, %v6645
        %v6647 = vpop.f32.mrf.mxu0
        %v6648 = vadd.f32 %v3195, %v6647
        %6649 = vmatmul.bf16.gmra.mxu0 %v3139
        %v6650 = vpop.f32.mrf.mxu0
        %v6651 = vadd.f32 %v3195, %v6650
        %v6652 = vpop.f32.mrf.mxu0
        %v6653 = vadd.f32 %v3195, %v6652
        %6654 = vmatmul.bf16.gmra.mxu0 %v3143
        %v6655 = vpop.f32.mrf.mxu0
        %v6656 = vadd.f32 %v3195, %v6655
        %v6657 = vpop.f32.mrf.mxu0
        %v6658 = vadd.f32 %v3195, %v6657
        %6659 = vmatmul.bf16.gmra.mxu0 %v3147
        %v6660 = vpop.f32.mrf.mxu0
        %v6661 = vadd.f32 %v3195, %v6660
        %v6662 = vpop.f32.mrf.mxu0
        %v6663 = vadd.f32 %v3195, %v6662
        %6664 = vmatmul.bf16.gmra.mxu0 %v3151
        %v6665 = vpop.f32.mrf.mxu0
        %v6666 = vadd.f32 %v3195, %v6665
        %v6667 = vpop.f32.mrf.mxu0
        %v6668 = vadd.f32 %v3195, %v6667
        %6669 = vmatmul.bf16.gmra.mxu0 %v3155
        %v6670 = vpop.f32.mrf.mxu0
        %v6671 = vadd.f32 %v3195, %v6670
        %v6672 = vpop.f32.mrf.mxu0
        %v6673 = vadd.f32 %v3195, %v6672
        %6674 = vmatmul.bf16.gmra.mxu0 %v3159
        %v6675 = vpop.f32.mrf.mxu0
        %v6676 = vadd.f32 %v3195, %v6675
        %v6677 = vpop.f32.mrf.mxu0
        %v6678 = vadd.f32 %v3195, %v6677
        %6679 = vmatmul.bf16.gmra.mxu0 %v3163
        %v6680 = vpop.f32.mrf.mxu0
        %v6681 = vadd.f32 %v3195, %v6680
        %v6682 = vpop.f32.mrf.mxu0
        %v6683 = vadd.f32 %v3195, %v6682
        %6684 = vmatmul.bf16.gmra.mxu0 %v3167
        %v6685 = vpop.f32.mrf.mxu0
        %v6686 = vadd.f32 %v3195, %v6685
        %v6687 = vpop.f32.mrf.mxu0
        %v6688 = vadd.f32 %v3195, %v6687
        %6689 = vmatmul.bf16.gmra.mxu0 %v3171
        %v6690 = vpop.f32.mrf.mxu0
        %v6691 = vadd.f32 %v3195, %v6690
        %v6692 = vpop.f32.mrf.mxu0
        %v6693 = vadd.f32 %v3195, %v6692
        %6694 = vmatmul.bf16.gmra.mxu0 %v3175
        %v6695 = vpop.f32.mrf.mxu0
        %v6696 = vadd.f32 %v3195, %v6695
        %v6697 = vpop.f32.mrf.mxu0
        %v6698 = vadd.f32 %v3195, %v6697
        %6699 = vmatmul.bf16.gmra.mxu0 %v3179
        %v6700 = vpop.f32.mrf.mxu0
        %v6701 = vadd.f32 %v3195, %v6700
        %v6702 = vpop.f32.mrf.mxu0
        %v6703 = vadd.f32 %v3195, %v6702
        %6704 = vmatmul.bf16.gmra.mxu0 %v3183
        %v6705 = vpop.f32.mrf.mxu0
        %v6706 = vadd.f32 %v3195, %v6705
        %v6707 = vpop.f32.mrf.mxu0
        %v6708 = vadd.f32 %v3195, %v6707
        %6709 = vdwg.mxu0
        %6710 = vmatpush.bf16.msra.mxu0 %v4099
        %6711 = vmatpush.bf16.msra.mxu0 %v4091
        %6712 = vmatpush.bf16.msra.mxu0 %v4083
        %6713 = vmatpush.bf16.msra.mxu0 %v4075
        %6714 = vmatpush.bf16.msra.mxu0 %v4067
        %6715 = vmatpush.bf16.msra.mxu0 %v4059
        %6716 = vmatpush.bf16.msra.mxu0 %v4051
        %6717 = vmatpush.bf16.msra.mxu0 %v4043
        %6718 = vmatmul.bf16.gmra.mxu0 %v3124
        %v6719 = vpop.f32.mrf.mxu0
        %v6720 = vadd.f32 %v6631, %v6719
        %v6721 = vpop.f32.mrf.mxu0
        %v6722 = vadd.f32 %v6633, %v6721
        %6723 = vmatmul.bf16.gmra.mxu0 %v3128
        %v6724 = vpop.f32.mrf.mxu0
        %v6725 = vadd.f32 %v6636, %v6724
        %v6726 = vpop.f32.mrf.mxu0
        %v6727 = vadd.f32 %v6638, %v6726
        %6728 = vmatmul.bf16.gmra.mxu0 %v3132
        %v6729 = vpop.f32.mrf.mxu0
        %v6730 = vadd.f32 %v6641, %v6729
        %v6731 = vpop.f32.mrf.mxu0
        %v6732 = vadd.f32 %v6643, %v6731
        %6733 = vmatmul.bf16.gmra.mxu0 %v3136
        %v6734 = vpop.f32.mrf.mxu0
        %v6735 = vadd.f32 %v6646, %v6734
        %v6736 = vpop.f32.mrf.mxu0
        %v6737 = vadd.f32 %v6648, %v6736
        %6738 = vmatmul.bf16.gmra.mxu0 %v3140
        %v6739 = vpop.f32.mrf.mxu0
        %v6740 = vadd.f32 %v6651, %v6739
        %v6741 = vpop.f32.mrf.mxu0
        %v6742 = vadd.f32 %v6653, %v6741
        %6743 = vmatmul.bf16.gmra.mxu0 %v3144
        %v6744 = vpop.f32.mrf.mxu0
        %v6745 = vadd.f32 %v6656, %v6744
        %v6746 = vpop.f32.mrf.mxu0
        %v6747 = vadd.f32 %v6658, %v6746
        %6748 = vmatmul.bf16.gmra.mxu0 %v3148
        %v6749 = vpop.f32.mrf.mxu0
        %v6750 = vadd.f32 %v6661, %v6749
        %v6751 = vpop.f32.mrf.mxu0
        %v6752 = vadd.f32 %v6663, %v6751
        %6753 = vmatmul.bf16.gmra.mxu0 %v3152
        %v6754 = vpop.f32.mrf.mxu0
        %v6755 = vadd.f32 %v6666, %v6754
        %v6756 = vpop.f32.mrf.mxu0
        %v6757 = vadd.f32 %v6668, %v6756
        %6758 = vmatmul.bf16.gmra.mxu0 %v3156
        %v6759 = vpop.f32.mrf.mxu0
        %v6760 = vadd.f32 %v6671, %v6759
        %v6761 = vpop.f32.mrf.mxu0
        %v6762 = vadd.f32 %v6673, %v6761
        %6763 = vmatmul.bf16.gmra.mxu0 %v3160
        %v6764 = vpop.f32.mrf.mxu0
        %v6765 = vadd.f32 %v6676, %v6764
        %v6766 = vpop.f32.mrf.mxu0
        %v6767 = vadd.f32 %v6678, %v6766
        %6768 = vmatmul.bf16.gmra.mxu0 %v3164
        %v6769 = vpop.f32.mrf.mxu0
        %v6770 = vadd.f32 %v6681, %v6769
        %v6771 = vpop.f32.mrf.mxu0
        %v6772 = vadd.f32 %v6683, %v6771
        %6773 = vmatmul.bf16.gmra.mxu0 %v3168
        %v6774 = vpop.f32.mrf.mxu0
        %v6775 = vadd.f32 %v6686, %v6774
        %v6776 = vpop.f32.mrf.mxu0
        %v6777 = vadd.f32 %v6688, %v6776
        %6778 = vmatmul.bf16.gmra.mxu0 %v3172
        %v6779 = vpop.f32.mrf.mxu0
        %v6780 = vadd.f32 %v6691, %v6779
        %v6781 = vpop.f32.mrf.mxu0
        %v6782 = vadd.f32 %v6693, %v6781
        %6783 = vmatmul.bf16.gmra.mxu0 %v3176
        %v6784 = vpop.f32.mrf.mxu0
        %v6785 = vadd.f32 %v6696, %v6784
        %v6786 = vpop.f32.mrf.mxu0
        %v6787 = vadd.f32 %v6698, %v6786
        %6788 = vmatmul.bf16.gmra.mxu0 %v3180
        %v6789 = vpop.f32.mrf.mxu0
        %v6790 = vadd.f32 %v6701, %v6789
        %v6791 = vpop.f32.mrf.mxu0
        %v6792 = vadd.f32 %v6703, %v6791
        %6793 = vmatmul.bf16.gmra.mxu0 %v3184
        %v6794 = vpop.f32.mrf.mxu0
        %v6795 = vadd.f32 %v6706, %v6794
        %v6796 = vpop.f32.mrf.mxu0
        %v6797 = vadd.f32 %v6708, %v6796
        %6798 = vdwg.mxu0
        %6799 = vmatpush.bf16.msra.mxu0 %v4163
        %6800 = vmatpush.bf16.msra.mxu0 %v4155
        %6801 = vmatpush.bf16.msra.mxu0 %v4147
        %6802 = vmatpush.bf16.msra.mxu0 %v4139
        %6803 = vmatpush.bf16.msra.mxu0 %v4131
        %6804 = vmatpush.bf16.msra.mxu0 %v4123
        %6805 = vmatpush.bf16.msra.mxu0 %v4115
        %6806 = vmatpush.bf16.msra.mxu0 %v4107
        %6807 = vmatmul.bf16.gmra.mxu0 %v3125
        %v6808 = vpop.f32.mrf.mxu0
        %v6809 = vadd.f32 %v6720, %v6808
        %v6810 = vpop.f32.mrf.mxu0
        %v6811 = vadd.f32 %v6722, %v6810
        %6812 = vmatmul.bf16.gmra.mxu0 %v3129
        %v6813 = vpop.f32.mrf.mxu0
        %v6814 = vadd.f32 %v6725, %v6813
        %v6815 = vpop.f32.mrf.mxu0
        %v6816 = vadd.f32 %v6727, %v6815
        %6817 = vmatmul.bf16.gmra.mxu0 %v3133
        %v6818 = vpop.f32.mrf.mxu0
        %v6819 = vadd.f32 %v6730, %v6818
        %v6820 = vpop.f32.mrf.mxu0
        %v6821 = vadd.f32 %v6732, %v6820
        %6822 = vmatmul.bf16.gmra.mxu0 %v3137
        %v6823 = vpop.f32.mrf.mxu0
        %v6824 = vadd.f32 %v6735, %v6823
        %v6825 = vpop.f32.mrf.mxu0
        %v6826 = vadd.f32 %v6737, %v6825
        %6827 = vmatmul.bf16.gmra.mxu0 %v3141
        %v6828 = vpop.f32.mrf.mxu0
        %v6829 = vadd.f32 %v6740, %v6828
        %v6830 = vpop.f32.mrf.mxu0
        %v6831 = vadd.f32 %v6742, %v6830
        %6832 = vmatmul.bf16.gmra.mxu0 %v3145
        %v6833 = vpop.f32.mrf.mxu0
        %v6834 = vadd.f32 %v6745, %v6833
        %v6835 = vpop.f32.mrf.mxu0
        %v6836 = vadd.f32 %v6747, %v6835
        %6837 = vmatmul.bf16.gmra.mxu0 %v3149
        %v6838 = vpop.f32.mrf.mxu0
        %v6839 = vadd.f32 %v6750, %v6838
        %v6840 = vpop.f32.mrf.mxu0
        %v6841 = vadd.f32 %v6752, %v6840
        %6842 = vmatmul.bf16.gmra.mxu0 %v3153
        %v6843 = vpop.f32.mrf.mxu0
        %v6844 = vadd.f32 %v6755, %v6843
        %v6845 = vpop.f32.mrf.mxu0
        %v6846 = vadd.f32 %v6757, %v6845
        %6847 = vmatmul.bf16.gmra.mxu0 %v3157
        %v6848 = vpop.f32.mrf.mxu0
        %v6849 = vadd.f32 %v6760, %v6848
        %v6850 = vpop.f32.mrf.mxu0
        %v6851 = vadd.f32 %v6762, %v6850
        %6852 = vmatmul.bf16.gmra.mxu0 %v3161
        %v6853 = vpop.f32.mrf.mxu0
        %v6854 = vadd.f32 %v6765, %v6853
        %v6855 = vpop.f32.mrf.mxu0
        %v6856 = vadd.f32 %v6767, %v6855
        %6857 = vmatmul.bf16.gmra.mxu0 %v3165
        %v6858 = vpop.f32.mrf.mxu0
        %v6859 = vadd.f32 %v6770, %v6858
        %v6860 = vpop.f32.mrf.mxu0
        %v6861 = vadd.f32 %v6772, %v6860
        %6862 = vmatmul.bf16.gmra.mxu0 %v3169
        %v6863 = vpop.f32.mrf.mxu0
        %v6864 = vadd.f32 %v6775, %v6863
        %v6865 = vpop.f32.mrf.mxu0
        %v6866 = vadd.f32 %v6777, %v6865
        %6867 = vmatmul.bf16.gmra.mxu0 %v3173
        %v6868 = vpop.f32.mrf.mxu0
        %v6869 = vadd.f32 %v6780, %v6868
        %v6870 = vpop.f32.mrf.mxu0
        %v6871 = vadd.f32 %v6782, %v6870
        %6872 = vmatmul.bf16.gmra.mxu0 %v3177
        %v6873 = vpop.f32.mrf.mxu0
        %v6874 = vadd.f32 %v6785, %v6873
        %v6875 = vpop.f32.mrf.mxu0
        %v6876 = vadd.f32 %v6787, %v6875
        %6877 = vmatmul.bf16.gmra.mxu0 %v3181
        %v6878 = vpop.f32.mrf.mxu0
        %v6879 = vadd.f32 %v6790, %v6878
        %v6880 = vpop.f32.mrf.mxu0
        %v6881 = vadd.f32 %v6792, %v6880
        %6882 = vmatmul.bf16.gmra.mxu0 %v3185
        %v6883 = vpop.f32.mrf.mxu0
        %v6884 = vadd.f32 %v6795, %v6883
        %v6885 = vpop.f32.mrf.mxu0
        %v6886 = vadd.f32 %v6797, %v6885
        %6887 = vdwg.mxu0
        %6888 = vmatpush.bf16.msra.mxu0 %v4227
        %6889 = vmatpush.bf16.msra.mxu0 %v4219
        %6890 = vmatpush.bf16.msra.mxu0 %v4211
        %6891 = vmatpush.bf16.msra.mxu0 %v4203
        %6892 = vmatpush.bf16.msra.mxu0 %v4195
        %6893 = vmatpush.bf16.msra.mxu0 %v4187
        %6894 = vmatpush.bf16.msra.mxu0 %v4179
        %6895 = vmatpush.bf16.msra.mxu0 %v4171
        %6896 = vmatmul.bf16.gmra.mxu0 %v3126
        %v6897 = vpop.f32.mrf.mxu0
        %v6898 = vadd.f32 %v6809, %v6897
        %v6899 = vpop.f32.mrf.mxu0
        %v6900 = vadd.f32 %v6811, %v6899
        %6901 = vmatmul.bf16.gmra.mxu0 %v3130
        %v6902 = vpop.f32.mrf.mxu0
        %v6903 = vadd.f32 %v6814, %v6902
        %v6904 = vpop.f32.mrf.mxu0
        %v6905 = vadd.f32 %v6816, %v6904
        %6906 = vmatmul.bf16.gmra.mxu0 %v3134
        %v6907 = vpop.f32.mrf.mxu0
        %v6908 = vadd.f32 %v6819, %v6907
        %v6909 = vpop.f32.mrf.mxu0
        %v6910 = vadd.f32 %v6821, %v6909
        %6911 = vmatmul.bf16.gmra.mxu0 %v3138
        %v6912 = vpop.f32.mrf.mxu0
        %v6913 = vadd.f32 %v6824, %v6912
        %v6914 = vpop.f32.mrf.mxu0
        %v6915 = vadd.f32 %v6826, %v6914
        %6916 = vmatmul.bf16.gmra.mxu0 %v3142
        %v6917 = vpop.f32.mrf.mxu0
        %v6918 = vadd.f32 %v6829, %v6917
        %v6919 = vpop.f32.mrf.mxu0
        %v6920 = vadd.f32 %v6831, %v6919
        %6921 = vmatmul.bf16.gmra.mxu0 %v3146
        %v6922 = vpop.f32.mrf.mxu0
        %v6923 = vadd.f32 %v6834, %v6922
        %v6924 = vpop.f32.mrf.mxu0
        %v6925 = vadd.f32 %v6836, %v6924
        %6926 = vmatmul.bf16.gmra.mxu0 %v3150
        %v6927 = vpop.f32.mrf.mxu0
        %v6928 = vadd.f32 %v6839, %v6927
        %v6929 = vpop.f32.mrf.mxu0
        %v6930 = vadd.f32 %v6841, %v6929
        %6931 = vmatmul.bf16.gmra.mxu0 %v3154
        %v6932 = vpop.f32.mrf.mxu0
        %v6933 = vadd.f32 %v6844, %v6932
        %v6934 = vpop.f32.mrf.mxu0
        %v6935 = vadd.f32 %v6846, %v6934
        %6936 = vmatmul.bf16.gmra.mxu0 %v3158
        %v6937 = vpop.f32.mrf.mxu0
        %v6938 = vadd.f32 %v6849, %v6937
        %v6939 = vpop.f32.mrf.mxu0
        %v6940 = vadd.f32 %v6851, %v6939
        %6941 = vmatmul.bf16.gmra.mxu0 %v3162
        %v6942 = vpop.f32.mrf.mxu0
        %v6943 = vadd.f32 %v6854, %v6942
        %v6944 = vpop.f32.mrf.mxu0
        %v6945 = vadd.f32 %v6856, %v6944
        %6946 = vmatmul.bf16.gmra.mxu0 %v3166
        %v6947 = vpop.f32.mrf.mxu0
        %v6948 = vadd.f32 %v6859, %v6947
        %v6949 = vpop.f32.mrf.mxu0
        %v6950 = vadd.f32 %v6861, %v6949
        %6951 = vmatmul.bf16.gmra.mxu0 %v3170
        %v6952 = vpop.f32.mrf.mxu0
        %v6953 = vadd.f32 %v6864, %v6952
        %v6954 = vpop.f32.mrf.mxu0
        %v6955 = vadd.f32 %v6866, %v6954
        %6956 = vmatmul.bf16.gmra.mxu0 %v3174
        %v6957 = vpop.f32.mrf.mxu0
        %v6958 = vadd.f32 %v6869, %v6957
        %v6959 = vpop.f32.mrf.mxu0
        %v6960 = vadd.f32 %v6871, %v6959
        %6961 = vmatmul.bf16.gmra.mxu0 %v3178
        %v6962 = vpop.f32.mrf.mxu0
        %v6963 = vadd.f32 %v6874, %v6962
        %v6964 = vpop.f32.mrf.mxu0
        %v6965 = vadd.f32 %v6876, %v6964
        %6966 = vmatmul.bf16.gmra.mxu0 %v3182
        %v6967 = vpop.f32.mrf.mxu0
        %v6968 = vadd.f32 %v6879, %v6967
        %v6969 = vpop.f32.mrf.mxu0
        %v6970 = vadd.f32 %v6881, %v6969
        %6971 = vmatmul.bf16.gmra.mxu0 %v3186
        %v6972 = vpop.f32.mrf.mxu0
        %v6973 = vadd.f32 %v6884, %v6972
        %v6974 = vpop.f32.mrf.mxu0
        %v6975 = vadd.f32 %v6886, %v6974
        %6976 = vdwg.mxu0
        %6977 = vmatpush.bf16.msra.mxu0 %v4036
        %6978 = vmatpush.bf16.msra.mxu0 %v4028
        %6979 = vmatpush.bf16.msra.mxu0 %v4020
        %6980 = vmatpush.bf16.msra.mxu0 %v4012
        %6981 = vmatpush.bf16.msra.mxu0 %v4004
        %6982 = vmatpush.bf16.msra.mxu0 %v3996
        %6983 = vmatpush.bf16.msra.mxu0 %v3988
        %6984 = vmatpush.bf16.msra.mxu0 %v3980
        %6985 = vmatmul.bf16.gmra.mxu0 %v3123
        %v6986 = vpop.f32.mrf.mxu0
        %v6987 = vadd.f32 %v3196, %v6986
        %v6988 = vpop.f32.mrf.mxu0
        %v6989 = vadd.f32 %v3196, %v6988
        %6990 = vmatmul.bf16.gmra.mxu0 %v3127
        %v6991 = vpop.f32.mrf.mxu0
        %v6992 = vadd.f32 %v3196, %v6991
        %v6993 = vpop.f32.mrf.mxu0
        %v6994 = vadd.f32 %v3196, %v6993
        %6995 = vmatmul.bf16.gmra.mxu0 %v3131
        %v6996 = vpop.f32.mrf.mxu0
        %v6997 = vadd.f32 %v3196, %v6996
        %v6998 = vpop.f32.mrf.mxu0
        %v6999 = vadd.f32 %v3196, %v6998
        %7000 = vmatmul.bf16.gmra.mxu0 %v3135
        %v7001 = vpop.f32.mrf.mxu0
        %v7002 = vadd.f32 %v3196, %v7001
        %v7003 = vpop.f32.mrf.mxu0
        %v7004 = vadd.f32 %v3196, %v7003
        %7005 = vmatmul.bf16.gmra.mxu0 %v3139
        %v7006 = vpop.f32.mrf.mxu0
        %v7007 = vadd.f32 %v3196, %v7006
        %v7008 = vpop.f32.mrf.mxu0
        %v7009 = vadd.f32 %v3196, %v7008
        %7010 = vmatmul.bf16.gmra.mxu0 %v3143
        %v7011 = vpop.f32.mrf.mxu0
        %v7012 = vadd.f32 %v3196, %v7011
        %v7013 = vpop.f32.mrf.mxu0
        %v7014 = vadd.f32 %v3196, %v7013
        %7015 = vmatmul.bf16.gmra.mxu0 %v3147
        %v7016 = vpop.f32.mrf.mxu0
        %v7017 = vadd.f32 %v3196, %v7016
        %v7018 = vpop.f32.mrf.mxu0
        %v7019 = vadd.f32 %v3196, %v7018
        %7020 = vmatmul.bf16.gmra.mxu0 %v3151
        %v7021 = vpop.f32.mrf.mxu0
        %v7022 = vadd.f32 %v3196, %v7021
        %v7023 = vpop.f32.mrf.mxu0
        %v7024 = vadd.f32 %v3196, %v7023
        %7025 = vmatmul.bf16.gmra.mxu0 %v3155
        %v7026 = vpop.f32.mrf.mxu0
        %v7027 = vadd.f32 %v3196, %v7026
        %v7028 = vpop.f32.mrf.mxu0
        %v7029 = vadd.f32 %v3196, %v7028
        %7030 = vmatmul.bf16.gmra.mxu0 %v3159
        %v7031 = vpop.f32.mrf.mxu0
        %v7032 = vadd.f32 %v3196, %v7031
        %v7033 = vpop.f32.mrf.mxu0
        %v7034 = vadd.f32 %v3196, %v7033
        %7035 = vmatmul.bf16.gmra.mxu0 %v3163
        %v7036 = vpop.f32.mrf.mxu0
        %v7037 = vadd.f32 %v3196, %v7036
        %v7038 = vpop.f32.mrf.mxu0
        %v7039 = vadd.f32 %v3196, %v7038
        %7040 = vmatmul.bf16.gmra.mxu0 %v3167
        %v7041 = vpop.f32.mrf.mxu0
        %v7042 = vadd.f32 %v3196, %v7041
        %v7043 = vpop.f32.mrf.mxu0
        %v7044 = vadd.f32 %v3196, %v7043
        %7045 = vmatmul.bf16.gmra.mxu0 %v3171
        %v7046 = vpop.f32.mrf.mxu0
        %v7047 = vadd.f32 %v3196, %v7046
        %v7048 = vpop.f32.mrf.mxu0
        %v7049 = vadd.f32 %v3196, %v7048
        %7050 = vmatmul.bf16.gmra.mxu0 %v3175
        %v7051 = vpop.f32.mrf.mxu0
        %v7052 = vadd.f32 %v3196, %v7051
        %v7053 = vpop.f32.mrf.mxu0
        %v7054 = vadd.f32 %v3196, %v7053
        %7055 = vmatmul.bf16.gmra.mxu0 %v3179
        %v7056 = vpop.f32.mrf.mxu0
        %v7057 = vadd.f32 %v3196, %v7056
        %v7058 = vpop.f32.mrf.mxu0
        %v7059 = vadd.f32 %v3196, %v7058
        %7060 = vmatmul.bf16.gmra.mxu0 %v3183
        %v7061 = vpop.f32.mrf.mxu0
        %v7062 = vadd.f32 %v3196, %v7061
        %v7063 = vpop.f32.mrf.mxu0
        %v7064 = vadd.f32 %v3196, %v7063
        %7065 = vdwg.mxu0
        %7066 = vmatpush.bf16.msra.mxu0 %v4100
        %7067 = vmatpush.bf16.msra.mxu0 %v4092
        %7068 = vmatpush.bf16.msra.mxu0 %v4084
        %7069 = vmatpush.bf16.msra.mxu0 %v4076
        %7070 = vmatpush.bf16.msra.mxu0 %v4068
        %7071 = vmatpush.bf16.msra.mxu0 %v4060
        %7072 = vmatpush.bf16.msra.mxu0 %v4052
        %7073 = vmatpush.bf16.msra.mxu0 %v4044
        %7074 = vmatmul.bf16.gmra.mxu0 %v3124
        %v7075 = vpop.f32.mrf.mxu0
        %v7076 = vadd.f32 %v6987, %v7075
        %v7077 = vpop.f32.mrf.mxu0
        %v7078 = vadd.f32 %v6989, %v7077
        %7079 = vmatmul.bf16.gmra.mxu0 %v3128
        %v7080 = vpop.f32.mrf.mxu0
        %v7081 = vadd.f32 %v6992, %v7080
        %v7082 = vpop.f32.mrf.mxu0
        %v7083 = vadd.f32 %v6994, %v7082
        %7084 = vmatmul.bf16.gmra.mxu0 %v3132
        %v7085 = vpop.f32.mrf.mxu0
        %v7086 = vadd.f32 %v6997, %v7085
        %v7087 = vpop.f32.mrf.mxu0
        %v7088 = vadd.f32 %v6999, %v7087
        %7089 = vmatmul.bf16.gmra.mxu0 %v3136
        %v7090 = vpop.f32.mrf.mxu0
        %v7091 = vadd.f32 %v7002, %v7090
        %v7092 = vpop.f32.mrf.mxu0
        %v7093 = vadd.f32 %v7004, %v7092
        %7094 = vmatmul.bf16.gmra.mxu0 %v3140
        %v7095 = vpop.f32.mrf.mxu0
        %v7096 = vadd.f32 %v7007, %v7095
        %v7097 = vpop.f32.mrf.mxu0
        %v7098 = vadd.f32 %v7009, %v7097
        %7099 = vmatmul.bf16.gmra.mxu0 %v3144
        %v7100 = vpop.f32.mrf.mxu0
        %v7101 = vadd.f32 %v7012, %v7100
        %v7102 = vpop.f32.mrf.mxu0
        %v7103 = vadd.f32 %v7014, %v7102
        %7104 = vmatmul.bf16.gmra.mxu0 %v3148
        %v7105 = vpop.f32.mrf.mxu0
        %v7106 = vadd.f32 %v7017, %v7105
        %v7107 = vpop.f32.mrf.mxu0
        %v7108 = vadd.f32 %v7019, %v7107
        %7109 = vmatmul.bf16.gmra.mxu0 %v3152
        %v7110 = vpop.f32.mrf.mxu0
        %v7111 = vadd.f32 %v7022, %v7110
        %v7112 = vpop.f32.mrf.mxu0
        %v7113 = vadd.f32 %v7024, %v7112
        %7114 = vmatmul.bf16.gmra.mxu0 %v3156
        %v7115 = vpop.f32.mrf.mxu0
        %v7116 = vadd.f32 %v7027, %v7115
        %v7117 = vpop.f32.mrf.mxu0
        %v7118 = vadd.f32 %v7029, %v7117
        %7119 = vmatmul.bf16.gmra.mxu0 %v3160
        %v7120 = vpop.f32.mrf.mxu0
        %v7121 = vadd.f32 %v7032, %v7120
        %v7122 = vpop.f32.mrf.mxu0
        %v7123 = vadd.f32 %v7034, %v7122
        %7124 = vmatmul.bf16.gmra.mxu0 %v3164
        %v7125 = vpop.f32.mrf.mxu0
        %v7126 = vadd.f32 %v7037, %v7125
        %v7127 = vpop.f32.mrf.mxu0
        %v7128 = vadd.f32 %v7039, %v7127
        %7129 = vmatmul.bf16.gmra.mxu0 %v3168
        %v7130 = vpop.f32.mrf.mxu0
        %v7131 = vadd.f32 %v7042, %v7130
        %v7132 = vpop.f32.mrf.mxu0
        %v7133 = vadd.f32 %v7044, %v7132
        %7134 = vmatmul.bf16.gmra.mxu0 %v3172
        %v7135 = vpop.f32.mrf.mxu0
        %v7136 = vadd.f32 %v7047, %v7135
        %v7137 = vpop.f32.mrf.mxu0
        %v7138 = vadd.f32 %v7049, %v7137
        %7139 = vmatmul.bf16.gmra.mxu0 %v3176
        %v7140 = vpop.f32.mrf.mxu0
        %v7141 = vadd.f32 %v7052, %v7140
        %v7142 = vpop.f32.mrf.mxu0
        %v7143 = vadd.f32 %v7054, %v7142
        %7144 = vmatmul.bf16.gmra.mxu0 %v3180
        %v7145 = vpop.f32.mrf.mxu0
        %v7146 = vadd.f32 %v7057, %v7145
        %v7147 = vpop.f32.mrf.mxu0
        %v7148 = vadd.f32 %v7059, %v7147
        %7149 = vmatmul.bf16.gmra.mxu0 %v3184
        %v7150 = vpop.f32.mrf.mxu0
        %v7151 = vadd.f32 %v7062, %v7150
        %v7152 = vpop.f32.mrf.mxu0
        %v7153 = vadd.f32 %v7064, %v7152
        %7154 = vdwg.mxu0
        %7155 = vmatpush.bf16.msra.mxu0 %v4164
        %7156 = vmatpush.bf16.msra.mxu0 %v4156
        %7157 = vmatpush.bf16.msra.mxu0 %v4148
        %7158 = vmatpush.bf16.msra.mxu0 %v4140
        %7159 = vmatpush.bf16.msra.mxu0 %v4132
        %7160 = vmatpush.bf16.msra.mxu0 %v4124
        %7161 = vmatpush.bf16.msra.mxu0 %v4116
        %7162 = vmatpush.bf16.msra.mxu0 %v4108
        %7163 = vmatmul.bf16.gmra.mxu0 %v3125
        %v7164 = vpop.f32.mrf.mxu0
        %v7165 = vadd.f32 %v7076, %v7164
        %v7166 = vpop.f32.mrf.mxu0
        %v7167 = vadd.f32 %v7078, %v7166
        %7168 = vmatmul.bf16.gmra.mxu0 %v3129
        %v7169 = vpop.f32.mrf.mxu0
        %v7170 = vadd.f32 %v7081, %v7169
        %v7171 = vpop.f32.mrf.mxu0
        %v7172 = vadd.f32 %v7083, %v7171
        %7173 = vmatmul.bf16.gmra.mxu0 %v3133
        %v7174 = vpop.f32.mrf.mxu0
        %v7175 = vadd.f32 %v7086, %v7174
        %v7176 = vpop.f32.mrf.mxu0
        %v7177 = vadd.f32 %v7088, %v7176
        %7178 = vmatmul.bf16.gmra.mxu0 %v3137
        %v7179 = vpop.f32.mrf.mxu0
        %v7180 = vadd.f32 %v7091, %v7179
        %v7181 = vpop.f32.mrf.mxu0
        %v7182 = vadd.f32 %v7093, %v7181
        %7183 = vmatmul.bf16.gmra.mxu0 %v3141
        %v7184 = vpop.f32.mrf.mxu0
        %v7185 = vadd.f32 %v7096, %v7184
        %v7186 = vpop.f32.mrf.mxu0
        %v7187 = vadd.f32 %v7098, %v7186
        %7188 = vmatmul.bf16.gmra.mxu0 %v3145
        %v7189 = vpop.f32.mrf.mxu0
        %v7190 = vadd.f32 %v7101, %v7189
        %v7191 = vpop.f32.mrf.mxu0
        %v7192 = vadd.f32 %v7103, %v7191
        %7193 = vmatmul.bf16.gmra.mxu0 %v3149
        %v7194 = vpop.f32.mrf.mxu0
        %v7195 = vadd.f32 %v7106, %v7194
        %v7196 = vpop.f32.mrf.mxu0
        %v7197 = vadd.f32 %v7108, %v7196
        %7198 = vmatmul.bf16.gmra.mxu0 %v3153
        %v7199 = vpop.f32.mrf.mxu0
        %v7200 = vadd.f32 %v7111, %v7199
        %v7201 = vpop.f32.mrf.mxu0
        %v7202 = vadd.f32 %v7113, %v7201
        %7203 = vmatmul.bf16.gmra.mxu0 %v3157
        %v7204 = vpop.f32.mrf.mxu0
        %v7205 = vadd.f32 %v7116, %v7204
        %v7206 = vpop.f32.mrf.mxu0
        %v7207 = vadd.f32 %v7118, %v7206
        %7208 = vmatmul.bf16.gmra.mxu0 %v3161
        %v7209 = vpop.f32.mrf.mxu0
        %v7210 = vadd.f32 %v7121, %v7209
        %v7211 = vpop.f32.mrf.mxu0
        %v7212 = vadd.f32 %v7123, %v7211
        %7213 = vmatmul.bf16.gmra.mxu0 %v3165
        %v7214 = vpop.f32.mrf.mxu0
        %v7215 = vadd.f32 %v7126, %v7214
        %v7216 = vpop.f32.mrf.mxu0
        %v7217 = vadd.f32 %v7128, %v7216
        %7218 = vmatmul.bf16.gmra.mxu0 %v3169
        %v7219 = vpop.f32.mrf.mxu0
        %v7220 = vadd.f32 %v7131, %v7219
        %v7221 = vpop.f32.mrf.mxu0
        %v7222 = vadd.f32 %v7133, %v7221
        %7223 = vmatmul.bf16.gmra.mxu0 %v3173
        %v7224 = vpop.f32.mrf.mxu0
        %v7225 = vadd.f32 %v7136, %v7224
        %v7226 = vpop.f32.mrf.mxu0
        %v7227 = vadd.f32 %v7138, %v7226
        %7228 = vmatmul.bf16.gmra.mxu0 %v3177
        %v7229 = vpop.f32.mrf.mxu0
        %v7230 = vadd.f32 %v7141, %v7229
        %v7231 = vpop.f32.mrf.mxu0
        %v7232 = vadd.f32 %v7143, %v7231
        %7233 = vmatmul.bf16.gmra.mxu0 %v3181
        %v7234 = vpop.f32.mrf.mxu0
        %v7235 = vadd.f32 %v7146, %v7234
        %v7236 = vpop.f32.mrf.mxu0
        %v7237 = vadd.f32 %v7148, %v7236
        %7238 = vmatmul.bf16.gmra.mxu0 %v3185
        %v7239 = vpop.f32.mrf.mxu0
        %v7240 = vadd.f32 %v7151, %v7239
        %v7241 = vpop.f32.mrf.mxu0
        %v7242 = vadd.f32 %v7153, %v7241
        %7243 = vdwg.mxu0
        %7244 = vmatpush.bf16.msra.mxu0 %v4228
        %7245 = vmatpush.bf16.msra.mxu0 %v4220
        %7246 = vmatpush.bf16.msra.mxu0 %v4212
        %7247 = vmatpush.bf16.msra.mxu0 %v4204
        %7248 = vmatpush.bf16.msra.mxu0 %v4196
        %7249 = vmatpush.bf16.msra.mxu0 %v4188
        %7250 = vmatpush.bf16.msra.mxu0 %v4180
        %7251 = vmatpush.bf16.msra.mxu0 %v4172
        %7252 = vmatmul.bf16.gmra.mxu0 %v3126
        %v7253 = vpop.f32.mrf.mxu0
        %v7254 = vadd.f32 %v7165, %v7253
        %v7255 = vpop.f32.mrf.mxu0
        %v7256 = vadd.f32 %v7167, %v7255
        %7257 = vmatmul.bf16.gmra.mxu0 %v3130
        %v7258 = vpop.f32.mrf.mxu0
        %v7259 = vadd.f32 %v7170, %v7258
        %v7260 = vpop.f32.mrf.mxu0
        %v7261 = vadd.f32 %v7172, %v7260
        %7262 = vmatmul.bf16.gmra.mxu0 %v3134
        %v7263 = vpop.f32.mrf.mxu0
        %v7264 = vadd.f32 %v7175, %v7263
        %v7265 = vpop.f32.mrf.mxu0
        %v7266 = vadd.f32 %v7177, %v7265
        %7267 = vmatmul.bf16.gmra.mxu0 %v3138
        %v7268 = vpop.f32.mrf.mxu0
        %v7269 = vadd.f32 %v7180, %v7268
        %v7270 = vpop.f32.mrf.mxu0
        %v7271 = vadd.f32 %v7182, %v7270
        %7272 = vmatmul.bf16.gmra.mxu0 %v3142
        %v7273 = vpop.f32.mrf.mxu0
        %v7274 = vadd.f32 %v7185, %v7273
        %v7275 = vpop.f32.mrf.mxu0
        %v7276 = vadd.f32 %v7187, %v7275
        %7277 = vmatmul.bf16.gmra.mxu0 %v3146
        %v7278 = vpop.f32.mrf.mxu0
        %v7279 = vadd.f32 %v7190, %v7278
        %v7280 = vpop.f32.mrf.mxu0
        %v7281 = vadd.f32 %v7192, %v7280
        %7282 = vmatmul.bf16.gmra.mxu0 %v3150
        %v7283 = vpop.f32.mrf.mxu0
        %v7284 = vadd.f32 %v7195, %v7283
        %v7285 = vpop.f32.mrf.mxu0
        %v7286 = vadd.f32 %v7197, %v7285
        %7287 = vmatmul.bf16.gmra.mxu0 %v3154
        %v7288 = vpop.f32.mrf.mxu0
        %v7289 = vadd.f32 %v7200, %v7288
        %v7290 = vpop.f32.mrf.mxu0
        %v7291 = vadd.f32 %v7202, %v7290
        %7292 = vmatmul.bf16.gmra.mxu0 %v3158
        %v7293 = vpop.f32.mrf.mxu0
        %v7294 = vadd.f32 %v7205, %v7293
        %v7295 = vpop.f32.mrf.mxu0
        %v7296 = vadd.f32 %v7207, %v7295
        %7297 = vmatmul.bf16.gmra.mxu0 %v3162
        %v7298 = vpop.f32.mrf.mxu0
        %v7299 = vadd.f32 %v7210, %v7298
        %v7300 = vpop.f32.mrf.mxu0
        %v7301 = vadd.f32 %v7212, %v7300
        %7302 = vmatmul.bf16.gmra.mxu0 %v3166
        %v7303 = vpop.f32.mrf.mxu0
        %v7304 = vadd.f32 %v7215, %v7303
        %v7305 = vpop.f32.mrf.mxu0
        %v7306 = vadd.f32 %v7217, %v7305
        %7307 = vmatmul.bf16.gmra.mxu0 %v3170
        %v7308 = vpop.f32.mrf.mxu0
        %v7309 = vadd.f32 %v7220, %v7308
        %v7310 = vpop.f32.mrf.mxu0
        %v7311 = vadd.f32 %v7222, %v7310
        %7312 = vmatmul.bf16.gmra.mxu0 %v3174
        %v7313 = vpop.f32.mrf.mxu0
        %v7314 = vadd.f32 %v7225, %v7313
        %v7315 = vpop.f32.mrf.mxu0
        %v7316 = vadd.f32 %v7227, %v7315
        %7317 = vmatmul.bf16.gmra.mxu0 %v3178
        %v7318 = vpop.f32.mrf.mxu0
        %v7319 = vadd.f32 %v7230, %v7318
        %v7320 = vpop.f32.mrf.mxu0
        %v7321 = vadd.f32 %v7232, %v7320
        %7322 = vmatmul.bf16.gmra.mxu0 %v3182
        %v7323 = vpop.f32.mrf.mxu0
        %v7324 = vadd.f32 %v7235, %v7323
        %v7325 = vpop.f32.mrf.mxu0
        %v7326 = vadd.f32 %v7237, %v7325
        %7327 = vmatmul.bf16.gmra.mxu0 %v3186
        %v7328 = vpop.f32.mrf.mxu0
        %v7329 = vadd.f32 %v7240, %v7328
        %v7330 = vpop.f32.mrf.mxu0
        %v7331 = vadd.f32 %v7242, %v7330
        %7332 = vdwg.mxu0
        %v7333 = vmax.f32 %v4762, 0.0
        %v7334 = vmax.f32 %v5118, 0.0
        %v7335 = vmax.f32 %v5474, 0.0
        %v7336 = vmax.f32 %v5830, 0.0
        %v7337 = vmax.f32 %v6186, 0.0
        %v7338 = vmax.f32 %v6542, 0.0
        %v7339 = vmax.f32 %v6898, 0.0
        %v7340 = vmax.f32 %v7254, 0.0
        %v7341 = vmax.f32 %v4764, 0.0
        %v7342 = vmax.f32 %v5120, 0.0
        %v7343 = vmax.f32 %v5476, 0.0
        %v7344 = vmax.f32 %v5832, 0.0
        %v7345 = vmax.f32 %v6188, 0.0
        %v7346 = vmax.f32 %v6544, 0.0
        %v7347 = vmax.f32 %v6900, 0.0
        %v7348 = vmax.f32 %v7256, 0.0
        %v7349 = vmax.f32 %v4767, 0.0
        %v7350 = vmax.f32 %v5123, 0.0
        %v7351 = vmax.f32 %v5479, 0.0
        %v7352 = vmax.f32 %v5835, 0.0
        %v7353 = vmax.f32 %v6191, 0.0
        %v7354 = vmax.f32 %v6547, 0.0
        %v7355 = vmax.f32 %v6903, 0.0
        %v7356 = vmax.f32 %v7259, 0.0
        %v7357 = vmax.f32 %v4769, 0.0
        %v7358 = vmax.f32 %v5125, 0.0
        %v7359 = vmax.f32 %v5481, 0.0
        %v7360 = vmax.f32 %v5837, 0.0
        %v7361 = vmax.f32 %v6193, 0.0
        %v7362 = vmax.f32 %v6549, 0.0
        %v7363 = vmax.f32 %v6905, 0.0
        %v7364 = vmax.f32 %v7261, 0.0
        %v7365 = vmax.f32 %v4772, 0.0
        %v7366 = vmax.f32 %v5128, 0.0
        %v7367 = vmax.f32 %v5484, 0.0
        %v7368 = vmax.f32 %v5840, 0.0
        %v7369 = vmax.f32 %v6196, 0.0
        %v7370 = vmax.f32 %v6552, 0.0
        %v7371 = vmax.f32 %v6908, 0.0
        %v7372 = vmax.f32 %v7264, 0.0
        %v7373 = vmax.f32 %v4774, 0.0
        %v7374 = vmax.f32 %v5130, 0.0
        %v7375 = vmax.f32 %v5486, 0.0
        %v7376 = vmax.f32 %v5842, 0.0
        %v7377 = vmax.f32 %v6198, 0.0
        %v7378 = vmax.f32 %v6554, 0.0
        %v7379 = vmax.f32 %v6910, 0.0
        %v7380 = vmax.f32 %v7266, 0.0
        %v7381 = vmax.f32 %v4777, 0.0
        %v7382 = vmax.f32 %v5133, 0.0
        %v7383 = vmax.f32 %v5489, 0.0
        %v7384 = vmax.f32 %v5845, 0.0
        %v7385 = vmax.f32 %v6201, 0.0
        %v7386 = vmax.f32 %v6557, 0.0
        %v7387 = vmax.f32 %v6913, 0.0
        %v7388 = vmax.f32 %v7269, 0.0
        %v7389 = vmax.f32 %v4779, 0.0
        %v7390 = vmax.f32 %v5135, 0.0
        %v7391 = vmax.f32 %v5491, 0.0
        %v7392 = vmax.f32 %v5847, 0.0
        %v7393 = vmax.f32 %v6203, 0.0
        %v7394 = vmax.f32 %v6559, 0.0
        %v7395 = vmax.f32 %v6915, 0.0
        %v7396 = vmax.f32 %v7271, 0.0
        %v7397 = vmax.f32 %v4782, 0.0
        %v7398 = vmax.f32 %v5138, 0.0
        %v7399 = vmax.f32 %v5494, 0.0
        %v7400 = vmax.f32 %v5850, 0.0
        %v7401 = vmax.f32 %v6206, 0.0
        %v7402 = vmax.f32 %v6562, 0.0
        %v7403 = vmax.f32 %v6918, 0.0
        %v7404 = vmax.f32 %v7274, 0.0
        %v7405 = vmax.f32 %v4784, 0.0
        %v7406 = vmax.f32 %v5140, 0.0
        %v7407 = vmax.f32 %v5496, 0.0
        %v7408 = vmax.f32 %v5852, 0.0
        %v7409 = vmax.f32 %v6208, 0.0
        %v7410 = vmax.f32 %v6564, 0.0
        %v7411 = vmax.f32 %v6920, 0.0
        %v7412 = vmax.f32 %v7276, 0.0
        %v7413 = vmax.f32 %v4787, 0.0
        %v7414 = vmax.f32 %v5143, 0.0
        %v7415 = vmax.f32 %v5499, 0.0
        %v7416 = vmax.f32 %v5855, 0.0
        %v7417 = vmax.f32 %v6211, 0.0
        %v7418 = vmax.f32 %v6567, 0.0
        %v7419 = vmax.f32 %v6923, 0.0
        %v7420 = vmax.f32 %v7279, 0.0
        %v7421 = vmax.f32 %v4789, 0.0
        %v7422 = vmax.f32 %v5145, 0.0
        %v7423 = vmax.f32 %v5501, 0.0
        %v7424 = vmax.f32 %v5857, 0.0
        %v7425 = vmax.f32 %v6213, 0.0
        %v7426 = vmax.f32 %v6569, 0.0
        %v7427 = vmax.f32 %v6925, 0.0
        %v7428 = vmax.f32 %v7281, 0.0
        %v7429 = vmax.f32 %v4792, 0.0
        %v7430 = vmax.f32 %v5148, 0.0
        %v7431 = vmax.f32 %v5504, 0.0
        %v7432 = vmax.f32 %v5860, 0.0
        %v7433 = vmax.f32 %v6216, 0.0
        %v7434 = vmax.f32 %v6572, 0.0
        %v7435 = vmax.f32 %v6928, 0.0
        %v7436 = vmax.f32 %v7284, 0.0
        %v7437 = vmax.f32 %v4794, 0.0
        %v7438 = vmax.f32 %v5150, 0.0
        %v7439 = vmax.f32 %v5506, 0.0
        %v7440 = vmax.f32 %v5862, 0.0
        %v7441 = vmax.f32 %v6218, 0.0
        %v7442 = vmax.f32 %v6574, 0.0
        %v7443 = vmax.f32 %v6930, 0.0
        %v7444 = vmax.f32 %v7286, 0.0
        %v7445 = vmax.f32 %v4797, 0.0
        %v7446 = vmax.f32 %v5153, 0.0
        %v7447 = vmax.f32 %v5509, 0.0
        %v7448 = vmax.f32 %v5865, 0.0
        %v7449 = vmax.f32 %v6221, 0.0
        %v7450 = vmax.f32 %v6577, 0.0
        %v7451 = vmax.f32 %v6933, 0.0
        %v7452 = vmax.f32 %v7289, 0.0
        %v7453 = vmax.f32 %v4799, 0.0
        %v7454 = vmax.f32 %v5155, 0.0
        %v7455 = vmax.f32 %v5511, 0.0
        %v7456 = vmax.f32 %v5867, 0.0
        %v7457 = vmax.f32 %v6223, 0.0
        %v7458 = vmax.f32 %v6579, 0.0
        %v7459 = vmax.f32 %v6935, 0.0
        %v7460 = vmax.f32 %v7291, 0.0
        %v7461 = vmax.f32 %v4802, 0.0
        %v7462 = vmax.f32 %v5158, 0.0
        %v7463 = vmax.f32 %v5514, 0.0
        %v7464 = vmax.f32 %v5870, 0.0
        %v7465 = vmax.f32 %v6226, 0.0
        %v7466 = vmax.f32 %v6582, 0.0
        %v7467 = vmax.f32 %v6938, 0.0
        %v7468 = vmax.f32 %v7294, 0.0
        %v7469 = vmax.f32 %v4804, 0.0
        %v7470 = vmax.f32 %v5160, 0.0
        %v7471 = vmax.f32 %v5516, 0.0
        %v7472 = vmax.f32 %v5872, 0.0
        %v7473 = vmax.f32 %v6228, 0.0
        %v7474 = vmax.f32 %v6584, 0.0
        %v7475 = vmax.f32 %v6940, 0.0
        %v7476 = vmax.f32 %v7296, 0.0
        %v7477 = vmax.f32 %v4807, 0.0
        %v7478 = vmax.f32 %v5163, 0.0
        %v7479 = vmax.f32 %v5519, 0.0
        %v7480 = vmax.f32 %v5875, 0.0
        %v7481 = vmax.f32 %v6231, 0.0
        %v7482 = vmax.f32 %v6587, 0.0
        %v7483 = vmax.f32 %v6943, 0.0
        %v7484 = vmax.f32 %v7299, 0.0
        %v7485 = vmax.f32 %v4809, 0.0
        %v7486 = vmax.f32 %v5165, 0.0
        %v7487 = vmax.f32 %v5521, 0.0
        %v7488 = vmax.f32 %v5877, 0.0
        %v7489 = vmax.f32 %v6233, 0.0
        %v7490 = vmax.f32 %v6589, 0.0
        %v7491 = vmax.f32 %v6945, 0.0
        %v7492 = vmax.f32 %v7301, 0.0
        %v7493 = vmax.f32 %v4812, 0.0
        %v7494 = vmax.f32 %v5168, 0.0
        %v7495 = vmax.f32 %v5524, 0.0
        %v7496 = vmax.f32 %v5880, 0.0
        %v7497 = vmax.f32 %v6236, 0.0
        %v7498 = vmax.f32 %v6592, 0.0
        %v7499 = vmax.f32 %v6948, 0.0
        %v7500 = vmax.f32 %v7304, 0.0
        %v7501 = vmax.f32 %v4814, 0.0
        %v7502 = vmax.f32 %v5170, 0.0
        %v7503 = vmax.f32 %v5526, 0.0
        %v7504 = vmax.f32 %v5882, 0.0
        %v7505 = vmax.f32 %v6238, 0.0
        %v7506 = vmax.f32 %v6594, 0.0
        %v7507 = vmax.f32 %v6950, 0.0
        %v7508 = vmax.f32 %v7306, 0.0
        %v7509 = vmax.f32 %v4817, 0.0
        %v7510 = vmax.f32 %v5173, 0.0
        %v7511 = vmax.f32 %v5529, 0.0
        %v7512 = vmax.f32 %v5885, 0.0
        %v7513 = vmax.f32 %v6241, 0.0
        %v7514 = vmax.f32 %v6597, 0.0
        %v7515 = vmax.f32 %v6953, 0.0
        %v7516 = vmax.f32 %v7309, 0.0
        %v7517 = vmax.f32 %v4819, 0.0
        %v7518 = vmax.f32 %v5175, 0.0
        %v7519 = vmax.f32 %v5531, 0.0
        %v7520 = vmax.f32 %v5887, 0.0
        %v7521 = vmax.f32 %v6243, 0.0
        %v7522 = vmax.f32 %v6599, 0.0
        %v7523 = vmax.f32 %v6955, 0.0
        %v7524 = vmax.f32 %v7311, 0.0
        %v7525 = vmax.f32 %v4822, 0.0
        %v7526 = vmax.f32 %v5178, 0.0
        %v7527 = vmax.f32 %v5534, 0.0
        %v7528 = vmax.f32 %v5890, 0.0
        %v7529 = vmax.f32 %v6246, 0.0
        %v7530 = vmax.f32 %v6602, 0.0
        %v7531 = vmax.f32 %v6958, 0.0
        %v7532 = vmax.f32 %v7314, 0.0
        %v7533 = vmax.f32 %v4824, 0.0
        %v7534 = vmax.f32 %v5180, 0.0
        %v7535 = vmax.f32 %v5536, 0.0
        %v7536 = vmax.f32 %v5892, 0.0
        %v7537 = vmax.f32 %v6248, 0.0
        %v7538 = vmax.f32 %v6604, 0.0
        %v7539 = vmax.f32 %v6960, 0.0
        %v7540 = vmax.f32 %v7316, 0.0
        %v7541 = vmax.f32 %v4827, 0.0
        %v7542 = vmax.f32 %v5183, 0.0
        %v7543 = vmax.f32 %v5539, 0.0
        %v7544 = vmax.f32 %v5895, 0.0
        %v7545 = vmax.f32 %v6251, 0.0
        %v7546 = vmax.f32 %v6607, 0.0
        %v7547 = vmax.f32 %v6963, 0.0
        %v7548 = vmax.f32 %v7319, 0.0
        %v7549 = vmax.f32 %v4829, 0.0
        %v7550 = vmax.f32 %v5185, 0.0
        %v7551 = vmax.f32 %v5541, 0.0
        %v7552 = vmax.f32 %v5897, 0.0
        %v7553 = vmax.f32 %v6253, 0.0
        %v7554 = vmax.f32 %v6609, 0.0
        %v7555 = vmax.f32 %v6965, 0.0
        %v7556 = vmax.f32 %v7321, 0.0
        %v7557 = vmax.f32 %v4832, 0.0
        %v7558 = vmax.f32 %v5188, 0.0
        %v7559 = vmax.f32 %v5544, 0.0
        %v7560 = vmax.f32 %v5900, 0.0
        %v7561 = vmax.f32 %v6256, 0.0
        %v7562 = vmax.f32 %v6612, 0.0
        %v7563 = vmax.f32 %v6968, 0.0
        %v7564 = vmax.f32 %v7324, 0.0
        %v7565 = vmax.f32 %v4834, 0.0
        %v7566 = vmax.f32 %v5190, 0.0
        %v7567 = vmax.f32 %v5546, 0.0
        %v7568 = vmax.f32 %v5902, 0.0
        %v7569 = vmax.f32 %v6258, 0.0
        %v7570 = vmax.f32 %v6614, 0.0
        %v7571 = vmax.f32 %v6970, 0.0
        %v7572 = vmax.f32 %v7326, 0.0
        %v7573 = vmax.f32 %v4837, 0.0
        %v7574 = vmax.f32 %v5193, 0.0
        %v7575 = vmax.f32 %v5549, 0.0
        %v7576 = vmax.f32 %v5905, 0.0
        %v7577 = vmax.f32 %v6261, 0.0
        %v7578 = vmax.f32 %v6617, 0.0
        %v7579 = vmax.f32 %v6973, 0.0
        %v7580 = vmax.f32 %v7329, 0.0
        %v7581 = vmax.f32 %v4839, 0.0
        %v7582 = vmax.f32 %v5195, 0.0
        %v7583 = vmax.f32 %v5551, 0.0
        %v7584 = vmax.f32 %v5907, 0.0
        %v7585 = vmax.f32 %v6263, 0.0
        %v7586 = vmax.f32 %v6619, 0.0
        %v7587 = vmax.f32 %v6975, 0.0
        %v7588 = vmax.f32 %v7331, 0.0
        %v7589 = vld [vmem:[%s13] sm:$0xf]
        %v7590 = vld [vmem:[%s13 + $0x4] sm:$0xf]
        %v7591 = vld [vmem:[%s13 + $0x8] sm:$0xf]
        %v7592 = vld [vmem:[%s13 + $0xc] sm:$0xf]
        %v7593 = vld [vmem:[%s13 + $0x10] sm:$0xf]
        %v7594 = vld [vmem:[%s13 + $0x14] sm:$0xf]
        %v7595 = vld [vmem:[%s13 + $0x18] sm:$0xf]
        %v7596 = vld [vmem:[%s13 + $0x1c] sm:$0xf]
        %v7597 = vld [vmem:[%s13 + $0x20] sm:$0xf]
        %v7598 = vld [vmem:[%s13 + $0x24] sm:$0xf]
        %v7599 = vld [vmem:[%s13 + $0x28] sm:$0xf]
        %v7600 = vld [vmem:[%s13 + $0x2c] sm:$0xf]
        %v7601 = vld [vmem:[%s13 + $0x30] sm:$0xf]
        %v7602 = vld [vmem:[%s13 + $0x34] sm:$0xf]
        %v7603 = vld [vmem:[%s13 + $0x38] sm:$0xf]
        %v7604 = vld [vmem:[%s13 + $0x3c] sm:$0xf]
        %v7605 = vld [vmem:[%s13 + $0x40] sm:$0xf]
        %v7606 = vld [vmem:[%s13 + $0x44] sm:$0xf]
        %v7607 = vld [vmem:[%s13 + $0x48] sm:$0xf]
        %v7608 = vld [vmem:[%s13 + $0x4c] sm:$0xf]
        %v7609 = vld [vmem:[%s13 + $0x50] sm:$0xf]
        %v7610 = vld [vmem:[%s13 + $0x54] sm:$0xf]
        %v7611 = vld [vmem:[%s13 + $0x58] sm:$0xf]
        %v7612 = vld [vmem:[%s13 + $0x5c] sm:$0xf]
        %v7613 = vld [vmem:[%s13 + $0x60] sm:$0xf]
        %v7614 = vld [vmem:[%s13 + $0x64] sm:$0xf]
        %v7615 = vld [vmem:[%s13 + $0x68] sm:$0xf]
        %v7616 = vld [vmem:[%s13 + $0x6c] sm:$0xf]
        %v7617 = vld [vmem:[%s13 + $0x70] sm:$0xf]
        %v7618 = vld [vmem:[%s13 + $0x74] sm:$0xf]
        %v7619 = vld [vmem:[%s13 + $0x78] sm:$0xf]
        %v7620 = vld [vmem:[%s13 + $0x7c] sm:$0xf]
        %v7621 = vld [vmem:[%s13 + $0x80] sm:$0xf]
        %v7622 = vld [vmem:[%s13 + $0x84] sm:$0xf]
        %v7623 = vld [vmem:[%s13 + $0x88] sm:$0xf]
        %v7624 = vld [vmem:[%s13 + $0x8c] sm:$0xf]
        %v7625 = vld [vmem:[%s13 + $0x90] sm:$0xf]
        %v7626 = vld [vmem:[%s13 + $0x94] sm:$0xf]
        %v7627 = vld [vmem:[%s13 + $0x98] sm:$0xf]
        %v7628 = vld [vmem:[%s13 + $0x9c] sm:$0xf]
        %v7629 = vld [vmem:[%s13 + $0xa0] sm:$0xf]
        %v7630 = vld [vmem:[%s13 + $0xa4] sm:$0xf]
        %v7631 = vld [vmem:[%s13 + $0xa8] sm:$0xf]
        %v7632 = vld [vmem:[%s13 + $0xac] sm:$0xf]
        %v7633 = vld [vmem:[%s13 + $0xb0] sm:$0xf]
        %v7634 = vld [vmem:[%s13 + $0xb4] sm:$0xf]
        %v7635 = vld [vmem:[%s13 + $0xb8] sm:$0xf]
        %v7636 = vld [vmem:[%s13 + $0xbc] sm:$0xf]
        %v7637 = vld [vmem:[%s13 + $0xc0] sm:$0xf]
        %v7638 = vld [vmem:[%s13 + $0xc4] sm:$0xf]
        %v7639 = vld [vmem:[%s13 + $0xc8] sm:$0xf]
        %v7640 = vld [vmem:[%s13 + $0xcc] sm:$0xf]
        %v7641 = vld [vmem:[%s13 + $0xd0] sm:$0xf]
        %v7642 = vld [vmem:[%s13 + $0xd4] sm:$0xf]
        %v7643 = vld [vmem:[%s13 + $0xd8] sm:$0xf]
        %v7644 = vld [vmem:[%s13 + $0xdc] sm:$0xf]
        %v7645 = vld [vmem:[%s13 + $0xe0] sm:$0xf]
        %v7646 = vld [vmem:[%s13 + $0xe4] sm:$0xf]
        %v7647 = vld [vmem:[%s13 + $0xe8] sm:$0xf]
        %v7648 = vld [vmem:[%s13 + $0xec] sm:$0xf]
        %v7649 = vld [vmem:[%s13 + $0xf0] sm:$0xf]
        %v7650 = vld [vmem:[%s13 + $0xf4] sm:$0xf]
        %v7651 = vld [vmem:[%s13 + $0xf8] sm:$0xf]
        %v7652 = vld [vmem:[%s13 + $0xfc] sm:$0xf]
        %v7653 = vld [vmem:[%s13 + $0x100] sm:$0xf]
        %v7654 = vld [vmem:[%s13 + $0x104] sm:$0xf]
        %v7655 = vld [vmem:[%s13 + $0x108] sm:$0xf]
        %v7656 = vld [vmem:[%s13 + $0x10c] sm:$0xf]
        %v7657 = vld [vmem:[%s13 + $0x110] sm:$0xf]
        %v7658 = vld [vmem:[%s13 + $0x114] sm:$0xf]
        %v7659 = vld [vmem:[%s13 + $0x118] sm:$0xf]
        %v7660 = vld [vmem:[%s13 + $0x11c] sm:$0xf]
        %v7661 = vld [vmem:[%s13 + $0x120] sm:$0xf]
        %v7662 = vld [vmem:[%s13 + $0x124] sm:$0xf]
        %v7663 = vld [vmem:[%s13 + $0x128] sm:$0xf]
        %v7664 = vld [vmem:[%s13 + $0x12c] sm:$0xf]
        %v7665 = vld [vmem:[%s13 + $0x130] sm:$0xf]
        %v7666 = vld [vmem:[%s13 + $0x134] sm:$0xf]
        %v7667 = vld [vmem:[%s13 + $0x138] sm:$0xf]
        %v7668 = vld [vmem:[%s13 + $0x13c] sm:$0xf]
        %v7669 = vld [vmem:[%s13 + $0x140] sm:$0xf]
        %v7670 = vld [vmem:[%s13 + $0x144] sm:$0xf]
        %v7671 = vld [vmem:[%s13 + $0x148] sm:$0xf]
        %v7672 = vld [vmem:[%s13 + $0x14c] sm:$0xf]
        %v7673 = vld [vmem:[%s13 + $0x150] sm:$0xf]
        %v7674 = vld [vmem:[%s13 + $0x154] sm:$0xf]
        %v7675 = vld [vmem:[%s13 + $0x158] sm:$0xf]
        %v7676 = vld [vmem:[%s13 + $0x15c] sm:$0xf]
        %v7677 = vld [vmem:[%s13 + $0x160] sm:$0xf]
        %v7678 = vld [vmem:[%s13 + $0x164] sm:$0xf]
        %v7679 = vld [vmem:[%s13 + $0x168] sm:$0xf]
        %v7680 = vld [vmem:[%s13 + $0x16c] sm:$0xf]
        %v7681 = vld [vmem:[%s13 + $0x170] sm:$0xf]
        %v7682 = vld [vmem:[%s13 + $0x174] sm:$0xf]
        %v7683 = vld [vmem:[%s13 + $0x178] sm:$0xf]
        %v7684 = vld [vmem:[%s13 + $0x17c] sm:$0xf]
        %v7685 = vld [vmem:[%s13 + $0x180] sm:$0xf]
        %v7686 = vld [vmem:[%s13 + $0x184] sm:$0xf]
        %v7687 = vld [vmem:[%s13 + $0x188] sm:$0xf]
        %v7688 = vld [vmem:[%s13 + $0x18c] sm:$0xf]
        %v7689 = vld [vmem:[%s13 + $0x190] sm:$0xf]
        %v7690 = vld [vmem:[%s13 + $0x194] sm:$0xf]
        %v7691 = vld [vmem:[%s13 + $0x198] sm:$0xf]
        %v7692 = vld [vmem:[%s13 + $0x19c] sm:$0xf]
        %v7693 = vld [vmem:[%s13 + $0x1a0] sm:$0xf]
        %v7694 = vld [vmem:[%s13 + $0x1a4] sm:$0xf]
        %v7695 = vld [vmem:[%s13 + $0x1a8] sm:$0xf]
        %v7696 = vld [vmem:[%s13 + $0x1ac] sm:$0xf]
        %v7697 = vld [vmem:[%s13 + $0x1b0] sm:$0xf]
        %v7698 = vld [vmem:[%s13 + $0x1b4] sm:$0xf]
        %v7699 = vld [vmem:[%s13 + $0x1b8] sm:$0xf]
        %v7700 = vld [vmem:[%s13 + $0x1bc] sm:$0xf]
        %v7701 = vld [vmem:[%s13 + $0x1c0] sm:$0xf]
        %v7702 = vld [vmem:[%s13 + $0x1c4] sm:$0xf]
        %v7703 = vld [vmem:[%s13 + $0x1c8] sm:$0xf]
        %v7704 = vld [vmem:[%s13 + $0x1cc] sm:$0xf]
        %v7705 = vld [vmem:[%s13 + $0x1d0] sm:$0xf]
        %v7706 = vld [vmem:[%s13 + $0x1d4] sm:$0xf]
        %v7707 = vld [vmem:[%s13 + $0x1d8] sm:$0xf]
        %v7708 = vld [vmem:[%s13 + $0x1dc] sm:$0xf]
        %v7709 = vld [vmem:[%s13 + $0x1e0] sm:$0xf]
        %v7710 = vld [vmem:[%s13 + $0x1e4] sm:$0xf]
        %v7711 = vld [vmem:[%s13 + $0x1e8] sm:$0xf]
        %v7712 = vld [vmem:[%s13 + $0x1ec] sm:$0xf]
        %v7713 = vld [vmem:[%s13 + $0x1f0] sm:$0xf]
        %v7714 = vld [vmem:[%s13 + $0x1f4] sm:$0xf]
        %v7715 = vld [vmem:[%s13 + $0x1f8] sm:$0xf]
        %v7716 = vld [vmem:[%s13 + $0x1fc] sm:$0xf]
        %v7717 = vpack.c.bf16 %v7341, %v7333
        %v7718 = vpack.c.bf16 %v7342, %v7334
        %v7719 = vpack.c.bf16 %v7343, %v7335
        %v7720 = vpack.c.bf16 %v7344, %v7336
        %v7721 = vpack.c.bf16 %v7345, %v7337
        %v7722 = vpack.c.bf16 %v7346, %v7338
        %v7723 = vpack.c.bf16 %v7347, %v7339
        %v7724 = vpack.c.bf16 %v7348, %v7340
        %v7725 = vpack.c.bf16 %v7357, %v7349
        %v7726 = vpack.c.bf16 %v7358, %v7350
        %v7727 = vpack.c.bf16 %v7359, %v7351
        %v7728 = vpack.c.bf16 %v7360, %v7352
        %v7729 = vpack.c.bf16 %v7361, %v7353
        %v7730 = vpack.c.bf16 %v7362, %v7354
        %v7731 = vpack.c.bf16 %v7363, %v7355
        %v7732 = vpack.c.bf16 %v7364, %v7356
        %v7733 = vpack.c.bf16 %v7373, %v7365
        %v7734 = vpack.c.bf16 %v7374, %v7366
        %v7735 = vpack.c.bf16 %v7375, %v7367
        %v7736 = vpack.c.bf16 %v7376, %v7368
        %v7737 = vpack.c.bf16 %v7377, %v7369
        %v7738 = vpack.c.bf16 %v7378, %v7370
        %v7739 = vpack.c.bf16 %v7379, %v7371
        %v7740 = vpack.c.bf16 %v7380, %v7372
        %v7741 = vpack.c.bf16 %v7389, %v7381
        %v7742 = vpack.c.bf16 %v7390, %v7382
        %v7743 = vpack.c.bf16 %v7391, %v7383
        %v7744 = vpack.c.bf16 %v7392, %v7384
        %v7745 = vpack.c.bf16 %v7393, %v7385
        %v7746 = vpack.c.bf16 %v7394, %v7386
        %v7747 = vpack.c.bf16 %v7395, %v7387
        %v7748 = vpack.c.bf16 %v7396, %v7388
        %v7749 = vpack.c.bf16 %v7405, %v7397
        %v7750 = vpack.c.bf16 %v7406, %v7398
        %v7751 = vpack.c.bf16 %v7407, %v7399
        %v7752 = vpack.c.bf16 %v7408, %v7400
        %v7753 = vpack.c.bf16 %v7409, %v7401
        %v7754 = vpack.c.bf16 %v7410, %v7402
        %v7755 = vpack.c.bf16 %v7411, %v7403
        %v7756 = vpack.c.bf16 %v7412, %v7404
        %v7757 = vpack.c.bf16 %v7421, %v7413
        %v7758 = vpack.c.bf16 %v7422, %v7414
        %v7759 = vpack.c.bf16 %v7423, %v7415
        %v7760 = vpack.c.bf16 %v7424, %v7416
        %v7761 = vpack.c.bf16 %v7425, %v7417
        %v7762 = vpack.c.bf16 %v7426, %v7418
        %v7763 = vpack.c.bf16 %v7427, %v7419
        %v7764 = vpack.c.bf16 %v7428, %v7420
        %v7765 = vpack.c.bf16 %v7437, %v7429
        %v7766 = vpack.c.bf16 %v7438, %v7430
        %v7767 = vpack.c.bf16 %v7439, %v7431
        %v7768 = vpack.c.bf16 %v7440, %v7432
        %v7769 = vpack.c.bf16 %v7441, %v7433
        %v7770 = vpack.c.bf16 %v7442, %v7434
        %v7771 = vpack.c.bf16 %v7443, %v7435
        %v7772 = vpack.c.bf16 %v7444, %v7436
        %v7773 = vpack.c.bf16 %v7453, %v7445
        %v7774 = vpack.c.bf16 %v7454, %v7446
        %v7775 = vpack.c.bf16 %v7455, %v7447
        %v7776 = vpack.c.bf16 %v7456, %v7448
        %v7777 = vpack.c.bf16 %v7457, %v7449
        %v7778 = vpack.c.bf16 %v7458, %v7450
        %v7779 = vpack.c.bf16 %v7459, %v7451
        %v7780 = vpack.c.bf16 %v7460, %v7452
        %v7781 = vpack.c.bf16 %v7469, %v7461
        %v7782 = vpack.c.bf16 %v7470, %v7462
        %v7783 = vpack.c.bf16 %v7471, %v7463
        %v7784 = vpack.c.bf16 %v7472, %v7464
        %v7785 = vpack.c.bf16 %v7473, %v7465
        %v7786 = vpack.c.bf16 %v7474, %v7466
        %v7787 = vpack.c.bf16 %v7475, %v7467
        %v7788 = vpack.c.bf16 %v7476, %v7468
        %v7789 = vpack.c.bf16 %v7485, %v7477
        %v7790 = vpack.c.bf16 %v7486, %v7478
        %v7791 = vpack.c.bf16 %v7487, %v7479
        %v7792 = vpack.c.bf16 %v7488, %v7480
        %v7793 = vpack.c.bf16 %v7489, %v7481
        %v7794 = vpack.c.bf16 %v7490, %v7482
        %v7795 = vpack.c.bf16 %v7491, %v7483
        %v7796 = vpack.c.bf16 %v7492, %v7484
        %v7797 = vpack.c.bf16 %v7501, %v7493
        %v7798 = vpack.c.bf16 %v7502, %v7494
        %v7799 = vpack.c.bf16 %v7503, %v7495
        %v7800 = vpack.c.bf16 %v7504, %v7496
        %v7801 = vpack.c.bf16 %v7505, %v7497
        %v7802 = vpack.c.bf16 %v7506, %v7498
        %v7803 = vpack.c.bf16 %v7507, %v7499
        %v7804 = vpack.c.bf16 %v7508, %v7500
        %v7805 = vpack.c.bf16 %v7517, %v7509
        %v7806 = vpack.c.bf16 %v7518, %v7510
        %v7807 = vpack.c.bf16 %v7519, %v7511
        %v7808 = vpack.c.bf16 %v7520, %v7512
        %v7809 = vpack.c.bf16 %v7521, %v7513
        %v7810 = vpack.c.bf16 %v7522, %v7514
        %v7811 = vpack.c.bf16 %v7523, %v7515
        %v7812 = vpack.c.bf16 %v7524, %v7516
        %v7813 = vpack.c.bf16 %v7533, %v7525
        %v7814 = vpack.c.bf16 %v7534, %v7526
        %v7815 = vpack.c.bf16 %v7535, %v7527
        %v7816 = vpack.c.bf16 %v7536, %v7528
        %v7817 = vpack.c.bf16 %v7537, %v7529
        %v7818 = vpack.c.bf16 %v7538, %v7530
        %v7819 = vpack.c.bf16 %v7539, %v7531
        %v7820 = vpack.c.bf16 %v7540, %v7532
        %v7821 = vpack.c.bf16 %v7549, %v7541
        %v7822 = vpack.c.bf16 %v7550, %v7542
        %v7823 = vpack.c.bf16 %v7551, %v7543
        %v7824 = vpack.c.bf16 %v7552, %v7544
        %v7825 = vpack.c.bf16 %v7553, %v7545
        %v7826 = vpack.c.bf16 %v7554, %v7546
        %v7827 = vpack.c.bf16 %v7555, %v7547
        %v7828 = vpack.c.bf16 %v7556, %v7548
        %v7829 = vpack.c.bf16 %v7565, %v7557
        %v7830 = vpack.c.bf16 %v7566, %v7558
        %v7831 = vpack.c.bf16 %v7567, %v7559
        %v7832 = vpack.c.bf16 %v7568, %v7560
        %v7833 = vpack.c.bf16 %v7569, %v7561
        %v7834 = vpack.c.bf16 %v7570, %v7562
        %v7835 = vpack.c.bf16 %v7571, %v7563
        %v7836 = vpack.c.bf16 %v7572, %v7564
        %v7837 = vpack.c.bf16 %v7581, %v7573
        %v7838 = vpack.c.bf16 %v7582, %v7574
        %v7839 = vpack.c.bf16 %v7583, %v7575
        %v7840 = vpack.c.bf16 %v7584, %v7576
        %v7841 = vpack.c.bf16 %v7585, %v7577
        %v7842 = vpack.c.bf16 %v7586, %v7578
        %v7843 = vpack.c.bf16 %v7587, %v7579
        %v7844 = vpack.c.bf16 %v7588, %v7580
        %v7845 = vld [vmem:[%s14] sm:$0x1]
        %v7847 = vperm.slane %v7845, 0
        %v7977 = vunpack.c.l.b16 %v7589
        %v7978 = vunpack.c.l.b16 %v7590
        %v7979 = vunpack.c.l.b16 %v7591
        %v7980 = vunpack.c.l.b16 %v7592
        %v7981 = vunpack.c.l.b16 %v7593
        %v7982 = vunpack.c.l.b16 %v7594
        %v7983 = vunpack.c.l.b16 %v7595
        %v7984 = vunpack.c.l.b16 %v7596
        %v7985 = vunpack.c.l.b16 %v7597
        %v7986 = vunpack.c.l.b16 %v7598
        %v7987 = vunpack.c.l.b16 %v7599
        %v7988 = vunpack.c.l.b16 %v7600
        %v7989 = vunpack.c.l.b16 %v7601
        %v7990 = vunpack.c.l.b16 %v7602
        %v7991 = vunpack.c.l.b16 %v7603
        %v7992 = vunpack.c.l.b16 %v7604
        %v7993 = vunpack.c.l.b16 %v7605
        %v7994 = vunpack.c.l.b16 %v7606
        %v7995 = vunpack.c.l.b16 %v7607
        %v7996 = vunpack.c.l.b16 %v7608
        %v7997 = vunpack.c.l.b16 %v7609
        %v7998 = vunpack.c.l.b16 %v7610
        %v7999 = vunpack.c.l.b16 %v7611
        %v8000 = vunpack.c.l.b16 %v7612
        %v8001 = vunpack.c.l.b16 %v7613
        %v8002 = vunpack.c.l.b16 %v7614
        %v8003 = vunpack.c.l.b16 %v7615
        %v8004 = vunpack.c.l.b16 %v7616
        %v8005 = vunpack.c.l.b16 %v7617
        %v8006 = vunpack.c.l.b16 %v7618
        %v8007 = vunpack.c.l.b16 %v7619
        %v8008 = vunpack.c.l.b16 %v7620
        %v8009 = vunpack.c.l.b16 %v7621
        %v8010 = vunpack.c.l.b16 %v7622
        %v8011 = vunpack.c.l.b16 %v7623
        %v8012 = vunpack.c.l.b16 %v7624
        %v8013 = vunpack.c.l.b16 %v7625
        %v8014 = vunpack.c.l.b16 %v7626
        %v8015 = vunpack.c.l.b16 %v7627
        %v8016 = vunpack.c.l.b16 %v7628
        %v8017 = vunpack.c.l.b16 %v7629
        %v8018 = vunpack.c.l.b16 %v7630
        %v8019 = vunpack.c.l.b16 %v7631
        %v8020 = vunpack.c.l.b16 %v7632
        %v8021 = vunpack.c.l.b16 %v7633
        %v8022 = vunpack.c.l.b16 %v7634
        %v8023 = vunpack.c.l.b16 %v7635
        %v8024 = vunpack.c.l.b16 %v7636
        %v8025 = vunpack.c.l.b16 %v7637
        %v8026 = vunpack.c.l.b16 %v7638
        %v8027 = vunpack.c.l.b16 %v7639
        %v8028 = vunpack.c.l.b16 %v7640
        %v8029 = vunpack.c.l.b16 %v7641
        %v8030 = vunpack.c.l.b16 %v7642
        %v8031 = vunpack.c.l.b16 %v7643
        %v8032 = vunpack.c.l.b16 %v7644
        %v8033 = vunpack.c.l.b16 %v7645
        %v8034 = vunpack.c.l.b16 %v7646
        %v8035 = vunpack.c.l.b16 %v7647
        %v8036 = vunpack.c.l.b16 %v7648
        %v8037 = vunpack.c.l.b16 %v7649
        %v8038 = vunpack.c.l.b16 %v7650
        %v8039 = vunpack.c.l.b16 %v7651
        %v8040 = vunpack.c.l.b16 %v7652
        %v8041 = vunpack.c.l.b16 %v7653
        %v8042 = vunpack.c.l.b16 %v7654
        %v8043 = vunpack.c.l.b16 %v7655
        %v8044 = vunpack.c.l.b16 %v7656
        %v8045 = vunpack.c.l.b16 %v7657
        %v8046 = vunpack.c.l.b16 %v7658
        %v8047 = vunpack.c.l.b16 %v7659
        %v8048 = vunpack.c.l.b16 %v7660
        %v8049 = vunpack.c.l.b16 %v7661
        %v8050 = vunpack.c.l.b16 %v7662
        %v8051 = vunpack.c.l.b16 %v7663
        %v8052 = vunpack.c.l.b16 %v7664
        %v8053 = vunpack.c.l.b16 %v7665
        %v8054 = vunpack.c.l.b16 %v7666
        %v8055 = vunpack.c.l.b16 %v7667
        %v8056 = vunpack.c.l.b16 %v7668
        %v8057 = vunpack.c.l.b16 %v7669
        %v8058 = vunpack.c.l.b16 %v7670
        %v8059 = vunpack.c.l.b16 %v7671
        %v8060 = vunpack.c.l.b16 %v7672
        %v8061 = vunpack.c.l.b16 %v7673
        %v8062 = vunpack.c.l.b16 %v7674
        %v8063 = vunpack.c.l.b16 %v7675
        %v8064 = vunpack.c.l.b16 %v7676
        %v8065 = vunpack.c.l.b16 %v7677
        %v8066 = vunpack.c.l.b16 %v7678
        %v8067 = vunpack.c.l.b16 %v7679
        %v8068 = vunpack.c.l.b16 %v7680
        %v8069 = vunpack.c.l.b16 %v7681
        %v8070 = vunpack.c.l.b16 %v7682
        %v8071 = vunpack.c.l.b16 %v7683
        %v8072 = vunpack.c.l.b16 %v7684
        %v8073 = vunpack.c.l.b16 %v7685
        %v8074 = vunpack.c.l.b16 %v7686
        %v8075 = vunpack.c.l.b16 %v7687
        %v8076 = vunpack.c.l.b16 %v7688
        %v8077 = vunpack.c.l.b16 %v7689
        %v8078 = vunpack.c.l.b16 %v7690
        %v8079 = vunpack.c.l.b16 %v7691
        %v8080 = vunpack.c.l.b16 %v7692
        %v8081 = vunpack.c.l.b16 %v7693
        %v8082 = vunpack.c.l.b16 %v7694
        %v8083 = vunpack.c.l.b16 %v7695
        %v8084 = vunpack.c.l.b16 %v7696
        %v8085 = vunpack.c.l.b16 %v7697
        %v8086 = vunpack.c.l.b16 %v7698
        %v8087 = vunpack.c.l.b16 %v7699
        %v8088 = vunpack.c.l.b16 %v7700
        %v8089 = vunpack.c.l.b16 %v7701
        %v8090 = vunpack.c.l.b16 %v7702
        %v8091 = vunpack.c.l.b16 %v7703
        %v8092 = vunpack.c.l.b16 %v7704
        %v8093 = vunpack.c.l.b16 %v7705
        %v8094 = vunpack.c.l.b16 %v7706
        %v8095 = vunpack.c.l.b16 %v7707
        %v8096 = vunpack.c.l.b16 %v7708
        %v8097 = vunpack.c.l.b16 %v7709
        %v8098 = vunpack.c.l.b16 %v7710
        %v8099 = vunpack.c.l.b16 %v7711
        %v8100 = vunpack.c.l.b16 %v7712
        %v8101 = vunpack.c.l.b16 %v7713
        %v8102 = vunpack.c.l.b16 %v7714
        %v8103 = vunpack.c.l.b16 %v7715
        %v8104 = vunpack.c.l.b16 %v7716
        %v8105 = vpack.c.b16 %v7978, %v7977
        %v8106 = vpack.c.b16 %v7980, %v7979
        %v8107 = vpack.c.b16 %v7982, %v7981
        %v8108 = vpack.c.b16 %v7984, %v7983
        %v8109 = vpack.c.b16 %v7986, %v7985
        %v8110 = vpack.c.b16 %v7988, %v7987
        %v8111 = vpack.c.b16 %v7990, %v7989
        %v8112 = vpack.c.b16 %v7992, %v7991
        %v8113 = vpack.c.b16 %v7994, %v7993
        %v8114 = vpack.c.b16 %v7996, %v7995
        %v8115 = vpack.c.b16 %v7998, %v7997
        %v8116 = vpack.c.b16 %v8000, %v7999
        %v8117 = vpack.c.b16 %v8002, %v8001
        %v8118 = vpack.c.b16 %v8004, %v8003
        %v8119 = vpack.c.b16 %v8006, %v8005
        %v8120 = vpack.c.b16 %v8008, %v8007
        %v8121 = vpack.c.b16 %v8010, %v8009
        %v8122 = vpack.c.b16 %v8012, %v8011
        %v8123 = vpack.c.b16 %v8014, %v8013
        %v8124 = vpack.c.b16 %v8016, %v8015
        %v8125 = vpack.c.b16 %v8018, %v8017
        %v8126 = vpack.c.b16 %v8020, %v8019
        %v8127 = vpack.c.b16 %v8022, %v8021
        %v8128 = vpack.c.b16 %v8024, %v8023
        %v8129 = vpack.c.b16 %v8026, %v8025
        %v8130 = vpack.c.b16 %v8028, %v8027
        %v8131 = vpack.c.b16 %v8030, %v8029
        %v8132 = vpack.c.b16 %v8032, %v8031
        %v8133 = vpack.c.b16 %v8034, %v8033
        %v8134 = vpack.c.b16 %v8036, %v8035
        %v8135 = vpack.c.b16 %v8038, %v8037
        %v8136 = vpack.c.b16 %v8040, %v8039
        %v8137 = vpack.c.b16 %v8042, %v8041
        %v8138 = vpack.c.b16 %v8044, %v8043
        %v8139 = vpack.c.b16 %v8046, %v8045
        %v8140 = vpack.c.b16 %v8048, %v8047
        %v8141 = vpack.c.b16 %v8050, %v8049
        %v8142 = vpack.c.b16 %v8052, %v8051
        %v8143 = vpack.c.b16 %v8054, %v8053
        %v8144 = vpack.c.b16 %v8056, %v8055
        %v8145 = vpack.c.b16 %v8058, %v8057
        %v8146 = vpack.c.b16 %v8060, %v8059
        %v8147 = vpack.c.b16 %v8062, %v8061
        %v8148 = vpack.c.b16 %v8064, %v8063
        %v8149 = vpack.c.b16 %v8066, %v8065
        %v8150 = vpack.c.b16 %v8068, %v8067
        %v8151 = vpack.c.b16 %v8070, %v8069
        %v8152 = vpack.c.b16 %v8072, %v8071
        %v8153 = vpack.c.b16 %v8074, %v8073
        %v8154 = vpack.c.b16 %v8076, %v8075
        %v8155 = vpack.c.b16 %v8078, %v8077
        %v8156 = vpack.c.b16 %v8080, %v8079
        %v8157 = vpack.c.b16 %v8082, %v8081
        %v8158 = vpack.c.b16 %v8084, %v8083
        %v8159 = vpack.c.b16 %v8086, %v8085
        %v8160 = vpack.c.b16 %v8088, %v8087
        %v8161 = vpack.c.b16 %v8090, %v8089
        %v8162 = vpack.c.b16 %v8092, %v8091
        %v8163 = vpack.c.b16 %v8094, %v8093
        %v8164 = vpack.c.b16 %v8096, %v8095
        %v8165 = vpack.c.b16 %v8098, %v8097
        %v8166 = vpack.c.b16 %v8100, %v8099
        %v8167 = vpack.c.b16 %v8102, %v8101
        %v8168 = vpack.c.b16 %v8104, %v8103
        %8233 = vmatpush.bf16.msra.mxu0 %v8112
        %8234 = vmatpush.bf16.msra.mxu0 %v8111
        %8235 = vmatpush.bf16.msra.mxu0 %v8110
        %8236 = vmatpush.bf16.msra.mxu0 %v8109
        %8237 = vmatpush.bf16.msra.mxu0 %v8108
        %8238 = vmatpush.bf16.msra.mxu0 %v8107
        %8239 = vmatpush.bf16.msra.mxu0 %v8106
        %8240 = vmatpush.bf16.msra.mxu0 %v8105
        %8241 = vmatmul.bf16.gmra.mxu0 %v7717
        %v8242 = vpop.f32.mrf.mxu0
        %v8243 = vadd.f32 %v7847, %v8242
        %v8244 = vpop.f32.mrf.mxu0
        %v8245 = vadd.f32 %v7847, %v8244
        %8246 = vmatmul.bf16.gmra.mxu0 %v7725
        %v8247 = vpop.f32.mrf.mxu0
        %v8248 = vadd.f32 %v7847, %v8247
        %v8249 = vpop.f32.mrf.mxu0
        %v8250 = vadd.f32 %v7847, %v8249
        %8251 = vmatmul.bf16.gmra.mxu0 %v7733
        %v8252 = vpop.f32.mrf.mxu0
        %v8253 = vadd.f32 %v7847, %v8252
        %v8254 = vpop.f32.mrf.mxu0
        %v8255 = vadd.f32 %v7847, %v8254
        %8256 = vmatmul.bf16.gmra.mxu0 %v7741
        %v8257 = vpop.f32.mrf.mxu0
        %v8258 = vadd.f32 %v7847, %v8257
        %v8259 = vpop.f32.mrf.mxu0
        %v8260 = vadd.f32 %v7847, %v8259
        %8261 = vmatmul.bf16.gmra.mxu0 %v7749
        %v8262 = vpop.f32.mrf.mxu0
        %v8263 = vadd.f32 %v7847, %v8262
        %v8264 = vpop.f32.mrf.mxu0
        %v8265 = vadd.f32 %v7847, %v8264
        %8266 = vmatmul.bf16.gmra.mxu0 %v7757
        %v8267 = vpop.f32.mrf.mxu0
        %v8268 = vadd.f32 %v7847, %v8267
        %v8269 = vpop.f32.mrf.mxu0
        %v8270 = vadd.f32 %v7847, %v8269
        %8271 = vmatmul.bf16.gmra.mxu0 %v7765
        %v8272 = vpop.f32.mrf.mxu0
        %v8273 = vadd.f32 %v7847, %v8272
        %v8274 = vpop.f32.mrf.mxu0
        %v8275 = vadd.f32 %v7847, %v8274
        %8276 = vmatmul.bf16.gmra.mxu0 %v7773
        %v8277 = vpop.f32.mrf.mxu0
        %v8278 = vadd.f32 %v7847, %v8277
        %v8279 = vpop.f32.mrf.mxu0
        %v8280 = vadd.f32 %v7847, %v8279
        %8281 = vmatmul.bf16.gmra.mxu0 %v7781
        %v8282 = vpop.f32.mrf.mxu0
        %v8283 = vadd.f32 %v7847, %v8282
        %v8284 = vpop.f32.mrf.mxu0
        %v8285 = vadd.f32 %v7847, %v8284
        %8286 = vmatmul.bf16.gmra.mxu0 %v7789
        %v8287 = vpop.f32.mrf.mxu0
        %v8288 = vadd.f32 %v7847, %v8287
        %v8289 = vpop.f32.mrf.mxu0
        %v8290 = vadd.f32 %v7847, %v8289
        %8291 = vmatmul.bf16.gmra.mxu0 %v7797
        %v8292 = vpop.f32.mrf.mxu0
        %v8293 = vadd.f32 %v7847, %v8292
        %v8294 = vpop.f32.mrf.mxu0
        %v8295 = vadd.f32 %v7847, %v8294
        %8296 = vmatmul.bf16.gmra.mxu0 %v7805
        %v8297 = vpop.f32.mrf.mxu0
        %v8298 = vadd.f32 %v7847, %v8297
        %v8299 = vpop.f32.mrf.mxu0
        %v8300 = vadd.f32 %v7847, %v8299
        %8301 = vmatmul.bf16.gmra.mxu0 %v7813
        %v8302 = vpop.f32.mrf.mxu0
        %v8303 = vadd.f32 %v7847, %v8302
        %v8304 = vpop.f32.mrf.mxu0
        %v8305 = vadd.f32 %v7847, %v8304
        %8306 = vmatmul.bf16.gmra.mxu0 %v7821
        %v8307 = vpop.f32.mrf.mxu0
        %v8308 = vadd.f32 %v7847, %v8307
        %v8309 = vpop.f32.mrf.mxu0
        %v8310 = vadd.f32 %v7847, %v8309
        %8311 = vmatmul.bf16.gmra.mxu0 %v7829
        %v8312 = vpop.f32.mrf.mxu0
        %v8313 = vadd.f32 %v7847, %v8312
        %v8314 = vpop.f32.mrf.mxu0
        %v8315 = vadd.f32 %v7847, %v8314
        %8316 = vmatmul.bf16.gmra.mxu0 %v7837
        %v8317 = vpop.f32.mrf.mxu0
        %v8318 = vadd.f32 %v7847, %v8317
        %v8319 = vpop.f32.mrf.mxu0
        %v8320 = vadd.f32 %v7847, %v8319
        %8321 = vdwg.mxu0
        %8322 = vmatpush.bf16.msra.mxu0 %v8120
        %8323 = vmatpush.bf16.msra.mxu0 %v8119
        %8324 = vmatpush.bf16.msra.mxu0 %v8118
        %8325 = vmatpush.bf16.msra.mxu0 %v8117
        %8326 = vmatpush.bf16.msra.mxu0 %v8116
        %8327 = vmatpush.bf16.msra.mxu0 %v8115
        %8328 = vmatpush.bf16.msra.mxu0 %v8114
        %8329 = vmatpush.bf16.msra.mxu0 %v8113
        %8330 = vmatmul.bf16.gmra.mxu0 %v7718
        %v8331 = vpop.f32.mrf.mxu0
        %v8332 = vadd.f32 %v8243, %v8331
        %v8333 = vpop.f32.mrf.mxu0
        %v8334 = vadd.f32 %v8245, %v8333
        %8335 = vmatmul.bf16.gmra.mxu0 %v7726
        %v8336 = vpop.f32.mrf.mxu0
        %v8337 = vadd.f32 %v8248, %v8336
        %v8338 = vpop.f32.mrf.mxu0
        %v8339 = vadd.f32 %v8250, %v8338
        %8340 = vmatmul.bf16.gmra.mxu0 %v7734
        %v8341 = vpop.f32.mrf.mxu0
        %v8342 = vadd.f32 %v8253, %v8341
        %v8343 = vpop.f32.mrf.mxu0
        %v8344 = vadd.f32 %v8255, %v8343
        %8345 = vmatmul.bf16.gmra.mxu0 %v7742
        %v8346 = vpop.f32.mrf.mxu0
        %v8347 = vadd.f32 %v8258, %v8346
        %v8348 = vpop.f32.mrf.mxu0
        %v8349 = vadd.f32 %v8260, %v8348
        %8350 = vmatmul.bf16.gmra.mxu0 %v7750
        %v8351 = vpop.f32.mrf.mxu0
        %v8352 = vadd.f32 %v8263, %v8351
        %v8353 = vpop.f32.mrf.mxu0
        %v8354 = vadd.f32 %v8265, %v8353
        %8355 = vmatmul.bf16.gmra.mxu0 %v7758
        %v8356 = vpop.f32.mrf.mxu0
        %v8357 = vadd.f32 %v8268, %v8356
        %v8358 = vpop.f32.mrf.mxu0
        %v8359 = vadd.f32 %v8270, %v8358
        %8360 = vmatmul.bf16.gmra.mxu0 %v7766
        %v8361 = vpop.f32.mrf.mxu0
        %v8362 = vadd.f32 %v8273, %v8361
        %v8363 = vpop.f32.mrf.mxu0
        %v8364 = vadd.f32 %v8275, %v8363
        %8365 = vmatmul.bf16.gmra.mxu0 %v7774
        %v8366 = vpop.f32.mrf.mxu0
        %v8367 = vadd.f32 %v8278, %v8366
        %v8368 = vpop.f32.mrf.mxu0
        %v8369 = vadd.f32 %v8280, %v8368
        %8370 = vmatmul.bf16.gmra.mxu0 %v7782
        %v8371 = vpop.f32.mrf.mxu0
        %v8372 = vadd.f32 %v8283, %v8371
        %v8373 = vpop.f32.mrf.mxu0
        %v8374 = vadd.f32 %v8285, %v8373
        %8375 = vmatmul.bf16.gmra.mxu0 %v7790
        %v8376 = vpop.f32.mrf.mxu0
        %v8377 = vadd.f32 %v8288, %v8376
        %v8378 = vpop.f32.mrf.mxu0
        %v8379 = vadd.f32 %v8290, %v8378
        %8380 = vmatmul.bf16.gmra.mxu0 %v7798
        %v8381 = vpop.f32.mrf.mxu0
        %v8382 = vadd.f32 %v8293, %v8381
        %v8383 = vpop.f32.mrf.mxu0
        %v8384 = vadd.f32 %v8295, %v8383
        %8385 = vmatmul.bf16.gmra.mxu0 %v7806
        %v8386 = vpop.f32.mrf.mxu0
        %v8387 = vadd.f32 %v8298, %v8386
        %v8388 = vpop.f32.mrf.mxu0
        %v8389 = vadd.f32 %v8300, %v8388
        %8390 = vmatmul.bf16.gmra.mxu0 %v7814
        %v8391 = vpop.f32.mrf.mxu0
        %v8392 = vadd.f32 %v8303, %v8391
        %v8393 = vpop.f32.mrf.mxu0
        %v8394 = vadd.f32 %v8305, %v8393
        %8395 = vmatmul.bf16.gmra.mxu0 %v7822
        %v8396 = vpop.f32.mrf.mxu0
        %v8397 = vadd.f32 %v8308, %v8396
        %v8398 = vpop.f32.mrf.mxu0
        %v8399 = vadd.f32 %v8310, %v8398
        %8400 = vmatmul.bf16.gmra.mxu0 %v7830
        %v8401 = vpop.f32.mrf.mxu0
        %v8402 = vadd.f32 %v8313, %v8401
        %v8403 = vpop.f32.mrf.mxu0
        %v8404 = vadd.f32 %v8315, %v8403
        %8405 = vmatmul.bf16.gmra.mxu0 %v7838
        %v8406 = vpop.f32.mrf.mxu0
        %v8407 = vadd.f32 %v8318, %v8406
        %v8408 = vpop.f32.mrf.mxu0
        %v8409 = vadd.f32 %v8320, %v8408
        %8410 = vdwg.mxu0
        %8411 = vmatpush.bf16.msra.mxu0 %v8128
        %8412 = vmatpush.bf16.msra.mxu0 %v8127
        %8413 = vmatpush.bf16.msra.mxu0 %v8126
        %8414 = vmatpush.bf16.msra.mxu0 %v8125
        %8415 = vmatpush.bf16.msra.mxu0 %v8124
        %8416 = vmatpush.bf16.msra.mxu0 %v8123
        %8417 = vmatpush.bf16.msra.mxu0 %v8122
        %8418 = vmatpush.bf16.msra.mxu0 %v8121
        %8419 = vmatmul.bf16.gmra.mxu0 %v7719
        %v8420 = vpop.f32.mrf.mxu0
        %v8421 = vadd.f32 %v8332, %v8420
        %v8422 = vpop.f32.mrf.mxu0
        %v8423 = vadd.f32 %v8334, %v8422
        %8424 = vmatmul.bf16.gmra.mxu0 %v7727
        %v8425 = vpop.f32.mrf.mxu0
        %v8426 = vadd.f32 %v8337, %v8425
        %v8427 = vpop.f32.mrf.mxu0
        %v8428 = vadd.f32 %v8339, %v8427
        %8429 = vmatmul.bf16.gmra.mxu0 %v7735
        %v8430 = vpop.f32.mrf.mxu0
        %v8431 = vadd.f32 %v8342, %v8430
        %v8432 = vpop.f32.mrf.mxu0
        %v8433 = vadd.f32 %v8344, %v8432
        %8434 = vmatmul.bf16.gmra.mxu0 %v7743
        %v8435 = vpop.f32.mrf.mxu0
        %v8436 = vadd.f32 %v8347, %v8435
        %v8437 = vpop.f32.mrf.mxu0
        %v8438 = vadd.f32 %v8349, %v8437
        %8439 = vmatmul.bf16.gmra.mxu0 %v7751
        %v8440 = vpop.f32.mrf.mxu0
        %v8441 = vadd.f32 %v8352, %v8440
        %v8442 = vpop.f32.mrf.mxu0
        %v8443 = vadd.f32 %v8354, %v8442
        %8444 = vmatmul.bf16.gmra.mxu0 %v7759
        %v8445 = vpop.f32.mrf.mxu0
        %v8446 = vadd.f32 %v8357, %v8445
        %v8447 = vpop.f32.mrf.mxu0
        %v8448 = vadd.f32 %v8359, %v8447
        %8449 = vmatmul.bf16.gmra.mxu0 %v7767
        %v8450 = vpop.f32.mrf.mxu0
        %v8451 = vadd.f32 %v8362, %v8450
        %v8452 = vpop.f32.mrf.mxu0
        %v8453 = vadd.f32 %v8364, %v8452
        %8454 = vmatmul.bf16.gmra.mxu0 %v7775
        %v8455 = vpop.f32.mrf.mxu0
        %v8456 = vadd.f32 %v8367, %v8455
        %v8457 = vpop.f32.mrf.mxu0
        %v8458 = vadd.f32 %v8369, %v8457
        %8459 = vmatmul.bf16.gmra.mxu0 %v7783
        %v8460 = vpop.f32.mrf.mxu0
        %v8461 = vadd.f32 %v8372, %v8460
        %v8462 = vpop.f32.mrf.mxu0
        %v8463 = vadd.f32 %v8374, %v8462
        %8464 = vmatmul.bf16.gmra.mxu0 %v7791
        %v8465 = vpop.f32.mrf.mxu0
        %v8466 = vadd.f32 %v8377, %v8465
        %v8467 = vpop.f32.mrf.mxu0
        %v8468 = vadd.f32 %v8379, %v8467
        %8469 = vmatmul.bf16.gmra.mxu0 %v7799
        %v8470 = vpop.f32.mrf.mxu0
        %v8471 = vadd.f32 %v8382, %v8470
        %v8472 = vpop.f32.mrf.mxu0
        %v8473 = vadd.f32 %v8384, %v8472
        %8474 = vmatmul.bf16.gmra.mxu0 %v7807
        %v8475 = vpop.f32.mrf.mxu0
        %v8476 = vadd.f32 %v8387, %v8475
        %v8477 = vpop.f32.mrf.mxu0
        %v8478 = vadd.f32 %v8389, %v8477
        %8479 = vmatmul.bf16.gmra.mxu0 %v7815
        %v8480 = vpop.f32.mrf.mxu0
        %v8481 = vadd.f32 %v8392, %v8480
        %v8482 = vpop.f32.mrf.mxu0
        %v8483 = vadd.f32 %v8394, %v8482
        %8484 = vmatmul.bf16.gmra.mxu0 %v7823
        %v8485 = vpop.f32.mrf.mxu0
        %v8486 = vadd.f32 %v8397, %v8485
        %v8487 = vpop.f32.mrf.mxu0
        %v8488 = vadd.f32 %v8399, %v8487
        %8489 = vmatmul.bf16.gmra.mxu0 %v7831
        %v8490 = vpop.f32.mrf.mxu0
        %v8491 = vadd.f32 %v8402, %v8490
        %v8492 = vpop.f32.mrf.mxu0
        %v8493 = vadd.f32 %v8404, %v8492
        %8494 = vmatmul.bf16.gmra.mxu0 %v7839
        %v8495 = vpop.f32.mrf.mxu0
        %v8496 = vadd.f32 %v8407, %v8495
        %v8497 = vpop.f32.mrf.mxu0
        %v8498 = vadd.f32 %v8409, %v8497
        %8499 = vdwg.mxu0
        %8500 = vmatpush.bf16.msra.mxu0 %v8136
        %8501 = vmatpush.bf16.msra.mxu0 %v8135
        %8502 = vmatpush.bf16.msra.mxu0 %v8134
        %8503 = vmatpush.bf16.msra.mxu0 %v8133
        %8504 = vmatpush.bf16.msra.mxu0 %v8132
        %8505 = vmatpush.bf16.msra.mxu0 %v8131
        %8506 = vmatpush.bf16.msra.mxu0 %v8130
        %8507 = vmatpush.bf16.msra.mxu0 %v8129
        %8508 = vmatmul.bf16.gmra.mxu0 %v7720
        %v8509 = vpop.f32.mrf.mxu0
        %v8510 = vadd.f32 %v8421, %v8509
        %v8511 = vpop.f32.mrf.mxu0
        %v8512 = vadd.f32 %v8423, %v8511
        %8513 = vmatmul.bf16.gmra.mxu0 %v7728
        %v8514 = vpop.f32.mrf.mxu0
        %v8515 = vadd.f32 %v8426, %v8514
        %v8516 = vpop.f32.mrf.mxu0
        %v8517 = vadd.f32 %v8428, %v8516
        %8518 = vmatmul.bf16.gmra.mxu0 %v7736
        %v8519 = vpop.f32.mrf.mxu0
        %v8520 = vadd.f32 %v8431, %v8519
        %v8521 = vpop.f32.mrf.mxu0
        %v8522 = vadd.f32 %v8433, %v8521
        %8523 = vmatmul.bf16.gmra.mxu0 %v7744
        %v8524 = vpop.f32.mrf.mxu0
        %v8525 = vadd.f32 %v8436, %v8524
        %v8526 = vpop.f32.mrf.mxu0
        %v8527 = vadd.f32 %v8438, %v8526
        %8528 = vmatmul.bf16.gmra.mxu0 %v7752
        %v8529 = vpop.f32.mrf.mxu0
        %v8530 = vadd.f32 %v8441, %v8529
        %v8531 = vpop.f32.mrf.mxu0
        %v8532 = vadd.f32 %v8443, %v8531
        %8533 = vmatmul.bf16.gmra.mxu0 %v7760
        %v8534 = vpop.f32.mrf.mxu0
        %v8535 = vadd.f32 %v8446, %v8534
        %v8536 = vpop.f32.mrf.mxu0
        %v8537 = vadd.f32 %v8448, %v8536
        %8538 = vmatmul.bf16.gmra.mxu0 %v7768
        %v8539 = vpop.f32.mrf.mxu0
        %v8540 = vadd.f32 %v8451, %v8539
        %v8541 = vpop.f32.mrf.mxu0
        %v8542 = vadd.f32 %v8453, %v8541
        %8543 = vmatmul.bf16.gmra.mxu0 %v7776
        %v8544 = vpop.f32.mrf.mxu0
        %v8545 = vadd.f32 %v8456, %v8544
        %v8546 = vpop.f32.mrf.mxu0
        %v8547 = vadd.f32 %v8458, %v8546
        %8548 = vmatmul.bf16.gmra.mxu0 %v7784
        %v8549 = vpop.f32.mrf.mxu0
        %v8550 = vadd.f32 %v8461, %v8549
        %v8551 = vpop.f32.mrf.mxu0
        %v8552 = vadd.f32 %v8463, %v8551
        %8553 = vmatmul.bf16.gmra.mxu0 %v7792
        %v8554 = vpop.f32.mrf.mxu0
        %v8555 = vadd.f32 %v8466, %v8554
        %v8556 = vpop.f32.mrf.mxu0
        %v8557 = vadd.f32 %v8468, %v8556
        %8558 = vmatmul.bf16.gmra.mxu0 %v7800
        %v8559 = vpop.f32.mrf.mxu0
        %v8560 = vadd.f32 %v8471, %v8559
        %v8561 = vpop.f32.mrf.mxu0
        %v8562 = vadd.f32 %v8473, %v8561
        %8563 = vmatmul.bf16.gmra.mxu0 %v7808
        %v8564 = vpop.f32.mrf.mxu0
        %v8565 = vadd.f32 %v8476, %v8564
        %v8566 = vpop.f32.mrf.mxu0
        %v8567 = vadd.f32 %v8478, %v8566
        %8568 = vmatmul.bf16.gmra.mxu0 %v7816
        %v8569 = vpop.f32.mrf.mxu0
        %v8570 = vadd.f32 %v8481, %v8569
        %v8571 = vpop.f32.mrf.mxu0
        %v8572 = vadd.f32 %v8483, %v8571
        %8573 = vmatmul.bf16.gmra.mxu0 %v7824
        %v8574 = vpop.f32.mrf.mxu0
        %v8575 = vadd.f32 %v8486, %v8574
        %v8576 = vpop.f32.mrf.mxu0
        %v8577 = vadd.f32 %v8488, %v8576
        %8578 = vmatmul.bf16.gmra.mxu0 %v7832
        %v8579 = vpop.f32.mrf.mxu0
        %v8580 = vadd.f32 %v8491, %v8579
        %v8581 = vpop.f32.mrf.mxu0
        %v8582 = vadd.f32 %v8493, %v8581
        %8583 = vmatmul.bf16.gmra.mxu0 %v7840
        %v8584 = vpop.f32.mrf.mxu0
        %v8585 = vadd.f32 %v8496, %v8584
        %v8586 = vpop.f32.mrf.mxu0
        %v8587 = vadd.f32 %v8498, %v8586
        %8588 = vdwg.mxu0
        %8589 = vmatpush.bf16.msra.mxu0 %v8144
        %8590 = vmatpush.bf16.msra.mxu0 %v8143
        %8591 = vmatpush.bf16.msra.mxu0 %v8142
        %8592 = vmatpush.bf16.msra.mxu0 %v8141
        %8593 = vmatpush.bf16.msra.mxu0 %v8140
        %8594 = vmatpush.bf16.msra.mxu0 %v8139
        %8595 = vmatpush.bf16.msra.mxu0 %v8138
        %8596 = vmatpush.bf16.msra.mxu0 %v8137
        %8597 = vmatmul.bf16.gmra.mxu0 %v7721
        %v8598 = vpop.f32.mrf.mxu0
        %v8599 = vadd.f32 %v8510, %v8598
        %v8600 = vpop.f32.mrf.mxu0
        %v8601 = vadd.f32 %v8512, %v8600
        %8602 = vmatmul.bf16.gmra.mxu0 %v7729
        %v8603 = vpop.f32.mrf.mxu0
        %v8604 = vadd.f32 %v8515, %v8603
        %v8605 = vpop.f32.mrf.mxu0
        %v8606 = vadd.f32 %v8517, %v8605
        %8607 = vmatmul.bf16.gmra.mxu0 %v7737
        %v8608 = vpop.f32.mrf.mxu0
        %v8609 = vadd.f32 %v8520, %v8608
        %v8610 = vpop.f32.mrf.mxu0
        %v8611 = vadd.f32 %v8522, %v8610
        %8612 = vmatmul.bf16.gmra.mxu0 %v7745
        %v8613 = vpop.f32.mrf.mxu0
        %v8614 = vadd.f32 %v8525, %v8613
        %v8615 = vpop.f32.mrf.mxu0
        %v8616 = vadd.f32 %v8527, %v8615
        %8617 = vmatmul.bf16.gmra.mxu0 %v7753
        %v8618 = vpop.f32.mrf.mxu0
        %v8619 = vadd.f32 %v8530, %v8618
        %v8620 = vpop.f32.mrf.mxu0
        %v8621 = vadd.f32 %v8532, %v8620
        %8622 = vmatmul.bf16.gmra.mxu0 %v7761
        %v8623 = vpop.f32.mrf.mxu0
        %v8624 = vadd.f32 %v8535, %v8623
        %v8625 = vpop.f32.mrf.mxu0
        %v8626 = vadd.f32 %v8537, %v8625
        %8627 = vmatmul.bf16.gmra.mxu0 %v7769
        %v8628 = vpop.f32.mrf.mxu0
        %v8629 = vadd.f32 %v8540, %v8628
        %v8630 = vpop.f32.mrf.mxu0
        %v8631 = vadd.f32 %v8542, %v8630
        %8632 = vmatmul.bf16.gmra.mxu0 %v7777
        %v8633 = vpop.f32.mrf.mxu0
        %v8634 = vadd.f32 %v8545, %v8633
        %v8635 = vpop.f32.mrf.mxu0
        %v8636 = vadd.f32 %v8547, %v8635
        %8637 = vmatmul.bf16.gmra.mxu0 %v7785
        %v8638 = vpop.f32.mrf.mxu0
        %v8639 = vadd.f32 %v8550, %v8638
        %v8640 = vpop.f32.mrf.mxu0
        %v8641 = vadd.f32 %v8552, %v8640
        %8642 = vmatmul.bf16.gmra.mxu0 %v7793
        %v8643 = vpop.f32.mrf.mxu0
        %v8644 = vadd.f32 %v8555, %v8643
        %v8645 = vpop.f32.mrf.mxu0
        %v8646 = vadd.f32 %v8557, %v8645
        %8647 = vmatmul.bf16.gmra.mxu0 %v7801
        %v8648 = vpop.f32.mrf.mxu0
        %v8649 = vadd.f32 %v8560, %v8648
        %v8650 = vpop.f32.mrf.mxu0
        %v8651 = vadd.f32 %v8562, %v8650
        %8652 = vmatmul.bf16.gmra.mxu0 %v7809
        %v8653 = vpop.f32.mrf.mxu0
        %v8654 = vadd.f32 %v8565, %v8653
        %v8655 = vpop.f32.mrf.mxu0
        %v8656 = vadd.f32 %v8567, %v8655
        %8657 = vmatmul.bf16.gmra.mxu0 %v7817
        %v8658 = vpop.f32.mrf.mxu0
        %v8659 = vadd.f32 %v8570, %v8658
        %v8660 = vpop.f32.mrf.mxu0
        %v8661 = vadd.f32 %v8572, %v8660
        %8662 = vmatmul.bf16.gmra.mxu0 %v7825
        %v8663 = vpop.f32.mrf.mxu0
        %v8664 = vadd.f32 %v8575, %v8663
        %v8665 = vpop.f32.mrf.mxu0
        %v8666 = vadd.f32 %v8577, %v8665
        %8667 = vmatmul.bf16.gmra.mxu0 %v7833
        %v8668 = vpop.f32.mrf.mxu0
        %v8669 = vadd.f32 %v8580, %v8668
        %v8670 = vpop.f32.mrf.mxu0
        %v8671 = vadd.f32 %v8582, %v8670
        %8672 = vmatmul.bf16.gmra.mxu0 %v7841
        %v8673 = vpop.f32.mrf.mxu0
        %v8674 = vadd.f32 %v8585, %v8673
        %v8675 = vpop.f32.mrf.mxu0
        %v8676 = vadd.f32 %v8587, %v8675
        %8677 = vdwg.mxu0
        %8678 = vmatpush.bf16.msra.mxu0 %v8152
        %8679 = vmatpush.bf16.msra.mxu0 %v8151
        %8680 = vmatpush.bf16.msra.mxu0 %v8150
        %8681 = vmatpush.bf16.msra.mxu0 %v8149
        %8682 = vmatpush.bf16.msra.mxu0 %v8148
        %8683 = vmatpush.bf16.msra.mxu0 %v8147
        %8684 = vmatpush.bf16.msra.mxu0 %v8146
        %8685 = vmatpush.bf16.msra.mxu0 %v8145
        %8686 = vmatmul.bf16.gmra.mxu0 %v7722
        %v8687 = vpop.f32.mrf.mxu0
        %v8688 = vadd.f32 %v8599, %v8687
        %v8689 = vpop.f32.mrf.mxu0
        %v8690 = vadd.f32 %v8601, %v8689
        %8691 = vmatmul.bf16.gmra.mxu0 %v7730
        %v8692 = vpop.f32.mrf.mxu0
        %v8693 = vadd.f32 %v8604, %v8692
        %v8694 = vpop.f32.mrf.mxu0
        %v8695 = vadd.f32 %v8606, %v8694
        %8696 = vmatmul.bf16.gmra.mxu0 %v7738
        %v8697 = vpop.f32.mrf.mxu0
        %v8698 = vadd.f32 %v8609, %v8697
        %v8699 = vpop.f32.mrf.mxu0
        %v8700 = vadd.f32 %v8611, %v8699
        %8701 = vmatmul.bf16.gmra.mxu0 %v7746
        %v8702 = vpop.f32.mrf.mxu0
        %v8703 = vadd.f32 %v8614, %v8702
        %v8704 = vpop.f32.mrf.mxu0
        %v8705 = vadd.f32 %v8616, %v8704
        %8706 = vmatmul.bf16.gmra.mxu0 %v7754
        %v8707 = vpop.f32.mrf.mxu0
        %v8708 = vadd.f32 %v8619, %v8707
        %v8709 = vpop.f32.mrf.mxu0
        %v8710 = vadd.f32 %v8621, %v8709
        %8711 = vmatmul.bf16.gmra.mxu0 %v7762
        %v8712 = vpop.f32.mrf.mxu0
        %v8713 = vadd.f32 %v8624, %v8712
        %v8714 = vpop.f32.mrf.mxu0
        %v8715 = vadd.f32 %v8626, %v8714
        %8716 = vmatmul.bf16.gmra.mxu0 %v7770
        %v8717 = vpop.f32.mrf.mxu0
        %v8718 = vadd.f32 %v8629, %v8717
        %v8719 = vpop.f32.mrf.mxu0
        %v8720 = vadd.f32 %v8631, %v8719
        %8721 = vmatmul.bf16.gmra.mxu0 %v7778
        %v8722 = vpop.f32.mrf.mxu0
        %v8723 = vadd.f32 %v8634, %v8722
        %v8724 = vpop.f32.mrf.mxu0
        %v8725 = vadd.f32 %v8636, %v8724
        %8726 = vmatmul.bf16.gmra.mxu0 %v7786
        %v8727 = vpop.f32.mrf.mxu0
        %v8728 = vadd.f32 %v8639, %v8727
        %v8729 = vpop.f32.mrf.mxu0
        %v8730 = vadd.f32 %v8641, %v8729
        %8731 = vmatmul.bf16.gmra.mxu0 %v7794
        %v8732 = vpop.f32.mrf.mxu0
        %v8733 = vadd.f32 %v8644, %v8732
        %v8734 = vpop.f32.mrf.mxu0
        %v8735 = vadd.f32 %v8646, %v8734
        %8736 = vmatmul.bf16.gmra.mxu0 %v7802
        %v8737 = vpop.f32.mrf.mxu0
        %v8738 = vadd.f32 %v8649, %v8737
        %v8739 = vpop.f32.mrf.mxu0
        %v8740 = vadd.f32 %v8651, %v8739
        %8741 = vmatmul.bf16.gmra.mxu0 %v7810
        %v8742 = vpop.f32.mrf.mxu0
        %v8743 = vadd.f32 %v8654, %v8742
        %v8744 = vpop.f32.mrf.mxu0
        %v8745 = vadd.f32 %v8656, %v8744
        %8746 = vmatmul.bf16.gmra.mxu0 %v7818
        %v8747 = vpop.f32.mrf.mxu0
        %v8748 = vadd.f32 %v8659, %v8747
        %v8749 = vpop.f32.mrf.mxu0
        %v8750 = vadd.f32 %v8661, %v8749
        %8751 = vmatmul.bf16.gmra.mxu0 %v7826
        %v8752 = vpop.f32.mrf.mxu0
        %v8753 = vadd.f32 %v8664, %v8752
        %v8754 = vpop.f32.mrf.mxu0
        %v8755 = vadd.f32 %v8666, %v8754
        %8756 = vmatmul.bf16.gmra.mxu0 %v7834
        %v8757 = vpop.f32.mrf.mxu0
        %v8758 = vadd.f32 %v8669, %v8757
        %v8759 = vpop.f32.mrf.mxu0
        %v8760 = vadd.f32 %v8671, %v8759
        %8761 = vmatmul.bf16.gmra.mxu0 %v7842
        %v8762 = vpop.f32.mrf.mxu0
        %v8763 = vadd.f32 %v8674, %v8762
        %v8764 = vpop.f32.mrf.mxu0
        %v8765 = vadd.f32 %v8676, %v8764
        %8766 = vdwg.mxu0
        %8767 = vmatpush.bf16.msra.mxu0 %v8160
        %8768 = vmatpush.bf16.msra.mxu0 %v8159
        %8769 = vmatpush.bf16.msra.mxu0 %v8158
        %8770 = vmatpush.bf16.msra.mxu0 %v8157
        %8771 = vmatpush.bf16.msra.mxu0 %v8156
        %8772 = vmatpush.bf16.msra.mxu0 %v8155
        %8773 = vmatpush.bf16.msra.mxu0 %v8154
        %8774 = vmatpush.bf16.msra.mxu0 %v8153
        %8775 = vmatmul.bf16.gmra.mxu0 %v7723
        %v8776 = vpop.f32.mrf.mxu0
        %v8777 = vadd.f32 %v8688, %v8776
        %v8778 = vpop.f32.mrf.mxu0
        %v8779 = vadd.f32 %v8690, %v8778
        %8780 = vmatmul.bf16.gmra.mxu0 %v7731
        %v8781 = vpop.f32.mrf.mxu0
        %v8782 = vadd.f32 %v8693, %v8781
        %v8783 = vpop.f32.mrf.mxu0
        %v8784 = vadd.f32 %v8695, %v8783
        %8785 = vmatmul.bf16.gmra.mxu0 %v7739
        %v8786 = vpop.f32.mrf.mxu0
        %v8787 = vadd.f32 %v8698, %v8786
        %v8788 = vpop.f32.mrf.mxu0
        %v8789 = vadd.f32 %v8700, %v8788
        %8790 = vmatmul.bf16.gmra.mxu0 %v7747
        %v8791 = vpop.f32.mrf.mxu0
        %v8792 = vadd.f32 %v8703, %v8791
        %v8793 = vpop.f32.mrf.mxu0
        %v8794 = vadd.f32 %v8705, %v8793
        %8795 = vmatmul.bf16.gmra.mxu0 %v7755
        %v8796 = vpop.f32.mrf.mxu0
        %v8797 = vadd.f32 %v8708, %v8796
        %v8798 = vpop.f32.mrf.mxu0
        %v8799 = vadd.f32 %v8710, %v8798
        %8800 = vmatmul.bf16.gmra.mxu0 %v7763
        %v8801 = vpop.f32.mrf.mxu0
        %v8802 = vadd.f32 %v8713, %v8801
        %v8803 = vpop.f32.mrf.mxu0
        %v8804 = vadd.f32 %v8715, %v8803
        %8805 = vmatmul.bf16.gmra.mxu0 %v7771
        %v8806 = vpop.f32.mrf.mxu0
        %v8807 = vadd.f32 %v8718, %v8806
        %v8808 = vpop.f32.mrf.mxu0
        %v8809 = vadd.f32 %v8720, %v8808
        %8810 = vmatmul.bf16.gmra.mxu0 %v7779
        %v8811 = vpop.f32.mrf.mxu0
        %v8812 = vadd.f32 %v8723, %v8811
        %v8813 = vpop.f32.mrf.mxu0
        %v8814 = vadd.f32 %v8725, %v8813
        %8815 = vmatmul.bf16.gmra.mxu0 %v7787
        %v8816 = vpop.f32.mrf.mxu0
        %v8817 = vadd.f32 %v8728, %v8816
        %v8818 = vpop.f32.mrf.mxu0
        %v8819 = vadd.f32 %v8730, %v8818
        %8820 = vmatmul.bf16.gmra.mxu0 %v7795
        %v8821 = vpop.f32.mrf.mxu0
        %v8822 = vadd.f32 %v8733, %v8821
        %v8823 = vpop.f32.mrf.mxu0
        %v8824 = vadd.f32 %v8735, %v8823
        %8825 = vmatmul.bf16.gmra.mxu0 %v7803
        %v8826 = vpop.f32.mrf.mxu0
        %v8827 = vadd.f32 %v8738, %v8826
        %v8828 = vpop.f32.mrf.mxu0
        %v8829 = vadd.f32 %v8740, %v8828
        %8830 = vmatmul.bf16.gmra.mxu0 %v7811
        %v8831 = vpop.f32.mrf.mxu0
        %v8832 = vadd.f32 %v8743, %v8831
        %v8833 = vpop.f32.mrf.mxu0
        %v8834 = vadd.f32 %v8745, %v8833
        %8835 = vmatmul.bf16.gmra.mxu0 %v7819
        %v8836 = vpop.f32.mrf.mxu0
        %v8837 = vadd.f32 %v8748, %v8836
        %v8838 = vpop.f32.mrf.mxu0
        %v8839 = vadd.f32 %v8750, %v8838
        %8840 = vmatmul.bf16.gmra.mxu0 %v7827
        %v8841 = vpop.f32.mrf.mxu0
        %v8842 = vadd.f32 %v8753, %v8841
        %v8843 = vpop.f32.mrf.mxu0
        %v8844 = vadd.f32 %v8755, %v8843
        %8845 = vmatmul.bf16.gmra.mxu0 %v7835
        %v8846 = vpop.f32.mrf.mxu0
        %v8847 = vadd.f32 %v8758, %v8846
        %v8848 = vpop.f32.mrf.mxu0
        %v8849 = vadd.f32 %v8760, %v8848
        %8850 = vmatmul.bf16.gmra.mxu0 %v7843
        %v8851 = vpop.f32.mrf.mxu0
        %v8852 = vadd.f32 %v8763, %v8851
        %v8853 = vpop.f32.mrf.mxu0
        %v8854 = vadd.f32 %v8765, %v8853
        %8855 = vdwg.mxu0
        %8856 = vmatpush.bf16.msra.mxu0 %v8168
        %8857 = vmatpush.bf16.msra.mxu0 %v8167
        %8858 = vmatpush.bf16.msra.mxu0 %v8166
        %8859 = vmatpush.bf16.msra.mxu0 %v8165
        %8860 = vmatpush.bf16.msra.mxu0 %v8164
        %8861 = vmatpush.bf16.msra.mxu0 %v8163
        %8862 = vmatpush.bf16.msra.mxu0 %v8162
        %8863 = vmatpush.bf16.msra.mxu0 %v8161
        %8864 = vmatmul.bf16.gmra.mxu0 %v7724
        %v8865 = vpop.f32.mrf.mxu0
        %v8866 = vadd.f32 %v8777, %v8865
        %v8867 = vpop.f32.mrf.mxu0
        %v8868 = vadd.f32 %v8779, %v8867
        %8869 = vmatmul.bf16.gmra.mxu0 %v7732
        %v8870 = vpop.f32.mrf.mxu0
        %v8871 = vadd.f32 %v8782, %v8870
        %v8872 = vpop.f32.mrf.mxu0
        %v8873 = vadd.f32 %v8784, %v8872
        %8874 = vmatmul.bf16.gmra.mxu0 %v7740
        %v8875 = vpop.f32.mrf.mxu0
        %v8876 = vadd.f32 %v8787, %v8875
        %v8877 = vpop.f32.mrf.mxu0
        %v8878 = vadd.f32 %v8789, %v8877
        %8879 = vmatmul.bf16.gmra.mxu0 %v7748
        %v8880 = vpop.f32.mrf.mxu0
        %v8881 = vadd.f32 %v8792, %v8880
        %v8882 = vpop.f32.mrf.mxu0
        %v8883 = vadd.f32 %v8794, %v8882
        %8884 = vmatmul.bf16.gmra.mxu0 %v7756
        %v8885 = vpop.f32.mrf.mxu0
        %v8886 = vadd.f32 %v8797, %v8885
        %v8887 = vpop.f32.mrf.mxu0
        %v8888 = vadd.f32 %v8799, %v8887
        %8889 = vmatmul.bf16.gmra.mxu0 %v7764
        %v8890 = vpop.f32.mrf.mxu0
        %v8891 = vadd.f32 %v8802, %v8890
        %v8892 = vpop.f32.mrf.mxu0
        %v8893 = vadd.f32 %v8804, %v8892
        %8894 = vmatmul.bf16.gmra.mxu0 %v7772
        %v8895 = vpop.f32.mrf.mxu0
        %v8896 = vadd.f32 %v8807, %v8895
        %v8897 = vpop.f32.mrf.mxu0
        %v8898 = vadd.f32 %v8809, %v8897
        %8899 = vmatmul.bf16.gmra.mxu0 %v7780
        %v8900 = vpop.f32.mrf.mxu0
        %v8901 = vadd.f32 %v8812, %v8900
        %v8902 = vpop.f32.mrf.mxu0
        %v8903 = vadd.f32 %v8814, %v8902
        %8904 = vmatmul.bf16.gmra.mxu0 %v7788
        %v8905 = vpop.f32.mrf.mxu0
        %v8906 = vadd.f32 %v8817, %v8905
        %v8907 = vpop.f32.mrf.mxu0
        %v8908 = vadd.f32 %v8819, %v8907
        %8909 = vmatmul.bf16.gmra.mxu0 %v7796
        %v8910 = vpop.f32.mrf.mxu0
        %v8911 = vadd.f32 %v8822, %v8910
        %v8912 = vpop.f32.mrf.mxu0
        %v8913 = vadd.f32 %v8824, %v8912
        %8914 = vmatmul.bf16.gmra.mxu0 %v7804
        %v8915 = vpop.f32.mrf.mxu0
        %v8916 = vadd.f32 %v8827, %v8915
        %v8917 = vpop.f32.mrf.mxu0
        %v8918 = vadd.f32 %v8829, %v8917
        %8919 = vmatmul.bf16.gmra.mxu0 %v7812
        %v8920 = vpop.f32.mrf.mxu0
        %v8921 = vadd.f32 %v8832, %v8920
        %v8922 = vpop.f32.mrf.mxu0
        %v8923 = vadd.f32 %v8834, %v8922
        %8924 = vmatmul.bf16.gmra.mxu0 %v7820
        %v8925 = vpop.f32.mrf.mxu0
        %v8926 = vadd.f32 %v8837, %v8925
        %v8927 = vpop.f32.mrf.mxu0
        %v8928 = vadd.f32 %v8839, %v8927
        %8929 = vmatmul.bf16.gmra.mxu0 %v7828
        %v8930 = vpop.f32.mrf.mxu0
        %v8931 = vadd.f32 %v8842, %v8930
        %v8932 = vpop.f32.mrf.mxu0
        %v8933 = vadd.f32 %v8844, %v8932
        %8934 = vmatmul.bf16.gmra.mxu0 %v7836
        %v8935 = vpop.f32.mrf.mxu0
        %v8936 = vadd.f32 %v8847, %v8935
        %v8937 = vpop.f32.mrf.mxu0
        %v8938 = vadd.f32 %v8849, %v8937
        %8939 = vmatmul.bf16.gmra.mxu0 %v7844
        %v8940 = vpop.f32.mrf.mxu0
        %v8941 = vadd.f32 %v8852, %v8940
        %v8942 = vpop.f32.mrf.mxu0
        %v8943 = vadd.f32 %v8854, %v8942
        %8944 = vdwg.mxu0
        %v8945 = vmax.f32 %v8866, 0.0
        %v8946 = vmax.f32 %v8868, 0.0
        %v8947 = vmax.f32 %v8871, 0.0
        %v8948 = vmax.f32 %v8873, 0.0
        %v8949 = vmax.f32 %v8876, 0.0
        %v8950 = vmax.f32 %v8878, 0.0
        %v8951 = vmax.f32 %v8881, 0.0
        %v8952 = vmax.f32 %v8883, 0.0
        %v8953 = vmax.f32 %v8886, 0.0
        %v8954 = vmax.f32 %v8888, 0.0
        %v8955 = vmax.f32 %v8891, 0.0
        %v8956 = vmax.f32 %v8893, 0.0
        %v8957 = vmax.f32 %v8896, 0.0
        %v8958 = vmax.f32 %v8898, 0.0
        %v8959 = vmax.f32 %v8901, 0.0
        %v8960 = vmax.f32 %v8903, 0.0
        %v8961 = vmax.f32 %v8906, 0.0
        %v8962 = vmax.f32 %v8908, 0.0
        %v8963 = vmax.f32 %v8911, 0.0
        %v8964 = vmax.f32 %v8913, 0.0
        %v8965 = vmax.f32 %v8916, 0.0
        %v8966 = vmax.f32 %v8918, 0.0
        %v8967 = vmax.f32 %v8921, 0.0
        %v8968 = vmax.f32 %v8923, 0.0
        %v8969 = vmax.f32 %v8926, 0.0
        %v8970 = vmax.f32 %v8928, 0.0
        %v8971 = vmax.f32 %v8931, 0.0
        %v8972 = vmax.f32 %v8933, 0.0
        %v8973 = vmax.f32 %v8936, 0.0
        %v8974 = vmax.f32 %v8938, 0.0
        %v8975 = vmax.f32 %v8941, 0.0
        %v8976 = vmax.f32 %v8943, 0.0
        %v8977 = vld [vmem:[%s15] sm:$0x1]
        %v8978 = vunpack.c.l.bf16 %v8977
        %v8979 = vperm.slane %v8978, 0
        %v8980 = vmul.f32 %v8945, %v8979
        %v8981 = vmul.f32 %v8946, %v8979
        %v8982 = vmul.f32 %v8947, %v8979
        %v8983 = vmul.f32 %v8948, %v8979
        %v8984 = vmul.f32 %v8949, %v8979
        %v8985 = vmul.f32 %v8950, %v8979
        %v8986 = vmul.f32 %v8951, %v8979
        %v8987 = vmul.f32 %v8952, %v8979
        %v8988 = vmul.f32 %v8953, %v8979
        %v8989 = vmul.f32 %v8954, %v8979
        %v8990 = vmul.f32 %v8955, %v8979
        %v8991 = vmul.f32 %v8956, %v8979
        %v8992 = vmul.f32 %v8957, %v8979
        %v8993 = vmul.f32 %v8958, %v8979
        %v8994 = vmul.f32 %v8959, %v8979
        %v8995 = vmul.f32 %v8960, %v8979
        %v8996 = vmul.f32 %v8961, %v8979
        %v8997 = vmul.f32 %v8962, %v8979
        %v8998 = vmul.f32 %v8963, %v8979
        %v8999 = vmul.f32 %v8964, %v8979
        %v9000 = vmul.f32 %v8965, %v8979
        %v9001 = vmul.f32 %v8966, %v8979
        %v9002 = vmul.f32 %v8967, %v8979
        %v9003 = vmul.f32 %v8968, %v8979
        %v9004 = vmul.f32 %v8969, %v8979
        %v9005 = vmul.f32 %v8970, %v8979
        %v9006 = vmul.f32 %v8971, %v8979
        %v9007 = vmul.f32 %v8972, %v8979
        %v9008 = vmul.f32 %v8973, %v8979
        %v9009 = vmul.f32 %v8974, %v8979
        %v9010 = vmul.f32 %v8975, %v8979
        %v9011 = vmul.f32 %v8976, %v8979
        %v9012 = vsel %vm1071, %v8980, 0.0
        %9013 = vadd.xlane.f32.xlu0 %v9012
        %v9014 = vpop.xlane.xlu0 %9013
        %v9015 = vsel %vm1071, %v8981, 0.0
        %9016 = vadd.xlane.f32.xlu0 %v9015
        %v9017 = vpop.xlane.xlu0 %9016
        %v9018 = vsel %vm1071, %v8982, 0.0
        %9019 = vadd.xlane.f32.xlu0 %v9018
        %v9020 = vpop.xlane.xlu0 %9019
        %v9021 = vsel %vm1071, %v8983, 0.0
        %9022 = vadd.xlane.f32.xlu0 %v9021
        %v9023 = vpop.xlane.xlu0 %9022
        %v9024 = vsel %vm1071, %v8984, 0.0
        %9025 = vadd.xlane.f32.xlu0 %v9024
        %v9026 = vpop.xlane.xlu0 %9025
        %v9027 = vsel %vm1071, %v8985, 0.0
        %9028 = vadd.xlane.f32.xlu0 %v9027
        %v9029 = vpop.xlane.xlu0 %9028
        %v9030 = vsel %vm1071, %v8986, 0.0
        %9031 = vadd.xlane.f32.xlu0 %v9030
        %v9032 = vpop.xlane.xlu0 %9031
        %v9033 = vsel %vm1071, %v8987, 0.0
        %9034 = vadd.xlane.f32.xlu0 %v9033
        %v9035 = vpop.xlane.xlu0 %9034
        %v9036 = vsel %vm1071, %v8988, 0.0
        %9037 = vadd.xlane.f32.xlu0 %v9036
        %v9038 = vpop.xlane.xlu0 %9037
        %v9039 = vsel %vm1071, %v8989, 0.0
        %9040 = vadd.xlane.f32.xlu0 %v9039
        %v9041 = vpop.xlane.xlu0 %9040
        %v9042 = vsel %vm1071, %v8990, 0.0
        %9043 = vadd.xlane.f32.xlu0 %v9042
        %v9044 = vpop.xlane.xlu0 %9043
        %v9045 = vsel %vm1071, %v8991, 0.0
        %9046 = vadd.xlane.f32.xlu0 %v9045
        %v9047 = vpop.xlane.xlu0 %9046
        %v9048 = vsel %vm1071, %v8992, 0.0
        %9049 = vadd.xlane.f32.xlu0 %v9048
        %v9050 = vpop.xlane.xlu0 %9049
        %v9051 = vsel %vm1071, %v8993, 0.0
        %9052 = vadd.xlane.f32.xlu0 %v9051
        %v9053 = vpop.xlane.xlu0 %9052
        %v9054 = vsel %vm1071, %v8994, 0.0
        %9055 = vadd.xlane.f32.xlu0 %v9054
        %v9056 = vpop.xlane.xlu0 %9055
        %v9057 = vsel %vm1071, %v8995, 0.0
        %9058 = vadd.xlane.f32.xlu0 %v9057
        %v9059 = vpop.xlane.xlu0 %9058
        %v9060 = vsel %vm1071, %v8996, 0.0
        %9061 = vadd.xlane.f32.xlu0 %v9060
        %v9062 = vpop.xlane.xlu0 %9061
        %v9063 = vsel %vm1071, %v8997, 0.0
        %9064 = vadd.xlane.f32.xlu0 %v9063
        %v9065 = vpop.xlane.xlu0 %9064
        %v9066 = vsel %vm1071, %v8998, 0.0
        %9067 = vadd.xlane.f32.xlu0 %v9066
        %v9068 = vpop.xlane.xlu0 %9067
        %v9069 = vsel %vm1071, %v8999, 0.0
        %9070 = vadd.xlane.f32.xlu0 %v9069
        %v9071 = vpop.xlane.xlu0 %9070
        %v9072 = vsel %vm1071, %v9000, 0.0
        %9073 = vadd.xlane.f32.xlu0 %v9072
        %v9074 = vpop.xlane.xlu0 %9073
        %v9075 = vsel %vm1071, %v9001, 0.0
        %9076 = vadd.xlane.f32.xlu0 %v9075
        %v9077 = vpop.xlane.xlu0 %9076
        %v9078 = vsel %vm1071, %v9002, 0.0
        %9079 = vadd.xlane.f32.xlu0 %v9078
        %v9080 = vpop.xlane.xlu0 %9079
        %v9081 = vsel %vm1071, %v9003, 0.0
        %9082 = vadd.xlane.f32.xlu0 %v9081
        %v9083 = vpop.xlane.xlu0 %9082
        %v9084 = vsel %vm1071, %v9004, 0.0
        %9085 = vadd.xlane.f32.xlu0 %v9084
        %v9086 = vpop.xlane.xlu0 %9085
        %v9087 = vsel %vm1071, %v9005, 0.0
        %9088 = vadd.xlane.f32.xlu0 %v9087
        %v9089 = vpop.xlane.xlu0 %9088
        %v9090 = vsel %vm1071, %v9006, 0.0
        %9091 = vadd.xlane.f32.xlu0 %v9090
        %v9092 = vpop.xlane.xlu0 %9091
        %v9093 = vsel %vm1071, %v9007, 0.0
        %9094 = vadd.xlane.f32.xlu0 %v9093
        %v9095 = vpop.xlane.xlu0 %9094
        %v9096 = vsel %vm1071, %v9008, 0.0
        %9097 = vadd.xlane.f32.xlu0 %v9096
        %v9098 = vpop.xlane.xlu0 %9097
        %v9099 = vsel %vm1071, %v9009, 0.0
        %9100 = vadd.xlane.f32.xlu0 %v9099
        %v9101 = vpop.xlane.xlu0 %9100
        %v9102 = vsel %vm1071, %v9010, 0.0
        %9103 = vadd.xlane.f32.xlu0 %v9102
        %v9104 = vpop.xlane.xlu0 %9103
        %v9105 = vsel %vm1071, %v9011, 0.0
        %9106 = vadd.xlane.f32.xlu0 %v9105
        %v9107 = vpop.xlane.xlu0 %9106
        %v9108 = vld [vmem:[#allocation2] sm:$0x1]
        %v9110 = vperm.slane %v9108, 0
        %v9112 = vadd.f32 %v9014, %v9110
        %v9113 = vadd.f32 %v9017, %v9110
        %v9114 = vadd.f32 %v9020, %v9110
        %v9115 = vadd.f32 %v9023, %v9110
        %v9116 = vadd.f32 %v9026, %v9110
        %v9117 = vadd.f32 %v9029, %v9110
        %v9118 = vadd.f32 %v9032, %v9110
        %v9119 = vadd.f32 %v9035, %v9110
        %v9120 = vadd.f32 %v9038, %v9110
        %v9121 = vadd.f32 %v9041, %v9110
        %v9122 = vadd.f32 %v9044, %v9110
        %v9123 = vadd.f32 %v9047, %v9110
        %v9124 = vadd.f32 %v9050, %v9110
        %v9125 = vadd.f32 %v9053, %v9110
        %v9126 = vadd.f32 %v9056, %v9110
        %v9127 = vadd.f32 %v9059, %v9110
        %v9128 = vadd.f32 %v9062, %v9110
        %v9129 = vadd.f32 %v9065, %v9110
        %v9130 = vadd.f32 %v9068, %v9110
        %v9131 = vadd.f32 %v9071, %v9110
        %v9132 = vadd.f32 %v9074, %v9110
        %v9133 = vadd.f32 %v9077, %v9110
        %v9134 = vadd.f32 %v9080, %v9110
        %v9135 = vadd.f32 %v9083, %v9110
        %v9136 = vadd.f32 %v9086, %v9110
        %v9137 = vadd.f32 %v9089, %v9110
        %v9138 = vadd.f32 %v9092, %v9110
        %v9139 = vadd.f32 %v9095, %v9110
        %v9140 = vadd.f32 %v9098, %v9110
        %v9141 = vadd.f32 %v9101, %v9110
        %v9142 = vadd.f32 %v9104, %v9110
        %v9143 = vadd.f32 %v9107, %v9110
        %v9144 = vand.u32 2147483647, %v9112
        %v9145 = vand.u32 2147483647, %v9113
        %v9146 = vand.u32 2147483647, %v9114
        %v9147 = vand.u32 2147483647, %v9115
        %v9148 = vand.u32 2147483647, %v9116
        %v9149 = vand.u32 2147483647, %v9117
        %v9150 = vand.u32 2147483647, %v9118
        %v9151 = vand.u32 2147483647, %v9119
        %v9152 = vand.u32 2147483647, %v9120
        %v9153 = vand.u32 2147483647, %v9121
        %v9154 = vand.u32 2147483647, %v9122
        %v9155 = vand.u32 2147483647, %v9123
        %v9156 = vand.u32 2147483647, %v9124
        %v9157 = vand.u32 2147483647, %v9125
        %v9158 = vand.u32 2147483647, %v9126
        %v9159 = vand.u32 2147483647, %v9127
        %v9160 = vand.u32 2147483647, %v9128
        %v9161 = vand.u32 2147483647, %v9129
        %v9162 = vand.u32 2147483647, %v9130
        %v9163 = vand.u32 2147483647, %v9131
        %v9164 = vand.u32 2147483647, %v9132
        %v9165 = vand.u32 2147483647, %v9133
        %v9166 = vand.u32 2147483647, %v9134
        %v9167 = vand.u32 2147483647, %v9135
        %v9168 = vand.u32 2147483647, %v9136
        %v9169 = vand.u32 2147483647, %v9137
        %v9170 = vand.u32 2147483647, %v9138
        %v9171 = vand.u32 2147483647, %v9139
        %v9172 = vand.u32 2147483647, %v9140
        %v9173 = vand.u32 2147483647, %v9141
        %v9174 = vand.u32 2147483647, %v9142
        %v9175 = vand.u32 2147483647, %v9143
        %v9176 = vsub.f32 0.0, %v9144
        %v9177 = vsub.f32 0.0, %v9145
        %v9178 = vsub.f32 0.0, %v9146
        %v9179 = vsub.f32 0.0, %v9147
        %v9180 = vsub.f32 0.0, %v9148
        %v9181 = vsub.f32 0.0, %v9149
        %v9182 = vsub.f32 0.0, %v9150
        %v9183 = vsub.f32 0.0, %v9151
        %v9184 = vsub.f32 0.0, %v9152
        %v9185 = vsub.f32 0.0, %v9153
        %v9186 = vsub.f32 0.0, %v9154
        %v9187 = vsub.f32 0.0, %v9155
        %v9188 = vsub.f32 0.0, %v9156
        %v9189 = vsub.f32 0.0, %v9157
        %v9190 = vsub.f32 0.0, %v9158
        %v9191 = vsub.f32 0.0, %v9159
        %v9192 = vsub.f32 0.0, %v9160
        %v9193 = vsub.f32 0.0, %v9161
        %v9194 = vsub.f32 0.0, %v9162
        %v9195 = vsub.f32 0.0, %v9163
        %v9196 = vsub.f32 0.0, %v9164
        %v9197 = vsub.f32 0.0, %v9165
        %v9198 = vsub.f32 0.0, %v9166
        %v9199 = vsub.f32 0.0, %v9167
        %v9200 = vsub.f32 0.0, %v9168
        %v9201 = vsub.f32 0.0, %v9169
        %v9202 = vsub.f32 0.0, %v9170
        %v9203 = vsub.f32 0.0, %v9171
        %v9204 = vsub.f32 0.0, %v9172
        %v9205 = vsub.f32 0.0, %v9173
        %v9206 = vsub.f32 0.0, %v9174
        %v9207 = vsub.f32 0.0, %v9175
        %v9208 = vmul.f32 %v9176, 1.442695
        %v9209 = vpow.pop %v9208
        %v9210 = vmul.f32 %v9177, 1.442695
        %v9211 = vpow.pop %v9210
        %v9212 = vmul.f32 %v9178, 1.442695
        %v9213 = vpow.pop %v9212
        %v9214 = vmul.f32 %v9179, 1.442695
        %v9215 = vpow.pop %v9214
        %v9216 = vmul.f32 %v9180, 1.442695
        %v9217 = vpow.pop %v9216
        %v9218 = vmul.f32 %v9181, 1.442695
        %v9219 = vpow.pop %v9218
        %v9220 = vmul.f32 %v9182, 1.442695
        %v9221 = vpow.pop %v9220
        %v9222 = vmul.f32 %v9183, 1.442695
        %v9223 = vpow.pop %v9222
        %v9224 = vmul.f32 %v9184, 1.442695
        %v9225 = vpow.pop %v9224
        %v9226 = vmul.f32 %v9185, 1.442695
        %v9227 = vpow.pop %v9226
        %v9228 = vmul.f32 %v9186, 1.442695
        %v9229 = vpow.pop %v9228
        %v9230 = vmul.f32 %v9187, 1.442695
        %v9231 = vpow.pop %v9230
        %v9232 = vmul.f32 %v9188, 1.442695
        %v9233 = vpow.pop %v9232
        %v9234 = vmul.f32 %v9189, 1.442695
        %v9235 = vpow.pop %v9234
        %v9236 = vmul.f32 %v9190, 1.442695
        %v9237 = vpow.pop %v9236
        %v9238 = vmul.f32 %v9191, 1.442695
        %v9239 = vpow.pop %v9238
        %v9240 = vmul.f32 %v9192, 1.442695
        %v9241 = vpow.pop %v9240
        %v9242 = vmul.f32 %v9193, 1.442695
        %v9243 = vpow.pop %v9242
        %v9244 = vmul.f32 %v9194, 1.442695
        %v9245 = vpow.pop %v9244
        %v9246 = vmul.f32 %v9195, 1.442695
        %v9247 = vpow.pop %v9246
        %v9248 = vmul.f32 %v9196, 1.442695
        %v9249 = vpow.pop %v9248
        %v9250 = vmul.f32 %v9197, 1.442695
        %v9251 = vpow.pop %v9250
        %v9252 = vmul.f32 %v9198, 1.442695
        %v9253 = vpow.pop %v9252
        %v9254 = vmul.f32 %v9199, 1.442695
        %v9255 = vpow.pop %v9254
        %v9256 = vmul.f32 %v9200, 1.442695
        %v9257 = vpow.pop %v9256
        %v9258 = vmul.f32 %v9201, 1.442695
        %v9259 = vpow.pop %v9258
        %v9260 = vmul.f32 %v9202, 1.442695
        %v9261 = vpow.pop %v9260
        %v9262 = vmul.f32 %v9203, 1.442695
        %v9263 = vpow.pop %v9262
        %v9264 = vmul.f32 %v9204, 1.442695
        %v9265 = vpow.pop %v9264
        %v9266 = vmul.f32 %v9205, 1.442695
        %v9267 = vpow.pop %v9266
        %v9268 = vmul.f32 %v9206, 1.442695
        %v9269 = vpow.pop %v9268
        %v9270 = vmul.f32 %v9207, 1.442695
        %v9271 = vpow.pop %v9270
        %v9272 = vadd.f32 %v9209, 1.0
        %v9273 = vadd.f32 %v9211, 1.0
        %v9274 = vadd.f32 %v9213, 1.0
        %v9275 = vadd.f32 %v9215, 1.0
        %v9276 = vadd.f32 %v9217, 1.0
        %v9277 = vadd.f32 %v9219, 1.0
        %v9278 = vadd.f32 %v9221, 1.0
        %v9279 = vadd.f32 %v9223, 1.0
        %v9280 = vadd.f32 %v9225, 1.0
        %v9281 = vadd.f32 %v9227, 1.0
        %v9282 = vadd.f32 %v9229, 1.0
        %v9283 = vadd.f32 %v9231, 1.0
        %v9284 = vadd.f32 %v9233, 1.0
        %v9285 = vadd.f32 %v9235, 1.0
        %v9286 = vadd.f32 %v9237, 1.0
        %v9287 = vadd.f32 %v9239, 1.0
        %v9288 = vadd.f32 %v9241, 1.0
        %v9289 = vadd.f32 %v9243, 1.0
        %v9290 = vadd.f32 %v9245, 1.0
        %v9291 = vadd.f32 %v9247, 1.0
        %v9292 = vadd.f32 %v9249, 1.0
        %v9293 = vadd.f32 %v9251, 1.0
        %v9294 = vadd.f32 %v9253, 1.0
        %v9295 = vadd.f32 %v9255, 1.0
        %v9296 = vadd.f32 %v9257, 1.0
        %v9297 = vadd.f32 %v9259, 1.0
        %v9298 = vadd.f32 %v9261, 1.0
        %v9299 = vadd.f32 %v9263, 1.0
        %v9300 = vadd.f32 %v9265, 1.0
        %v9301 = vadd.f32 %v9267, 1.0
        %v9302 = vadd.f32 %v9269, 1.0
        %v9303 = vadd.f32 %v9271, 1.0
        %v9304 = vrcp.pop %v9272
        %v9305 = vrcp.pop %v9273
        %v9306 = vrcp.pop %v9274
        %v9307 = vrcp.pop %v9275
        %v9308 = vrcp.pop %v9276
        %v9309 = vrcp.pop %v9277
        %v9310 = vrcp.pop %v9278
        %v9311 = vrcp.pop %v9279
        %v9312 = vrcp.pop %v9280
        %v9313 = vrcp.pop %v9281
        %v9314 = vrcp.pop %v9282
        %v9315 = vrcp.pop %v9283
        %v9316 = vrcp.pop %v9284
        %v9317 = vrcp.pop %v9285
        %v9318 = vrcp.pop %v9286
        %v9319 = vrcp.pop %v9287
        %v9320 = vrcp.pop %v9288
        %v9321 = vrcp.pop %v9289
        %v9322 = vrcp.pop %v9290
        %v9323 = vrcp.pop %v9291
        %v9324 = vrcp.pop %v9292
        %v9325 = vrcp.pop %v9293
        %v9326 = vrcp.pop %v9294
        %v9327 = vrcp.pop %v9295
        %v9328 = vrcp.pop %v9296
        %v9329 = vrcp.pop %v9297
        %v9330 = vrcp.pop %v9298
        %v9331 = vrcp.pop %v9299
        %v9332 = vrcp.pop %v9300
        %v9333 = vrcp.pop %v9301
        %v9334 = vrcp.pop %v9302
        %v9335 = vrcp.pop %v9303
        %vm9336 = vcmp.ge.f32.partialorder %v9112, 0.0
        %vm9337 = vcmp.ge.f32.partialorder %v9113, 0.0
        %vm9338 = vcmp.ge.f32.partialorder %v9114, 0.0
        %vm9339 = vcmp.ge.f32.partialorder %v9115, 0.0
        %vm9340 = vcmp.ge.f32.partialorder %v9116, 0.0
        %vm9341 = vcmp.ge.f32.partialorder %v9117, 0.0
        %vm9342 = vcmp.ge.f32.partialorder %v9118, 0.0
        %vm9343 = vcmp.ge.f32.partialorder %v9119, 0.0
        %vm9344 = vcmp.ge.f32.partialorder %v9120, 0.0
        %vm9345 = vcmp.ge.f32.partialorder %v9121, 0.0
        %vm9346 = vcmp.ge.f32.partialorder %v9122, 0.0
        %vm9347 = vcmp.ge.f32.partialorder %v9123, 0.0
        %vm9348 = vcmp.ge.f32.partialorder %v9124, 0.0
        %vm9349 = vcmp.ge.f32.partialorder %v9125, 0.0
        %vm9350 = vcmp.ge.f32.partialorder %v9126, 0.0
        %vm9351 = vcmp.ge.f32.partialorder %v9127, 0.0
        %vm9352 = vcmp.ge.f32.partialorder %v9128, 0.0
        %vm9353 = vcmp.ge.f32.partialorder %v9129, 0.0
        %vm9354 = vcmp.ge.f32.partialorder %v9130, 0.0
        %vm9355 = vcmp.ge.f32.partialorder %v9131, 0.0
        %vm9356 = vcmp.ge.f32.partialorder %v9132, 0.0
        %vm9357 = vcmp.ge.f32.partialorder %v9133, 0.0
        %vm9358 = vcmp.ge.f32.partialorder %v9134, 0.0
        %vm9359 = vcmp.ge.f32.partialorder %v9135, 0.0
        %vm9360 = vcmp.ge.f32.partialorder %v9136, 0.0
        %vm9361 = vcmp.ge.f32.partialorder %v9137, 0.0
        %vm9362 = vcmp.ge.f32.partialorder %v9138, 0.0
        %vm9363 = vcmp.ge.f32.partialorder %v9139, 0.0
        %vm9364 = vcmp.ge.f32.partialorder %v9140, 0.0
        %vm9365 = vcmp.ge.f32.partialorder %v9141, 0.0
        %vm9366 = vcmp.ge.f32.partialorder %v9142, 0.0
        %vm9367 = vcmp.ge.f32.partialorder %v9143, 0.0
        %v9368 = vmul.f32 %v9209, %v9304
        %v9369 = vmul.f32 %v9211, %v9305
        %v9370 = vmul.f32 %v9213, %v9306
        %v9371 = vmul.f32 %v9215, %v9307
        %v9372 = vmul.f32 %v9217, %v9308
        %v9373 = vmul.f32 %v9219, %v9309
        %v9374 = vmul.f32 %v9221, %v9310
        %v9375 = vmul.f32 %v9223, %v9311
        %v9376 = vmul.f32 %v9225, %v9312
        %v9377 = vmul.f32 %v9227, %v9313
        %v9378 = vmul.f32 %v9229, %v9314
        %v9379 = vmul.f32 %v9231, %v9315
        %v9380 = vmul.f32 %v9233, %v9316
        %v9381 = vmul.f32 %v9235, %v9317
        %v9382 = vmul.f32 %v9237, %v9318
        %v9383 = vmul.f32 %v9239, %v9319
        %v9384 = vmul.f32 %v9241, %v9320
        %v9385 = vmul.f32 %v9243, %v9321
        %v9386 = vmul.f32 %v9245, %v9322
        %v9387 = vmul.f32 %v9247, %v9323
        %v9388 = vmul.f32 %v9249, %v9324
        %v9389 = vmul.f32 %v9251, %v9325
        %v9390 = vmul.f32 %v9253, %v9326
        %v9391 = vmul.f32 %v9255, %v9327
        %v9392 = vmul.f32 %v9257, %v9328
        %v9393 = vmul.f32 %v9259, %v9329
        %v9394 = vmul.f32 %v9261, %v9330
        %v9395 = vmul.f32 %v9263, %v9331
        %v9396 = vmul.f32 %v9265, %v9332
        %v9397 = vmul.f32 %v9267, %v9333
        %v9398 = vmul.f32 %v9269, %v9334
        %v9399 = vmul.f32 %v9271, %v9335
        %v9400 = vsel %vm9336, %v9304, %v9368
        %v9401 = vsel %vm9337, %v9305, %v9369
        %v9402 = vsel %vm9338, %v9306, %v9370
        %v9403 = vsel %vm9339, %v9307, %v9371
        %v9404 = vsel %vm9340, %v9308, %v9372
        %v9405 = vsel %vm9341, %v9309, %v9373
        %v9406 = vsel %vm9342, %v9310, %v9374
        %v9407 = vsel %vm9343, %v9311, %v9375
        %v9408 = vsel %vm9344, %v9312, %v9376
        %v9409 = vsel %vm9345, %v9313, %v9377
        %v9410 = vsel %vm9346, %v9314, %v9378
        %v9411 = vsel %vm9347, %v9315, %v9379
        %v9412 = vsel %vm9348, %v9316, %v9380
        %v9413 = vsel %vm9349, %v9317, %v9381
        %v9414 = vsel %vm9350, %v9318, %v9382
        %v9415 = vsel %vm9351, %v9319, %v9383
        %v9416 = vsel %vm9352, %v9320, %v9384
        %v9417 = vsel %vm9353, %v9321, %v9385
        %v9418 = vsel %vm9354, %v9322, %v9386
        %v9419 = vsel %vm9355, %v9323, %v9387
        %v9420 = vsel %vm9356, %v9324, %v9388
        %v9421 = vsel %vm9357, %v9325, %v9389
        %v9422 = vsel %vm9358, %v9326, %v9390
        %v9423 = vsel %vm9359, %v9327, %v9391
        %v9424 = vsel %vm9360, %v9328, %v9392
        %v9425 = vsel %vm9361, %v9329, %v9393
        %v9426 = vsel %vm9362, %v9330, %v9394
        %v9427 = vsel %vm9363, %v9331, %v9395
        %v9428 = vsel %vm9364, %v9332, %v9396
        %v9429 = vsel %vm9365, %v9333, %v9397
        %v9430 = vsel %vm9366, %v9334, %v9398
        %v9431 = vsel %vm9367, %v9335, %v9399
        %vm9432 = vcmask 7168
        %9433 = vst.msk [vmem:[%s569] sm:$0xff] %vm9432, %v9400
        %9434 = vst.msk [vmem:[%s569 + $0x8] sm:$0xff] %vm9432, %v9401
        %9435 = vst.msk [vmem:[%s569 + $0x10] sm:$0xff] %vm9432, %v9402
        %9436 = vst.msk [vmem:[%s569 + $0x18] sm:$0xff] %vm9432, %v9403
        %9437 = vst.msk [vmem:[%s569 + $0x20] sm:$0xff] %vm9432, %v9404
        %9438 = vst.msk [vmem:[%s569 + $0x28] sm:$0xff] %vm9432, %v9405
        %9439 = vst.msk [vmem:[%s569 + $0x30] sm:$0xff] %vm9432, %v9406
        %9440 = vst.msk [vmem:[%s569 + $0x38] sm:$0xff] %vm9432, %v9407
        %9441 = vst.msk [vmem:[%s569 + $0x40] sm:$0xff] %vm9432, %v9408
        %9442 = vst.msk [vmem:[%s569 + $0x48] sm:$0xff] %vm9432, %v9409
        %9443 = vst.msk [vmem:[%s569 + $0x50] sm:$0xff] %vm9432, %v9410
        %9444 = vst.msk [vmem:[%s569 + $0x58] sm:$0xff] %vm9432, %v9411
        %9445 = vst.msk [vmem:[%s569 + $0x60] sm:$0xff] %vm9432, %v9412
        %9446 = vst.msk [vmem:[%s569 + $0x68] sm:$0xff] %vm9432, %v9413
        %9447 = vst.msk [vmem:[%s569 + $0x70] sm:$0xff] %vm9432, %v9414
        %9448 = vst.msk [vmem:[%s569 + $0x78] sm:$0xff] %vm9432, %v9415
        %9449 = vst.msk [vmem:[%s569 + $0x80] sm:$0xff] %vm9432, %v9416
        %9450 = vst.msk [vmem:[%s569 + $0x88] sm:$0xff] %vm9432, %v9417
        %9451 = vst.msk [vmem:[%s569 + $0x90] sm:$0xff] %vm9432, %v9418
        %9452 = vst.msk [vmem:[%s569 + $0x98] sm:$0xff] %vm9432, %v9419
        %9453 = vst.msk [vmem:[%s569 + $0xa0] sm:$0xff] %vm9432, %v9420
        %9454 = vst.msk [vmem:[%s569 + $0xa8] sm:$0xff] %vm9432, %v9421
        %9455 = vst.msk [vmem:[%s569 + $0xb0] sm:$0xff] %vm9432, %v9422
        %9456 = vst.msk [vmem:[%s569 + $0xb8] sm:$0xff] %vm9432, %v9423
        %9457 = vst.msk [vmem:[%s569 + $0xc0] sm:$0xff] %vm9432, %v9424
        %9458 = vst.msk [vmem:[%s569 + $0xc8] sm:$0xff] %vm9432, %v9425
        %9459 = vst.msk [vmem:[%s569 + $0xd0] sm:$0xff] %vm9432, %v9426
        %9460 = vst.msk [vmem:[%s569 + $0xd8] sm:$0xff] %vm9432, %v9427
        %9461 = vst.msk [vmem:[%s569 + $0xe0] sm:$0xff] %vm9432, %v9428
        %9462 = vst.msk [vmem:[%s569 + $0xe8] sm:$0xff] %vm9432, %v9429
        %9463 = vst.msk [vmem:[%s569 + $0xf0] sm:$0xff] %vm9432, %v9430
        %9464 = vst.msk [vmem:[%s569 + $0xf8] sm:$0xff] %vm9432, %v9431
        %s9465 = smul.u32 32, %s31
        %p9466 = scmp.lt.s32.totalorder %s9465, 63
        %s9467 = scalar_select %p9466, %s9465, 63
        %s9468 = smul.addr %s9467, 8
        %s9469 = scalar_lea.vmem %s17, %s9468
        // Predicated region
        $region93: #{tpu_custom_call.1} parent=87 // pred_check
          %p9470 = pneg %p411
        $region94: #{tpu_custom_call.1} parent=87 // pred_check_branch
          %9472 = sbr.rel (%p9470) target = $region96
        $region95: #{tpu_custom_call.1} parent=87 // pred_region
          %s9473 = smul.u32 32, %s31
        $region96: #{tpu_custom_call.1} parent=87 // pred_fallthru
          _
      $region88: #{tpu_custom_call.1} parent=5 // pred_fallthru
        _
      %p9474 = scmp.le.s32.totalorder 2, %s26
      // Predicated region
      $region97: #{tpu_custom_call.1} parent=5 // pred_check
        %p9475 = pneg %p9474
      $region98: #{tpu_custom_call.1} parent=5 // pred_check_branch
        %9477 = sbr.rel (%p9475) target = $region100
      $region99: #{tpu_custom_call.1} parent=5 // pred_region
        %s9478 = ssub.s32 %s26, 2
        // Predicated region
        $region101: #{tpu_custom_call.1} parent=99 // pred_check
          %p9479 = pneg %p417
        $region102: #{tpu_custom_call.1} parent=99 // pred_check_branch
          %9481 = sbr.rel (%p9479) target = $region104
        $region103: #{tpu_custom_call.1} parent=99 // pred_region
          %s9482 = smul.u32 32, %s32
          %p9483 = scmp.lt.s32.totalorder %s9482, 63
          %s9484 = scalar_select %p9483, %s9482, 63
          %s9485 = smul.addr %s9484, 8
          %s9486 = scalar_lea.vmem %s17, %s9485
        $region104: #{tpu_custom_call.1} parent=99 // pred_fallthru
          _
      $region100: #{tpu_custom_call.1} parent=5 // pred_fallthru
        _
    $region6: #{tpu_custom_call.1} parent=1 // loop_footer
      %s30 = sadd.s32 1, %s26
    $region7: #{tpu_custom_call.1} parent=1 // loop_footer_branch
      %25 = sbr.rel target = $region3
    $region8: #{tpu_custom_call.1} parent=1 // loop_exit
      _
    %9487 = vsyncpa [#allocation4], 1
    %s9488 = scalar_lea.sflag [#allocation4], 1
    %9489 = vsyncpa %s9488, 1

</llo_original>
